<compile_context>
chip_gen: v5e
topology: v5e:2x2
jax: 0.10.0
libtpu: 0.0.40
codegen_flags: <defaults>
</compile_context>

<pallas_src>
import functools

import jax
import jax.numpy as jnp
import numpy as np
from jax.experimental import pallas as pl
from jax.experimental.pallas import tpu as pltpu


def _round_up(x, m):
    return ((x + m - 1) // m) * m


# ----------------------------- Pallas kernels ---------------------------------

def _fc_stats_kernel(x_ref, w_ref, o_ref, s_ref, q_ref):
    """Stem matmul (1x1 -> 4x4 ConvTranspose) + per-column sum / sum-of-squares."""
    y = jnp.dot(x_ref[...].astype(jnp.bfloat16), w_ref[...],
                preferred_element_type=jnp.float32)
    o_ref[...] = y
    s_ref[...] = jnp.sum(y, axis=0, keepdims=True)
    q_ref[...] = jnp.sum(y * y, axis=0, keepdims=True)


def pallas_fc_stats(x, w_bf16):
    m, k = x.shape
    n = w_bf16.shape[1]
    return pl.pallas_call(
        _fc_stats_kernel,
        out_shape=(jax.ShapeDtypeStruct((m, n), jnp.float32),
                   jax.ShapeDtypeStruct((1, n), jnp.float32),
                   jax.ShapeDtypeStruct((1, n), jnp.float32)),
        grid=(1,),
        in_specs=[pl.BlockSpec((m, k), lambda i: (0, 0)),
                  pl.BlockSpec((k, n), lambda i: (0, 0))],
        out_specs=(pl.BlockSpec((m, n), lambda i: (0, 0)),
                   pl.BlockSpec((1, n), lambda i: (0, 0)),
                   pl.BlockSpec((1, n), lambda i: (0, 0))),
    )(x, w_bf16)


def _convt_kernel(x_ref, w_ref, o_ref, *, wp, p_out, act):
    """Fused im2col + matmul: four accumulated K=Cin dots on shifted flat views."""
    x = x_ref[...]                                         # (P_in, Cin) f32
    acc = None
    for t in range(2):
        for s in range(2):
            off = t * wp + s
            xt = x[off:off + p_out, :].astype(jnp.bfloat16)
            d = jnp.dot(xt, w_ref[t * 2 + s],
                        preferred_element_type=jnp.float32)
            acc = d if acc is None else acc + d
    if act == "tanh":
        acc = jnp.tanh(acc)
    o_ref[...] = acc


def _convt_stats_kernel(x_ref, w_ref, m_ref, o_ref, s_ref, q_ref, *, wp, p_out):
    """Same as _convt_kernel, plus masked per-column BN sum / sum-of-squares."""
    x = x_ref[...]
    acc = None
    for t in range(2):
        for s in range(2):
            off = t * wp + s
            xt = x[off:off + p_out, :].astype(jnp.bfloat16)
            d = jnp.dot(xt, w_ref[t * 2 + s],
                        preferred_element_type=jnp.float32)
            acc = d if acc is None else acc + d
    o_ref[...] = acc
    m = m_ref[...]                                         # parity-validity mask
    s_ref[...] = jnp.sum(acc * m, axis=0, keepdims=True)
    q_ref[...] = jnp.sum(acc * acc * m, axis=0, keepdims=True)


def pallas_convt_s2(xflat, w4, h, w, *, mask_cols=None, act=None):
    """Stride-2 / k=4 / p=1 ConvTranspose2d as a phase-decomposed matmul.

    xflat : (N, P_in, Cin) f32 -- 1-padded activation (+1 extra zero row)
            flattened over (rows, cols); P_in = (h+3)*(w+2).
    w4    : (4, Cin, Npad) bf16 -- 2x2-tap phase weights, Npad multiple of 128.
    Returns res (N, P_out, Npad) in output-parity layout, P_out = (h+1)*(w+2);
    if mask_cols is given, also per-image masked column (sum, sumsq).
    """
    n, p_in, cin = xflat.shape
    npad = w4.shape[2]
    wp = w + 2
    p_out = (h + 1) * wp
    params = pltpu.CompilerParams(dimension_semantics=("parallel",))
    if mask_cols is None:
        kern = functools.partial(_convt_kernel, wp=wp, p_out=p_out, act=act)
        return pl.pallas_call(
            kern,
            out_shape=jax.ShapeDtypeStruct((n, p_out, npad), jnp.float32),
            grid=(n,),
            in_specs=[pl.BlockSpec((None, p_in, cin), lambda b: (b, 0, 0)),
                      pl.BlockSpec((4, cin, npad), lambda b: (0, 0, 0))],
            out_specs=pl.BlockSpec((None, p_out, npad), lambda b: (b, 0, 0)),
            compiler_params=params,
        )(xflat, w4)
    kern = functools.partial(_convt_stats_kernel, wp=wp, p_out=p_out)
    return pl.pallas_call(
        kern,
        out_shape=(jax.ShapeDtypeStruct((n, p_out, npad), jnp.float32),
                   jax.ShapeDtypeStruct((n, 1, npad), jnp.float32),
                   jax.ShapeDtypeStruct((n, 1, npad), jnp.float32)),
        grid=(n,),
        in_specs=[pl.BlockSpec((None, p_in, cin), lambda b: (b, 0, 0)),
                  pl.BlockSpec((4, cin, npad), lambda b: (0, 0, 0)),
                  pl.BlockSpec((p_out, npad), lambda b: (0, 0))],
        out_specs=(pl.BlockSpec((None, p_out, npad), lambda b: (b, 0, 0)),
                   pl.BlockSpec((None, 1, npad), lambda b: (b, 0, 0)),
                   pl.BlockSpec((None, 1, npad), lambda b: (b, 0, 0))),
        compiler_params=params,
    )(xflat, w4, mask_cols)


def _affine_relu_kernel(x_ref, sc_ref, sh_ref, o_ref):
    o_ref[...] = jnp.maximum(x_ref[...] * sc_ref[...] + sh_ref[...], 0.0)


def pallas_affine_relu(x3, scale_cols, shift_cols):
    """Column-broadcast BN affine + ReLU on (B, R, C); C is a 128 multiple."""
    b, r, c = x3.shape
    return pl.pallas_call(
        _affine_relu_kernel,
        out_shape=jax.ShapeDtypeStruct((b, r, c), jnp.float32),
        grid=(b,),
        in_specs=[pl.BlockSpec((None, r, c), lambda i: (i, 0, 0)),
                  pl.BlockSpec((1, c), lambda i: (0, 0)),
                  pl.BlockSpec((1, c), lambda i: (0, 0))],
        out_specs=pl.BlockSpec((None, r, c), lambda i: (i, 0, 0)),
        compiler_params=pltpu.CompilerParams(
            dimension_semantics=("parallel",)),
    )(x3, scale_cols.reshape(1, c), shift_cols.reshape(1, c))


# ------------------------ weight / mask preparation ---------------------------

def _convt_s2_weight(w, npad):
    """(Cin, Cout, 4, 4) -> (4, Cin, Npad) bf16 phase-decomposed weight.

    tap index = t*2 + s          (2x2 offsets within the 1-padded input window)
    column    = (py*2+px)*Cout+co (output-pixel parity and channel)
    value     = W[ci, co, 3 - py - 2t, 3 - px - 2s]
    """
    cin, cout = w.shape[0], w.shape[1]
    w_rev = w[:, :, ::-1, ::-1]                     # [ci, co, 2t+py, 2s+px]
    w6 = w_rev.reshape(cin, cout, 2, 2, 2, 2)       # [ci, co, t, py, s, px]
    w6 = jnp.transpose(w6, (2, 4, 0, 3, 5, 1))      # [t, s, ci, py, px, co]
    wm = w6.reshape(4, cin, 4 * cout)
    if npad > 4 * cout:
        wm = jnp.pad(wm, ((0, 0), (0, 0), (0, npad - 4 * cout)))
    return wm.astype(jnp.bfloat16)


def _parity_mask(h, w, cout, npad):
    """(P_out, Npad) 0/1 mask selecting, per parity column group, the grid
    positions that survive the de-interleave (keeps BN stats unbiased)."""
    ho, wp = h + 1, w + 2
    m = np.zeros((ho, wp, 4, cout), np.float32)
    for py in range(2):
        for px in range(2):
            m[py:py + h, px:px + w, py * 2 + px, :] = 1.0
    m = m.reshape(ho * wp, 4 * cout)
    if npad > 4 * cout:
        m = np.pad(m, ((0, 0), (0, npad - 4 * cout)))
    return jnp.asarray(m)


# ------------------------------- XLA glue --------------------------------------
# TODO(synk): the parity de-interleave + 1-pixel zero-pad between layers are
# pure data movement and remain XLA glue (one fused gather/pad per layer).

def _deinterleave(res, n, h, w, cout, npad):
    ho, wo, wp = h + 1, w + 1, w + 2
    r = res.reshape(n, ho, wp, npad)[:, :, :wo, :4 * cout]
    r = r.reshape(n, ho, wo, 2, 2, cout)
    y00 = r[:, 0:h,     0:w,     0, 0, :]
    y01 = r[:, 0:h,     1:w + 1, 0, 1, :]
    y10 = r[:, 1:h + 1, 0:w,     1, 0, :]
    y11 = r[:, 1:h + 1, 1:w + 1, 1, 1, :]
    row0 = jnp.stack([y00, y01], axis=3).reshape(n, h, 2 * w, cout)
    row1 = jnp.stack([y10, y11], axis=3).reshape(n, h, 2 * w, cout)
    return jnp.stack([row0, row1], axis=2).reshape(n, 2 * h, 2 * w, cout)


def _bn_scale_shift(ch_sum, ch_sq, count, gamma, beta, eps):
    mean = ch_sum / count
    var = ch_sq / count - mean * mean               # biased (PyTorch training)
    scale = gamma * jax.lax.rsqrt(var + eps)
    shift = beta - mean * scale
    return scale, shift


# -------------------------------- forward --------------------------------------

def generator_forward(params, inp_nchw, noise_nchw):
    """Matches Generator.forward (training-mode BatchNorm) exactly."""
    eps = 1e-5
    weights = params["weights"]
    bns = params["bn"]
    n_layers = len(weights)

    a = jnp.concatenate([inp_nchw, noise_nchw], axis=1)     # (N, 2*nz, 1, 1)
    nb = a.shape[0]
    x = a.reshape(nb, -1)                                    # (N, 2*nz)

    # ---- Layer 0: ConvTranspose2d(2nz, ngf*8, 4, 1, 0) == a plain matmul. ----
    w0, s0, p0 = weights[0]
    assert s0 == 1 and p0 == 0 and w0.shape[2] == 4
    cin0, c0 = w0.shape[0], w0.shape[1]
    w0m = jnp.transpose(w0, (0, 2, 3, 1)).reshape(cin0, 16 * c0)
    y0, s_cols, q_cols = pallas_fc_stats(x, w0m.astype(jnp.bfloat16))
    gamma, beta = bns[0]
    scale, shift = _bn_scale_shift(s_cols.reshape(16, c0).sum(0),
                                   q_cols.reshape(16, c0).sum(0),
                                   nb * 16, gamma, beta, eps)
    y0a = pallas_affine_relu(y0.reshape(1, nb, 16 * c0),
                             jnp.tile(scale, 16), jnp.tile(shift, 16))
    act = y0a.reshape(nb, 4, 4, c0)                          # NHWC
    h = w_sp = 4

    # ---- Layers 1..4: ConvTranspose2d(Cin, Cout, 4, 2, 1), phase-decomposed. --
    for li in range(1, n_layers):
        wt, stride, pad = weights[li]
        assert stride == 2 and pad == 1 and wt.shape[2] == 4
        cin, cout = wt.shape[0], wt.shape[1]
        npad = _round_up(4 * cout, 128)
        w4 = _convt_s2_weight(wt, npad)                      # (4, Cin, Npad) bf16

        # 1-pixel zero pad (+1 extra zero row so the flat 2x2 taps never read
        # out of bounds), then flatten the spatial grid.
        xp = jnp.pad(act, ((0, 0), (1, 2), (1, 1), (0, 0)))
        xflat = xp.reshape(nb, (h + 3) * (w_sp + 2), cin)

        if li == n_layers - 1:
            res = pallas_convt_s2(xflat, w4, h, w_sp, act="tanh")
        else:
            mask = _parity_mask(h, w_sp, cout, npad)
            res, s_img, q_img = pallas_convt_s2(xflat, w4, h, w_sp,
                                                mask_cols=mask)
            gamma, beta = bns[li]
            ch_sum = s_img.sum(axis=(0, 1))[:4 * cout].reshape(4, cout).sum(0)
            ch_sq = q_img.sum(axis=(0, 1))[:4 * cout].reshape(4, cout).sum(0)
            scale, shift = _bn_scale_shift(ch_sum, ch_sq, nb * 4 * h * w_sp,
                                           gamma, beta, eps)
            sc_cols = jnp.pad(jnp.tile(scale, 4), (0, npad - 4 * cout))
            sh_cols = jnp.pad(jnp.tile(shift, 4), (0, npad - 4 * cout))
            res = pallas_affine_relu(res, sc_cols, sh_cols)

        act = _deinterleave(res, nb, h, w_sp, cout, npad)    # (N, 2H, 2W, Cout)
        h, w_sp = 2 * h, 2 * w_sp

    return jnp.transpose(act, (0, 3, 1, 2))                  # NHWC -> NCHW


# --------------------------- pure-JAX reference ---------------------------------

def ref_forward(params, inp_nchw, noise_nchw):
    eps = 1e-5
    x = jnp.concatenate([inp_nchw, noise_nchw], axis=1)
    x = jnp.transpose(x, (0, 2, 3, 1))
    n_layers = len(params["weights"])
    for li, (w_t, stride, pad) in enumerate(params["weights"]):
        k = w_t.shape[2]
        kern = jnp.flip(w_t, axis=(2, 3)).transpose(2, 3, 0, 1)  # HWIO
        x = jax.lax.conv_general_dilated(
            x, kern, window_strides=(1, 1),
            padding=[(k - 1 - pad, k - 1 - pad)] * 2,
            lhs_dilation=(stride, stride),
            dimension_numbers=("NHWC", "HWIO", "NHWC"))
        if li < n_layers - 1:
            gamma, beta = params["bn"][li]
            mean = jnp.mean(x, axis=(0, 1, 2))
            var = jnp.mean((x - mean) ** 2, axis=(0, 1, 2))
            x = (x - mean) * jax.lax.rsqrt(var + eps) * gamma + beta
            x = jnp.maximum(x, 0.0)
        else:
            x = jnp.tanh(x)
    return jnp.transpose(x, (0, 3, 1, 2))


# ----------------------------------- main ---------------------------------------

if __name__ == "__main__":
    config = {"text": {"hidden": 8},
              "generator": {"features": 8},
              "img": {"channels": 3}}
    nz = config["text"]["hidden"]
    ngf = config["generator"]["features"]
    nc = config["img"]["channels"]

    key = jax.random.PRNGKey(0)
    keys = jax.random.split(key, 8)

    # (Cin, Cout, stride, pad) for the 5 ConvTranspose2d layers, kernel 4x4.
    layer_dims = [(nz * 2, ngf * 8, 1, 0),
                  (ngf * 8, ngf * 4, 2, 1),
                  (ngf * 4, ngf * 2, 2, 1),
                  (ngf * 2, ngf, 2, 1),
                  (ngf, nc, 2, 1)]

    weights = []
    for i, (cin, cout, s, p) in enumerate(layer_dims):
        w = 0.05 * jax.random.normal(keys[i], (cin, cout, 4, 4), jnp.float32)
        weights.append((w, s, p))
    bn = [(jnp.ones((cout,), jnp.float32), jnp.zeros((cout,), jnp.float32))
          for (_, cout, _, _) in layer_dims[:-1]]
    params = {"weights": weights, "bn": bn}

    batch = 2
    inp = jax.random.normal(keys[5], (batch, nz, 1, 1), jnp.float32)
    noise = jax.random.normal(keys[6], (batch, nz, 1, 1), jnp.float32)

    fwd = jax.jit(lambda a, b: generator_forward(params, a, b))
    out = jax.block_until_ready(fwd(inp, noise))
    assert out.shape == (batch, nc, 64, 64), out.shape

    ref = jax.block_until_ready(ref_forward(params, inp, noise))
    np.testing.assert_allclose(np.asarray(out), np.asarray(ref),
                               atol=2e-2, rtol=2e-2)
    print("KERNEL_OK")
</pallas_src>

<mosaic_0001>
module attributes {stable_mosaic.version = 11 : i64} {
  func.func @_fc_stats_kernel(%arg0: i32, %arg1: memref<2x16xf32, #tpu.memory_space<vmem>>, %arg2: memref<16x1024xbf16, #tpu.memory_space<vmem>>, %arg3: memref<2x1024xf32, #tpu.memory_space<vmem>>, %arg4: memref<1x1024xf32, #tpu.memory_space<vmem>>, %arg5: memref<1x1024xf32, #tpu.memory_space<vmem>>) attributes {dimension_semantics = [#tpu.dimension_semantics<arbitrary>], iteration_bounds = array<i64: 1>, scalar_prefetch = 0 : i64, scratch_operands = 0 : i64, tpu.core_type = #tpu.core_type<tc>, window_params = [{pipeline_mode = #tpu.pipeline_mode<synchronous>, transform_indices = @transform_0, window_bounds = array<i64: 2, 16>}, {pipeline_mode = #tpu.pipeline_mode<synchronous>, transform_indices = @transform_1, window_bounds = array<i64: 16, 1024>}, {pipeline_mode = #tpu.pipeline_mode<synchronous>, transform_indices = @transform_2, window_bounds = array<i64: 2, 1024>}, {pipeline_mode = #tpu.pipeline_mode<synchronous>, transform_indices = @transform_3, window_bounds = array<i64: 1, 1024>}, {pipeline_mode = #tpu.pipeline_mode<synchronous>, transform_indices = @transform_4, window_bounds = array<i64: 1, 1024>}]} {
    %c0 = arith.constant 0 : index
    %c0_0 = arith.constant 0 : index
    %0 = vector.load %arg1[%c0, %c0_0] : memref<2x16xf32, #tpu.memory_space<vmem>>, vector<2x16xf32>
    %1 = arith.truncf %0 : vector<2x16xf32> to vector<2x16xbf16>
    %c0_1 = arith.constant 0 : index
    %c0_2 = arith.constant 0 : index
    %2 = vector.load %arg2[%c0_1, %c0_2] : memref<16x1024xbf16, #tpu.memory_space<vmem>>, vector<16x1024xbf16>
    %cst = arith.constant dense<0.000000e+00> : vector<2x1024xf32>
    %3 = tpu.matmul %1, %2, %cst {dimension_numbers = #tpu.dot_dimension_numbers<[1], [0], [0], [1], [0, 0, 1, 1], [], []>} : vector<2x16xbf16>, vector<16x1024xbf16>, vector<2x1024xf32> -> vector<2x1024xf32>
    %c0_3 = arith.constant 0 : index
    %c0_4 = arith.constant 0 : index
    %4 = vector.load %arg3[%c0_3, %c0_4] : memref<2x1024xf32, #tpu.memory_space<vmem>>, vector<2x1024xf32>
    tpu.vector_store %arg3[%c0_3, %c0_4], %3 {strides = array<i32>} : memref<2x1024xf32, #tpu.memory_space<vmem>>, vector<2x1024xf32>,
    %cst_5 = arith.constant dense<0.000000e+00> : vector<1024xf32>
    %5 = vector.multi_reduction <add>, %3, %cst_5 [0] : vector<2x1024xf32> to vector<1024xf32>
    %6 = vector.shape_cast %5 : vector<1024xf32> to vector<1x1024xf32>
    %c0_6 = arith.constant 0 : index
    %c0_7 = arith.constant 0 : index
    %7 = vector.load %arg4[%c0_6, %c0_7] : memref<1x1024xf32, #tpu.memory_space<vmem>>, vector<1x1024xf32>
    tpu.vector_store %arg4[%c0_6, %c0_7], %6 {strides = array<i32>} : memref<1x1024xf32, #tpu.memory_space<vmem>>, vector<1x1024xf32>,
    %8 = arith.mulf %3, %3 : vector<2x1024xf32>
    %cst_8 = arith.constant dense<0.000000e+00> : vector<1024xf32>
    %9 = vector.multi_reduction <add>, %8, %cst_8 [0] : vector<2x1024xf32> to vector<1024xf32>
    %10 = vector.shape_cast %9 : vector<1024xf32> to vector<1x1024xf32>
    %c0_9 = arith.constant 0 : index
    %c0_10 = arith.constant 0 : index
    %11 = vector.load %arg5[%c0_9, %c0_10] : memref<1x1024xf32, #tpu.memory_space<vmem>>, vector<1x1024xf32>
    tpu.vector_store %arg5[%c0_9, %c0_10], %10 {strides = array<i32>} : memref<1x1024xf32, #tpu.memory_space<vmem>>, vector<1x1024xf32>,
    return
  }
  func.func @transform_0(%arg0: i32) -> (i32, i32) {
    %c0_i32 = arith.constant 0 : i32
    %c0_i32_0 = arith.constant 0 : i32
    %c0_i32_1 = arith.constant 0 : i32
    return %c0_i32, %c0_i32_0 : i32, i32
  }
  func.func @transform_1(%arg0: i32) -> (i32, i32) {
    %c0_i32 = arith.constant 0 : i32
    %c0_i32_0 = arith.constant 0 : i32
    %c0_i32_1 = arith.constant 0 : i32
    return %c0_i32, %c0_i32_0 : i32, i32
  }
  func.func @transform_2(%arg0: i32) -> (i32, i32) {
    %c0_i32 = arith.constant 0 : i32
    %c0_i32_0 = arith.constant 0 : i32
    %c0_i32_1 = arith.constant 0 : i32
    return %c0_i32, %c0_i32_0 : i32, i32
  }
  func.func @transform_3(%arg0: i32) -> (i32, i32) {
    %c0_i32 = arith.constant 0 : i32
    %c0_i32_0 = arith.constant 0 : i32
    %c0_i32_1 = arith.constant 0 : i32
    return %c0_i32, %c0_i32_0 : i32, i32
  }
  func.func @transform_4(%arg0: i32) -> (i32, i32) {
    %c0_i32 = arith.constant 0 : i32
    %c0_i32_0 = arith.constant 0 : i32
    %c0_i32_1 = arith.constant 0 : i32
    return %c0_i32, %c0_i32_0 : i32, i32
  }
}

module attributes {stable_mosaic.version = 11 : i64} {
  func.func @_affine_relu_kernel(%arg0: i32, %arg1: memref<1x2x1024xf32, #tpu.memory_space<vmem>>, %arg2: memref<1x1024xf32, #tpu.memory_space<vmem>>, %arg3: memref<1x1024xf32, #tpu.memory_space<vmem>>, %arg4: memref<1x2x1024xf32, #tpu.memory_space<vmem>>) attributes {dimension_semantics = [#tpu.dimension_semantics<parallel>], iteration_bounds = array<i64: 1>, scalar_prefetch = 0 : i64, scratch_operands = 0 : i64, tpu.core_type = #tpu.core_type<tc>, window_params = [{transform_indices = @transform_0, window_bounds = array<i64: 1, 2, 1024>}, {pipeline_mode = #tpu.pipeline_mode<synchronous>, transform_indices = @transform_1, window_bounds = array<i64: 1, 1024>}, {pipeline_mode = #tpu.pipeline_mode<synchronous>, transform_indices = @transform_2, window_bounds = array<i64: 1, 1024>}, {transform_indices = @transform_3, window_bounds = array<i64: 1, 2, 1024>}]} {
    %c0 = arith.constant 0 : index
    %c0_0 = arith.constant 0 : index
    %c0_1 = arith.constant 0 : index
    %0 = vector.load %arg1[%c0, %c0_0, %c0_1] : memref<1x2x1024xf32, #tpu.memory_space<vmem>>, vector<1x2x1024xf32>
    %1 = vector.shape_cast %0 : vector<1x2x1024xf32> to vector<2x1024xf32>
    %c0_2 = arith.constant 0 : index
    %c0_3 = arith.constant 0 : index
    %2 = vector.load %arg2[%c0_2, %c0_3] : memref<1x1024xf32, #tpu.memory_space<vmem>>, vector<1x1024xf32>
    %3 = vector.broadcast %2 : vector<1x1024xf32> to vector<2x1024xf32>
    %4 = arith.mulf %1, %3 : vector<2x1024xf32>
    %c0_4 = arith.constant 0 : index
    %c0_5 = arith.constant 0 : index
    %5 = vector.load %arg3[%c0_4, %c0_5] : memref<1x1024xf32, #tpu.memory_space<vmem>>, vector<1x1024xf32>
    %6 = vector.broadcast %5 : vector<1x1024xf32> to vector<2x1024xf32>
    %7 = arith.addf %4, %6 : vector<2x1024xf32>
    %cst = arith.constant 0.000000e+00 : f32
    %8 = vector.broadcast %cst : f32 to vector<2x1024xf32>
    %9 = arith.maximumf %7, %8 : vector<2x1024xf32>
    %c0_6 = arith.constant 0 : index
    %c0_7 = arith.constant 0 : index
    %c0_8 = arith.constant 0 : index
    %10 = vector.load %arg4[%c0_6, %c0_7, %c0_8] : memref<1x2x1024xf32, #tpu.memory_space<vmem>>, vector<1x2x1024xf32>
    %11 = vector.shape_cast %10 : vector<1x2x1024xf32> to vector<2x1024xf32>
    %12 = vector.shape_cast %9 : vector<2x1024xf32> to vector<1x2x1024xf32>
    tpu.vector_store %arg4[%c0_6, %c0_7, %c0_8], %12 {strides = array<i32>} : memref<1x2x1024xf32, #tpu.memory_space<vmem>>, vector<1x2x1024xf32>,
    return
  }
  func.func @transform_0(%arg0: i32) -> (i32, i32, i32) {
    %c0_i32 = arith.constant 0 : i32
    %c0_i32_0 = arith.constant 0 : i32
    %c0_i32_1 = arith.constant 0 : i32
    return %arg0, %c0_i32, %c0_i32_0 : i32, i32, i32
  }
  func.func @transform_1(%arg0: i32) -> (i32, i32) {
    %c0_i32 = arith.constant 0 : i32
    %c0_i32_0 = arith.constant 0 : i32
    %c0_i32_1 = arith.constant 0 : i32
    return %c0_i32, %c0_i32_0 : i32, i32
  }
  func.func @transform_2(%arg0: i32) -> (i32, i32) {
    %c0_i32 = arith.constant 0 : i32
    %c0_i32_0 = arith.constant 0 : i32
    %c0_i32_1 = arith.constant 0 : i32
    return %c0_i32, %c0_i32_0 : i32, i32
  }
  func.func @transform_3(%arg0: i32) -> (i32, i32, i32) {
    %c0_i32 = arith.constant 0 : i32
    %c0_i32_0 = arith.constant 0 : i32
    %c0_i32_1 = arith.constant 0 : i32
    return %arg0, %c0_i32, %c0_i32_0 : i32, i32, i32
  }
}

module attributes {stable_mosaic.version = 11 : i64} {
  func.func @_convt_stats_kernel(%arg0: i32, %arg1: memref<1x42x64xf32, #tpu.memory_space<vmem>>, %arg2: memref<4x64x128xbf16, #tpu.memory_space<vmem>>, %arg3: memref<30x128xf32, #tpu.memory_space<vmem>>, %arg4: memref<1x30x128xf32, #tpu.memory_space<vmem>>, %arg5: memref<1x1x128xf32, #tpu.memory_space<vmem>>, %arg6: memref<1x1x128xf32, #tpu.memory_space<vmem>>) attributes {dimension_semantics = [#tpu.dimension_semantics<parallel>], iteration_bounds = array<i64: 2>, scalar_prefetch = 0 : i64, scratch_operands = 0 : i64, tpu.core_type = #tpu.core_type<tc>, window_params = [{transform_indices = @transform_0, window_bounds = array<i64: 1, 42, 64>}, {pipeline_mode = #tpu.pipeline_mode<synchronous>, transform_indices = @transform_1, window_bounds = array<i64: 4, 64, 128>}, {pipeline_mode = #tpu.pipeline_mode<synchronous>, transform_indices = @transform_2, window_bounds = array<i64: 30, 128>}, {transform_indices = @transform_3, window_bounds = array<i64: 1, 30, 128>}, {transform_indices = @transform_4, window_bounds = array<i64: 1, 1, 128>}, {transform_indices = @transform_5, window_bounds = array<i64: 1, 1, 128>}]} {
    %c0 = arith.constant 0 : index
    %c0_0 = arith.constant 0 : index
    %c0_1 = arith.constant 0 : index
    %0 = vector.load %arg1[%c0, %c0_0, %c0_1] : memref<1x42x64xf32, #tpu.memory_space<vmem>>, vector<1x42x64xf32>
    %1 = vector.shape_cast %0 : vector<1x42x64xf32> to vector<42x64xf32>
    %2 = vector.extract_strided_slice %1 {offsets = [0, 0], sizes = [30, 64], strides = [1, 1]} : vector<42x64xf32> to vector<30x64xf32>
    %3 = arith.truncf %2 : vector<30x64xf32> to vector<30x64xbf16>
    %c0_2 = arith.constant 0 : index
    %c0_3 = arith.constant 0 : index
    %c0_4 = arith.constant 0 : index
    %4 = vector.load %arg2[%c0_2, %c0_3, %c0_4] : memref<4x64x128xbf16, #tpu.memory_space<vmem>>, vector<1x64x128xbf16>
    %5 = vector.shape_cast %4 : vector<1x64x128xbf16> to vector<64x128xbf16>
    %cst = arith.constant dense<0.000000e+00> : vector<30x128xf32>
    %6 = tpu.matmul %3, %5, %cst {dimension_numbers = #tpu.dot_dimension_numbers<[1], [0], [0], [1], [0, 0, 1, 1], [], []>} : vector<30x64xbf16>, vector<64x128xbf16>, vector<30x128xf32> -> vector<30x128xf32>
    %7 = vector.extract_strided_slice %1 {offsets = [1, 0], sizes = [30, 64], strides = [1, 1]} : vector<42x64xf32> to vector<30x64xf32>
    %8 = arith.truncf %7 : vector<30x64xf32> to vector<30x64xbf16>
    %c1 = arith.constant 1 : index
    %c0_5 = arith.constant 0 : index
    %c0_6 = arith.constant 0 : index
    %9 = vector.load %arg2[%c1, %c0_5, %c0_6] : memref<4x64x128xbf16, #tpu.memory_space<vmem>>, vector<1x64x128xbf16>
    %10 = vector.shape_cast %9 : vector<1x64x128xbf16> to vector<64x128xbf16>
    %cst_7 = arith.constant dense<0.000000e+00> : vector<30x128xf32>
    %11 = tpu.matmul %8, %10, %cst_7 {dimension_numbers = #tpu.dot_dimension_numbers<[1], [0], [0], [1], [0, 0, 1, 1], [], []>} : vector<30x64xbf16>, vector<64x128xbf16>, vector<30x128xf32> -> vector<30x128xf32>
    %12 = arith.addf %6, %11 : vector<30x128xf32>
    %13 = vector.extract_strided_slice %1 {offsets = [6, 0], sizes = [30, 64], strides = [1, 1]} : vector<42x64xf32> to vector<30x64xf32>
    %14 = arith.truncf %13 : vector<30x64xf32> to vector<30x64xbf16>
    %c2 = arith.constant 2 : index
    %c0_8 = arith.constant 0 : index
    %c0_9 = arith.constant 0 : index
    %15 = vector.load %arg2[%c2, %c0_8, %c0_9] : memref<4x64x128xbf16, #tpu.memory_space<vmem>>, vector<1x64x128xbf16>
    %16 = vector.shape_cast %15 : vector<1x64x128xbf16> to vector<64x128xbf16>
    %cst_10 = arith.constant dense<0.000000e+00> : vector<30x128xf32>
    %17 = tpu.matmul %14, %16, %cst_10 {dimension_numbers = #tpu.dot_dimension_numbers<[1], [0], [0], [1], [0, 0, 1, 1], [], []>} : vector<30x64xbf16>, vector<64x128xbf16>, vector<30x128xf32> -> vector<30x128xf32>
    %18 = arith.addf %12, %17 : vector<30x128xf32>
    %19 = vector.extract_strided_slice %1 {offsets = [7, 0], sizes = [30, 64], strides = [1, 1]} : vector<42x64xf32> to vector<30x64xf32>
    %20 = arith.truncf %19 : vector<30x64xf32> to vector<30x64xbf16>
    %c3 = arith.constant 3 : index
    %c0_11 = arith.constant 0 : index
    %c0_12 = arith.constant 0 : index
    %21 = vector.load %arg2[%c3, %c0_11, %c0_12] : memref<4x64x128xbf16, #tpu.memory_space<vmem>>, vector<1x64x128xbf16>
    %22 = vector.shape_cast %21 : vector<1x64x128xbf16> to vector<64x128xbf16>
    %cst_13 = arith.constant dense<0.000000e+00> : vector<30x128xf32>
    %23 = tpu.matmul %20, %22, %cst_13 {dimension_numbers = #tpu.dot_dimension_numbers<[1], [0], [0], [1], [0, 0, 1, 1], [], []>} : vector<30x64xbf16>, vector<64x128xbf16>, vector<30x128xf32> -> vector<30x128xf32>
    %24 = arith.addf %18, %23 : vector<30x128xf32>
    %c0_14 = arith.constant 0 : index
    %c0_15 = arith.constant 0 : index
    %c0_16 = arith.constant 0 : index
    %25 = vector.load %arg4[%c0_14, %c0_15, %c0_16] : memref<1x30x128xf32, #tpu.memory_space<vmem>>, vector<1x30x128xf32>
    %26 = vector.shape_cast %25 : vector<1x30x128xf32> to vector<30x128xf32>
    %27 = vector.shape_cast %24 : vector<30x128xf32> to vector<1x30x128xf32>
    tpu.vector_store %arg4[%c0_14, %c0_15, %c0_16], %27 {strides = array<i32>} : memref<1x30x128xf32, #tpu.memory_space<vmem>>, vector<1x30x128xf32>,
    %c0_17 = arith.constant 0 : index
    %c0_18 = arith.constant 0 : index
    %28 = vector.load %arg3[%c0_17, %c0_18] : memref<30x128xf32, #tpu.memory_space<vmem>>, vector<30x128xf32>
    %29 = arith.mulf %24, %28 : vector<30x128xf32>
    %cst_19 = arith.constant dense<0.000000e+00> : vector<128xf32>
    %30 = vector.multi_reduction <add>, %29, %cst_19 [0] : vector<30x128xf32> to vector<128xf32>
    %31 = vector.shape_cast %30 : vector<128xf32> to vector<1x128xf32>
    %c0_20 = arith.constant 0 : index
    %c0_21 = arith.constant 0 : index
    %c0_22 = arith.constant 0 : index
    %32 = vector.load %arg5[%c0_20, %c0_21, %c0_22] : memref<1x1x128xf32, #tpu.memory_space<vmem>>, vector<1x1x128xf32>
    %33 = vector.shape_cast %32 : vector<1x1x128xf32> to vector<1x128xf32>
    %34 = vector.shape_cast %31 : vector<1x128xf32> to vector<1x1x128xf32>
    tpu.vector_store %arg5[%c0_20, %c0_21, %c0_22], %34 {strides = array<i32>} : memref<1x1x128xf32, #tpu.memory_space<vmem>>, vector<1x1x128xf32>,
    %35 = arith.mulf %24, %24 : vector<30x128xf32>
    %36 = arith.mulf %35, %28 : vector<30x128xf32>
    %cst_23 = arith.constant dense<0.000000e+00> : vector<128xf32>
    %37 = vector.multi_reduction <add>, %36, %cst_23 [0] : vector<30x128xf32> to vector<128xf32>
    %38 = vector.shape_cast %37 : vector<128xf32> to vector<1x128xf32>
    %c0_24 = arith.constant 0 : index
    %c0_25 = arith.constant 0 : index
    %c0_26 = arith.constant 0 : index
    %39 = vector.load %arg6[%c0_24, %c0_25, %c0_26] : memref<1x1x128xf32, #tpu.memory_space<vmem>>, vector<1x1x128xf32>
    %40 = vector.shape_cast %39 : vector<1x1x128xf32> to vector<1x128xf32>
    %41 = vector.shape_cast %38 : vector<1x128xf32> to vector<1x1x128xf32>
    tpu.vector_store %arg6[%c0_24, %c0_25, %c0_26], %41 {strides = array<i32>} : memref<1x1x128xf32, #tpu.memory_space<vmem>>, vector<1x1x128xf32>,
    return
  }
  func.func @transform_0(%arg0: i32) -> (i32, i32, i32) {
    %c0_i32 = arith.constant 0 : i32
    %c0_i32_0 = arith.constant 0 : i32
    %c0_i32_1 = arith.constant 0 : i32
    return %arg0, %c0_i32, %c0_i32_0 : i32, i32, i32
  }
  func.func @transform_1(%arg0: i32) -> (i32, i32, i32) {
    %c0_i32 = arith.constant 0 : i32
    %c0_i32_0 = arith.constant 0 : i32
    %c0_i32_1 = arith.constant 0 : i32
    %c0_i32_2 = arith.constant 0 : i32
    return %c0_i32, %c0_i32_0, %c0_i32_1 : i32, i32, i32
  }
  func.func @transform_2(%arg0: i32) -> (i32, i32) {
    %c0_i32 = arith.constant 0 : i32
    %c0_i32_0 = arith.constant 0 : i32
    %c0_i32_1 = arith.constant 0 : i32
    return %c0_i32, %c0_i32_0 : i32, i32
  }
  func.func @transform_3(%arg0: i32) -> (i32, i32, i32) {
    %c0_i32 = arith.constant 0 : i32
    %c0_i32_0 = arith.constant 0 : i32
    %c0_i32_1 = arith.constant 0 : i32
    return %arg0, %c0_i32, %c0_i32_0 : i32, i32, i32
  }
  func.func @transform_4(%arg0: i32) -> (i32, i32, i32) {
    %c0_i32 = arith.constant 0 : i32
    %c0_i32_0 = arith.constant 0 : i32
    %c0_i32_1 = arith.constant 0 : i32
    return %arg0, %c0_i32, %c0_i32_0 : i32, i32, i32
  }
  func.func @transform_5(%arg0: i32) -> (i32, i32, i32) {
    %c0_i32 = arith.constant 0 : i32
    %c0_i32_0 = arith.constant 0 : i32
    %c0_i32_1 = arith.constant 0 : i32
    return %arg0, %c0_i32, %c0_i32_0 : i32, i32, i32
  }
}

module attributes {stable_mosaic.version = 11 : i64} {
  func.func @_affine_relu_kernel(%arg0: i32, %arg1: memref<1x30x128xf32, #tpu.memory_space<vmem>>, %arg2: memref<1x128xf32, #tpu.memory_space<vmem>>, %arg3: memref<1x128xf32, #tpu.memory_space<vmem>>, %arg4: memref<1x30x128xf32, #tpu.memory_space<vmem>>) attributes {dimension_semantics = [#tpu.dimension_semantics<parallel>], iteration_bounds = array<i64: 2>, scalar_prefetch = 0 : i64, scratch_operands = 0 : i64, tpu.core_type = #tpu.core_type<tc>, window_params = [{transform_indices = @transform_0, window_bounds = array<i64: 1, 30, 128>}, {pipeline_mode = #tpu.pipeline_mode<synchronous>, transform_indices = @transform_1, window_bounds = array<i64: 1, 128>}, {pipeline_mode = #tpu.pipeline_mode<synchronous>, transform_indices = @transform_2, window_bounds = array<i64: 1, 128>}, {transform_indices = @transform_3, window_bounds = array<i64: 1, 30, 128>}]} {
    %c0 = arith.constant 0 : index
    %c0_0 = arith.constant 0 : index
    %c0_1 = arith.constant 0 : index
    %0 = vector.load %arg1[%c0, %c0_0, %c0_1] : memref<1x30x128xf32, #tpu.memory_space<vmem>>, vector<1x30x128xf32>
    %1 = vector.shape_cast %0 : vector<1x30x128xf32> to vector<30x128xf32>
    %c0_2 = arith.constant 0 : index
    %c0_3 = arith.constant 0 : index
    %2 = vector.load %arg2[%c0_2, %c0_3] : memref<1x128xf32, #tpu.memory_space<vmem>>, vector<1x128xf32>
    %3 = vector.broadcast %2 : vector<1x128xf32> to vector<30x128xf32>
    %4 = arith.mulf %1, %3 : vector<30x128xf32>
    %c0_4 = arith.constant 0 : index
    %c0_5 = arith.constant 0 : index
    %5 = vector.load %arg3[%c0_4, %c0_5] : memref<1x128xf32, #tpu.memory_space<vmem>>, vector<1x128xf32>
    %6 = vector.broadcast %5 : vector<1x128xf32> to vector<30x128xf32>
    %7 = arith.addf %4, %6 : vector<30x128xf32>
    %cst = arith.constant 0.000000e+00 : f32
    %8 = vector.broadcast %cst : f32 to vector<30x128xf32>
    %9 = arith.maximumf %7, %8 : vector<30x128xf32>
    %c0_6 = arith.constant 0 : index
    %c0_7 = arith.constant 0 : index
    %c0_8 = arith.constant 0 : index
    %10 = vector.load %arg4[%c0_6, %c0_7, %c0_8] : memref<1x30x128xf32, #tpu.memory_space<vmem>>, vector<1x30x128xf32>
    %11 = vector.shape_cast %10 : vector<1x30x128xf32> to vector<30x128xf32>
    %12 = vector.shape_cast %9 : vector<30x128xf32> to vector<1x30x128xf32>
    tpu.vector_store %arg4[%c0_6, %c0_7, %c0_8], %12 {strides = array<i32>} : memref<1x30x128xf32, #tpu.memory_space<vmem>>, vector<1x30x128xf32>,
    return
  }
  func.func @transform_0(%arg0: i32) -> (i32, i32, i32) {
    %c0_i32 = arith.constant 0 : i32
    %c0_i32_0 = arith.constant 0 : i32
    %c0_i32_1 = arith.constant 0 : i32
    return %arg0, %c0_i32, %c0_i32_0 : i32, i32, i32
  }
  func.func @transform_1(%arg0: i32) -> (i32, i32) {
    %c0_i32 = arith.constant 0 : i32
    %c0_i32_0 = arith.constant 0 : i32
    %c0_i32_1 = arith.constant 0 : i32
    return %c0_i32, %c0_i32_0 : i32, i32
  }
  func.func @transform_2(%arg0: i32) -> (i32, i32) {
    %c0_i32 = arith.constant 0 : i32
    %c0_i32_0 = arith.constant 0 : i32
    %c0_i32_1 = arith.constant 0 : i32
    return %c0_i32, %c0_i32_0 : i32, i32
  }
  func.func @transform_3(%arg0: i32) -> (i32, i32, i32) {
    %c0_i32 = arith.constant 0 : i32
    %c0_i32_0 = arith.constant 0 : i32
    %c0_i32_1 = arith.constant 0 : i32
    return %arg0, %c0_i32, %c0_i32_0 : i32, i32, i32
  }
}

module attributes {stable_mosaic.version = 11 : i64} {
  func.func @_convt_stats_kernel(%arg0: i32, %arg1: memref<1x110x32xf32, #tpu.memory_space<vmem>>, %arg2: memref<4x32x128xbf16, #tpu.memory_space<vmem>>, %arg3: memref<90x128xf32, #tpu.memory_space<vmem>>, %arg4: memref<1x90x128xf32, #tpu.memory_space<vmem>>, %arg5: memref<1x1x128xf32, #tpu.memory_space<vmem>>, %arg6: memref<1x1x128xf32, #tpu.memory_space<vmem>>) attributes {dimension_semantics = [#tpu.dimension_semantics<parallel>], iteration_bounds = array<i64: 2>, scalar_prefetch = 0 : i64, scratch_operands = 0 : i64, tpu.core_type = #tpu.core_type<tc>, window_params = [{transform_indices = @transform_0, window_bounds = array<i64: 1, 110, 32>}, {pipeline_mode = #tpu.pipeline_mode<synchronous>, transform_indices = @transform_1, window_bounds = array<i64: 4, 32, 128>}, {pipeline_mode = #tpu.pipeline_mode<synchronous>, transform_indices = @transform_2, window_bounds = array<i64: 90, 128>}, {transform_indices = @transform_3, window_bounds = array<i64: 1, 90, 128>}, {transform_indices = @transform_4, window_bounds = array<i64: 1, 1, 128>}, {transform_indices = @transform_5, window_bounds = array<i64: 1, 1, 128>}]} {
    %c0 = arith.constant 0 : index
    %c0_0 = arith.constant 0 : index
    %c0_1 = arith.constant 0 : index
    %0 = vector.load %arg1[%c0, %c0_0, %c0_1] : memref<1x110x32xf32, #tpu.memory_space<vmem>>, vector<1x110x32xf32>
    %1 = vector.shape_cast %0 : vector<1x110x32xf32> to vector<110x32xf32>
    %2 = vector.extract_strided_slice %1 {offsets = [0, 0], sizes = [90, 32], strides = [1, 1]} : vector<110x32xf32> to vector<90x32xf32>
    %3 = arith.truncf %2 : vector<90x32xf32> to vector<90x32xbf16>
    %c0_2 = arith.constant 0 : index
    %c0_3 = arith.constant 0 : index
    %c0_4 = arith.constant 0 : index
    %4 = vector.load %arg2[%c0_2, %c0_3, %c0_4] : memref<4x32x128xbf16, #tpu.memory_space<vmem>>, vector<1x32x128xbf16>
    %5 = vector.shape_cast %4 : vector<1x32x128xbf16> to vector<32x128xbf16>
    %cst = arith.constant dense<0.000000e+00> : vector<90x128xf32>
    %6 = tpu.matmul %3, %5, %cst {dimension_numbers = #tpu.dot_dimension_numbers<[1], [0], [0], [1], [0, 0, 1, 1], [], []>} : vector<90x32xbf16>, vector<32x128xbf16>, vector<90x128xf32> -> vector<90x128xf32>
    %7 = vector.extract_strided_slice %1 {offsets = [1, 0], sizes = [90, 32], strides = [1, 1]} : vector<110x32xf32> to vector<90x32xf32>
    %8 = arith.truncf %7 : vector<90x32xf32> to vector<90x32xbf16>
    %c1 = arith.constant 1 : index
    %c0_5 = arith.constant 0 : index
    %c0_6 = arith.constant 0 : index
    %9 = vector.load %arg2[%c1, %c0_5, %c0_6] : memref<4x32x128xbf16, #tpu.memory_space<vmem>>, vector<1x32x128xbf16>
    %10 = vector.shape_cast %9 : vector<1x32x128xbf16> to vector<32x128xbf16>
    %cst_7 = arith.constant dense<0.000000e+00> : vector<90x128xf32>
    %11 = tpu.matmul %8, %10, %cst_7 {dimension_numbers = #tpu.dot_dimension_numbers<[1], [0], [0], [1], [0, 0, 1, 1], [], []>} : vector<90x32xbf16>, vector<32x128xbf16>, vector<90x128xf32> -> vector<90x128xf32>
    %12 = arith.addf %6, %11 : vector<90x128xf32>
    %13 = vector.extract_strided_slice %1 {offsets = [10, 0], sizes = [90, 32], strides = [1, 1]} : vector<110x32xf32> to vector<90x32xf32>
    %14 = arith.truncf %13 : vector<90x32xf32> to vector<90x32xbf16>
    %c2 = arith.constant 2 : index
    %c0_8 = arith.constant 0 : index
    %c0_9 = arith.constant 0 : index
    %15 = vector.load %arg2[%c2, %c0_8, %c0_9] : memref<4x32x128xbf16, #tpu.memory_space<vmem>>, vector<1x32x128xbf16>
    %16 = vector.shape_cast %15 : vector<1x32x128xbf16> to vector<32x128xbf16>
    %cst_10 = arith.constant dense<0.000000e+00> : vector<90x128xf32>
    %17 = tpu.matmul %14, %16, %cst_10 {dimension_numbers = #tpu.dot_dimension_numbers<[1], [0], [0], [1], [0, 0, 1, 1], [], []>} : vector<90x32xbf16>, vector<32x128xbf16>, vector<90x128xf32> -> vector<90x128xf32>
    %18 = arith.addf %12, %17 : vector<90x128xf32>
    %19 = vector.extract_strided_slice %1 {offsets = [11, 0], sizes = [90, 32], strides = [1, 1]} : vector<110x32xf32> to vector<90x32xf32>
    %20 = arith.truncf %19 : vector<90x32xf32> to vector<90x32xbf16>
    %c3 = arith.constant 3 : index
    %c0_11 = arith.constant 0 : index
    %c0_12 = arith.constant 0 : index
    %21 = vector.load %arg2[%c3, %c0_11, %c0_12] : memref<4x32x128xbf16, #tpu.memory_space<vmem>>, vector<1x32x128xbf16>
    %22 = vector.shape_cast %21 : vector<1x32x128xbf16> to vector<32x128xbf16>
    %cst_13 = arith.constant dense<0.000000e+00> : vector<90x128xf32>
    %23 = tpu.matmul %20, %22, %cst_13 {dimension_numbers = #tpu.dot_dimension_numbers<[1], [0], [0], [1], [0, 0, 1, 1], [], []>} : vector<90x32xbf16>, vector<32x128xbf16>, vector<90x128xf32> -> vector<90x128xf32>
    %24 = arith.addf %18, %23 : vector<90x128xf32>
    %c0_14 = arith.constant 0 : index
    %c0_15 = arith.constant 0 : index
    %c0_16 = arith.constant 0 : index
    %25 = vector.load %arg4[%c0_14, %c0_15, %c0_16] : memref<1x90x128xf32, #tpu.memory_space<vmem>>, vector<1x90x128xf32>
    %26 = vector.shape_cast %25 : vector<1x90x128xf32> to vector<90x128xf32>
    %27 = vector.shape_cast %24 : vector<90x128xf32> to vector<1x90x128xf32>
    tpu.vector_store %arg4[%c0_14, %c0_15, %c0_16], %27 {strides = array<i32>} : memref<1x90x128xf32, #tpu.memory_space<vmem>>, vector<1x90x128xf32>,
    %c0_17 = arith.constant 0 : index
    %c0_18 = arith.constant 0 : index
    %28 = vector.load %arg3[%c0_17, %c0_18] : memref<90x128xf32, #tpu.memory_space<vmem>>, vector<90x128xf32>
    %29 = arith.mulf %24, %28 : vector<90x128xf32>
    %cst_19 = arith.constant dense<0.000000e+00> : vector<128xf32>
    %30 = vector.multi_reduction <add>, %29, %cst_19 [0] : vector<90x128xf32> to vector<128xf32>
    %31 = vector.shape_cast %30 : vector<128xf32> to vector<1x128xf32>
    %c0_20 = arith.constant 0 : index
    %c0_21 = arith.constant 0 : index
    %c0_22 = arith.constant 0 : index
    %32 = vector.load %arg5[%c0_20, %c0_21, %c0_22] : memref<1x1x128xf32, #tpu.memory_space<vmem>>, vector<1x1x128xf32>
    %33 = vector.shape_cast %32 : vector<1x1x128xf32> to vector<1x128xf32>
    %34 = vector.shape_cast %31 : vector<1x128xf32> to vector<1x1x128xf32>
    tpu.vector_store %arg5[%c0_20, %c0_21, %c0_22], %34 {strides = array<i32>} : memref<1x1x128xf32, #tpu.memory_space<vmem>>, vector<1x1x128xf32>,
    %35 = arith.mulf %24, %24 : vector<90x128xf32>
    %36 = arith.mulf %35, %28 : vector<90x128xf32>
    %cst_23 = arith.constant dense<0.000000e+00> : vector<128xf32>
    %37 = vector.multi_reduction <add>, %36, %cst_23 [0] : vector<90x128xf32> to vector<128xf32>
    %38 = vector.shape_cast %37 : vector<128xf32> to vector<1x128xf32>
    %c0_24 = arith.constant 0 : index
    %c0_25 = arith.constant 0 : index
    %c0_26 = arith.constant 0 : index
    %39 = vector.load %arg6[%c0_24, %c0_25, %c0_26] : memref<1x1x128xf32, #tpu.memory_space<vmem>>, vector<1x1x128xf32>
    %40 = vector.shape_cast %39 : vector<1x1x128xf32> to vector<1x128xf32>
    %41 = vector.shape_cast %38 : vector<1x128xf32> to vector<1x1x128xf32>
    tpu.vector_store %arg6[%c0_24, %c0_25, %c0_26], %41 {strides = array<i32>} : memref<1x1x128xf32, #tpu.memory_space<vmem>>, vector<1x1x128xf32>,
    return
  }
  func.func @transform_0(%arg0: i32) -> (i32, i32, i32) {
    %c0_i32 = arith.constant 0 : i32
    %c0_i32_0 = arith.constant 0 : i32
    %c0_i32_1 = arith.constant 0 : i32
    return %arg0, %c0_i32, %c0_i32_0 : i32, i32, i32
  }
  func.func @transform_1(%arg0: i32) -> (i32, i32, i32) {
    %c0_i32 = arith.constant 0 : i32
    %c0_i32_0 = arith.constant 0 : i32
    %c0_i32_1 = arith.constant 0 : i32
    %c0_i32_2 = arith.constant 0 : i32
    return %c0_i32, %c0_i32_0, %c0_i32_1 : i32, i32, i32
  }
  func.func @transform_2(%arg0: i32) -> (i32, i32) {
    %c0_i32 = arith.constant 0 : i32
    %c0_i32_0 = arith.constant 0 : i32
    %c0_i32_1 = arith.constant 0 : i32
    return %c0_i32, %c0_i32_0 : i32, i32
  }
  func.func @transform_3(%arg0: i32) -> (i32, i32, i32) {
    %c0_i32 = arith.constant 0 : i32
    %c0_i32_0 = arith.constant 0 : i32
    %c0_i32_1 = arith.constant 0 : i32
    return %arg0, %c0_i32, %c0_i32_0 : i32, i32, i32
  }
  func.func @transform_4(%arg0: i32) -> (i32, i32, i32) {
    %c0_i32 = arith.constant 0 : i32
    %c0_i32_0 = arith.constant 0 : i32
    %c0_i32_1 = arith.constant 0 : i32
    return %arg0, %c0_i32, %c0_i32_0 : i32, i32, i32
  }
  func.func @transform_5(%arg0: i32) -> (i32, i32, i32) {
    %c0_i32 = arith.constant 0 : i32
    %c0_i32_0 = arith.constant 0 : i32
    %c0_i32_1 = arith.constant 0 : i32
    return %arg0, %c0_i32, %c0_i32_0 : i32, i32, i32
  }
}

module attributes {stable_mosaic.version = 11 : i64} {
  func.func @_affine_relu_kernel(%arg0: i32, %arg1: memref<1x90x128xf32, #tpu.memory_space<vmem>>, %arg2: memref<1x128xf32, #tpu.memory_space<vmem>>, %arg3: memref<1x128xf32, #tpu.memory_space<vmem>>, %arg4: memref<1x90x128xf32, #tpu.memory_space<vmem>>) attributes {dimension_semantics = [#tpu.dimension_semantics<parallel>], iteration_bounds = array<i64: 2>, scalar_prefetch = 0 : i64, scratch_operands = 0 : i64, tpu.core_type = #tpu.core_type<tc>, window_params = [{transform_indices = @transform_0, window_bounds = array<i64: 1, 90, 128>}, {pipeline_mode = #tpu.pipeline_mode<synchronous>, transform_indices = @transform_1, window_bounds = array<i64: 1, 128>}, {pipeline_mode = #tpu.pipeline_mode<synchronous>, transform_indices = @transform_2, window_bounds = array<i64: 1, 128>}, {transform_indices = @transform_3, window_bounds = array<i64: 1, 90, 128>}]} {
    %c0 = arith.constant 0 : index
    %c0_0 = arith.constant 0 : index
    %c0_1 = arith.constant 0 : index
    %0 = vector.load %arg1[%c0, %c0_0, %c0_1] : memref<1x90x128xf32, #tpu.memory_space<vmem>>, vector<1x90x128xf32>
    %1 = vector.shape_cast %0 : vector<1x90x128xf32> to vector<90x128xf32>
    %c0_2 = arith.constant 0 : index
    %c0_3 = arith.constant 0 : index
    %2 = vector.load %arg2[%c0_2, %c0_3] : memref<1x128xf32, #tpu.memory_space<vmem>>, vector<1x128xf32>
    %3 = vector.broadcast %2 : vector<1x128xf32> to vector<90x128xf32>
    %4 = arith.mulf %1, %3 : vector<90x128xf32>
    %c0_4 = arith.constant 0 : index
    %c0_5 = arith.constant 0 : index
    %5 = vector.load %arg3[%c0_4, %c0_5] : memref<1x128xf32, #tpu.memory_space<vmem>>, vector<1x128xf32>
    %6 = vector.broadcast %5 : vector<1x128xf32> to vector<90x128xf32>
    %7 = arith.addf %4, %6 : vector<90x128xf32>
    %cst = arith.constant 0.000000e+00 : f32
    %8 = vector.broadcast %cst : f32 to vector<90x128xf32>
    %9 = arith.maximumf %7, %8 : vector<90x128xf32>
    %c0_6 = arith.constant 0 : index
    %c0_7 = arith.constant 0 : index
    %c0_8 = arith.constant 0 : index
    %10 = vector.load %arg4[%c0_6, %c0_7, %c0_8] : memref<1x90x128xf32, #tpu.memory_space<vmem>>, vector<1x90x128xf32>
    %11 = vector.shape_cast %10 : vector<1x90x128xf32> to vector<90x128xf32>
    %12 = vector.shape_cast %9 : vector<90x128xf32> to vector<1x90x128xf32>
    tpu.vector_store %arg4[%c0_6, %c0_7, %c0_8], %12 {strides = array<i32>} : memref<1x90x128xf32, #tpu.memory_space<vmem>>, vector<1x90x128xf32>,
    return
  }
  func.func @transform_0(%arg0: i32) -> (i32, i32, i32) {
    %c0_i32 = arith.constant 0 : i32
    %c0_i32_0 = arith.constant 0 : i32
    %c0_i32_1 = arith.constant 0 : i32
    return %arg0, %c0_i32, %c0_i32_0 : i32, i32, i32
  }
  func.func @transform_1(%arg0: i32) -> (i32, i32) {
    %c0_i32 = arith.constant 0 : i32
    %c0_i32_0 = arith.constant 0 : i32
    %c0_i32_1 = arith.constant 0 : i32
    return %c0_i32, %c0_i32_0 : i32, i32
  }
  func.func @transform_2(%arg0: i32) -> (i32, i32) {
    %c0_i32 = arith.constant 0 : i32
    %c0_i32_0 = arith.constant 0 : i32
    %c0_i32_1 = arith.constant 0 : i32
    return %c0_i32, %c0_i32_0 : i32, i32
  }
  func.func @transform_3(%arg0: i32) -> (i32, i32, i32) {
    %c0_i32 = arith.constant 0 : i32
    %c0_i32_0 = arith.constant 0 : i32
    %c0_i32_1 = arith.constant 0 : i32
    return %arg0, %c0_i32, %c0_i32_0 : i32, i32, i32
  }
}

module attributes {stable_mosaic.version = 11 : i64} {
  func.func @_convt_stats_kernel(%arg0: i32, %arg1: memref<1x342x16xf32, #tpu.memory_space<vmem>>, %arg2: memref<4x16x128xbf16, #tpu.memory_space<vmem>>, %arg3: memref<306x128xf32, #tpu.memory_space<vmem>>, %arg4: memref<1x306x128xf32, #tpu.memory_space<vmem>>, %arg5: memref<1x1x128xf32, #tpu.memory_space<vmem>>, %arg6: memref<1x1x128xf32, #tpu.memory_space<vmem>>) attributes {dimension_semantics = [#tpu.dimension_semantics<parallel>], iteration_bounds = array<i64: 2>, scalar_prefetch = 0 : i64, scratch_operands = 0 : i64, tpu.core_type = #tpu.core_type<tc>, window_params = [{transform_indices = @transform_0, window_bounds = array<i64: 1, 342, 16>}, {pipeline_mode = #tpu.pipeline_mode<synchronous>, transform_indices = @transform_1, window_bounds = array<i64: 4, 16, 128>}, {pipeline_mode = #tpu.pipeline_mode<synchronous>, transform_indices = @transform_2, window_bounds = array<i64: 306, 128>}, {transform_indices = @transform_3, window_bounds = array<i64: 1, 306, 128>}, {transform_indices = @transform_4, window_bounds = array<i64: 1, 1, 128>}, {transform_indices = @transform_5, window_bounds = array<i64: 1, 1, 128>}]} {
    %c0 = arith.constant 0 : index
    %c0_0 = arith.constant 0 : index
    %c0_1 = arith.constant 0 : index
    %0 = vector.load %arg1[%c0, %c0_0, %c0_1] : memref<1x342x16xf32, #tpu.memory_space<vmem>>, vector<1x342x16xf32>
    %1 = vector.shape_cast %0 : vector<1x342x16xf32> to vector<342x16xf32>
    %2 = vector.extract_strided_slice %1 {offsets = [0, 0], sizes = [306, 16], strides = [1, 1]} : vector<342x16xf32> to vector<306x16xf32>
    %3 = arith.truncf %2 : vector<306x16xf32> to vector<306x16xbf16>
    %c0_2 = arith.constant 0 : index
    %c0_3 = arith.constant 0 : index
    %c0_4 = arith.constant 0 : index
    %4 = vector.load %arg2[%c0_2, %c0_3, %c0_4] : memref<4x16x128xbf16, #tpu.memory_space<vmem>>, vector<1x16x128xbf16>
    %5 = vector.shape_cast %4 : vector<1x16x128xbf16> to vector<16x128xbf16>
    %cst = arith.constant dense<0.000000e+00> : vector<306x128xf32>
    %6 = tpu.matmul %3, %5, %cst {dimension_numbers = #tpu.dot_dimension_numbers<[1], [0], [0], [1], [0, 0, 1, 1], [], []>} : vector<306x16xbf16>, vector<16x128xbf16>, vector<306x128xf32> -> vector<306x128xf32>
    %7 = vector.extract_strided_slice %1 {offsets = [1, 0], sizes = [306, 16], strides = [1, 1]} : vector<342x16xf32> to vector<306x16xf32>
    %8 = arith.truncf %7 : vector<306x16xf32> to vector<306x16xbf16>
    %c1 = arith.constant 1 : index
    %c0_5 = arith.constant 0 : index
    %c0_6 = arith.constant 0 : index
    %9 = vector.load %arg2[%c1, %c0_5, %c0_6] : memref<4x16x128xbf16, #tpu.memory_space<vmem>>, vector<1x16x128xbf16>
    %10 = vector.shape_cast %9 : vector<1x16x128xbf16> to vector<16x128xbf16>
    %cst_7 = arith.constant dense<0.000000e+00> : vector<306x128xf32>
    %11 = tpu.matmul %8, %10, %cst_7 {dimension_numbers = #tpu.dot_dimension_numbers<[1], [0], [0], [1], [0, 0, 1, 1], [], []>} : vector<306x16xbf16>, vector<16x128xbf16>, vector<306x128xf32> -> vector<306x128xf32>
    %12 = arith.addf %6, %11 : vector<306x128xf32>
    %13 = vector.extract_strided_slice %1 {offsets = [18, 0], sizes = [306, 16], strides = [1, 1]} : vector<342x16xf32> to vector<306x16xf32>
    %14 = arith.truncf %13 : vector<306x16xf32> to vector<306x16xbf16>
    %c2 = arith.constant 2 : index
    %c0_8 = arith.constant 0 : index
    %c0_9 = arith.constant 0 : index
    %15 = vector.load %arg2[%c2, %c0_8, %c0_9] : memref<4x16x128xbf16, #tpu.memory_space<vmem>>, vector<1x16x128xbf16>
    %16 = vector.shape_cast %15 : vector<1x16x128xbf16> to vector<16x128xbf16>
    %cst_10 = arith.constant dense<0.000000e+00> : vector<306x128xf32>
    %17 = tpu.matmul %14, %16, %cst_10 {dimension_numbers = #tpu.dot_dimension_numbers<[1], [0], [0], [1], [0, 0, 1, 1], [], []>} : vector<306x16xbf16>, vector<16x128xbf16>, vector<306x128xf32> -> vector<306x128xf32>
    %18 = arith.addf %12, %17 : vector<306x128xf32>
    %19 = vector.extract_strided_slice %1 {offsets = [19, 0], sizes = [306, 16], strides = [1, 1]} : vector<342x16xf32> to vector<306x16xf32>
    %20 = arith.truncf %19 : vector<306x16xf32> to vector<306x16xbf16>
    %c3 = arith.constant 3 : index
    %c0_11 = arith.constant 0 : index
    %c0_12 = arith.constant 0 : index
    %21 = vector.load %arg2[%c3, %c0_11, %c0_12] : memref<4x16x128xbf16, #tpu.memory_space<vmem>>, vector<1x16x128xbf16>
    %22 = vector.shape_cast %21 : vector<1x16x128xbf16> to vector<16x128xbf16>
    %cst_13 = arith.constant dense<0.000000e+00> : vector<306x128xf32>
    %23 = tpu.matmul %20, %22, %cst_13 {dimension_numbers = #tpu.dot_dimension_numbers<[1], [0], [0], [1], [0, 0, 1, 1], [], []>} : vector<306x16xbf16>, vector<16x128xbf16>, vector<306x128xf32> -> vector<306x128xf32>
    %24 = arith.addf %18, %23 : vector<306x128xf32>
    %c0_14 = arith.constant 0 : index
    %c0_15 = arith.constant 0 : index
    %c0_16 = arith.constant 0 : index
    %25 = vector.load %arg4[%c0_14, %c0_15, %c0_16] : memref<1x306x128xf32, #tpu.memory_space<vmem>>, vector<1x306x128xf32>
    %26 = vector.shape_cast %25 : vector<1x306x128xf32> to vector<306x128xf32>
    %27 = vector.shape_cast %24 : vector<306x128xf32> to vector<1x306x128xf32>
    tpu.vector_store %arg4[%c0_14, %c0_15, %c0_16], %27 {strides = array<i32>} : memref<1x306x128xf32, #tpu.memory_space<vmem>>, vector<1x306x128xf32>,
    %c0_17 = arith.constant 0 : index
    %c0_18 = arith.constant 0 : index
    %28 = vector.load %arg3[%c0_17, %c0_18] : memref<306x128xf32, #tpu.memory_space<vmem>>, vector<306x128xf32>
    %29 = arith.mulf %24, %28 : vector<306x128xf32>
    %cst_19 = arith.constant dense<0.000000e+00> : vector<128xf32>
    %30 = vector.multi_reduction <add>, %29, %cst_19 [0] : vector<306x128xf32> to vector<128xf32>
    %31 = vector.shape_cast %30 : vector<128xf32> to vector<1x128xf32>
    %c0_20 = arith.constant 0 : index
    %c0_21 = arith.constant 0 : index
    %c0_22 = arith.constant 0 : index
    %32 = vector.load %arg5[%c0_20, %c0_21, %c0_22] : memref<1x1x128xf32, #tpu.memory_space<vmem>>, vector<1x1x128xf32>
    %33 = vector.shape_cast %32 : vector<1x1x128xf32> to vector<1x128xf32>
    %34 = vector.shape_cast %31 : vector<1x128xf32> to vector<1x1x128xf32>
    tpu.vector_store %arg5[%c0_20, %c0_21, %c0_22], %34 {strides = array<i32>} : memref<1x1x128xf32, #tpu.memory_space<vmem>>, vector<1x1x128xf32>,
    %35 = arith.mulf %24, %24 : vector<306x128xf32>
    %36 = arith.mulf %35, %28 : vector<306x128xf32>
    %cst_23 = arith.constant dense<0.000000e+00> : vector<128xf32>
    %37 = vector.multi_reduction <add>, %36, %cst_23 [0] : vector<306x128xf32> to vector<128xf32>
    %38 = vector.shape_cast %37 : vector<128xf32> to vector<1x128xf32>
    %c0_24 = arith.constant 0 : index
    %c0_25 = arith.constant 0 : index
    %c0_26 = arith.constant 0 : index
    %39 = vector.load %arg6[%c0_24, %c0_25, %c0_26] : memref<1x1x128xf32, #tpu.memory_space<vmem>>, vector<1x1x128xf32>
    %40 = vector.shape_cast %39 : vector<1x1x128xf32> to vector<1x128xf32>
    %41 = vector.shape_cast %38 : vector<1x128xf32> to vector<1x1x128xf32>
    tpu.vector_store %arg6[%c0_24, %c0_25, %c0_26], %41 {strides = array<i32>} : memref<1x1x128xf32, #tpu.memory_space<vmem>>, vector<1x1x128xf32>,
    return
  }
  func.func @transform_0(%arg0: i32) -> (i32, i32, i32) {
    %c0_i32 = arith.constant 0 : i32
    %c0_i32_0 = arith.constant 0 : i32
    %c0_i32_1 = arith.constant 0 : i32
    return %arg0, %c0_i32, %c0_i32_0 : i32, i32, i32
  }
  func.func @transform_1(%arg0: i32) -> (i32, i32, i32) {
    %c0_i32 = arith.constant 0 : i32
    %c0_i32_0 = arith.constant 0 : i32
    %c0_i32_1 = arith.constant 0 : i32
    %c0_i32_2 = arith.constant 0 : i32
    return %c0_i32, %c0_i32_0, %c0_i32_1 : i32, i32, i32
  }
  func.func @transform_2(%arg0: i32) -> (i32, i32) {
    %c0_i32 = arith.constant 0 : i32
    %c0_i32_0 = arith.constant 0 : i32
    %c0_i32_1 = arith.constant 0 : i32
    return %c0_i32, %c0_i32_0 : i32, i32
  }
  func.func @transform_3(%arg0: i32) -> (i32, i32, i32) {
    %c0_i32 = arith.constant 0 : i32
    %c0_i32_0 = arith.constant 0 : i32
    %c0_i32_1 = arith.constant 0 : i32
    return %arg0, %c0_i32, %c0_i32_0 : i32, i32, i32
  }
  func.func @transform_4(%arg0: i32) -> (i32, i32, i32) {
    %c0_i32 = arith.constant 0 : i32
    %c0_i32_0 = arith.constant 0 : i32
    %c0_i32_1 = arith.constant 0 : i32
    return %arg0, %c0_i32, %c0_i32_0 : i32, i32, i32
  }
  func.func @transform_5(%arg0: i32) -> (i32, i32, i32) {
    %c0_i32 = arith.constant 0 : i32
    %c0_i32_0 = arith.constant 0 : i32
    %c0_i32_1 = arith.constant 0 : i32
    return %arg0, %c0_i32, %c0_i32_0 : i32, i32, i32
  }
}

module attributes {stable_mosaic.version = 11 : i64} {
  func.func @_affine_relu_kernel(%arg0: i32, %arg1: memref<1x306x128xf32, #tpu.memory_space<vmem>>, %arg2: memref<1x128xf32, #tpu.memory_space<vmem>>, %arg3: memref<1x128xf32, #tpu.memory_space<vmem>>, %arg4: memref<1x306x128xf32, #tpu.memory_space<vmem>>) attributes {dimension_semantics = [#tpu.dimension_semantics<parallel>], iteration_bounds = array<i64: 2>, scalar_prefetch = 0 : i64, scratch_operands = 0 : i64, tpu.core_type = #tpu.core_type<tc>, window_params = [{transform_indices = @transform_0, window_bounds = array<i64: 1, 306, 128>}, {pipeline_mode = #tpu.pipeline_mode<synchronous>, transform_indices = @transform_1, window_bounds = array<i64: 1, 128>}, {pipeline_mode = #tpu.pipeline_mode<synchronous>, transform_indices = @transform_2, window_bounds = array<i64: 1, 128>}, {transform_indices = @transform_3, window_bounds = array<i64: 1, 306, 128>}]} {
    %c0 = arith.constant 0 : index
    %c0_0 = arith.constant 0 : index
    %c0_1 = arith.constant 0 : index
    %0 = vector.load %arg1[%c0, %c0_0, %c0_1] : memref<1x306x128xf32, #tpu.memory_space<vmem>>, vector<1x306x128xf32>
    %1 = vector.shape_cast %0 : vector<1x306x128xf32> to vector<306x128xf32>
    %c0_2 = arith.constant 0 : index
    %c0_3 = arith.constant 0 : index
    %2 = vector.load %arg2[%c0_2, %c0_3] : memref<1x128xf32, #tpu.memory_space<vmem>>, vector<1x128xf32>
    %3 = vector.broadcast %2 : vector<1x128xf32> to vector<306x128xf32>
    %4 = arith.mulf %1, %3 : vector<306x128xf32>
    %c0_4 = arith.constant 0 : index
    %c0_5 = arith.constant 0 : index
    %5 = vector.load %arg3[%c0_4, %c0_5] : memref<1x128xf32, #tpu.memory_space<vmem>>, vector<1x128xf32>
    %6 = vector.broadcast %5 : vector<1x128xf32> to vector<306x128xf32>
    %7 = arith.addf %4, %6 : vector<306x128xf32>
    %cst = arith.constant 0.000000e+00 : f32
    %8 = vector.broadcast %cst : f32 to vector<306x128xf32>
    %9 = arith.maximumf %7, %8 : vector<306x128xf32>
    %c0_6 = arith.constant 0 : index
    %c0_7 = arith.constant 0 : index
    %c0_8 = arith.constant 0 : index
    %10 = vector.load %arg4[%c0_6, %c0_7, %c0_8] : memref<1x306x128xf32, #tpu.memory_space<vmem>>, vector<1x306x128xf32>
    %11 = vector.shape_cast %10 : vector<1x306x128xf32> to vector<306x128xf32>
    %12 = vector.shape_cast %9 : vector<306x128xf32> to vector<1x306x128xf32>
    tpu.vector_store %arg4[%c0_6, %c0_7, %c0_8], %12 {strides = array<i32>} : memref<1x306x128xf32, #tpu.memory_space<vmem>>, vector<1x306x128xf32>,
    return
  }
  func.func @transform_0(%arg0: i32) -> (i32, i32, i32) {
    %c0_i32 = arith.constant 0 : i32
    %c0_i32_0 = arith.constant 0 : i32
    %c0_i32_1 = arith.constant 0 : i32
    return %arg0, %c0_i32, %c0_i32_0 : i32, i32, i32
  }
  func.func @transform_1(%arg0: i32) -> (i32, i32) {
    %c0_i32 = arith.constant 0 : i32
    %c0_i32_0 = arith.constant 0 : i32
    %c0_i32_1 = arith.constant 0 : i32
    return %c0_i32, %c0_i32_0 : i32, i32
  }
  func.func @transform_2(%arg0: i32) -> (i32, i32) {
    %c0_i32 = arith.constant 0 : i32
    %c0_i32_0 = arith.constant 0 : i32
    %c0_i32_1 = arith.constant 0 : i32
    return %c0_i32, %c0_i32_0 : i32, i32
  }
  func.func @transform_3(%arg0: i32) -> (i32, i32, i32) {
    %c0_i32 = arith.constant 0 : i32
    %c0_i32_0 = arith.constant 0 : i32
    %c0_i32_1 = arith.constant 0 : i32
    return %arg0, %c0_i32, %c0_i32_0 : i32, i32, i32
  }
}

module attributes {stable_mosaic.version = 11 : i64} {
  func.func @_convt_kernel(%arg0: i32, %arg1: memref<1x1190x8xf32, #tpu.memory_space<vmem>>, %arg2: memref<4x8x128xbf16, #tpu.memory_space<vmem>>, %arg3: memref<1x1122x128xf32, #tpu.memory_space<vmem>>) attributes {dimension_semantics = [#tpu.dimension_semantics<parallel>], iteration_bounds = array<i64: 2>, scalar_prefetch = 0 : i64, scratch_operands = 0 : i64, tpu.core_type = #tpu.core_type<tc>, window_params = [{transform_indices = @transform_0, window_bounds = array<i64: 1, 1190, 8>}, {pipeline_mode = #tpu.pipeline_mode<synchronous>, transform_indices = @transform_1, window_bounds = array<i64: 4, 8, 128>}, {transform_indices = @transform_2, window_bounds = array<i64: 1, 1122, 128>}]} {
    %c0 = arith.constant 0 : index
    %c0_0 = arith.constant 0 : index
    %c0_1 = arith.constant 0 : index
    %0 = vector.load %arg1[%c0, %c0_0, %c0_1] : memref<1x1190x8xf32, #tpu.memory_space<vmem>>, vector<1x1190x8xf32>
    %1 = vector.shape_cast %0 : vector<1x1190x8xf32> to vector<1190x8xf32>
    %2 = vector.extract_strided_slice %1 {offsets = [0, 0], sizes = [1122, 8], strides = [1, 1]} : vector<1190x8xf32> to vector<1122x8xf32>
    %3 = arith.truncf %2 : vector<1122x8xf32> to vector<1122x8xbf16>
    %c0_2 = arith.constant 0 : index
    %c0_3 = arith.constant 0 : index
    %c0_4 = arith.constant 0 : index
    %4 = vector.load %arg2[%c0_2, %c0_3, %c0_4] : memref<4x8x128xbf16, #tpu.memory_space<vmem>>, vector<1x8x128xbf16>
    %5 = vector.shape_cast %4 : vector<1x8x128xbf16> to vector<8x128xbf16>
    %cst = arith.constant dense<0.000000e+00> : vector<1122x128xf32>
    %6 = tpu.matmul %3, %5, %cst {dimension_numbers = #tpu.dot_dimension_numbers<[1], [0], [0], [1], [0, 0, 1, 1], [], []>} : vector<1122x8xbf16>, vector<8x128xbf16>, vector<1122x128xf32> -> vector<1122x128xf32>
    %7 = vector.extract_strided_slice %1 {offsets = [1, 0], sizes = [1122, 8], strides = [1, 1]} : vector<1190x8xf32> to vector<1122x8xf32>
    %8 = arith.truncf %7 : vector<1122x8xf32> to vector<1122x8xbf16>
    %c1 = arith.constant 1 : index
    %c0_5 = arith.constant 0 : index
    %c0_6 = arith.constant 0 : index
    %9 = vector.load %arg2[%c1, %c0_5, %c0_6] : memref<4x8x128xbf16, #tpu.memory_space<vmem>>, vector<1x8x128xbf16>
    %10 = vector.shape_cast %9 : vector<1x8x128xbf16> to vector<8x128xbf16>
    %cst_7 = arith.constant dense<0.000000e+00> : vector<1122x128xf32>
    %11 = tpu.matmul %8, %10, %cst_7 {dimension_numbers = #tpu.dot_dimension_numbers<[1], [0], [0], [1], [0, 0, 1, 1], [], []>} : vector<1122x8xbf16>, vector<8x128xbf16>, vector<1122x128xf32> -> vector<1122x128xf32>
    %12 = arith.addf %6, %11 : vector<1122x128xf32>
    %13 = vector.extract_strided_slice %1 {offsets = [34, 0], sizes = [1122, 8], strides = [1, 1]} : vector<1190x8xf32> to vector<1122x8xf32>
    %14 = arith.truncf %13 : vector<1122x8xf32> to vector<1122x8xbf16>
    %c2 = arith.constant 2 : index
    %c0_8 = arith.constant 0 : index
    %c0_9 = arith.constant 0 : index
    %15 = vector.load %arg2[%c2, %c0_8, %c0_9] : memref<4x8x128xbf16, #tpu.memory_space<vmem>>, vector<1x8x128xbf16>
    %16 = vector.shape_cast %15 : vector<1x8x128xbf16> to vector<8x128xbf16>
    %cst_10 = arith.constant dense<0.000000e+00> : vector<1122x128xf32>
    %17 = tpu.matmul %14, %16, %cst_10 {dimension_numbers = #tpu.dot_dimension_numbers<[1], [0], [0], [1], [0, 0, 1, 1], [], []>} : vector<1122x8xbf16>, vector<8x128xbf16>, vector<1122x128xf32> -> vector<1122x128xf32>
    %18 = arith.addf %12, %17 : vector<1122x128xf32>
    %19 = vector.extract_strided_slice %1 {offsets = [35, 0], sizes = [1122, 8], strides = [1, 1]} : vector<1190x8xf32> to vector<1122x8xf32>
    %20 = arith.truncf %19 : vector<1122x8xf32> to vector<1122x8xbf16>
    %c3 = arith.constant 3 : index
    %c0_11 = arith.constant 0 : index
    %c0_12 = arith.constant 0 : index
    %21 = vector.load %arg2[%c3, %c0_11, %c0_12] : memref<4x8x128xbf16, #tpu.memory_space<vmem>>, vector<1x8x128xbf16>
    %22 = vector.shape_cast %21 : vector<1x8x128xbf16> to vector<8x128xbf16>
    %cst_13 = arith.constant dense<0.000000e+00> : vector<1122x128xf32>
    %23 = tpu.matmul %20, %22, %cst_13 {dimension_numbers = #tpu.dot_dimension_numbers<[1], [0], [0], [1], [0, 0, 1, 1], [], []>} : vector<1122x8xbf16>, vector<8x128xbf16>, vector<1122x128xf32> -> vector<1122x128xf32>
    %24 = arith.addf %18, %23 : vector<1122x128xf32>
    %25 = math.tanh %24 : vector<1122x128xf32>
    %c0_14 = arith.constant 0 : index
    %c0_15 = arith.constant 0 : index
    %c0_16 = arith.constant 0 : index
    %26 = vector.load %arg3[%c0_14, %c0_15, %c0_16] : memref<1x1122x128xf32, #tpu.memory_space<vmem>>, vector<1x1122x128xf32>
    %27 = vector.shape_cast %26 : vector<1x1122x128xf32> to vector<1122x128xf32>
    %28 = vector.shape_cast %25 : vector<1122x128xf32> to vector<1x1122x128xf32>
    tpu.vector_store %arg3[%c0_14, %c0_15, %c0_16], %28 {strides = array<i32>} : memref<1x1122x128xf32, #tpu.memory_space<vmem>>, vector<1x1122x128xf32>,
    return
  }
  func.func @transform_0(%arg0: i32) -> (i32, i32, i32) {
    %c0_i32 = arith.constant 0 : i32
    %c0_i32_0 = arith.constant 0 : i32
    %c0_i32_1 = arith.constant 0 : i32
    return %arg0, %c0_i32, %c0_i32_0 : i32, i32, i32
  }
  func.func @transform_1(%arg0: i32) -> (i32, i32, i32) {
    %c0_i32 = arith.constant 0 : i32
    %c0_i32_0 = arith.constant 0 : i32
    %c0_i32_1 = arith.constant 0 : i32
    %c0_i32_2 = arith.constant 0 : i32
    return %c0_i32, %c0_i32_0, %c0_i32_1 : i32, i32, i32
  }
  func.func @transform_2(%arg0: i32) -> (i32, i32, i32) {
    %c0_i32 = arith.constant 0 : i32
    %c0_i32_0 = arith.constant 0 : i32
    %c0_i32_1 = arith.constant 0 : i32
    return %arg0, %c0_i32, %c0_i32_0 : i32, i32, i32
  }
}

</mosaic_0001>

<llo_original>
// kernel: tile.47
$region0: #{tile.47}
  #allocation0 [shape = 's32[1]{0}', space=sflag, size = 0x4, scoped, tag = 'scoped memory for tile.47']
  %s0 = inlined_call_operand.vmem [shape: f32[64], index: 0, kind: input, shape index: {}]
  %s1 = inlined_call_operand.vmem [shape: f32[16,64], index: 1, kind: output, shape index: {}]
  // Predicated region
  $region2: #{tile.47} parent=0 // pred_check
    _
  $region3: #{tile.47} parent=0 // pred_check_branch
    %3 = sbr.rel (0) target = $region5
  $region4: #{tile.47} parent=0 // pred_region
    _
  $region5: #{tile.47} parent=0 // pred_fallthru
    _
  %v4 = vld [vmem:[%s0] ss:$0 sm:$0xff]
  %5 = vst [vmem:[%s1] sm:$0xff] %v4
  %s6 = scalar_lea.vmem %s1, 8
  %7 = vst [vmem:[%s6] sm:$0xff] %v4

// kernel: tile.49
$region0: #{tile.49}
  %s0 = inlined_call_operand.vmem [shape: f32[16,64], index: 0, kind: input, shape index: {}]
  %s1 = inlined_call_operand.vmem [shape: f32[1,1024], index: 1, kind: output, shape index: {}]
  $region1: #{tile.49} parent=0
    #allocation0 [shape = 'u8[32768]{0}', space=vmem, size = 0x8000, scoped, tag = 'scoped mem for output reshape']
    %v2 = vld [vmem:[%s0] ss:$2 sm:$0xff]
    %vm3 = vcmask 523264
    %4 = vst.msk [vmem:[#allocation0] ss:$8 sm:$0xf] %vm3, %v2
    %5 = vst.msk [vmem:[#allocation0] ss:$8 sm:$0xf0] %vm3, %v2
    %s6 = scalar_lea.vmem %s0, 1
    %v7 = vld [vmem:[%s6] ss:$2 sm:$0xff]
    %8 = vrot.lane.b32.xlu0 %v7, 64
    %v9 = vpop.permute.xlu0 %8
    %vm10 = vcmask 1048064
    %11 = vst.msk [vmem:[#allocation0] ss:$8 sm:$0xf] %vm10, %v9
    %12 = vst.msk [vmem:[#allocation0] ss:$8 sm:$0xf0] %vm10, %v9
    %s14 = ssub.s32 2, 1
    %v15 = vld [vmem:[#allocation0] sm:%s14]
    %s17 = ssub.s32 2, 1
    %18 = vst [vmem:[%s1] sm:%s17] %v15
    %s19 = scalar_lea.vmem [#allocation0], 8
    %v20 = vld [vmem:[%s19] sm:%s14]
    %s22 = ssub.s32 2, 1
    %s23 = scalar_lea.vmem %s1, 1
    %24 = vst [vmem:[%s23] sm:%s22] %v20
    %s25 = scalar_lea.vmem [#allocation0], 16
    %v26 = vld [vmem:[%s25] sm:%s14]
    %s28 = ssub.s32 2, 1
    %s29 = scalar_lea.vmem %s1, 2
    %30 = vst [vmem:[%s29] sm:%s28] %v26
    %s31 = scalar_lea.vmem [#allocation0], 24
    %v32 = vld [vmem:[%s31] sm:%s14]
    %s34 = ssub.s32 2, 1
    %s35 = scalar_lea.vmem %s1, 3
    %36 = vst [vmem:[%s35] sm:%s34] %v32
    %s37 = scalar_lea.vmem [#allocation0], 32
    %v38 = vld [vmem:[%s37] sm:%s14]
    %s40 = ssub.s32 2, 1
    %s41 = scalar_lea.vmem %s1, 4
    %42 = vst [vmem:[%s41] sm:%s40] %v38
    %s43 = scalar_lea.vmem [#allocation0], 40
    %v44 = vld [vmem:[%s43] sm:%s14]
    %s46 = ssub.s32 2, 1
    %s47 = scalar_lea.vmem %s1, 5
    %48 = vst [vmem:[%s47] sm:%s46] %v44
    %s49 = scalar_lea.vmem [#allocation0], 48
    %v50 = vld [vmem:[%s49] sm:%s14]
    %s52 = ssub.s32 2, 1
    %s53 = scalar_lea.vmem %s1, 6
    %54 = vst [vmem:[%s53] sm:%s52] %v50
    %s55 = scalar_lea.vmem [#allocation0], 56
    %v56 = vld [vmem:[%s55] sm:%s14]
    %s58 = ssub.s32 2, 1
    %s59 = scalar_lea.vmem %s1, 7
    %60 = vst [vmem:[%s59] sm:%s58] %v56

// kernel: tile.58
$region0: #{tile.58}
  #allocation0 [shape = 's32[1]{0}', space=sflag, size = 0x4, scoped, tag = 'scoped memory for tile.58']
  %s0 = inlined_call_operand.vmem [shape: f32[32], index: 0, kind: input, shape index: {}]
  %s1 = inlined_call_operand.vmem [shape: f32[4,32], index: 1, kind: output, shape index: {}]
  // Predicated region
  $region2: #{tile.58} parent=0 // pred_check
    _
  $region3: #{tile.58} parent=0 // pred_check_branch
    %3 = sbr.rel (0) target = $region5
  $region4: #{tile.58} parent=0 // pred_region
    _
  $region5: #{tile.58} parent=0 // pred_fallthru
    _
  %v4 = vld [vmem:[%s0] ss:$0 sm:$0xff]
  %5 = vst [vmem:[%s1] sm:$0xf] %v4

// kernel: _lambda_.9
$region0: #{_lambda_.9}
  #allocation0 [shape = 'u32[]', space=smem, size = 0x4, offset = 0x4, fixed_abs, tag = 'smem constant byte address 0x4 - core index']
  #allocation1 [shape = 'u32[72,128]{1,0:T(1,128)}', space=vmem, size = 0x9000, scoped, tag = 'internal scratch']
  %s0 = inlined_call_operand.vmem [shape: f32[2,16], index: 0, kind: input, shape index: {}]
  %s1 = inlined_call_operand.hbm [shape: bf16[16,1024], index: 1, kind: input, shape index: {}]
  %s2 = inlined_call_operand.vmem [shape: f32[2,1024], index: 2, kind: output, shape index: {0}]
  %s3 = inlined_call_operand.vmem [shape: f32[1,1024], index: 3, kind: output, shape index: {1}]
  %s4 = inlined_call_operand.vmem [shape: f32[1,1024], index: 4, kind: output, shape index: {2}]
  %5 = xla_tuple %s2, %s3, %s4
  %s6 = sld [smem:[#allocation0]]
  $region38: #{_lambda_.9} parent=0
    _
  %s8 = ssub.s32 1, %s6
  %s9 = scalar_select 0, %s8, %s6
  $region1: #{_lambda_.9} parent=0
    #allocation2 [shape = 'u8[32768]{0}', space=vmem, size = 0x8000, scoped, tag = 'input window, operand 1, single buffered']
    #allocation3 [shape = 's32[1]{0}', space=sflag, size = 0x4, scoped, tag = 'scoped memory for _lambda_.9']
    %10 = vsyncpa [#allocation3], 0
    // Predicated region
    $region2: #{_lambda_.9} parent=1 // pred_check
      _
    $region3: #{_lambda_.9} parent=1 // pred_check_branch
      %12 = sbr.rel (0) target = $region5
    $region4: #{_lambda_.9} parent=1 // pred_region
      _
    $region5: #{_lambda_.9} parent=1 // pred_fallthru
      _
    // Predicated region
    $region6: #{_lambda_.9} parent=1 // pred_check
      _
    $region7: #{_lambda_.9} parent=1 // pred_check_branch
      %14 = sbr.rel (0) target = $region9
    $region8: #{_lambda_.9} parent=1 // pred_region
      %16 = vsyncadd [#allocation3], 0
      %s17 = sshll.u32 %s1, 4
      %s18 = int_to_ptr.hbm [resolvable:$true] %s17
      %s19 = sshll.u32 [#allocation2], 4
      %s20 = int_to_ptr.vmem [resolvable:$true] %s19
      %25 = dma.hbm_to_vmem [thread:$0]  %s18, 1024, %s20, [#allocation3], 512, 512, 32
    $region9: #{_lambda_.9} parent=1 // pred_fallthru
      _
    // Predicated region
    $region10: #{_lambda_.9} parent=1 // pred_check
      _
    $region11: #{_lambda_.9} parent=1 // pred_check_branch
      %27 = sbr.rel (0) target = $region13
    $region12: #{_lambda_.9} parent=1 // pred_region
      %29 = dma.done [#allocation3], 1024
    $region13: #{_lambda_.9} parent=1 // pred_fallthru
      _
    %v31 = vld [vmem:[%s0] sm:$0x3]
    %v32 = vpack.c.bf16 %v31, %v31
    %v33 = vld [vmem:[#allocation2] sm:$0xff]
    %v34 = vld [vmem:[#allocation2 + $0x8] sm:$0xff]
    %v35 = vld [vmem:[#allocation2 + $0x10] sm:$0xff]
    %v36 = vld [vmem:[#allocation2 + $0x18] sm:$0xff]
    %v37 = vld [vmem:[#allocation2 + $0x20] sm:$0xff]
    %v38 = vld [vmem:[#allocation2 + $0x28] sm:$0xff]
    %v39 = vld [vmem:[#allocation2 + $0x30] sm:$0xff]
    %v40 = vld [vmem:[#allocation2 + $0x38] sm:$0xff]
    %v49 = vunpack.c.l.b16 %v33
    %v50 = vunpack.c.h.b16 %v33
    %v51 = vunpack.c.l.b16 %v34
    %v52 = vunpack.c.h.b16 %v34
    %v53 = vunpack.c.l.b16 %v35
    %v54 = vunpack.c.h.b16 %v35
    %v55 = vunpack.c.l.b16 %v36
    %v56 = vunpack.c.h.b16 %v36
    %v57 = vunpack.c.l.b16 %v37
    %v58 = vunpack.c.h.b16 %v37
    %v59 = vunpack.c.l.b16 %v38
    %v60 = vunpack.c.h.b16 %v38
    %v61 = vunpack.c.l.b16 %v39
    %v62 = vunpack.c.h.b16 %v39
    %v63 = vunpack.c.l.b16 %v40
    %v64 = vunpack.c.h.b16 %v40
    %v65 = vpack.c.b16 %v57, %v49
    %v66 = vpack.c.b16 %v58, %v50
    %v67 = vpack.c.b16 %v59, %v51
    %v68 = vpack.c.b16 %v60, %v52
    %v69 = vpack.c.b16 %v61, %v53
    %v70 = vpack.c.b16 %v62, %v54
    %v71 = vpack.c.b16 %v63, %v55
    %v72 = vpack.c.b16 %v64, %v56
    %vm81 = vcmask 130048
    %v83 = vsel %vm81, %v32, 0
    %85 = vmatpush.bf16.msra.mxu0 0
    %86 = vmatpush.bf16.msra.mxu0 0
    %87 = vmatpush.bf16.msra.mxu0 0
    %88 = vmatpush.bf16.msra.mxu0 0
    %89 = vmatpush.bf16.msra.mxu0 0
    %90 = vmatpush.bf16.msra.mxu0 0
    %91 = vmatpush.bf16.msra.mxu0 0
    %92 = vmatpush.bf16.msra.mxu0 %v65
    %93 = vmatmul.bf16.gmra.mxu0 %v83
    %v94 = vpop.f32.mrf.mxu0
    %v95 = vadd.f32 0.0, %v94
    %v96 = vpop.f32.mrf.mxu0
    %97 = vdwg.mxu0
    %98 = vmatpush.bf16.msra.mxu0 0
    %99 = vmatpush.bf16.msra.mxu0 0
    %100 = vmatpush.bf16.msra.mxu0 0
    %101 = vmatpush.bf16.msra.mxu0 0
    %102 = vmatpush.bf16.msra.mxu0 0
    %103 = vmatpush.bf16.msra.mxu0 0
    %104 = vmatpush.bf16.msra.mxu0 0
    %105 = vmatpush.bf16.msra.mxu0 %v66
    %106 = vmatmul.bf16.gmra.mxu0 %v83
    %v107 = vpop.f32.mrf.mxu0
    %v108 = vadd.f32 0.0, %v107
    %v109 = vpop.f32.mrf.mxu0
    %110 = vdwg.mxu0
    %111 = vmatpush.bf16.msra.mxu0 0
    %112 = vmatpush.bf16.msra.mxu0 0
    %113 = vmatpush.bf16.msra.mxu0 0
    %114 = vmatpush.bf16.msra.mxu0 0
    %115 = vmatpush.bf16.msra.mxu0 0
    %116 = vmatpush.bf16.msra.mxu0 0
    %117 = vmatpush.bf16.msra.mxu0 0
    %118 = vmatpush.bf16.msra.mxu0 %v67
    %119 = vmatmul.bf16.gmra.mxu0 %v83
    %v120 = vpop.f32.mrf.mxu0
    %v121 = vadd.f32 0.0, %v120
    %v122 = vpop.f32.mrf.mxu0
    %123 = vdwg.mxu0
    %124 = vmatpush.bf16.msra.mxu0 0
    %125 = vmatpush.bf16.msra.mxu0 0
    %126 = vmatpush.bf16.msra.mxu0 0
    %127 = vmatpush.bf16.msra.mxu0 0
    %128 = vmatpush.bf16.msra.mxu0 0
    %129 = vmatpush.bf16.msra.mxu0 0
    %130 = vmatpush.bf16.msra.mxu0 0
    %131 = vmatpush.bf16.msra.mxu0 %v68
    %132 = vmatmul.bf16.gmra.mxu0 %v83
    %v133 = vpop.f32.mrf.mxu0
    %v134 = vadd.f32 0.0, %v133
    %v135 = vpop.f32.mrf.mxu0
    %136 = vdwg.mxu0
    %137 = vmatpush.bf16.msra.mxu0 0
    %138 = vmatpush.bf16.msra.mxu0 0
    %139 = vmatpush.bf16.msra.mxu0 0
    %140 = vmatpush.bf16.msra.mxu0 0
    %141 = vmatpush.bf16.msra.mxu0 0
    %142 = vmatpush.bf16.msra.mxu0 0
    %143 = vmatpush.bf16.msra.mxu0 0
    %144 = vmatpush.bf16.msra.mxu0 %v69
    %145 = vmatmul.bf16.gmra.mxu0 %v83
    %v146 = vpop.f32.mrf.mxu0
    %v147 = vadd.f32 0.0, %v146
    %v148 = vpop.f32.mrf.mxu0
    %149 = vdwg.mxu0
    %150 = vmatpush.bf16.msra.mxu0 0
    %151 = vmatpush.bf16.msra.mxu0 0
    %152 = vmatpush.bf16.msra.mxu0 0
    %153 = vmatpush.bf16.msra.mxu0 0
    %154 = vmatpush.bf16.msra.mxu0 0
    %155 = vmatpush.bf16.msra.mxu0 0
    %156 = vmatpush.bf16.msra.mxu0 0
    %157 = vmatpush.bf16.msra.mxu0 %v70
    %158 = vmatmul.bf16.gmra.mxu0 %v83
    %v159 = vpop.f32.mrf.mxu0
    %v160 = vadd.f32 0.0, %v159
    %v161 = vpop.f32.mrf.mxu0
    %162 = vdwg.mxu0
    %163 = vmatpush.bf16.msra.mxu0 0
    %164 = vmatpush.bf16.msra.mxu0 0
    %165 = vmatpush.bf16.msra.mxu0 0
    %166 = vmatpush.bf16.msra.mxu0 0
    %167 = vmatpush.bf16.msra.mxu0 0
    %168 = vmatpush.bf16.msra.mxu0 0
    %169 = vmatpush.bf16.msra.mxu0 0
    %170 = vmatpush.bf16.msra.mxu0 %v71
    %171 = vmatmul.bf16.gmra.mxu0 %v83
    %v172 = vpop.f32.mrf.mxu0
    %v173 = vadd.f32 0.0, %v172
    %v174 = vpop.f32.mrf.mxu0
    %175 = vdwg.mxu0
    %176 = vmatpush.bf16.msra.mxu0 0
    %177 = vmatpush.bf16.msra.mxu0 0
    %178 = vmatpush.bf16.msra.mxu0 0
    %179 = vmatpush.bf16.msra.mxu0 0
    %180 = vmatpush.bf16.msra.mxu0 0
    %181 = vmatpush.bf16.msra.mxu0 0
    %182 = vmatpush.bf16.msra.mxu0 0
    %183 = vmatpush.bf16.msra.mxu0 %v72
    %184 = vmatmul.bf16.gmra.mxu0 %v83
    %v185 = vpop.f32.mrf.mxu0
    %v186 = vadd.f32 0.0, %v185
    %v187 = vpop.f32.mrf.mxu0
    %188 = vdwg.mxu0
    %v197 = vrot.slane %v108, 6
    %v198 = vrot.slane %v121, 4
    %v199 = vrot.slane %v134, 2
    %v200 = vrot.slane %v160, 6
    %v201 = vrot.slane %v173, 4
    %v202 = vrot.slane %v186, 2
    %vm203 = vcmask 1041408
    %v204 = vsel %vm203, %v95, %v197
    %vm205 = vcmask 1045508
    %v206 = vsel %vm205, %v198, %v199
    %vm207 = vcmask 1043456
    %v208 = vsel %vm207, %v204, %v206
    %v209 = vsel %vm203, %v147, %v200
    %v210 = vsel %vm205, %v201, %v202
    %v211 = vsel %vm207, %v209, %v210
    %214 = vst [vmem:[%s2] sm:$0xff] %v208
    %215 = vst [vmem:[%s2 + $0x8] sm:$0xff] %v211
    %v216 = vsel %vm203, %v95, 0.0
    %v217 = vrot.slane %v216, 4
    %v218 = vadd.f32 %v216, %v217
    %v219 = vrot.slane %v218, 2
    %v220 = vadd.f32 %v218, %v219
    %v221 = vrot.slane %v220, 1
    %v222 = vadd.f32 %v220, %v221
    %v223 = vsel %vm203, %v108, 0.0
    %v224 = vrot.slane %v223, 4
    %v225 = vadd.f32 %v223, %v224
    %v226 = vrot.slane %v225, 2
    %v227 = vadd.f32 %v225, %v226
    %v228 = vrot.slane %v227, 1
    %v229 = vadd.f32 %v227, %v228
    %v230 = vsel %vm203, %v121, 0.0
    %v231 = vrot.slane %v230, 4
    %v232 = vadd.f32 %v230, %v231
    %v233 = vrot.slane %v232, 2
    %v234 = vadd.f32 %v232, %v233
    %v235 = vrot.slane %v234, 1
    %v236 = vadd.f32 %v234, %v235
    %v237 = vsel %vm203, %v134, 0.0
    %v238 = vrot.slane %v237, 4
    %v239 = vadd.f32 %v237, %v238
    %v240 = vrot.slane %v239, 2
    %v241 = vadd.f32 %v239, %v240
    %v242 = vrot.slane %v241, 1
    %v243 = vadd.f32 %v241, %v242
    %v244 = vsel %vm203, %v147, 0.0
    %v245 = vrot.slane %v244, 4
    %v246 = vadd.f32 %v244, %v245
    %v247 = vrot.slane %v246, 2
    %v248 = vadd.f32 %v246, %v247
    %v249 = vrot.slane %v248, 1
    %v250 = vadd.f32 %v248, %v249
    %v251 = vsel %vm203, %v160, 0.0
    %v252 = vrot.slane %v251, 4
    %v253 = vadd.f32 %v251, %v252
    %v254 = vrot.slane %v253, 2
    %v255 = vadd.f32 %v253, %v254
    %v256 = vrot.slane %v255, 1
    %v257 = vadd.f32 %v255, %v256
    %v258 = vsel %vm203, %v173, 0.0
    %v259 = vrot.slane %v258, 4
    %v260 = vadd.f32 %v258, %v259
    %v261 = vrot.slane %v260, 2
    %v262 = vadd.f32 %v260, %v261
    %v263 = vrot.slane %v262, 1
    %v264 = vadd.f32 %v262, %v263
    %v265 = vsel %vm203, %v186, 0.0
    %v266 = vrot.slane %v265, 4
    %v267 = vadd.f32 %v265, %v266
    %v268 = vrot.slane %v267, 2
    %v269 = vadd.f32 %v267, %v268
    %v270 = vrot.slane %v269, 1
    %v271 = vadd.f32 %v269, %v270
    %v280 = vrot.slane %v229, 7
    %v281 = vrot.slane %v236, 6
    %v282 = vrot.slane %v243, 5
    %v283 = vrot.slane %v250, 4
    %v284 = vrot.slane %v257, 3
    %v285 = vrot.slane %v264, 2
    %v286 = vrot.slane %v271, 1
    %vm287 = vcmask 1040384
    %v288 = vsel %vm287, %v222, %v280
    %vm289 = vcmask 1042434
    %v290 = vsel %vm289, %v281, %v282
    %v291 = vsel %vm203, %v288, %v290
    %vm292 = vcmask 1044484
    %v293 = vsel %vm292, %v283, %v284
    %vm294 = vcmask 1046534
    %v295 = vsel %vm294, %v285, %v286
    %v296 = vsel %vm205, %v293, %v295
    %v297 = vsel %vm207, %v291, %v296
    %299 = vst [vmem:[%s3] sm:$0xff] %v297
    %v300 = vmul.f32 %v95, %v95
    %v301 = vmul.f32 %v108, %v108
    %v302 = vmul.f32 %v121, %v121
    %v303 = vmul.f32 %v134, %v134
    %v304 = vmul.f32 %v147, %v147
    %v305 = vmul.f32 %v160, %v160
    %v306 = vmul.f32 %v173, %v173
    %v307 = vmul.f32 %v186, %v186
    %v308 = vsel %vm203, %v300, 0.0
    %v309 = vrot.slane %v308, 4
    %v310 = vadd.f32 %v308, %v309
    %v311 = vrot.slane %v310, 2
    %v312 = vadd.f32 %v310, %v311
    %v313 = vrot.slane %v312, 1
    %v314 = vadd.f32 %v312, %v313
    %v315 = vsel %vm203, %v301, 0.0
    %v316 = vrot.slane %v315, 4
    %v317 = vadd.f32 %v315, %v316
    %v318 = vrot.slane %v317, 2
    %v319 = vadd.f32 %v317, %v318
    %v320 = vrot.slane %v319, 1
    %v321 = vadd.f32 %v319, %v320
    %v322 = vsel %vm203, %v302, 0.0
    %v323 = vrot.slane %v322, 4
    %v324 = vadd.f32 %v322, %v323
    %v325 = vrot.slane %v324, 2
    %v326 = vadd.f32 %v324, %v325
    %v327 = vrot.slane %v326, 1
    %v328 = vadd.f32 %v326, %v327
    %v329 = vsel %vm203, %v303, 0.0
    %v330 = vrot.slane %v329, 4
    %v331 = vadd.f32 %v329, %v330
    %v332 = vrot.slane %v331, 2
    %v333 = vadd.f32 %v331, %v332
    %v334 = vrot.slane %v333, 1
    %v335 = vadd.f32 %v333, %v334
    %v336 = vsel %vm203, %v304, 0.0
    %v337 = vrot.slane %v336, 4
    %v338 = vadd.f32 %v336, %v337
    %v339 = vrot.slane %v338, 2
    %v340 = vadd.f32 %v338, %v339
    %v341 = vrot.slane %v340, 1
    %v342 = vadd.f32 %v340, %v341
    %v343 = vsel %vm203, %v305, 0.0
    %v344 = vrot.slane %v343, 4
    %v345 = vadd.f32 %v343, %v344
    %v346 = vrot.slane %v345, 2
    %v347 = vadd.f32 %v345, %v346
    %v348 = vrot.slane %v347, 1
    %v349 = vadd.f32 %v347, %v348
    %v350 = vsel %vm203, %v306, 0.0
    %v351 = vrot.slane %v350, 4
    %v352 = vadd.f32 %v350, %v351
    %v353 = vrot.slane %v352, 2
    %v354 = vadd.f32 %v352, %v353
    %v355 = vrot.slane %v354, 1
    %v356 = vadd.f32 %v354, %v355
    %v357 = vsel %vm203, %v307, 0.0
    %v358 = vrot.slane %v357, 4
    %v359 = vadd.f32 %v357, %v358
    %v360 = vrot.slane %v359, 2
    %v361 = vadd.f32 %v359, %v360
    %v362 = vrot.slane %v361, 1
    %v363 = vadd.f32 %v361, %v362
    %v372 = vrot.slane %v321, 7
    %v373 = vrot.slane %v328, 6
    %v374 = vrot.slane %v335, 5
    %v375 = vrot.slane %v342, 4
    %v376 = vrot.slane %v349, 3
    %v377 = vrot.slane %v356, 2
    %v378 = vrot.slane %v363, 1
    %v379 = vsel %vm287, %v314, %v372
    %v380 = vsel %vm289, %v373, %v374
    %v381 = vsel %vm203, %v379, %v380
    %v382 = vsel %vm292, %v375, %v376
    %v383 = vsel %vm294, %v377, %v378
    %v384 = vsel %vm205, %v382, %v383
    %v385 = vsel %vm207, %v381, %v384
    %387 = vst [vmem:[%s4] sm:$0xff] %v385
    // Predicated region
    $region14: #{_lambda_.9} parent=1 // pred_check
      _
    $region15: #{_lambda_.9} parent=1 // pred_check_branch
      %389 = sbr.rel (0) target = $region17
    $region16: #{_lambda_.9} parent=1 // pred_region
      _
    $region17: #{_lambda_.9} parent=1 // pred_fallthru
      _
    // Predicated region
    $region18: #{_lambda_.9} parent=1 // pred_check
      _
    $region19: #{_lambda_.9} parent=1 // pred_check_branch
      %391 = sbr.rel (0) target = $region21
    $region20: #{_lambda_.9} parent=1 // pred_region
      _
    $region21: #{_lambda_.9} parent=1 // pred_fallthru
      _
    // Predicated region
    $region22: #{_lambda_.9} parent=1 // pred_check
      _
    $region23: #{_lambda_.9} parent=1 // pred_check_branch
      %393 = sbr.rel (0) target = $region25
    $region24: #{_lambda_.9} parent=1 // pred_region
      _
    $region25: #{_lambda_.9} parent=1 // pred_fallthru
      _
    // Predicated region
    $region26: #{_lambda_.9} parent=1 // pred_check
      _
    $region27: #{_lambda_.9} parent=1 // pred_check_branch
      %395 = sbr.rel (0) target = $region29
    $region28: #{_lambda_.9} parent=1 // pred_region
      _
    $region29: #{_lambda_.9} parent=1 // pred_fallthru
      _
    // Predicated region
    $region30: #{_lambda_.9} parent=1 // pred_check
      _
    $region31: #{_lambda_.9} parent=1 // pred_check_branch
      %397 = sbr.rel (0) target = $region33
    $region32: #{_lambda_.9} parent=1 // pred_region
      _
    $region33: #{_lambda_.9} parent=1 // pred_fallthru
      _
    // Predicated region
    $region34: #{_lambda_.9} parent=1 // pred_check
      _
    $region35: #{_lambda_.9} parent=1 // pred_check_branch
      %399 = sbr.rel (0) target = $region37
    $region36: #{_lambda_.9} parent=1 // pred_region
      _
    $region37: #{_lambda_.9} parent=1 // pred_fallthru
      _
    %400 = vsyncpa [#allocation3], 1

// kernel: _lambda_.10
$region0: #{_lambda_.10}
  #allocation0 [shape = 'u32[]', space=smem, size = 0x4, offset = 0x4, fixed_abs, tag = 'smem constant byte address 0x4 - core index']
  #allocation1 [shape = 'u32[72,128]{1,0:T(1,128)}', space=vmem, size = 0x9000, scoped, tag = 'internal scratch']
  %s0 = inlined_call_operand.vmem [shape: f32[1,2,1024], index: 0, kind: input, shape index: {}]
  %s1 = inlined_call_operand.vmem [shape: f32[1,1024], index: 1, kind: input, shape index: {}]
  %s2 = inlined_call_operand.vmem [shape: f32[1,1024], index: 2, kind: input, shape index: {}]
  %s3 = inlined_call_operand.vmem [shape: f32[1,2,1024], index: 3, kind: output, shape index: {}]
  %s4 = sld [smem:[#allocation0]]
  $region22: #{_lambda_.10} parent=0
    _
  %s6 = ssub.s32 1, %s4
  %s7 = scalar_select 0, %s6, %s4
  // Predicated region
  $region2: #{_lambda_.10} parent=0 // pred_check
    _
  $region3: #{_lambda_.10} parent=0 // pred_check_branch
    %9 = sbr.rel (0) target = $region5
  $region4: #{_lambda_.10} parent=0 // pred_region
    _
  $region5: #{_lambda_.10} parent=0 // pred_fallthru
    _
  // Predicated region
  $region6: #{_lambda_.10} parent=0 // pred_check
    _
  $region7: #{_lambda_.10} parent=0 // pred_check_branch
    %11 = sbr.rel (0) target = $region9
  $region8: #{_lambda_.10} parent=0 // pred_region
    _
  $region9: #{_lambda_.10} parent=0 // pred_fallthru
    _
  // Predicated region
  $region10: #{_lambda_.10} parent=0 // pred_check
    _
  $region11: #{_lambda_.10} parent=0 // pred_check_branch
    %13 = sbr.rel (0) target = $region13
  $region12: #{_lambda_.10} parent=0 // pred_region
    _
  $region13: #{_lambda_.10} parent=0 // pred_fallthru
    _
  %v14 = vld [vmem:[%s0] sm:$0xff]
  %v15 = vld [vmem:[%s0 + $0x8] sm:$0xff]
  %v16 = vld [vmem:[%s1] sm:$0xff]
  %v18 = vperm.slane %v16, 0
  %v19 = vperm.slane %v16, 1
  %v20 = vperm.slane %v16, 2
  %v21 = vperm.slane %v16, 3
  %v22 = vperm.slane %v16, 4
  %v23 = vperm.slane %v16, 5
  %v24 = vperm.slane %v16, 6
  %v25 = vperm.slane %v16, 7
  %v26 = vrot.slane %v19, 6
  %v27 = vrot.slane %v20, 4
  %v28 = vrot.slane %v21, 2
  %v29 = vrot.slane %v23, 6
  %v30 = vrot.slane %v24, 4
  %v31 = vrot.slane %v25, 2
  %vm32 = vcmask 1041408
  %v33 = vsel %vm32, %v18, %v26
  %vm34 = vcmask 1045508
  %v35 = vsel %vm34, %v27, %v28
  %vm36 = vcmask 1043456
  %v37 = vsel %vm36, %v33, %v35
  %v38 = vsel %vm32, %v22, %v29
  %v39 = vsel %vm34, %v30, %v31
  %v40 = vsel %vm36, %v38, %v39
  %v43 = vmul.f32 %v14, %v37
  %v44 = vmul.f32 %v15, %v40
  %v45 = vld [vmem:[%s2] sm:$0xff]
  %v47 = vperm.slane %v45, 0
  %v48 = vperm.slane %v45, 1
  %v49 = vperm.slane %v45, 2
  %v50 = vperm.slane %v45, 3
  %v51 = vperm.slane %v45, 4
  %v52 = vperm.slane %v45, 5
  %v53 = vperm.slane %v45, 6
  %v54 = vperm.slane %v45, 7
  %v55 = vrot.slane %v48, 6
  %v56 = vrot.slane %v49, 4
  %v57 = vrot.slane %v50, 2
  %v58 = vrot.slane %v52, 6
  %v59 = vrot.slane %v53, 4
  %v60 = vrot.slane %v54, 2
  %v61 = vsel %vm32, %v47, %v55
  %v62 = vsel %vm34, %v56, %v57
  %v63 = vsel %vm36, %v61, %v62
  %v64 = vsel %vm32, %v51, %v58
  %v65 = vsel %vm34, %v59, %v60
  %v66 = vsel %vm36, %v64, %v65
  %v69 = vadd.f32 %v43, %v63
  %v70 = vadd.f32 %v44, %v66
  %v71 = vmax.f32 %v69, 0.0
  %v72 = vmax.f32 %v70, 0.0
  %73 = vst [vmem:[%s3] sm:$0xff] %v71
  %74 = vst [vmem:[%s3 + $0x8] sm:$0xff] %v72
  // Predicated region
  $region14: #{_lambda_.10} parent=0 // pred_check
    _
  $region15: #{_lambda_.10} parent=0 // pred_check_branch
    %76 = sbr.rel (0) target = $region17
  $region16: #{_lambda_.10} parent=0 // pred_region
    _
  $region17: #{_lambda_.10} parent=0 // pred_fallthru
    _
  // Predicated region
  $region18: #{_lambda_.10} parent=0 // pred_check
    _
  $region19: #{_lambda_.10} parent=0 // pred_check_branch
    %78 = sbr.rel (0) target = $region21
  $region20: #{_lambda_.10} parent=0 // pred_region
    _
  $region21: #{_lambda_.10} parent=0 // pred_fallthru
    _

// kernel: _lambda_.11
$region0: #{_lambda_.11}
  #allocation0 [shape = 'u32[]', space=smem, size = 0x4, offset = 0x4, fixed_abs, tag = 'smem constant byte address 0x4 - core index']
  #allocation1 [shape = 'u32[72,128]{1,0:T(1,128)}', space=vmem, size = 0x9000, scoped, tag = 'internal scratch']
  %s0 = inlined_call_operand.vmem [shape: f32[2,42,64], index: 0, kind: input, shape index: {}]
  %s1 = inlined_call_operand.hbm [shape: bf16[4,64,128], index: 1, kind: input, shape index: {}]
  %s2 = inlined_call_operand.hbm [shape: f32[30,128], index: 2, kind: input, shape index: {}]
  %s3 = inlined_call_operand.vmem [shape: f32[2,30,128], index: 3, kind: output, shape index: {0}]
  %s4 = inlined_call_operand.vmem [shape: f32[2,1,128], index: 4, kind: output, shape index: {1}]
  %s5 = inlined_call_operand.vmem [shape: f32[2,1,128], index: 5, kind: output, shape index: {2}]
  %6 = xla_tuple %s3, %s4, %s5
  %s7 = sld [smem:[#allocation0]]
  $region69: #{_lambda_.11} parent=0
    _
  %s9 = ssub.s32 1, %s7
  %s10 = scalar_select 0, %s9, %s7
  $region1: #{_lambda_.11} parent=0
    #allocation2 [shape = 'u8[65536]{0}', space=vmem, size = 0x10000, scoped, tag = 'input window, operand 1, single buffered']
    #allocation3 [shape = 's32[2]{0}', space=sflag, size = 0x8, scoped, tag = 'scoped memory for _lambda_.11']
    #allocation4 [shape = 'u8[16384]{0}', space=vmem, size = 0x4000, scoped, tag = 'input window, operand 2, single buffered']
    #allocation5 [shape = 's32[1]{0}', space=sflag, size = 0x4, scoped, tag = 'scoped memory for _lambda_.11']
    %11 = vsyncpa [#allocation3], 0
    %12 = vsyncpa [#allocation5], 0
    loop: start=0, step=1, limit=4
    $region2: #{_lambda_.11} parent=1 // loop_pre_header
      _
    $region3: #{_lambda_.11} parent=1 // loop_header
      %s14 = sphi 0, %s18
      %p15 = scmp.ge.s32.totalorder %s14, 4
      %s24 = sphi 0, %s26
      %s27 = sphi 0, %s24
      %s28 = sphi 0, %s27
      %s44 = sphi 0, %s28
      %s48 = sphi 0, %s48
      %s50 = sphi 0, %s48
      %s51 = sphi 0, %s50
      %s65 = sphi 0, %s51
      %s69 = sphi 0, %s69
      %s71 = sphi 0, %s69
      %s72 = sphi 0, %s71
      %s86 = sphi 0, %s72
      %s92 = sphi 0, %s94
      %s95 = sphi 0, %s92
      %s96 = sphi 0, %s95
      %s112 = sphi 0, %s96
      %s118 = sphi 0, %s120
      %s121 = sphi 0, %s118
      %s122 = sphi 0, %s121
      %s138 = sphi 0, %s122
      %s144 = sphi 0, %s146
      %s147 = sphi 0, %s144
      %s148 = sphi 0, %s147
      %s164 = sphi 0, %s148
    $region4: #{_lambda_.11} parent=1 // loop_header_branch
      %17 = sbr.rel (%p15) target = $region8
    $region5: #{_lambda_.11} parent=1 // loop_body
      %s19 = ssub.s32 %s14, 1
      %s20 = ssub.s32 %s14, 2
      %s21 = sadd.s32 %s14, 1
      %s22 = ssub.s32 %s14, %s21
      %p23 = scmp.eq.s32.totalorder %s22, 0
      %s25 = sadd.s32 %s24, 1
      %s26 = scalar_select %p23, %s24, %s25
      %p29 = pneg %p23
      %p30 = scmp.eq.s32.totalorder %s14, 1
      %p31 = por %p29, %p30
      %p32 = scmp.ne.s32.totalorder %s24, %s27
      %p33 = scmp.eq.s32.totalorder %s14, 0
      %p34 = por %p32, %p33
      %p35 = scmp.ne.s32.totalorder %s24, %s27
      %p36 = scmp.eq.s32.totalorder %s19, 1
      %p37 = por %p35, %p36
      %p38 = scmp.ne.s32.totalorder %s27, %s28
      %p39 = scmp.eq.s32.totalorder %s19, 0
      %p40 = por %p38, %p39
      %p41 = scmp.ne.s32.totalorder %s27, %s28
      %p42 = scmp.eq.s32.totalorder %s20, 1
      %p43 = por %p41, %p42
      %p45 = scmp.ne.s32.totalorder %s28, %s44
      %p46 = scmp.eq.s32.totalorder %s20, 0
      %p47 = por %p45, %p46
      %s49 = sadd.s32 %s48, 1
      %p52 = scmp.eq.s32.totalorder %s14, 1
      %p53 = scmp.ne.s32.totalorder %s48, %s50
      %p54 = scmp.eq.s32.totalorder %s14, 0
      %p55 = por %p53, %p54
      %p56 = scmp.ne.s32.totalorder %s48, %s50
      %p57 = scmp.eq.s32.totalorder %s19, 1
      %p58 = por %p56, %p57
      %p59 = scmp.ne.s32.totalorder %s50, %s51
      %p60 = scmp.eq.s32.totalorder %s19, 0
      %p61 = por %p59, %p60
      %p62 = scmp.ne.s32.totalorder %s50, %s51
      %p63 = scmp.eq.s32.totalorder %s20, 1
      %p64 = por %p62, %p63
      %p66 = scmp.ne.s32.totalorder %s51, %s65
      %p67 = scmp.eq.s32.totalorder %s20, 0
      %p68 = por %p66, %p67
      %s70 = sadd.s32 %s69, 1
      %p73 = scmp.eq.s32.totalorder %s14, 1
      %p74 = scmp.ne.s32.totalorder %s69, %s71
      %p75 = scmp.eq.s32.totalorder %s14, 0
      %p76 = por %p74, %p75
      %p77 = scmp.ne.s32.totalorder %s69, %s71
      %p78 = scmp.eq.s32.totalorder %s19, 1
      %p79 = por %p77, %p78
      %p80 = scmp.ne.s32.totalorder %s71, %s72
      %p81 = scmp.eq.s32.totalorder %s19, 0
      %p82 = por %p80, %p81
      %p83 = scmp.ne.s32.totalorder %s71, %s72
      %p84 = scmp.eq.s32.totalorder %s20, 1
      %p85 = por %p83, %p84
      %p87 = scmp.ne.s32.totalorder %s72, %s86
      %p88 = scmp.eq.s32.totalorder %s20, 0
      %p89 = por %p87, %p88
      %s90 = ssub.s32 %s14, %s21
      %p91 = scmp.eq.s32.totalorder %s90, 0
      %s93 = sadd.s32 %s92, 1
      %s94 = scalar_select %p91, %s92, %s93
      %p97 = pneg %p91
      %p98 = scmp.eq.s32.totalorder %s14, 1
      %p99 = por %p97, %p98
      %p100 = scmp.ne.s32.totalorder %s92, %s95
      %p101 = scmp.eq.s32.totalorder %s14, 0
      %p102 = por %p100, %p101
      %p103 = scmp.ne.s32.totalorder %s92, %s95
      %p104 = scmp.eq.s32.totalorder %s19, 1
      %p105 = por %p103, %p104
      %p106 = scmp.ne.s32.totalorder %s95, %s96
      %p107 = scmp.eq.s32.totalorder %s19, 0
      %p108 = por %p106, %p107
      %p109 = scmp.ne.s32.totalorder %s95, %s96
      %p110 = scmp.eq.s32.totalorder %s20, 1
      %p111 = por %p109, %p110
      %p113 = scmp.ne.s32.totalorder %s96, %s112
      %p114 = scmp.eq.s32.totalorder %s20, 0
      %p115 = por %p113, %p114
      %s116 = ssub.s32 %s14, %s21
      %p117 = scmp.eq.s32.totalorder %s116, 0
      %s119 = sadd.s32 %s118, 1
      %s120 = scalar_select %p117, %s118, %s119
      %p123 = pneg %p117
      %p124 = scmp.eq.s32.totalorder %s14, 1
      %p125 = por %p123, %p124
      %p126 = scmp.ne.s32.totalorder %s118, %s121
      %p127 = scmp.eq.s32.totalorder %s14, 0
      %p128 = por %p126, %p127
      %p129 = scmp.ne.s32.totalorder %s118, %s121
      %p130 = scmp.eq.s32.totalorder %s19, 1
      %p131 = por %p129, %p130
      %p132 = scmp.ne.s32.totalorder %s121, %s122
      %p133 = scmp.eq.s32.totalorder %s19, 0
      %p134 = por %p132, %p133
      %p135 = scmp.ne.s32.totalorder %s121, %s122
      %p136 = scmp.eq.s32.totalorder %s20, 1
      %p137 = por %p135, %p136
      %p139 = scmp.ne.s32.totalorder %s122, %s138
      %p140 = scmp.eq.s32.totalorder %s20, 0
      %p141 = por %p139, %p140
      %s142 = ssub.s32 %s14, %s21
      %p143 = scmp.eq.s32.totalorder %s142, 0
      %s145 = sadd.s32 %s144, 1
      %s146 = scalar_select %p143, %s144, %s145
      %p149 = pneg %p143
      %p150 = scmp.eq.s32.totalorder %s14, 1
      %p151 = por %p149, %p150
      %p152 = scmp.ne.s32.totalorder %s144, %s147
      %p153 = scmp.eq.s32.totalorder %s14, 0
      %p154 = por %p152, %p153
      %p155 = scmp.ne.s32.totalorder %s144, %s147
      %p156 = scmp.eq.s32.totalorder %s19, 1
      %p157 = por %p155, %p156
      %p158 = scmp.ne.s32.totalorder %s147, %s148
      %p159 = scmp.eq.s32.totalorder %s19, 0
      %p160 = por %p158, %p159
      %p161 = scmp.ne.s32.totalorder %s147, %s148
      %p162 = scmp.eq.s32.totalorder %s20, 1
      %p163 = por %p161, %p162
      %p165 = scmp.ne.s32.totalorder %s148, %s164
      %p166 = scmp.eq.s32.totalorder %s20, 0
      %p167 = por %p165, %p166
      %p168 = scmp.le.s32.totalorder 1, %s14
      %p169 = scmp.lt.s32.totalorder %s14, 3
      %p170 = pnand %p168, %p169
      %p171 = pneg %p170
      // Predicated region
      $region9: #{_lambda_.11} parent=5 // pred_check
        _
      $region10: #{_lambda_.11} parent=5 // pred_check_branch
        %173 = sbr.rel (%p170) target = $region12
      $region11: #{_lambda_.11} parent=5 // pred_region
        %s174 = ssub.s32 %s14, 1
        // Predicated region
        $region13: #{_lambda_.11} parent=11 // pred_check
          %p175 = pneg %p61
        $region14: #{_lambda_.11} parent=11 // pred_check_branch
          %177 = sbr.rel (%p175) target = $region16
        $region15: #{_lambda_.11} parent=11 // pred_region
          %179 = vsyncadd [#allocation3], 0
          %s180 = sshll.u32 %s1, 4
          %s181 = int_to_ptr.hbm [resolvable:$true] %s180
          %s182 = sshll.u32 [#allocation2], 4
          %s183 = int_to_ptr.vmem [resolvable:$true] %s182
          %188 = dma.hbm_to_vmem [thread:$0]  %s181, 2048, %s183, [#allocation3], 64, 64, 4
        $region16: #{_lambda_.11} parent=11 // pred_fallthru
          _
        // Predicated region
        $region17: #{_lambda_.11} parent=11 // pred_check
          %p189 = pneg %p82
        $region18: #{_lambda_.11} parent=11 // pred_check_branch
          %191 = sbr.rel (%p189) target = $region20
        $region19: #{_lambda_.11} parent=11 // pred_region
          %193 = vsyncadd [#allocation5], 0
          %s194 = sshll.u32 %s2, 4
          %s195 = int_to_ptr.hbm [resolvable:$true] %s194
          %s196 = sshll.u32 [#allocation4], 4
          %s197 = int_to_ptr.vmem [resolvable:$true] %s196
          %202 = dma.hbm_to_vmem [thread:$0]  %s195, 512, %s197, [#allocation5], 128, 128, 8
        $region20: #{_lambda_.11} parent=11 // pred_fallthru
          _
      $region12: #{_lambda_.11} parent=5 // pred_fallthru
        _
      %p203 = scmp.lt.s32.totalorder %s14, 2
      // Predicated region
      $region21: #{_lambda_.11} parent=5 // pred_check
        %p204 = pneg %p203
      $region22: #{_lambda_.11} parent=5 // pred_check_branch
        %206 = sbr.rel (%p204) target = $region24
      $region23: #{_lambda_.11} parent=5 // pred_region
        // Predicated region
        $region25: #{_lambda_.11} parent=23 // pred_check
          %p207 = pneg %p34
        $region26: #{_lambda_.11} parent=23 // pred_check_branch
          %209 = sbr.rel (%p207) target = $region28
        $region27: #{_lambda_.11} parent=23 // pred_region
          %p210 = scmp.lt.s32.totalorder %s14, 1
          %s211 = scalar_select %p210, %s14, 1
          %s212 = smul.addr %s211, 6
          %s213 = smul.addr %s212, 8
          %s214 = scalar_lea.vmem %s0, %s213
        $region28: #{_lambda_.11} parent=23 // pred_fallthru
          _
      $region24: #{_lambda_.11} parent=5 // pred_fallthru
        _
      %p215 = scmp.le.s32.totalorder 1, %s14
      %p216 = scmp.lt.s32.totalorder %s14, 3
      %p217 = pnand %p215, %p216
      %p218 = pneg %p217
      // Predicated region
      $region29: #{_lambda_.11} parent=5 // pred_check
        _
      $region30: #{_lambda_.11} parent=5 // pred_check_branch
        %220 = sbr.rel (%p217) target = $region32
      $region31: #{_lambda_.11} parent=5 // pred_region
        %s221 = ssub.s32 %s14, 1
        // Predicated region
        $region33: #{_lambda_.11} parent=31 // pred_check
          %p222 = pneg %p61
        $region34: #{_lambda_.11} parent=31 // pred_check_branch
          %224 = sbr.rel (%p222) target = $region36
        $region35: #{_lambda_.11} parent=31 // pred_region
          %226 = dma.done [#allocation3], 2048
        $region36: #{_lambda_.11} parent=31 // pred_fallthru
          _
        // Predicated region
        $region37: #{_lambda_.11} parent=31 // pred_check
          %p227 = pneg %p82
        $region38: #{_lambda_.11} parent=31 // pred_check_branch
          %229 = sbr.rel (%p227) target = $region40
        $region39: #{_lambda_.11} parent=31 // pred_region
          %231 = dma.done [#allocation5], 512
        $region40: #{_lambda_.11} parent=31 // pred_fallthru
          _
        %p232 = scmp.lt.s32.totalorder %s19, 1
        %s233 = scalar_select %p232, %s19, 1
        %s234 = smul.addr %s233, 6
        %s235 = smul.addr %s234, 8
        %s236 = scalar_lea.vmem %s0, %s235
        %p237 = pneg %p40
        %p238 = pneg %p37
        %p239 = pneg %p61
        %p240 = pneg %p58
        %p241 = pneg %p82
        %p242 = pneg %p79
        %p243 = pneg %p108
        %p244 = pneg %p105
        %p245 = scmp.lt.s32.totalorder %s19, 1
        %s246 = scalar_select %p245, %s19, 1
        %s247 = smul.addr %s246, 4
        %s248 = smul.addr %s247, 8
        %s249 = scalar_lea.vmem %s3, %s248
        %p250 = pneg %p134
        %p251 = pneg %p131
        %p252 = scmp.lt.s32.totalorder %s19, 1
        %s253 = scalar_select %p252, %s19, 1
        %s254 = scalar_lea.vmem %s4, %s253
        %p255 = pneg %p160
        %p256 = pneg %p157
        %p257 = scmp.lt.s32.totalorder %s19, 1
        %s258 = scalar_select %p257, %s19, 1
        %s259 = scalar_lea.vmem %s5, %s258
        %p260 = scmp.lt.s32.totalorder %s19, 1
        %s261 = scalar_select %p260, %s19, 1
        %s262 = smul.addr %s261, 6
        %s263 = smul.addr %s262, 8
        %s264 = scalar_lea.vmem %s0, %s263
        %p265 = scmp.lt.s32.totalorder %s19, 1
        %s266 = scalar_select %p265, %s19, 1
        %s267 = smul.addr %s266, 4
        %s268 = smul.addr %s267, 8
        %s269 = scalar_lea.vmem %s3, %s268
        %p270 = scmp.lt.s32.totalorder %s19, 1
        %s271 = scalar_select %p270, %s19, 1
        %s272 = scalar_lea.vmem %s4, %s271
        %p273 = scmp.lt.s32.totalorder %s19, 1
        %s274 = scalar_select %p273, %s19, 1
        %s275 = scalar_lea.vmem %s5, %s274
        %v277 = vld [vmem:[%s264] sm:$0xff]
        %v278 = vld [vmem:[%s264 + $0x8] sm:$0xff]
        %v279 = vld [vmem:[%s264 + $0x10] sm:$0xff]
        %v280 = vld [vmem:[%s264 + $0x18] sm:$0xff]
        %v281 = vld [vmem:[%s264 + $0x20] sm:$0xff]
        %v282 = vpack.c.bf16 %v278, %v277
        %v283 = vpack.c.bf16 %v280, %v279
        %v284 = vld [vmem:[#allocation2] sm:$0xf]
        %v285 = vld [vmem:[#allocation2 + $0x4] sm:$0xf]
        %v286 = vld [vmem:[#allocation2 + $0x8] sm:$0xf]
        %v287 = vld [vmem:[#allocation2 + $0xc] sm:$0xf]
        %v288 = vld [vmem:[#allocation2 + $0x10] sm:$0xf]
        %v289 = vld [vmem:[#allocation2 + $0x14] sm:$0xf]
        %v290 = vld [vmem:[#allocation2 + $0x18] sm:$0xf]
        %v291 = vld [vmem:[#allocation2 + $0x1c] sm:$0xf]
        %s292 = scalar_lea.vmem [#allocation2], 32
        %v293 = vld [vmem:[%s292] sm:$0xf]
        %v294 = vld [vmem:[%s292 + $0x4] sm:$0xf]
        %v295 = vld [vmem:[%s292 + $0x8] sm:$0xf]
        %v296 = vld [vmem:[%s292 + $0xc] sm:$0xf]
        %v297 = vld [vmem:[%s292 + $0x10] sm:$0xf]
        %v298 = vld [vmem:[%s292 + $0x14] sm:$0xf]
        %v299 = vld [vmem:[%s292 + $0x18] sm:$0xf]
        %v300 = vld [vmem:[%s292 + $0x1c] sm:$0xf]
        %vm301 = vsmask.f32 7424
        %v303 = vshrl.u32 %v282, 16
        %v305 = vshll.u32 %v282, 16
        %v307 = vrot.slane %v305, 1
        %v308 = vor.u32 %v303, %v307
        %v310 = vshll.u32 %v283, 16
        %v312 = vrot.slane %v310, 1
        %v313 = vsel %vm301, %v308, %v312
        %v314 = vshrl.u32 %v283, 16
        %v316 = vor.u32 %v314, %v312
        %v325 = vunpack.c.l.b16 %v293
        %v326 = vunpack.c.l.b16 %v294
        %v327 = vunpack.c.l.b16 %v295
        %v328 = vunpack.c.l.b16 %v296
        %v329 = vunpack.c.l.b16 %v297
        %v330 = vunpack.c.l.b16 %v298
        %v331 = vunpack.c.l.b16 %v299
        %v332 = vunpack.c.l.b16 %v300
        %v333 = vpack.c.b16 %v326, %v325
        %v334 = vpack.c.b16 %v328, %v327
        %v335 = vpack.c.b16 %v330, %v329
        %v336 = vpack.c.b16 %v332, %v331
        %vm341 = vcmask 523264
        %v343 = vsel %vm341, %v313, 0
        %v346 = vsel %vm341, %v316, 0
        %348 = vmatpush.bf16.msra.mxu0 0
        %349 = vmatpush.bf16.msra.mxu0 0
        %350 = vmatpush.bf16.msra.mxu0 0
        %351 = vmatpush.bf16.msra.mxu0 0
        %352 = vmatpush.bf16.msra.mxu0 %v336
        %353 = vmatpush.bf16.msra.mxu0 %v335
        %354 = vmatpush.bf16.msra.mxu0 %v334
        %355 = vmatpush.bf16.msra.mxu0 %v333
        %356 = vmatmul.bf16.gmra.mxu0 %v343
        %v357 = vpop.f32.mrf.mxu0
        %v358 = vadd.f32 0.0, %v357
        %v359 = vpop.f32.mrf.mxu0
        %v360 = vadd.f32 0.0, %v359
        %361 = vmatmul.bf16.gmra.mxu0 %v346
        %v362 = vpop.f32.mrf.mxu0
        %v363 = vadd.f32 0.0, %v362
        %v364 = vpop.f32.mrf.mxu0
        %v365 = vadd.f32 0.0, %v364
        %366 = vdwg.mxu0
        %v375 = vunpack.c.l.b16 %v284
        %v376 = vunpack.c.l.b16 %v285
        %v377 = vunpack.c.l.b16 %v286
        %v378 = vunpack.c.l.b16 %v287
        %v379 = vunpack.c.l.b16 %v288
        %v380 = vunpack.c.l.b16 %v289
        %v381 = vunpack.c.l.b16 %v290
        %v382 = vunpack.c.l.b16 %v291
        %v383 = vpack.c.b16 %v376, %v375
        %v384 = vpack.c.b16 %v378, %v377
        %v385 = vpack.c.b16 %v380, %v379
        %v386 = vpack.c.b16 %v382, %v381
        %v391 = vsel %vm341, %v282, 0
        %v393 = vsel %vm341, %v283, 0
        %395 = vmatpush.bf16.msra.mxu0 0
        %396 = vmatpush.bf16.msra.mxu0 0
        %397 = vmatpush.bf16.msra.mxu0 0
        %398 = vmatpush.bf16.msra.mxu0 0
        %399 = vmatpush.bf16.msra.mxu0 %v386
        %400 = vmatpush.bf16.msra.mxu0 %v385
        %401 = vmatpush.bf16.msra.mxu0 %v384
        %402 = vmatpush.bf16.msra.mxu0 %v383
        %403 = vmatmul.bf16.gmra.mxu0 %v391
        %v404 = vpop.f32.mrf.mxu0
        %v405 = vadd.f32 %v358, %v404
        %v406 = vpop.f32.mrf.mxu0
        %v407 = vadd.f32 %v360, %v406
        %408 = vmatmul.bf16.gmra.mxu0 %v393
        %v409 = vpop.f32.mrf.mxu0
        %v410 = vadd.f32 %v363, %v409
        %v411 = vpop.f32.mrf.mxu0
        %v412 = vadd.f32 %v365, %v411
        %413 = vdwg.mxu0
        %v414 = vpack.c.bf16 %v281, %v281
        %s415 = scalar_lea.vmem [#allocation2], 64
        %v416 = vld [vmem:[%s415] sm:$0xf]
        %v417 = vld [vmem:[%s415 + $0x4] sm:$0xf]
        %v418 = vld [vmem:[%s415 + $0x8] sm:$0xf]
        %v419 = vld [vmem:[%s415 + $0xc] sm:$0xf]
        %v420 = vld [vmem:[%s415 + $0x10] sm:$0xf]
        %v421 = vld [vmem:[%s415 + $0x14] sm:$0xf]
        %v422 = vld [vmem:[%s415 + $0x18] sm:$0xf]
        %v423 = vld [vmem:[%s415 + $0x1c] sm:$0xf]
        %vm427 = vcmask 1044480
        %v428 = vrot.slane %v282, 3
        %v429 = vrot.slane %v283, 3
        %v430 = vsel %vm427, %v428, %v429
        %v431 = vrot.slane %v414, 3
        %v432 = vsel %vm427, %v429, %v431
        %v441 = vunpack.c.l.b16 %v416
        %v442 = vunpack.c.l.b16 %v417
        %v443 = vunpack.c.l.b16 %v418
        %v444 = vunpack.c.l.b16 %v419
        %v445 = vunpack.c.l.b16 %v420
        %v446 = vunpack.c.l.b16 %v421
        %v447 = vunpack.c.l.b16 %v422
        %v448 = vunpack.c.l.b16 %v423
        %v449 = vpack.c.b16 %v442, %v441
        %v450 = vpack.c.b16 %v444, %v443
        %v451 = vpack.c.b16 %v446, %v445
        %v452 = vpack.c.b16 %v448, %v447
        %v458 = vsel %vm341, %v430, 0
        %v461 = vsel %vm341, %v432, 0
        %463 = vmatpush.bf16.msra.mxu0 0
        %464 = vmatpush.bf16.msra.mxu0 0
        %465 = vmatpush.bf16.msra.mxu0 0
        %466 = vmatpush.bf16.msra.mxu0 0
        %467 = vmatpush.bf16.msra.mxu0 %v452
        %468 = vmatpush.bf16.msra.mxu0 %v451
        %469 = vmatpush.bf16.msra.mxu0 %v450
        %470 = vmatpush.bf16.msra.mxu0 %v449
        %471 = vmatmul.bf16.gmra.mxu0 %v458
        %v472 = vpop.f32.mrf.mxu0
        %v473 = vadd.f32 0.0, %v472
        %v474 = vpop.f32.mrf.mxu0
        %v475 = vadd.f32 0.0, %v474
        %476 = vmatmul.bf16.gmra.mxu0 %v461
        %v477 = vpop.f32.mrf.mxu0
        %v478 = vadd.f32 0.0, %v477
        %v479 = vpop.f32.mrf.mxu0
        %v480 = vadd.f32 0.0, %v479
        %481 = vdwg.mxu0
        %v482 = vadd.f32 %v405, %v473
        %v483 = vadd.f32 %v407, %v475
        %v484 = vadd.f32 %v410, %v478
        %v485 = vadd.f32 %v412, %v480
        %s486 = scalar_lea.vmem [#allocation2], 96
        %v487 = vld [vmem:[%s486] sm:$0xf]
        %v488 = vld [vmem:[%s486 + $0x4] sm:$0xf]
        %v489 = vld [vmem:[%s486 + $0x8] sm:$0xf]
        %v490 = vld [vmem:[%s486 + $0xc] sm:$0xf]
        %v491 = vld [vmem:[%s486 + $0x10] sm:$0xf]
        %v492 = vld [vmem:[%s486 + $0x14] sm:$0xf]
        %v493 = vld [vmem:[%s486 + $0x18] sm:$0xf]
        %v494 = vld [vmem:[%s486 + $0x1c] sm:$0xf]
        %vm495 = vsmask.f32 4352
        %v496 = vrot.slane %v303, 3
        %v497 = vrot.slane %v305, 4
        %v498 = vor.u32 %v496, %v497
        %v499 = vrot.slane %v314, 3
        %v500 = vrot.slane %v310, 4
        %v501 = vor.u32 %v499, %v500
        %v502 = vsel %vm495, %v498, %v501
        %v504 = vshrl.u32 %v414, 16
        %v506 = vrot.slane %v504, 3
        %v507 = vshll.u32 %v414, 16
        %v509 = vrot.slane %v507, 4
        %v510 = vor.u32 %v506, %v509
        %v511 = vsel %vm495, %v501, %v510
        %v520 = vunpack.c.l.b16 %v487
        %v521 = vunpack.c.l.b16 %v488
        %v522 = vunpack.c.l.b16 %v489
        %v523 = vunpack.c.l.b16 %v490
        %v524 = vunpack.c.l.b16 %v491
        %v525 = vunpack.c.l.b16 %v492
        %v526 = vunpack.c.l.b16 %v493
        %v527 = vunpack.c.l.b16 %v494
        %v528 = vpack.c.b16 %v521, %v520
        %v529 = vpack.c.b16 %v523, %v522
        %v530 = vpack.c.b16 %v525, %v524
        %v531 = vpack.c.b16 %v527, %v526
        %v537 = vsel %vm341, %v502, 0
        %v540 = vsel %vm341, %v511, 0
        %542 = vmatpush.bf16.msra.mxu0 0
        %543 = vmatpush.bf16.msra.mxu0 0
        %544 = vmatpush.bf16.msra.mxu0 0
        %545 = vmatpush.bf16.msra.mxu0 0
        %546 = vmatpush.bf16.msra.mxu0 %v531
        %547 = vmatpush.bf16.msra.mxu0 %v530
        %548 = vmatpush.bf16.msra.mxu0 %v529
        %549 = vmatpush.bf16.msra.mxu0 %v528
        %550 = vmatmul.bf16.gmra.mxu0 %v537
        %v551 = vpop.f32.mrf.mxu0
        %v552 = vadd.f32 0.0, %v551
        %v553 = vpop.f32.mrf.mxu0
        %v554 = vadd.f32 0.0, %v553
        %555 = vmatmul.bf16.gmra.mxu0 %v540
        %v556 = vpop.f32.mrf.mxu0
        %v557 = vadd.f32 0.0, %v556
        %v558 = vpop.f32.mrf.mxu0
        %v559 = vadd.f32 0.0, %v558
        %560 = vdwg.mxu0
        %v561 = vadd.f32 %v482, %v552
        %v562 = vadd.f32 %v483, %v554
        %v563 = vadd.f32 %v484, %v557
        %v564 = vadd.f32 %v485, %v559
        %565 = vst [vmem:[%s269] sm:$0xff] %v561
        %566 = vst [vmem:[%s269 + $0x8] sm:$0xff] %v562
        %567 = vst [vmem:[%s269 + $0x10] sm:$0xff] %v563
        %568 = vst [vmem:[%s269 + $0x18] sm:$0x3f] %v564
        %v569 = vld [vmem:[#allocation4] sm:$0xff]
        %v570 = vld [vmem:[#allocation4 + $0x8] sm:$0xff]
        %v571 = vld [vmem:[#allocation4 + $0x10] sm:$0xff]
        %v572 = vld [vmem:[#allocation4 + $0x18] sm:$0x3f]
        %v573 = vmul.f32 %v561, %v569
        %v574 = vmul.f32 %v562, %v570
        %v575 = vmul.f32 %v563, %v571
        %v576 = vmul.f32 %v564, %v572
        %v577 = vadd.f32 %v573, %v574
        %v578 = vadd.f32 %v577, %v575
        %vm579 = vcmask 1045504
        %v580 = vsel %vm579, %v576, 0.0
        %v581 = vadd.f32 %v578, %v580
        %v582 = vrot.slane %v581, 4
        %v583 = vadd.f32 %v581, %v582
        %v584 = vrot.slane %v583, 2
        %v585 = vadd.f32 %v583, %v584
        %v586 = vrot.slane %v585, 1
        %v587 = vadd.f32 %v585, %v586
        %588 = vst [vmem:[%s272] sm:$0x1] %v587
        %v589 = vmul.f32 %v561, %v561
        %v590 = vmul.f32 %v562, %v562
        %v591 = vmul.f32 %v563, %v563
        %v592 = vmul.f32 %v564, %v564
        %v593 = vmul.f32 %v589, %v569
        %v594 = vmul.f32 %v590, %v570
        %v595 = vmul.f32 %v591, %v571
        %v596 = vmul.f32 %v592, %v572
        %v597 = vadd.f32 %v593, %v594
        %v598 = vadd.f32 %v597, %v595
        %v599 = vsel %vm579, %v596, 0.0
        %v600 = vadd.f32 %v598, %v599
        %v601 = vrot.slane %v600, 4
        %v602 = vadd.f32 %v600, %v601
        %v603 = vrot.slane %v602, 2
        %v604 = vadd.f32 %v602, %v603
        %v605 = vrot.slane %v604, 1
        %v606 = vadd.f32 %v604, %v605
        %607 = vst [vmem:[%s275] sm:$0x1] %v606
        %p608 = scmp.lt.s32.totalorder %s19, 1
        %s609 = scalar_select %p608, %s19, 1
        %s610 = smul.addr %s609, 4
        %s611 = smul.addr %s610, 8
        %s612 = scalar_lea.vmem %s3, %s611
        %p613 = scmp.lt.s32.totalorder %s19, 1
        %s614 = scalar_select %p613, %s19, 1
        %s615 = scalar_lea.vmem %s4, %s614
        %p616 = scmp.lt.s32.totalorder %s19, 1
        %s617 = scalar_select %p616, %s19, 1
        %s618 = scalar_lea.vmem %s5, %s617
        // Predicated region
        $region41: #{_lambda_.11} parent=31 // pred_check
          %p619 = pneg %p105
        $region42: #{_lambda_.11} parent=31 // pred_check_branch
          %621 = sbr.rel (%p619) target = $region44
        $region43: #{_lambda_.11} parent=31 // pred_region
          _
        $region44: #{_lambda_.11} parent=31 // pred_fallthru
          _
        // Predicated region
        $region45: #{_lambda_.11} parent=31 // pred_check
          %p622 = pneg %p131
        $region46: #{_lambda_.11} parent=31 // pred_check_branch
          %624 = sbr.rel (%p622) target = $region48
        $region47: #{_lambda_.11} parent=31 // pred_region
          _
        $region48: #{_lambda_.11} parent=31 // pred_fallthru
          _
        // Predicated region
        $region49: #{_lambda_.11} parent=31 // pred_check
          %p625 = pneg %p157
        $region50: #{_lambda_.11} parent=31 // pred_check_branch
          %627 = sbr.rel (%p625) target = $region52
        $region51: #{_lambda_.11} parent=31 // pred_region
          _
        $region52: #{_lambda_.11} parent=31 // pred_fallthru
          _
      $region32: #{_lambda_.11} parent=5 // pred_fallthru
        _
      %p628 = scmp.le.s32.totalorder 2, %s14
      // Predicated region
      $region53: #{_lambda_.11} parent=5 // pred_check
        %p629 = pneg %p628
      $region54: #{_lambda_.11} parent=5 // pred_check_branch
        %631 = sbr.rel (%p629) target = $region56
      $region55: #{_lambda_.11} parent=5 // pred_region
        %s632 = ssub.s32 %s14, 2
        // Predicated region
        $region57: #{_lambda_.11} parent=55 // pred_check
          %p633 = pneg %p111
        $region58: #{_lambda_.11} parent=55 // pred_check_branch
          %635 = sbr.rel (%p633) target = $region60
        $region59: #{_lambda_.11} parent=55 // pred_region
          %p636 = scmp.lt.s32.totalorder %s20, 1
          %s637 = scalar_select %p636, %s20, 1
          %s638 = smul.addr %s637, 4
          %s639 = smul.addr %s638, 8
          %s640 = scalar_lea.vmem %s3, %s639
        $region60: #{_lambda_.11} parent=55 // pred_fallthru
          _
        // Predicated region
        $region61: #{_lambda_.11} parent=55 // pred_check
          %p641 = pneg %p137
        $region62: #{_lambda_.11} parent=55 // pred_check_branch
          %643 = sbr.rel (%p641) target = $region64
        $region63: #{_lambda_.11} parent=55 // pred_region
          %p644 = scmp.lt.s32.totalorder %s20, 1
          %s645 = scalar_select %p644, %s20, 1
          %s646 = scalar_lea.vmem %s4, %s645
        $region64: #{_lambda_.11} parent=55 // pred_fallthru
          _
        // Predicated region
        $region65: #{_lambda_.11} parent=55 // pred_check
          %p647 = pneg %p163
        $region66: #{_lambda_.11} parent=55 // pred_check_branch
          %649 = sbr.rel (%p647) target = $region68
        $region67: #{_lambda_.11} parent=55 // pred_region
          %p650 = scmp.lt.s32.totalorder %s20, 1
          %s651 = scalar_select %p650, %s20, 1
          %s652 = scalar_lea.vmem %s5, %s651
        $region68: #{_lambda_.11} parent=55 // pred_fallthru
          _
      $region56: #{_lambda_.11} parent=5 // pred_fallthru
        _
    $region6: #{_lambda_.11} parent=1 // loop_footer
      %s18 = sadd.s32 1, %s14
    $region7: #{_lambda_.11} parent=1 // loop_footer_branch
      %13 = sbr.rel target = $region3
    $region8: #{_lambda_.11} parent=1 // loop_exit
      _
    %653 = vsyncpa [#allocation3], 1
    %s654 = scalar_lea.sflag [#allocation3], 1
    %655 = vsyncpa %s654, 1
    %656 = vsyncpa [#allocation5], 1

// kernel: _lambda_.12
$region0: #{_lambda_.12}
  #allocation0 [shape = 'u32[]', space=smem, size = 0x4, offset = 0x4, fixed_abs, tag = 'smem constant byte address 0x4 - core index']
  #allocation1 [shape = 'u32[72,128]{1,0:T(1,128)}', space=vmem, size = 0x9000, scoped, tag = 'internal scratch']
  %s0 = inlined_call_operand.vmem [shape: f32[2,30,128], index: 0, kind: input, shape index: {}]
  %s1 = inlined_call_operand.vmem [shape: f32[1,128], index: 1, kind: input, shape index: {}]
  %s2 = inlined_call_operand.vmem [shape: f32[1,128], index: 2, kind: input, shape index: {}]
  %s3 = inlined_call_operand.vmem [shape: f32[2,30,128], index: 3, kind: output, shape index: {}]
  %s4 = sld [smem:[#allocation0]]
  $region45: #{_lambda_.12} parent=0
    _
  %s6 = ssub.s32 1, %s4
  %s7 = scalar_select 0, %s6, %s4
  loop: start=0, step=1, limit=4
  $region2: #{_lambda_.12} parent=0 // loop_pre_header
    _
  $region3: #{_lambda_.12} parent=0 // loop_header
    %s9 = sphi 0, %s13
    %p10 = scmp.ge.s32.totalorder %s9, 4
    %s19 = sphi 0, %s21
    %s22 = sphi 0, %s19
    %s23 = sphi 0, %s22
    %s39 = sphi 0, %s23
    %s43 = sphi 0, %s43
    %s45 = sphi 0, %s43
    %s46 = sphi 0, %s45
    %s60 = sphi 0, %s46
    %s64 = sphi 0, %s64
    %s66 = sphi 0, %s64
    %s67 = sphi 0, %s66
    %s81 = sphi 0, %s67
    %s87 = sphi 0, %s89
    %s90 = sphi 0, %s87
    %s91 = sphi 0, %s90
    %s107 = sphi 0, %s91
  $region4: #{_lambda_.12} parent=0 // loop_header_branch
    %12 = sbr.rel (%p10) target = $region8
  $region5: #{_lambda_.12} parent=0 // loop_body
    %s14 = ssub.s32 %s9, 1
    %s15 = ssub.s32 %s9, 2
    %s16 = sadd.s32 %s9, 1
    %s17 = ssub.s32 %s9, %s16
    %p18 = scmp.eq.s32.totalorder %s17, 0
    %s20 = sadd.s32 %s19, 1
    %s21 = scalar_select %p18, %s19, %s20
    %p24 = pneg %p18
    %p25 = scmp.eq.s32.totalorder %s9, 1
    %p26 = por %p24, %p25
    %p27 = scmp.ne.s32.totalorder %s19, %s22
    %p28 = scmp.eq.s32.totalorder %s9, 0
    %p29 = por %p27, %p28
    %p30 = scmp.ne.s32.totalorder %s19, %s22
    %p31 = scmp.eq.s32.totalorder %s14, 1
    %p32 = por %p30, %p31
    %p33 = scmp.ne.s32.totalorder %s22, %s23
    %p34 = scmp.eq.s32.totalorder %s14, 0
    %p35 = por %p33, %p34
    %p36 = scmp.ne.s32.totalorder %s22, %s23
    %p37 = scmp.eq.s32.totalorder %s15, 1
    %p38 = por %p36, %p37
    %p40 = scmp.ne.s32.totalorder %s23, %s39
    %p41 = scmp.eq.s32.totalorder %s15, 0
    %p42 = por %p40, %p41
    %s44 = sadd.s32 %s43, 1
    %p47 = scmp.eq.s32.totalorder %s9, 1
    %p48 = scmp.ne.s32.totalorder %s43, %s45
    %p49 = scmp.eq.s32.totalorder %s9, 0
    %p50 = por %p48, %p49
    %p51 = scmp.ne.s32.totalorder %s43, %s45
    %p52 = scmp.eq.s32.totalorder %s14, 1
    %p53 = por %p51, %p52
    %p54 = scmp.ne.s32.totalorder %s45, %s46
    %p55 = scmp.eq.s32.totalorder %s14, 0
    %p56 = por %p54, %p55
    %p57 = scmp.ne.s32.totalorder %s45, %s46
    %p58 = scmp.eq.s32.totalorder %s15, 1
    %p59 = por %p57, %p58
    %p61 = scmp.ne.s32.totalorder %s46, %s60
    %p62 = scmp.eq.s32.totalorder %s15, 0
    %p63 = por %p61, %p62
    %s65 = sadd.s32 %s64, 1
    %p68 = scmp.eq.s32.totalorder %s9, 1
    %p69 = scmp.ne.s32.totalorder %s64, %s66
    %p70 = scmp.eq.s32.totalorder %s9, 0
    %p71 = por %p69, %p70
    %p72 = scmp.ne.s32.totalorder %s64, %s66
    %p73 = scmp.eq.s32.totalorder %s14, 1
    %p74 = por %p72, %p73
    %p75 = scmp.ne.s32.totalorder %s66, %s67
    %p76 = scmp.eq.s32.totalorder %s14, 0
    %p77 = por %p75, %p76
    %p78 = scmp.ne.s32.totalorder %s66, %s67
    %p79 = scmp.eq.s32.totalorder %s15, 1
    %p80 = por %p78, %p79
    %p82 = scmp.ne.s32.totalorder %s67, %s81
    %p83 = scmp.eq.s32.totalorder %s15, 0
    %p84 = por %p82, %p83
    %s85 = ssub.s32 %s9, %s16
    %p86 = scmp.eq.s32.totalorder %s85, 0
    %s88 = sadd.s32 %s87, 1
    %s89 = scalar_select %p86, %s87, %s88
    %p92 = pneg %p86
    %p93 = scmp.eq.s32.totalorder %s9, 1
    %p94 = por %p92, %p93
    %p95 = scmp.ne.s32.totalorder %s87, %s90
    %p96 = scmp.eq.s32.totalorder %s9, 0
    %p97 = por %p95, %p96
    %p98 = scmp.ne.s32.totalorder %s87, %s90
    %p99 = scmp.eq.s32.totalorder %s14, 1
    %p100 = por %p98, %p99
    %p101 = scmp.ne.s32.totalorder %s90, %s91
    %p102 = scmp.eq.s32.totalorder %s14, 0
    %p103 = por %p101, %p102
    %p104 = scmp.ne.s32.totalorder %s90, %s91
    %p105 = scmp.eq.s32.totalorder %s15, 1
    %p106 = por %p104, %p105
    %p108 = scmp.ne.s32.totalorder %s91, %s107
    %p109 = scmp.eq.s32.totalorder %s15, 0
    %p110 = por %p108, %p109
    %p111 = scmp.le.s32.totalorder 1, %s9
    %p112 = scmp.lt.s32.totalorder %s9, 3
    %p113 = pnand %p111, %p112
    %p114 = pneg %p113
    // Predicated region
    $region9: #{_lambda_.12} parent=5 // pred_check
      _
    $region10: #{_lambda_.12} parent=5 // pred_check_branch
      %116 = sbr.rel (%p113) target = $region12
    $region11: #{_lambda_.12} parent=5 // pred_region
      %s117 = ssub.s32 %s9, 1
      // Predicated region
      $region13: #{_lambda_.12} parent=11 // pred_check
        %p118 = pneg %p56
      $region14: #{_lambda_.12} parent=11 // pred_check_branch
        %120 = sbr.rel (%p118) target = $region16
      $region15: #{_lambda_.12} parent=11 // pred_region
        _
      $region16: #{_lambda_.12} parent=11 // pred_fallthru
        _
      // Predicated region
      $region17: #{_lambda_.12} parent=11 // pred_check
        %p121 = pneg %p77
      $region18: #{_lambda_.12} parent=11 // pred_check_branch
        %123 = sbr.rel (%p121) target = $region20
      $region19: #{_lambda_.12} parent=11 // pred_region
        _
      $region20: #{_lambda_.12} parent=11 // pred_fallthru
        _
    $region12: #{_lambda_.12} parent=5 // pred_fallthru
      _
    %p124 = scmp.lt.s32.totalorder %s9, 2
    // Predicated region
    $region21: #{_lambda_.12} parent=5 // pred_check
      %p125 = pneg %p124
    $region22: #{_lambda_.12} parent=5 // pred_check_branch
      %127 = sbr.rel (%p125) target = $region24
    $region23: #{_lambda_.12} parent=5 // pred_region
      // Predicated region
      $region25: #{_lambda_.12} parent=23 // pred_check
        %p128 = pneg %p29
      $region26: #{_lambda_.12} parent=23 // pred_check_branch
        %130 = sbr.rel (%p128) target = $region28
      $region27: #{_lambda_.12} parent=23 // pred_region
        %p131 = scmp.lt.s32.totalorder %s9, 1
        %s132 = scalar_select %p131, %s9, 1
        %s133 = smul.addr %s132, 4
        %s134 = smul.addr %s133, 8
        %s135 = scalar_lea.vmem %s0, %s134
      $region28: #{_lambda_.12} parent=23 // pred_fallthru
        _
    $region24: #{_lambda_.12} parent=5 // pred_fallthru
      _
    %p136 = scmp.le.s32.totalorder 1, %s9
    %p137 = scmp.lt.s32.totalorder %s9, 3
    %p138 = pnand %p136, %p137
    %p139 = pneg %p138
    // Predicated region
    $region29: #{_lambda_.12} parent=5 // pred_check
      _
    $region30: #{_lambda_.12} parent=5 // pred_check_branch
      %141 = sbr.rel (%p138) target = $region32
    $region31: #{_lambda_.12} parent=5 // pred_region
      %s142 = ssub.s32 %s9, 1
      %p143 = scmp.lt.s32.totalorder %s14, 1
      %s144 = scalar_select %p143, %s14, 1
      %s145 = smul.addr %s144, 4
      %s146 = smul.addr %s145, 8
      %s147 = scalar_lea.vmem %s0, %s146
      %p148 = pneg %p35
      %p149 = pneg %p32
      %p150 = pneg %p56
      %p151 = pneg %p53
      %p152 = pneg %p77
      %p153 = pneg %p74
      %p154 = pneg %p103
      %p155 = pneg %p100
      %p156 = scmp.lt.s32.totalorder %s14, 1
      %s157 = scalar_select %p156, %s14, 1
      %s158 = smul.addr %s157, 4
      %s159 = smul.addr %s158, 8
      %s160 = scalar_lea.vmem %s3, %s159
      %p161 = scmp.lt.s32.totalorder %s14, 1
      %s162 = scalar_select %p161, %s14, 1
      %s163 = smul.addr %s162, 4
      %s164 = smul.addr %s163, 8
      %s165 = scalar_lea.vmem %s0, %s164
      %p166 = scmp.lt.s32.totalorder %s14, 1
      %s167 = scalar_select %p166, %s14, 1
      %s168 = smul.addr %s167, 4
      %s169 = smul.addr %s168, 8
      %s170 = scalar_lea.vmem %s3, %s169
      %v171 = vld [vmem:[%s165] sm:$0xff]
      %v172 = vld [vmem:[%s165 + $0x8] sm:$0xff]
      %v173 = vld [vmem:[%s165 + $0x10] sm:$0xff]
      %v174 = vld [vmem:[%s165 + $0x18] sm:$0x3f]
      %v175 = vld [vmem:[%s1] sm:$0x1]
      %v177 = vperm.slane %v175, 0
      %v179 = vmul.f32 %v171, %v177
      %v180 = vmul.f32 %v172, %v177
      %v181 = vmul.f32 %v173, %v177
      %v182 = vmul.f32 %v174, %v177
      %v183 = vld [vmem:[%s2] sm:$0x1]
      %v185 = vperm.slane %v183, 0
      %v187 = vadd.f32 %v179, %v185
      %v188 = vadd.f32 %v180, %v185
      %v189 = vadd.f32 %v181, %v185
      %v190 = vadd.f32 %v182, %v185
      %v191 = vmax.f32 %v187, 0.0
      %v192 = vmax.f32 %v188, 0.0
      %v193 = vmax.f32 %v189, 0.0
      %v194 = vmax.f32 %v190, 0.0
      %195 = vst [vmem:[%s170] sm:$0xff] %v191
      %196 = vst [vmem:[%s170 + $0x8] sm:$0xff] %v192
      %197 = vst [vmem:[%s170 + $0x10] sm:$0xff] %v193
      %198 = vst [vmem:[%s170 + $0x18] sm:$0x3f] %v194
      %p199 = scmp.lt.s32.totalorder %s14, 1
      %s200 = scalar_select %p199, %s14, 1
      %s201 = smul.addr %s200, 4
      %s202 = smul.addr %s201, 8
      %s203 = scalar_lea.vmem %s3, %s202
      // Predicated region
      $region33: #{_lambda_.12} parent=31 // pred_check
        %p204 = pneg %p100
      $region34: #{_lambda_.12} parent=31 // pred_check_branch
        %206 = sbr.rel (%p204) target = $region36
      $region35: #{_lambda_.12} parent=31 // pred_region
        _
      $region36: #{_lambda_.12} parent=31 // pred_fallthru
        _
    $region32: #{_lambda_.12} parent=5 // pred_fallthru
      _
    %p207 = scmp.le.s32.totalorder 2, %s9
    // Predicated region
    $region37: #{_lambda_.12} parent=5 // pred_check
      %p208 = pneg %p207
    $region38: #{_lambda_.12} parent=5 // pred_check_branch
      %210 = sbr.rel (%p208) target = $region40
    $region39: #{_lambda_.12} parent=5 // pred_region
      %s211 = ssub.s32 %s9, 2
      // Predicated region
      $region41: #{_lambda_.12} parent=39 // pred_check
        %p212 = pneg %p106
      $region42: #{_lambda_.12} parent=39 // pred_check_branch
        %214 = sbr.rel (%p212) target = $region44
      $region43: #{_lambda_.12} parent=39 // pred_region
        %p215 = scmp.lt.s32.totalorder %s15, 1
        %s216 = scalar_select %p215, %s15, 1
        %s217 = smul.addr %s216, 4
        %s218 = smul.addr %s217, 8
        %s219 = scalar_lea.vmem %s3, %s218
      $region44: #{_lambda_.12} parent=39 // pred_fallthru
        _
    $region40: #{_lambda_.12} parent=5 // pred_fallthru
      _
  $region6: #{_lambda_.12} parent=0 // loop_footer
    %s13 = sadd.s32 1, %s9
  $region7: #{_lambda_.12} parent=0 // loop_footer_branch
    %8 = sbr.rel target = $region3
  $region8: #{_lambda_.12} parent=0 // loop_exit
    _

// kernel: tile.68
$region0: #{tile.68}
  #allocation0 [shape = 's32[1]{0}', space=sflag, size = 0x4, scoped, tag = 'scoped memory for tile.68']
  %s0 = inlined_call_operand.vmem [shape: f32[16], index: 0, kind: input, shape index: {}]
  %s1 = inlined_call_operand.vmem [shape: f32[4,16], index: 1, kind: output, shape index: {}]
  // Predicated region
  $region2: #{tile.68} parent=0 // pred_check
    _
  $region3: #{tile.68} parent=0 // pred_check_branch
    %3 = sbr.rel (0) target = $region5
  $region4: #{tile.68} parent=0 // pred_region
    _
  $region5: #{tile.68} parent=0 // pred_fallthru
    _
  %v4 = vld [vmem:[%s0] ss:$0 sm:$0xff]
  %5 = vst [vmem:[%s1] sm:$0xf] %v4

// kernel: tile.69
$region0: #{tile.69}
  %s0 = inlined_call_operand.vmem [shape: f32[4,16], index: 0, kind: input, shape index: {}]
  %s1 = inlined_call_operand.vmem [shape: f32[64], index: 1, kind: output, shape index: {}]
  $region1: #{tile.69} parent=0
    #allocation0 [shape = 'u8[4096]{0}', space=vmem, size = 0x1000, scoped, tag = 'scoped mem for output reshape']
    #allocation1 [shape = 'u8[4096]{0}', space=vmem, size = 0x1000, scoped, tag = 'scoped mem for input reshape']
    %s3 = ssub.s32 16, 1
    %v4 = vld [vmem:[%s0] sm:%s3]
    %5 = vst [vmem:[#allocation1] sm:%s3] %v4
    %v6 = vld [vmem:[#allocation1] sm:$0x1]
    %vm7 = vcmask 130048
    %8 = vst.msk [vmem:[#allocation0] sm:$0x1] %vm7, %v6
    %s9 = scalar_lea.vmem [#allocation1], 3
    %v10 = vld [vmem:[%s9] sm:$0x1]
    %11 = vrot.lane.b32.xlu0 %v10, 48
    %v12 = vpop.permute.xlu0 %11
    %vm13 = vcmask 523648
    %14 = vst.msk [vmem:[#allocation0] sm:$0x1] %vm13, %v12
    %s15 = scalar_lea.vmem [#allocation1], 2
    %v16 = vld [vmem:[%s15] sm:$0x1]
    %17 = vrot.lane.b32.xlu0 %v16, 32
    %v18 = vpop.permute.xlu0 %17
    %vm19 = vcmask 392448
    %20 = vst.msk [vmem:[#allocation0] sm:$0x1] %vm19, %v18
    %s21 = scalar_lea.vmem [#allocation1], 1
    %v22 = vld [vmem:[%s21] sm:$0x1]
    %23 = vrot.lane.b32.xlu0 %v22, 16
    %v24 = vpop.permute.xlu0 %23
    %vm25 = vcmask 261248
    %26 = vst.msk [vmem:[#allocation0] sm:$0x1] %vm25, %v24
    %s28 = ssub.s32 2, 1
    %v29 = vld [vmem:[#allocation0] sm:%s28]
    %s31 = ssub.s32 2, 1
    %32 = vst [vmem:[%s1] sm:%s31] %v29

// kernel: _lambda_.14
$region0: #{_lambda_.14}
  #allocation0 [shape = 'u32[]', space=smem, size = 0x4, offset = 0x4, fixed_abs, tag = 'smem constant byte address 0x4 - core index']
  #allocation1 [shape = 'u32[72,128]{1,0:T(1,128)}', space=vmem, size = 0x9000, scoped, tag = 'internal scratch']
  %s0 = inlined_call_operand.vmem [shape: f32[2,90,128], index: 0, kind: input, shape index: {}]
  %s1 = inlined_call_operand.vmem [shape: f32[1,128], index: 1, kind: input, shape index: {}]
  %s2 = inlined_call_operand.vmem [shape: f32[1,128], index: 2, kind: input, shape index: {}]
  %s3 = inlined_call_operand.vmem [shape: f32[2,90,128], index: 3, kind: output, shape index: {}]
  %s4 = sld [smem:[#allocation0]]
  $region45: #{_lambda_.14} parent=0
    _
  %s6 = ssub.s32 1, %s4
  %s7 = scalar_select 0, %s6, %s4
  loop: start=0, step=1, limit=4
  $region2: #{_lambda_.14} parent=0 // loop_pre_header
    _
  $region3: #{_lambda_.14} parent=0 // loop_header
    %s9 = sphi 0, %s13
    %p10 = scmp.ge.s32.totalorder %s9, 4
    %s19 = sphi 0, %s21
    %s22 = sphi 0, %s19
    %s23 = sphi 0, %s22
    %s39 = sphi 0, %s23
    %s43 = sphi 0, %s43
    %s45 = sphi 0, %s43
    %s46 = sphi 0, %s45
    %s60 = sphi 0, %s46
    %s64 = sphi 0, %s64
    %s66 = sphi 0, %s64
    %s67 = sphi 0, %s66
    %s81 = sphi 0, %s67
    %s87 = sphi 0, %s89
    %s90 = sphi 0, %s87
    %s91 = sphi 0, %s90
    %s107 = sphi 0, %s91
  $region4: #{_lambda_.14} parent=0 // loop_header_branch
    %12 = sbr.rel (%p10) target = $region8
  $region5: #{_lambda_.14} parent=0 // loop_body
    %s14 = ssub.s32 %s9, 1
    %s15 = ssub.s32 %s9, 2
    %s16 = sadd.s32 %s9, 1
    %s17 = ssub.s32 %s9, %s16
    %p18 = scmp.eq.s32.totalorder %s17, 0
    %s20 = sadd.s32 %s19, 1
    %s21 = scalar_select %p18, %s19, %s20
    %p24 = pneg %p18
    %p25 = scmp.eq.s32.totalorder %s9, 1
    %p26 = por %p24, %p25
    %p27 = scmp.ne.s32.totalorder %s19, %s22
    %p28 = scmp.eq.s32.totalorder %s9, 0
    %p29 = por %p27, %p28
    %p30 = scmp.ne.s32.totalorder %s19, %s22
    %p31 = scmp.eq.s32.totalorder %s14, 1
    %p32 = por %p30, %p31
    %p33 = scmp.ne.s32.totalorder %s22, %s23
    %p34 = scmp.eq.s32.totalorder %s14, 0
    %p35 = por %p33, %p34
    %p36 = scmp.ne.s32.totalorder %s22, %s23
    %p37 = scmp.eq.s32.totalorder %s15, 1
    %p38 = por %p36, %p37
    %p40 = scmp.ne.s32.totalorder %s23, %s39
    %p41 = scmp.eq.s32.totalorder %s15, 0
    %p42 = por %p40, %p41
    %s44 = sadd.s32 %s43, 1
    %p47 = scmp.eq.s32.totalorder %s9, 1
    %p48 = scmp.ne.s32.totalorder %s43, %s45
    %p49 = scmp.eq.s32.totalorder %s9, 0
    %p50 = por %p48, %p49
    %p51 = scmp.ne.s32.totalorder %s43, %s45
    %p52 = scmp.eq.s32.totalorder %s14, 1
    %p53 = por %p51, %p52
    %p54 = scmp.ne.s32.totalorder %s45, %s46
    %p55 = scmp.eq.s32.totalorder %s14, 0
    %p56 = por %p54, %p55
    %p57 = scmp.ne.s32.totalorder %s45, %s46
    %p58 = scmp.eq.s32.totalorder %s15, 1
    %p59 = por %p57, %p58
    %p61 = scmp.ne.s32.totalorder %s46, %s60
    %p62 = scmp.eq.s32.totalorder %s15, 0
    %p63 = por %p61, %p62
    %s65 = sadd.s32 %s64, 1
    %p68 = scmp.eq.s32.totalorder %s9, 1
    %p69 = scmp.ne.s32.totalorder %s64, %s66
    %p70 = scmp.eq.s32.totalorder %s9, 0
    %p71 = por %p69, %p70
    %p72 = scmp.ne.s32.totalorder %s64, %s66
    %p73 = scmp.eq.s32.totalorder %s14, 1
    %p74 = por %p72, %p73
    %p75 = scmp.ne.s32.totalorder %s66, %s67
    %p76 = scmp.eq.s32.totalorder %s14, 0
    %p77 = por %p75, %p76
    %p78 = scmp.ne.s32.totalorder %s66, %s67
    %p79 = scmp.eq.s32.totalorder %s15, 1
    %p80 = por %p78, %p79
    %p82 = scmp.ne.s32.totalorder %s67, %s81
    %p83 = scmp.eq.s32.totalorder %s15, 0
    %p84 = por %p82, %p83
    %s85 = ssub.s32 %s9, %s16
    %p86 = scmp.eq.s32.totalorder %s85, 0
    %s88 = sadd.s32 %s87, 1
    %s89 = scalar_select %p86, %s87, %s88
    %p92 = pneg %p86
    %p93 = scmp.eq.s32.totalorder %s9, 1
    %p94 = por %p92, %p93
    %p95 = scmp.ne.s32.totalorder %s87, %s90
    %p96 = scmp.eq.s32.totalorder %s9, 0
    %p97 = por %p95, %p96
    %p98 = scmp.ne.s32.totalorder %s87, %s90
    %p99 = scmp.eq.s32.totalorder %s14, 1
    %p100 = por %p98, %p99
    %p101 = scmp.ne.s32.totalorder %s90, %s91
    %p102 = scmp.eq.s32.totalorder %s14, 0
    %p103 = por %p101, %p102
    %p104 = scmp.ne.s32.totalorder %s90, %s91
    %p105 = scmp.eq.s32.totalorder %s15, 1
    %p106 = por %p104, %p105
    %p108 = scmp.ne.s32.totalorder %s91, %s107
    %p109 = scmp.eq.s32.totalorder %s15, 0
    %p110 = por %p108, %p109
    %p111 = scmp.le.s32.totalorder 1, %s9
    %p112 = scmp.lt.s32.totalorder %s9, 3
    %p113 = pnand %p111, %p112
    %p114 = pneg %p113
    // Predicated region
    $region9: #{_lambda_.14} parent=5 // pred_check
      _
    $region10: #{_lambda_.14} parent=5 // pred_check_branch
      %116 = sbr.rel (%p113) target = $region12
    $region11: #{_lambda_.14} parent=5 // pred_region
      %s117 = ssub.s32 %s9, 1
      // Predicated region
      $region13: #{_lambda_.14} parent=11 // pred_check
        %p118 = pneg %p56
      $region14: #{_lambda_.14} parent=11 // pred_check_branch
        %120 = sbr.rel (%p118) target = $region16
      $region15: #{_lambda_.14} parent=11 // pred_region
        _
      $region16: #{_lambda_.14} parent=11 // pred_fallthru
        _
      // Predicated region
      $region17: #{_lambda_.14} parent=11 // pred_check
        %p121 = pneg %p77
      $region18: #{_lambda_.14} parent=11 // pred_check_branch
        %123 = sbr.rel (%p121) target = $region20
      $region19: #{_lambda_.14} parent=11 // pred_region
        _
      $region20: #{_lambda_.14} parent=11 // pred_fallthru
        _
    $region12: #{_lambda_.14} parent=5 // pred_fallthru
      _
    %p124 = scmp.lt.s32.totalorder %s9, 2
    // Predicated region
    $region21: #{_lambda_.14} parent=5 // pred_check
      %p125 = pneg %p124
    $region22: #{_lambda_.14} parent=5 // pred_check_branch
      %127 = sbr.rel (%p125) target = $region24
    $region23: #{_lambda_.14} parent=5 // pred_region
      // Predicated region
      $region25: #{_lambda_.14} parent=23 // pred_check
        %p128 = pneg %p29
      $region26: #{_lambda_.14} parent=23 // pred_check_branch
        %130 = sbr.rel (%p128) target = $region28
      $region27: #{_lambda_.14} parent=23 // pred_region
        %p131 = scmp.lt.s32.totalorder %s9, 1
        %s132 = scalar_select %p131, %s9, 1
        %s133 = smul.addr %s132, 12
        %s134 = smul.addr %s133, 8
        %s135 = scalar_lea.vmem %s0, %s134
      $region28: #{_lambda_.14} parent=23 // pred_fallthru
        _
    $region24: #{_lambda_.14} parent=5 // pred_fallthru
      _
    %p136 = scmp.le.s32.totalorder 1, %s9
    %p137 = scmp.lt.s32.totalorder %s9, 3
    %p138 = pnand %p136, %p137
    %p139 = pneg %p138
    // Predicated region
    $region29: #{_lambda_.14} parent=5 // pred_check
      _
    $region30: #{_lambda_.14} parent=5 // pred_check_branch
      %141 = sbr.rel (%p138) target = $region32
    $region31: #{_lambda_.14} parent=5 // pred_region
      %s142 = ssub.s32 %s9, 1
      %p143 = scmp.lt.s32.totalorder %s14, 1
      %s144 = scalar_select %p143, %s14, 1
      %s145 = smul.addr %s144, 12
      %s146 = smul.addr %s145, 8
      %s147 = scalar_lea.vmem %s0, %s146
      %p148 = pneg %p35
      %p149 = pneg %p32
      %p150 = pneg %p56
      %p151 = pneg %p53
      %p152 = pneg %p77
      %p153 = pneg %p74
      %p154 = pneg %p103
      %p155 = pneg %p100
      %p156 = scmp.lt.s32.totalorder %s14, 1
      %s157 = scalar_select %p156, %s14, 1
      %s158 = smul.addr %s157, 12
      %s159 = smul.addr %s158, 8
      %s160 = scalar_lea.vmem %s3, %s159
      %p161 = scmp.lt.s32.totalorder %s14, 1
      %s162 = scalar_select %p161, %s14, 1
      %s163 = smul.addr %s162, 12
      %s164 = smul.addr %s163, 8
      %s165 = scalar_lea.vmem %s0, %s164
      %p166 = scmp.lt.s32.totalorder %s14, 1
      %s167 = scalar_select %p166, %s14, 1
      %s168 = smul.addr %s167, 12
      %s169 = smul.addr %s168, 8
      %s170 = scalar_lea.vmem %s3, %s169
      %v171 = vld [vmem:[%s165] sm:$0xff]
      %v172 = vld [vmem:[%s165 + $0x8] sm:$0xff]
      %v173 = vld [vmem:[%s165 + $0x10] sm:$0xff]
      %v174 = vld [vmem:[%s165 + $0x18] sm:$0xff]
      %v175 = vld [vmem:[%s165 + $0x20] sm:$0xff]
      %v176 = vld [vmem:[%s165 + $0x28] sm:$0xff]
      %v177 = vld [vmem:[%s165 + $0x30] sm:$0xff]
      %v178 = vld [vmem:[%s165 + $0x38] sm:$0xff]
      %v179 = vld [vmem:[%s165 + $0x40] sm:$0xff]
      %v180 = vld [vmem:[%s165 + $0x48] sm:$0xff]
      %v181 = vld [vmem:[%s165 + $0x50] sm:$0xff]
      %v182 = vld [vmem:[%s165 + $0x58] sm:$0x3]
      %v183 = vld [vmem:[%s1] sm:$0x1]
      %v185 = vperm.slane %v183, 0
      %v187 = vmul.f32 %v171, %v185
      %v188 = vmul.f32 %v172, %v185
      %v189 = vmul.f32 %v173, %v185
      %v190 = vmul.f32 %v174, %v185
      %v191 = vmul.f32 %v175, %v185
      %v192 = vmul.f32 %v176, %v185
      %v193 = vmul.f32 %v177, %v185
      %v194 = vmul.f32 %v178, %v185
      %v195 = vmul.f32 %v179, %v185
      %v196 = vmul.f32 %v180, %v185
      %v197 = vmul.f32 %v181, %v185
      %v198 = vmul.f32 %v182, %v185
      %v199 = vld [vmem:[%s2] sm:$0x1]
      %v201 = vperm.slane %v199, 0
      %v203 = vadd.f32 %v187, %v201
      %v204 = vadd.f32 %v188, %v201
      %v205 = vadd.f32 %v189, %v201
      %v206 = vadd.f32 %v190, %v201
      %v207 = vadd.f32 %v191, %v201
      %v208 = vadd.f32 %v192, %v201
      %v209 = vadd.f32 %v193, %v201
      %v210 = vadd.f32 %v194, %v201
      %v211 = vadd.f32 %v195, %v201
      %v212 = vadd.f32 %v196, %v201
      %v213 = vadd.f32 %v197, %v201
      %v214 = vadd.f32 %v198, %v201
      %v215 = vmax.f32 %v203, 0.0
      %v216 = vmax.f32 %v204, 0.0
      %v217 = vmax.f32 %v205, 0.0
      %v218 = vmax.f32 %v206, 0.0
      %v219 = vmax.f32 %v207, 0.0
      %v220 = vmax.f32 %v208, 0.0
      %v221 = vmax.f32 %v209, 0.0
      %v222 = vmax.f32 %v210, 0.0
      %v223 = vmax.f32 %v211, 0.0
      %v224 = vmax.f32 %v212, 0.0
      %v225 = vmax.f32 %v213, 0.0
      %v226 = vmax.f32 %v214, 0.0
      %227 = vst [vmem:[%s170] sm:$0xff] %v215
      %228 = vst [vmem:[%s170 + $0x8] sm:$0xff] %v216
      %229 = vst [vmem:[%s170 + $0x10] sm:$0xff] %v217
      %230 = vst [vmem:[%s170 + $0x18] sm:$0xff] %v218
      %231 = vst [vmem:[%s170 + $0x20] sm:$0xff] %v219
      %232 = vst [vmem:[%s170 + $0x28] sm:$0xff] %v220
      %233 = vst [vmem:[%s170 + $0x30] sm:$0xff] %v221
      %234 = vst [vmem:[%s170 + $0x38] sm:$0xff] %v222
      %235 = vst [vmem:[%s170 + $0x40] sm:$0xff] %v223
      %236 = vst [vmem:[%s170 + $0x48] sm:$0xff] %v224
      %237 = vst [vmem:[%s170 + $0x50] sm:$0xff] %v225
      %238 = vst [vmem:[%s170 + $0x58] sm:$0x3] %v226
      %p239 = scmp.lt.s32.totalorder %s14, 1
      %s240 = scalar_select %p239, %s14, 1
      %s241 = smul.addr %s240, 12
      %s242 = smul.addr %s241, 8
      %s243 = scalar_lea.vmem %s3, %s242
      // Predicated region
      $region33: #{_lambda_.14} parent=31 // pred_check
        %p244 = pneg %p100
      $region34: #{_lambda_.14} parent=31 // pred_check_branch
        %246 = sbr.rel (%p244) target = $region36
      $region35: #{_lambda_.14} parent=31 // pred_region
        _
      $region36: #{_lambda_.14} parent=31 // pred_fallthru
        _
    $region32: #{_lambda_.14} parent=5 // pred_fallthru
      _
    %p247 = scmp.le.s32.totalorder 2, %s9
    // Predicated region
    $region37: #{_lambda_.14} parent=5 // pred_check
      %p248 = pneg %p247
    $region38: #{_lambda_.14} parent=5 // pred_check_branch
      %250 = sbr.rel (%p248) target = $region40
    $region39: #{_lambda_.14} parent=5 // pred_region
      %s251 = ssub.s32 %s9, 2
      // Predicated region
      $region41: #{_lambda_.14} parent=39 // pred_check
        %p252 = pneg %p106
      $region42: #{_lambda_.14} parent=39 // pred_check_branch
        %254 = sbr.rel (%p252) target = $region44
      $region43: #{_lambda_.14} parent=39 // pred_region
        %p255 = scmp.lt.s32.totalorder %s15, 1
        %s256 = scalar_select %p255, %s15, 1
        %s257 = smul.addr %s256, 12
        %s258 = smul.addr %s257, 8
        %s259 = scalar_lea.vmem %s3, %s258
      $region44: #{_lambda_.14} parent=39 // pred_fallthru
        _
    $region40: #{_lambda_.14} parent=5 // pred_fallthru
      _
  $region6: #{_lambda_.14} parent=0 // loop_footer
    %s13 = sadd.s32 1, %s9
  $region7: #{_lambda_.14} parent=0 // loop_footer_branch
    %8 = sbr.rel target = $region3
  $region8: #{_lambda_.14} parent=0 // loop_exit
    _

// kernel: _lambda_.13
$region0: #{_lambda_.13}
  #allocation0 [shape = 'u32[]', space=smem, size = 0x4, offset = 0x4, fixed_abs, tag = 'smem constant byte address 0x4 - core index']
  #allocation1 [shape = 'u32[72,128]{1,0:T(1,128)}', space=vmem, size = 0x9000, scoped, tag = 'internal scratch']
  %s0 = inlined_call_operand.vmem [shape: f32[2,110,32], index: 0, kind: input, shape index: {}]
  %s1 = inlined_call_operand.vmem [shape: bf16[4,32,128], index: 1, kind: input, shape index: {}]
  %s2 = inlined_call_operand.vmem [shape: f32[90,128], index: 2, kind: input, shape index: {}]
  %s3 = inlined_call_operand.vmem [shape: f32[2,90,128], index: 3, kind: output, shape index: {0}]
  %s4 = inlined_call_operand.vmem [shape: f32[2,1,128], index: 4, kind: output, shape index: {1}]
  %s5 = inlined_call_operand.vmem [shape: f32[2,1,128], index: 5, kind: output, shape index: {2}]
  %6 = xla_tuple %s3, %s4, %s5
  %s7 = sld [smem:[#allocation0]]
  $region61: #{_lambda_.13} parent=0
    _
  %s9 = ssub.s32 1, %s7
  %s10 = scalar_select 0, %s9, %s7
  loop: start=0, step=1, limit=4
  $region2: #{_lambda_.13} parent=0 // loop_pre_header
    _
  $region3: #{_lambda_.13} parent=0 // loop_header
    %s12 = sphi 0, %s16
    %p13 = scmp.ge.s32.totalorder %s12, 4
    %s22 = sphi 0, %s24
    %s25 = sphi 0, %s22
    %s26 = sphi 0, %s25
    %s42 = sphi 0, %s26
    %s46 = sphi 0, %s46
    %s48 = sphi 0, %s46
    %s49 = sphi 0, %s48
    %s63 = sphi 0, %s49
    %s67 = sphi 0, %s67
    %s69 = sphi 0, %s67
    %s70 = sphi 0, %s69
    %s84 = sphi 0, %s70
    %s90 = sphi 0, %s92
    %s93 = sphi 0, %s90
    %s94 = sphi 0, %s93
    %s110 = sphi 0, %s94
    %s116 = sphi 0, %s118
    %s119 = sphi 0, %s116
    %s120 = sphi 0, %s119
    %s136 = sphi 0, %s120
    %s142 = sphi 0, %s144
    %s145 = sphi 0, %s142
    %s146 = sphi 0, %s145
    %s162 = sphi 0, %s146
  $region4: #{_lambda_.13} parent=0 // loop_header_branch
    %15 = sbr.rel (%p13) target = $region8
  $region5: #{_lambda_.13} parent=0 // loop_body
    %s17 = ssub.s32 %s12, 1
    %s18 = ssub.s32 %s12, 2
    %s19 = sadd.s32 %s12, 1
    %s20 = ssub.s32 %s12, %s19
    %p21 = scmp.eq.s32.totalorder %s20, 0
    %s23 = sadd.s32 %s22, 1
    %s24 = scalar_select %p21, %s22, %s23
    %p27 = pneg %p21
    %p28 = scmp.eq.s32.totalorder %s12, 1
    %p29 = por %p27, %p28
    %p30 = scmp.ne.s32.totalorder %s22, %s25
    %p31 = scmp.eq.s32.totalorder %s12, 0
    %p32 = por %p30, %p31
    %p33 = scmp.ne.s32.totalorder %s22, %s25
    %p34 = scmp.eq.s32.totalorder %s17, 1
    %p35 = por %p33, %p34
    %p36 = scmp.ne.s32.totalorder %s25, %s26
    %p37 = scmp.eq.s32.totalorder %s17, 0
    %p38 = por %p36, %p37
    %p39 = scmp.ne.s32.totalorder %s25, %s26
    %p40 = scmp.eq.s32.totalorder %s18, 1
    %p41 = por %p39, %p40
    %p43 = scmp.ne.s32.totalorder %s26, %s42
    %p44 = scmp.eq.s32.totalorder %s18, 0
    %p45 = por %p43, %p44
    %s47 = sadd.s32 %s46, 1
    %p50 = scmp.eq.s32.totalorder %s12, 1
    %p51 = scmp.ne.s32.totalorder %s46, %s48
    %p52 = scmp.eq.s32.totalorder %s12, 0
    %p53 = por %p51, %p52
    %p54 = scmp.ne.s32.totalorder %s46, %s48
    %p55 = scmp.eq.s32.totalorder %s17, 1
    %p56 = por %p54, %p55
    %p57 = scmp.ne.s32.totalorder %s48, %s49
    %p58 = scmp.eq.s32.totalorder %s17, 0
    %p59 = por %p57, %p58
    %p60 = scmp.ne.s32.totalorder %s48, %s49
    %p61 = scmp.eq.s32.totalorder %s18, 1
    %p62 = por %p60, %p61
    %p64 = scmp.ne.s32.totalorder %s49, %s63
    %p65 = scmp.eq.s32.totalorder %s18, 0
    %p66 = por %p64, %p65
    %s68 = sadd.s32 %s67, 1
    %p71 = scmp.eq.s32.totalorder %s12, 1
    %p72 = scmp.ne.s32.totalorder %s67, %s69
    %p73 = scmp.eq.s32.totalorder %s12, 0
    %p74 = por %p72, %p73
    %p75 = scmp.ne.s32.totalorder %s67, %s69
    %p76 = scmp.eq.s32.totalorder %s17, 1
    %p77 = por %p75, %p76
    %p78 = scmp.ne.s32.totalorder %s69, %s70
    %p79 = scmp.eq.s32.totalorder %s17, 0
    %p80 = por %p78, %p79
    %p81 = scmp.ne.s32.totalorder %s69, %s70
    %p82 = scmp.eq.s32.totalorder %s18, 1
    %p83 = por %p81, %p82
    %p85 = scmp.ne.s32.totalorder %s70, %s84
    %p86 = scmp.eq.s32.totalorder %s18, 0
    %p87 = por %p85, %p86
    %s88 = ssub.s32 %s12, %s19
    %p89 = scmp.eq.s32.totalorder %s88, 0
    %s91 = sadd.s32 %s90, 1
    %s92 = scalar_select %p89, %s90, %s91
    %p95 = pneg %p89
    %p96 = scmp.eq.s32.totalorder %s12, 1
    %p97 = por %p95, %p96
    %p98 = scmp.ne.s32.totalorder %s90, %s93
    %p99 = scmp.eq.s32.totalorder %s12, 0
    %p100 = por %p98, %p99
    %p101 = scmp.ne.s32.totalorder %s90, %s93
    %p102 = scmp.eq.s32.totalorder %s17, 1
    %p103 = por %p101, %p102
    %p104 = scmp.ne.s32.totalorder %s93, %s94
    %p105 = scmp.eq.s32.totalorder %s17, 0
    %p106 = por %p104, %p105
    %p107 = scmp.ne.s32.totalorder %s93, %s94
    %p108 = scmp.eq.s32.totalorder %s18, 1
    %p109 = por %p107, %p108
    %p111 = scmp.ne.s32.totalorder %s94, %s110
    %p112 = scmp.eq.s32.totalorder %s18, 0
    %p113 = por %p111, %p112
    %s114 = ssub.s32 %s12, %s19
    %p115 = scmp.eq.s32.totalorder %s114, 0
    %s117 = sadd.s32 %s116, 1
    %s118 = scalar_select %p115, %s116, %s117
    %p121 = pneg %p115
    %p122 = scmp.eq.s32.totalorder %s12, 1
    %p123 = por %p121, %p122
    %p124 = scmp.ne.s32.totalorder %s116, %s119
    %p125 = scmp.eq.s32.totalorder %s12, 0
    %p126 = por %p124, %p125
    %p127 = scmp.ne.s32.totalorder %s116, %s119
    %p128 = scmp.eq.s32.totalorder %s17, 1
    %p129 = por %p127, %p128
    %p130 = scmp.ne.s32.totalorder %s119, %s120
    %p131 = scmp.eq.s32.totalorder %s17, 0
    %p132 = por %p130, %p131
    %p133 = scmp.ne.s32.totalorder %s119, %s120
    %p134 = scmp.eq.s32.totalorder %s18, 1
    %p135 = por %p133, %p134
    %p137 = scmp.ne.s32.totalorder %s120, %s136
    %p138 = scmp.eq.s32.totalorder %s18, 0
    %p139 = por %p137, %p138
    %s140 = ssub.s32 %s12, %s19
    %p141 = scmp.eq.s32.totalorder %s140, 0
    %s143 = sadd.s32 %s142, 1
    %s144 = scalar_select %p141, %s142, %s143
    %p147 = pneg %p141
    %p148 = scmp.eq.s32.totalorder %s12, 1
    %p149 = por %p147, %p148
    %p150 = scmp.ne.s32.totalorder %s142, %s145
    %p151 = scmp.eq.s32.totalorder %s12, 0
    %p152 = por %p150, %p151
    %p153 = scmp.ne.s32.totalorder %s142, %s145
    %p154 = scmp.eq.s32.totalorder %s17, 1
    %p155 = por %p153, %p154
    %p156 = scmp.ne.s32.totalorder %s145, %s146
    %p157 = scmp.eq.s32.totalorder %s17, 0
    %p158 = por %p156, %p157
    %p159 = scmp.ne.s32.totalorder %s145, %s146
    %p160 = scmp.eq.s32.totalorder %s18, 1
    %p161 = por %p159, %p160
    %p163 = scmp.ne.s32.totalorder %s146, %s162
    %p164 = scmp.eq.s32.totalorder %s18, 0
    %p165 = por %p163, %p164
    %p166 = scmp.le.s32.totalorder 1, %s12
    %p167 = scmp.lt.s32.totalorder %s12, 3
    %p168 = pnand %p166, %p167
    %p169 = pneg %p168
    // Predicated region
    $region9: #{_lambda_.13} parent=5 // pred_check
      _
    $region10: #{_lambda_.13} parent=5 // pred_check_branch
      %171 = sbr.rel (%p168) target = $region12
    $region11: #{_lambda_.13} parent=5 // pred_region
      %s172 = ssub.s32 %s12, 1
      // Predicated region
      $region13: #{_lambda_.13} parent=11 // pred_check
        %p173 = pneg %p59
      $region14: #{_lambda_.13} parent=11 // pred_check_branch
        %175 = sbr.rel (%p173) target = $region16
      $region15: #{_lambda_.13} parent=11 // pred_region
        _
      $region16: #{_lambda_.13} parent=11 // pred_fallthru
        _
      // Predicated region
      $region17: #{_lambda_.13} parent=11 // pred_check
        %p176 = pneg %p80
      $region18: #{_lambda_.13} parent=11 // pred_check_branch
        %178 = sbr.rel (%p176) target = $region20
      $region19: #{_lambda_.13} parent=11 // pred_region
        _
      $region20: #{_lambda_.13} parent=11 // pred_fallthru
        _
    $region12: #{_lambda_.13} parent=5 // pred_fallthru
      _
    %p179 = scmp.lt.s32.totalorder %s12, 2
    // Predicated region
    $region21: #{_lambda_.13} parent=5 // pred_check
      %p180 = pneg %p179
    $region22: #{_lambda_.13} parent=5 // pred_check_branch
      %182 = sbr.rel (%p180) target = $region24
    $region23: #{_lambda_.13} parent=5 // pred_region
      // Predicated region
      $region25: #{_lambda_.13} parent=23 // pred_check
        %p183 = pneg %p32
      $region26: #{_lambda_.13} parent=23 // pred_check_branch
        %185 = sbr.rel (%p183) target = $region28
      $region27: #{_lambda_.13} parent=23 // pred_region
        %p186 = scmp.lt.s32.totalorder %s12, 1
        %s187 = scalar_select %p186, %s12, 1
        %s188 = smul.addr %s187, 14
        %s189 = smul.addr %s188, 8
        %s190 = scalar_lea.vmem %s0, %s189
      $region28: #{_lambda_.13} parent=23 // pred_fallthru
        _
    $region24: #{_lambda_.13} parent=5 // pred_fallthru
      _
    %p191 = scmp.le.s32.totalorder 1, %s12
    %p192 = scmp.lt.s32.totalorder %s12, 3
    %p193 = pnand %p191, %p192
    %p194 = pneg %p193
    // Predicated region
    $region29: #{_lambda_.13} parent=5 // pred_check
      _
    $region30: #{_lambda_.13} parent=5 // pred_check_branch
      %196 = sbr.rel (%p193) target = $region32
    $region31: #{_lambda_.13} parent=5 // pred_region
      %s197 = ssub.s32 %s12, 1
      %p198 = scmp.lt.s32.totalorder %s17, 1
      %s199 = scalar_select %p198, %s17, 1
      %s200 = smul.addr %s199, 14
      %s201 = smul.addr %s200, 8
      %s202 = scalar_lea.vmem %s0, %s201
      %p203 = pneg %p38
      %p204 = pneg %p35
      %p205 = pneg %p59
      %p206 = pneg %p56
      %p207 = pneg %p80
      %p208 = pneg %p77
      %p209 = pneg %p106
      %p210 = pneg %p103
      %p211 = scmp.lt.s32.totalorder %s17, 1
      %s212 = scalar_select %p211, %s17, 1
      %s213 = smul.addr %s212, 12
      %s214 = smul.addr %s213, 8
      %s215 = scalar_lea.vmem %s3, %s214
      %p216 = pneg %p132
      %p217 = pneg %p129
      %p218 = scmp.lt.s32.totalorder %s17, 1
      %s219 = scalar_select %p218, %s17, 1
      %s220 = scalar_lea.vmem %s4, %s219
      %p221 = pneg %p158
      %p222 = pneg %p155
      %p223 = scmp.lt.s32.totalorder %s17, 1
      %s224 = scalar_select %p223, %s17, 1
      %s225 = scalar_lea.vmem %s5, %s224
      %p226 = scmp.lt.s32.totalorder %s17, 1
      %s227 = scalar_select %p226, %s17, 1
      %s228 = smul.addr %s227, 14
      %s229 = smul.addr %s228, 8
      %s230 = scalar_lea.vmem %s0, %s229
      %p231 = scmp.lt.s32.totalorder %s17, 1
      %s232 = scalar_select %p231, %s17, 1
      %s233 = smul.addr %s232, 12
      %s234 = smul.addr %s233, 8
      %s235 = scalar_lea.vmem %s3, %s234
      %p236 = scmp.lt.s32.totalorder %s17, 1
      %s237 = scalar_select %p236, %s17, 1
      %s238 = scalar_lea.vmem %s4, %s237
      %p239 = scmp.lt.s32.totalorder %s17, 1
      %s240 = scalar_select %p239, %s17, 1
      %s241 = scalar_lea.vmem %s5, %s240
      %v243 = vld [vmem:[%s230] sm:$0xff]
      %v244 = vld [vmem:[%s230 + $0x8] sm:$0xff]
      %v245 = vld [vmem:[%s230 + $0x10] sm:$0xff]
      %v246 = vld [vmem:[%s230 + $0x18] sm:$0xff]
      %v247 = vld [vmem:[%s230 + $0x20] sm:$0xff]
      %v248 = vld [vmem:[%s230 + $0x28] sm:$0xff]
      %v249 = vld [vmem:[%s230 + $0x30] sm:$0xff]
      %v250 = vld [vmem:[%s230 + $0x38] sm:$0xff]
      %v251 = vld [vmem:[%s230 + $0x40] sm:$0xff]
      %v252 = vld [vmem:[%s230 + $0x48] sm:$0xff]
      %v253 = vld [vmem:[%s230 + $0x50] sm:$0xff]
      %v254 = vld [vmem:[%s230 + $0x58] sm:$0xff]
      %v255 = vld [vmem:[%s230 + $0x60] sm:$0xff]
      %v256 = vpack.c.bf16 %v244, %v243
      %v257 = vpack.c.bf16 %v246, %v245
      %v258 = vpack.c.bf16 %v248, %v247
      %v259 = vpack.c.bf16 %v250, %v249
      %v260 = vpack.c.bf16 %v252, %v251
      %v261 = vpack.c.bf16 %v254, %v253
      %v262 = vld [vmem:[%s1] sm:$0xf]
      %v263 = vld [vmem:[%s1 + $0x4] sm:$0xf]
      %v264 = vld [vmem:[%s1 + $0x8] sm:$0xf]
      %v265 = vld [vmem:[%s1 + $0xc] sm:$0xf]
      %s266 = scalar_lea.vmem %s1, 16
      %v267 = vld [vmem:[%s266] sm:$0xf]
      %v268 = vld [vmem:[%s266 + $0x4] sm:$0xf]
      %v269 = vld [vmem:[%s266 + $0x8] sm:$0xf]
      %v270 = vld [vmem:[%s266 + $0xc] sm:$0xf]
      %vm271 = vsmask.f32 7424
      %v273 = vshrl.u32 %v256, 16
      %v275 = vshll.u32 %v256, 16
      %v277 = vrot.slane %v275, 1
      %v278 = vor.u32 %v273, %v277
      %v280 = vshll.u32 %v257, 16
      %v282 = vrot.slane %v280, 1
      %v283 = vsel %vm271, %v278, %v282
      %v284 = vshrl.u32 %v257, 16
      %v286 = vor.u32 %v284, %v282
      %v288 = vshll.u32 %v258, 16
      %v290 = vrot.slane %v288, 1
      %v291 = vsel %vm271, %v286, %v290
      %v292 = vshrl.u32 %v258, 16
      %v294 = vor.u32 %v292, %v290
      %v296 = vshll.u32 %v259, 16
      %v298 = vrot.slane %v296, 1
      %v299 = vsel %vm271, %v294, %v298
      %v300 = vshrl.u32 %v259, 16
      %v302 = vor.u32 %v300, %v298
      %v304 = vshll.u32 %v260, 16
      %v306 = vrot.slane %v304, 1
      %v307 = vsel %vm271, %v302, %v306
      %v308 = vshrl.u32 %v260, 16
      %v310 = vor.u32 %v308, %v306
      %v312 = vshll.u32 %v261, 16
      %v314 = vrot.slane %v312, 1
      %v315 = vsel %vm271, %v310, %v314
      %v316 = vshrl.u32 %v261, 16
      %v318 = vor.u32 %v316, %v314
      %v323 = vunpack.c.l.b16 %v267
      %v324 = vunpack.c.l.b16 %v268
      %v325 = vunpack.c.l.b16 %v269
      %v326 = vunpack.c.l.b16 %v270
      %v327 = vpack.c.b16 %v324, %v323
      %v328 = vpack.c.b16 %v326, %v325
      %vm331 = vcmask 261120
      %v333 = vsel %vm331, %v283, 0
      %v336 = vsel %vm331, %v291, 0
      %v339 = vsel %vm331, %v299, 0
      %v342 = vsel %vm331, %v307, 0
      %v345 = vsel %vm331, %v315, 0
      %v348 = vsel %vm331, %v318, 0
      %350 = vmatpush.bf16.msra.mxu0 0
      %351 = vmatpush.bf16.msra.mxu0 0
      %352 = vmatpush.bf16.msra.mxu0 0
      %353 = vmatpush.bf16.msra.mxu0 0
      %354 = vmatpush.bf16.msra.mxu0 0
      %355 = vmatpush.bf16.msra.mxu0 0
      %356 = vmatpush.bf16.msra.mxu0 %v328
      %357 = vmatpush.bf16.msra.mxu0 %v327
      %358 = vmatmul.bf16.gmra.mxu0 %v333
      %v359 = vpop.f32.mrf.mxu0
      %v360 = vadd.f32 0.0, %v359
      %v361 = vpop.f32.mrf.mxu0
      %v362 = vadd.f32 0.0, %v361
      %363 = vmatmul.bf16.gmra.mxu0 %v336
      %v364 = vpop.f32.mrf.mxu0
      %v365 = vadd.f32 0.0, %v364
      %v366 = vpop.f32.mrf.mxu0
      %v367 = vadd.f32 0.0, %v366
      %368 = vmatmul.bf16.gmra.mxu0 %v339
      %v369 = vpop.f32.mrf.mxu0
      %v370 = vadd.f32 0.0, %v369
      %v371 = vpop.f32.mrf.mxu0
      %v372 = vadd.f32 0.0, %v371
      %373 = vmatmul.bf16.gmra.mxu0 %v342
      %v374 = vpop.f32.mrf.mxu0
      %v375 = vadd.f32 0.0, %v374
      %v376 = vpop.f32.mrf.mxu0
      %v377 = vadd.f32 0.0, %v376
      %378 = vmatmul.bf16.gmra.mxu0 %v345
      %v379 = vpop.f32.mrf.mxu0
      %v380 = vadd.f32 0.0, %v379
      %v381 = vpop.f32.mrf.mxu0
      %v382 = vadd.f32 0.0, %v381
      %383 = vmatmul.bf16.gmra.mxu0 %v348
      %v384 = vpop.f32.mrf.mxu0
      %v385 = vadd.f32 0.0, %v384
      %v386 = vpop.f32.mrf.mxu0
      %v387 = vadd.f32 0.0, %v386
      %388 = vdwg.mxu0
      %v393 = vunpack.c.l.b16 %v262
      %v394 = vunpack.c.l.b16 %v263
      %v395 = vunpack.c.l.b16 %v264
      %v396 = vunpack.c.l.b16 %v265
      %v397 = vpack.c.b16 %v394, %v393
      %v398 = vpack.c.b16 %v396, %v395
      %v401 = vsel %vm331, %v256, 0
      %v403 = vsel %vm331, %v257, 0
      %v405 = vsel %vm331, %v258, 0
      %v407 = vsel %vm331, %v259, 0
      %v409 = vsel %vm331, %v260, 0
      %v411 = vsel %vm331, %v261, 0
      %413 = vmatpush.bf16.msra.mxu0 0
      %414 = vmatpush.bf16.msra.mxu0 0
      %415 = vmatpush.bf16.msra.mxu0 0
      %416 = vmatpush.bf16.msra.mxu0 0
      %417 = vmatpush.bf16.msra.mxu0 0
      %418 = vmatpush.bf16.msra.mxu0 0
      %419 = vmatpush.bf16.msra.mxu0 %v398
      %420 = vmatpush.bf16.msra.mxu0 %v397
      %421 = vmatmul.bf16.gmra.mxu0 %v401
      %v422 = vpop.f32.mrf.mxu0
      %v423 = vadd.f32 %v360, %v422
      %v424 = vpop.f32.mrf.mxu0
      %v425 = vadd.f32 %v362, %v424
      %426 = vmatmul.bf16.gmra.mxu0 %v403
      %v427 = vpop.f32.mrf.mxu0
      %v428 = vadd.f32 %v365, %v427
      %v429 = vpop.f32.mrf.mxu0
      %v430 = vadd.f32 %v367, %v429
      %431 = vmatmul.bf16.gmra.mxu0 %v405
      %v432 = vpop.f32.mrf.mxu0
      %v433 = vadd.f32 %v370, %v432
      %v434 = vpop.f32.mrf.mxu0
      %v435 = vadd.f32 %v372, %v434
      %436 = vmatmul.bf16.gmra.mxu0 %v407
      %v437 = vpop.f32.mrf.mxu0
      %v438 = vadd.f32 %v375, %v437
      %v439 = vpop.f32.mrf.mxu0
      %v440 = vadd.f32 %v377, %v439
      %441 = vmatmul.bf16.gmra.mxu0 %v409
      %v442 = vpop.f32.mrf.mxu0
      %v443 = vadd.f32 %v380, %v442
      %v444 = vpop.f32.mrf.mxu0
      %v445 = vadd.f32 %v382, %v444
      %446 = vmatmul.bf16.gmra.mxu0 %v411
      %v447 = vpop.f32.mrf.mxu0
      %v448 = vadd.f32 %v385, %v447
      %v449 = vpop.f32.mrf.mxu0
      %v450 = vadd.f32 %v387, %v449
      %451 = vdwg.mxu0
      %v452 = vpack.c.bf16 %v245, %v244
      %v453 = vpack.c.bf16 %v247, %v246
      %v454 = vpack.c.bf16 %v249, %v248
      %v455 = vpack.c.bf16 %v251, %v250
      %v456 = vpack.c.bf16 %v253, %v252
      %v457 = vpack.c.bf16 %v255, %v254
      %s458 = scalar_lea.vmem %s1, 32
      %v459 = vld [vmem:[%s458] sm:$0xf]
      %v460 = vld [vmem:[%s458 + $0x4] sm:$0xf]
      %v461 = vld [vmem:[%s458 + $0x8] sm:$0xf]
      %v462 = vld [vmem:[%s458 + $0xc] sm:$0xf]
      %vm469 = vcmask 1046528
      %v470 = vrot.slane %v452, 1
      %v471 = vrot.slane %v453, 1
      %v472 = vsel %vm469, %v470, %v471
      %v473 = vrot.slane %v454, 1
      %v474 = vsel %vm469, %v471, %v473
      %v475 = vrot.slane %v455, 1
      %v476 = vsel %vm469, %v473, %v475
      %v477 = vrot.slane %v456, 1
      %v478 = vsel %vm469, %v475, %v477
      %v479 = vrot.slane %v457, 1
      %v480 = vsel %vm469, %v477, %v479
      %v485 = vunpack.c.l.b16 %v459
      %v486 = vunpack.c.l.b16 %v460
      %v487 = vunpack.c.l.b16 %v461
      %v488 = vunpack.c.l.b16 %v462
      %v489 = vpack.c.b16 %v486, %v485
      %v490 = vpack.c.b16 %v488, %v487
      %v494 = vsel %vm331, %v472, 0
      %v497 = vsel %vm331, %v474, 0
      %v500 = vsel %vm331, %v476, 0
      %v503 = vsel %vm331, %v478, 0
      %v506 = vsel %vm331, %v480, 0
      %v509 = vsel %vm331, %v479, 0
      %511 = vmatpush.bf16.msra.mxu0 0
      %512 = vmatpush.bf16.msra.mxu0 0
      %513 = vmatpush.bf16.msra.mxu0 0
      %514 = vmatpush.bf16.msra.mxu0 0
      %515 = vmatpush.bf16.msra.mxu0 0
      %516 = vmatpush.bf16.msra.mxu0 0
      %517 = vmatpush.bf16.msra.mxu0 %v490
      %518 = vmatpush.bf16.msra.mxu0 %v489
      %519 = vmatmul.bf16.gmra.mxu0 %v494
      %v520 = vpop.f32.mrf.mxu0
      %v521 = vadd.f32 0.0, %v520
      %v522 = vpop.f32.mrf.mxu0
      %v523 = vadd.f32 0.0, %v522
      %524 = vmatmul.bf16.gmra.mxu0 %v497
      %v525 = vpop.f32.mrf.mxu0
      %v526 = vadd.f32 0.0, %v525
      %v527 = vpop.f32.mrf.mxu0
      %v528 = vadd.f32 0.0, %v527
      %529 = vmatmul.bf16.gmra.mxu0 %v500
      %v530 = vpop.f32.mrf.mxu0
      %v531 = vadd.f32 0.0, %v530
      %v532 = vpop.f32.mrf.mxu0
      %v533 = vadd.f32 0.0, %v532
      %534 = vmatmul.bf16.gmra.mxu0 %v503
      %v535 = vpop.f32.mrf.mxu0
      %v536 = vadd.f32 0.0, %v535
      %v537 = vpop.f32.mrf.mxu0
      %v538 = vadd.f32 0.0, %v537
      %539 = vmatmul.bf16.gmra.mxu0 %v506
      %v540 = vpop.f32.mrf.mxu0
      %v541 = vadd.f32 0.0, %v540
      %v542 = vpop.f32.mrf.mxu0
      %v543 = vadd.f32 0.0, %v542
      %544 = vmatmul.bf16.gmra.mxu0 %v509
      %v545 = vpop.f32.mrf.mxu0
      %v546 = vadd.f32 0.0, %v545
      %v547 = vpop.f32.mrf.mxu0
      %v548 = vadd.f32 0.0, %v547
      %549 = vdwg.mxu0
      %v550 = vadd.f32 %v423, %v521
      %v551 = vadd.f32 %v425, %v523
      %v552 = vadd.f32 %v428, %v526
      %v553 = vadd.f32 %v430, %v528
      %v554 = vadd.f32 %v433, %v531
      %v555 = vadd.f32 %v435, %v533
      %v556 = vadd.f32 %v438, %v536
      %v557 = vadd.f32 %v440, %v538
      %v558 = vadd.f32 %v443, %v541
      %v559 = vadd.f32 %v445, %v543
      %v560 = vadd.f32 %v448, %v546
      %v561 = vadd.f32 %v450, %v548
      %s562 = scalar_lea.vmem %s1, 48
      %v563 = vld [vmem:[%s562] sm:$0xf]
      %v564 = vld [vmem:[%s562 + $0x4] sm:$0xf]
      %v565 = vld [vmem:[%s562 + $0x8] sm:$0xf]
      %v566 = vld [vmem:[%s562 + $0xc] sm:$0xf]
      %vm567 = vsmask.f32 6400
      %v569 = vshrl.u32 %v452, 16
      %v571 = vrot.slane %v569, 1
      %v572 = vshll.u32 %v452, 16
      %v574 = vrot.slane %v572, 2
      %v575 = vor.u32 %v571, %v574
      %v577 = vshrl.u32 %v453, 16
      %v579 = vrot.slane %v577, 1
      %v580 = vshll.u32 %v453, 16
      %v582 = vrot.slane %v580, 2
      %v583 = vor.u32 %v579, %v582
      %v584 = vsel %vm567, %v575, %v583
      %v586 = vshrl.u32 %v454, 16
      %v588 = vrot.slane %v586, 1
      %v589 = vshll.u32 %v454, 16
      %v591 = vrot.slane %v589, 2
      %v592 = vor.u32 %v588, %v591
      %v593 = vsel %vm567, %v583, %v592
      %v595 = vshrl.u32 %v455, 16
      %v597 = vrot.slane %v595, 1
      %v598 = vshll.u32 %v455, 16
      %v600 = vrot.slane %v598, 2
      %v601 = vor.u32 %v597, %v600
      %v602 = vsel %vm567, %v592, %v601
      %v604 = vshrl.u32 %v456, 16
      %v606 = vrot.slane %v604, 1
      %v607 = vshll.u32 %v456, 16
      %v609 = vrot.slane %v607, 2
      %v610 = vor.u32 %v606, %v609
      %v611 = vsel %vm567, %v601, %v610
      %v613 = vshrl.u32 %v457, 16
      %v615 = vrot.slane %v613, 1
      %v616 = vshll.u32 %v457, 16
      %v618 = vrot.slane %v616, 2
      %v619 = vor.u32 %v615, %v618
      %v620 = vsel %vm567, %v610, %v619
      %v625 = vunpack.c.l.b16 %v563
      %v626 = vunpack.c.l.b16 %v564
      %v627 = vunpack.c.l.b16 %v565
      %v628 = vunpack.c.l.b16 %v566
      %v629 = vpack.c.b16 %v626, %v625
      %v630 = vpack.c.b16 %v628, %v627
      %v634 = vsel %vm331, %v584, 0
      %v637 = vsel %vm331, %v593, 0
      %v640 = vsel %vm331, %v602, 0
      %v643 = vsel %vm331, %v611, 0
      %v646 = vsel %vm331, %v620, 0
      %v649 = vsel %vm331, %v619, 0
      %651 = vmatpush.bf16.msra.mxu0 0
      %652 = vmatpush.bf16.msra.mxu0 0
      %653 = vmatpush.bf16.msra.mxu0 0
      %654 = vmatpush.bf16.msra.mxu0 0
      %655 = vmatpush.bf16.msra.mxu0 0
      %656 = vmatpush.bf16.msra.mxu0 0
      %657 = vmatpush.bf16.msra.mxu0 %v630
      %658 = vmatpush.bf16.msra.mxu0 %v629
      %659 = vmatmul.bf16.gmra.mxu0 %v634
      %v660 = vpop.f32.mrf.mxu0
      %v661 = vadd.f32 0.0, %v660
      %v662 = vpop.f32.mrf.mxu0
      %v663 = vadd.f32 0.0, %v662
      %664 = vmatmul.bf16.gmra.mxu0 %v637
      %v665 = vpop.f32.mrf.mxu0
      %v666 = vadd.f32 0.0, %v665
      %v667 = vpop.f32.mrf.mxu0
      %v668 = vadd.f32 0.0, %v667
      %669 = vmatmul.bf16.gmra.mxu0 %v640
      %v670 = vpop.f32.mrf.mxu0
      %v671 = vadd.f32 0.0, %v670
      %v672 = vpop.f32.mrf.mxu0
      %v673 = vadd.f32 0.0, %v672
      %674 = vmatmul.bf16.gmra.mxu0 %v643
      %v675 = vpop.f32.mrf.mxu0
      %v676 = vadd.f32 0.0, %v675
      %v677 = vpop.f32.mrf.mxu0
      %v678 = vadd.f32 0.0, %v677
      %679 = vmatmul.bf16.gmra.mxu0 %v646
      %v680 = vpop.f32.mrf.mxu0
      %v681 = vadd.f32 0.0, %v680
      %v682 = vpop.f32.mrf.mxu0
      %v683 = vadd.f32 0.0, %v682
      %684 = vmatmul.bf16.gmra.mxu0 %v649
      %v685 = vpop.f32.mrf.mxu0
      %v686 = vadd.f32 0.0, %v685
      %v687 = vpop.f32.mrf.mxu0
      %v688 = vadd.f32 0.0, %v687
      %689 = vdwg.mxu0
      %v690 = vadd.f32 %v550, %v661
      %v691 = vadd.f32 %v551, %v663
      %v692 = vadd.f32 %v552, %v666
      %v693 = vadd.f32 %v553, %v668
      %v694 = vadd.f32 %v554, %v671
      %v695 = vadd.f32 %v555, %v673
      %v696 = vadd.f32 %v556, %v676
      %v697 = vadd.f32 %v557, %v678
      %v698 = vadd.f32 %v558, %v681
      %v699 = vadd.f32 %v559, %v683
      %v700 = vadd.f32 %v560, %v686
      %v701 = vadd.f32 %v561, %v688
      %702 = vst [vmem:[%s235] sm:$0xff] %v690
      %703 = vst [vmem:[%s235 + $0x8] sm:$0xff] %v691
      %704 = vst [vmem:[%s235 + $0x10] sm:$0xff] %v692
      %705 = vst [vmem:[%s235 + $0x18] sm:$0xff] %v693
      %706 = vst [vmem:[%s235 + $0x20] sm:$0xff] %v694
      %707 = vst [vmem:[%s235 + $0x28] sm:$0xff] %v695
      %708 = vst [vmem:[%s235 + $0x30] sm:$0xff] %v696
      %709 = vst [vmem:[%s235 + $0x38] sm:$0xff] %v697
      %710 = vst [vmem:[%s235 + $0x40] sm:$0xff] %v698
      %711 = vst [vmem:[%s235 + $0x48] sm:$0xff] %v699
      %712 = vst [vmem:[%s235 + $0x50] sm:$0xff] %v700
      %713 = vst [vmem:[%s235 + $0x58] sm:$0x3] %v701
      %v714 = vld [vmem:[%s2] sm:$0xff]
      %v715 = vld [vmem:[%s2 + $0x8] sm:$0xff]
      %v716 = vld [vmem:[%s2 + $0x10] sm:$0xff]
      %v717 = vld [vmem:[%s2 + $0x18] sm:$0xff]
      %v718 = vld [vmem:[%s2 + $0x20] sm:$0xff]
      %v719 = vld [vmem:[%s2 + $0x28] sm:$0xff]
      %v720 = vld [vmem:[%s2 + $0x30] sm:$0xff]
      %v721 = vld [vmem:[%s2 + $0x38] sm:$0xff]
      %v722 = vld [vmem:[%s2 + $0x40] sm:$0xff]
      %v723 = vld [vmem:[%s2 + $0x48] sm:$0xff]
      %v724 = vld [vmem:[%s2 + $0x50] sm:$0xff]
      %v725 = vld [vmem:[%s2 + $0x58] sm:$0x3]
      %v726 = vmul.f32 %v690, %v714
      %v727 = vmul.f32 %v691, %v715
      %v728 = vmul.f32 %v692, %v716
      %v729 = vmul.f32 %v693, %v717
      %v730 = vmul.f32 %v694, %v718
      %v731 = vmul.f32 %v695, %v719
      %v732 = vmul.f32 %v696, %v720
      %v733 = vmul.f32 %v697, %v721
      %v734 = vmul.f32 %v698, %v722
      %v735 = vmul.f32 %v699, %v723
      %v736 = vmul.f32 %v700, %v724
      %v737 = vmul.f32 %v701, %v725
      %v738 = vadd.f32 %v726, %v727
      %v739 = vadd.f32 %v738, %v728
      %v740 = vadd.f32 %v739, %v729
      %v741 = vadd.f32 %v740, %v730
      %v742 = vadd.f32 %v741, %v731
      %v743 = vadd.f32 %v742, %v732
      %v744 = vadd.f32 %v743, %v733
      %v745 = vadd.f32 %v744, %v734
      %v746 = vadd.f32 %v745, %v735
      %v747 = vadd.f32 %v746, %v736
      %vm748 = vcmask 1041408
      %v749 = vsel %vm748, %v737, 0.0
      %v750 = vadd.f32 %v747, %v749
      %v751 = vrot.slane %v750, 4
      %v752 = vadd.f32 %v750, %v751
      %v753 = vrot.slane %v752, 2
      %v754 = vadd.f32 %v752, %v753
      %v755 = vrot.slane %v754, 1
      %v756 = vadd.f32 %v754, %v755
      %757 = vst [vmem:[%s238] sm:$0x1] %v756
      %v758 = vmul.f32 %v690, %v690
      %v759 = vmul.f32 %v691, %v691
      %v760 = vmul.f32 %v692, %v692
      %v761 = vmul.f32 %v693, %v693
      %v762 = vmul.f32 %v694, %v694
      %v763 = vmul.f32 %v695, %v695
      %v764 = vmul.f32 %v696, %v696
      %v765 = vmul.f32 %v697, %v697
      %v766 = vmul.f32 %v698, %v698
      %v767 = vmul.f32 %v699, %v699
      %v768 = vmul.f32 %v700, %v700
      %v769 = vmul.f32 %v701, %v701
      %v770 = vmul.f32 %v758, %v714
      %v771 = vmul.f32 %v759, %v715
      %v772 = vmul.f32 %v760, %v716
      %v773 = vmul.f32 %v761, %v717
      %v774 = vmul.f32 %v762, %v718
      %v775 = vmul.f32 %v763, %v719
      %v776 = vmul.f32 %v764, %v720
      %v777 = vmul.f32 %v765, %v721
      %v778 = vmul.f32 %v766, %v722
      %v779 = vmul.f32 %v767, %v723
      %v780 = vmul.f32 %v768, %v724
      %v781 = vmul.f32 %v769, %v725
      %v782 = vadd.f32 %v770, %v771
      %v783 = vadd.f32 %v782, %v772
      %v784 = vadd.f32 %v783, %v773
      %v785 = vadd.f32 %v784, %v774
      %v786 = vadd.f32 %v785, %v775
      %v787 = vadd.f32 %v786, %v776
      %v788 = vadd.f32 %v787, %v777
      %v789 = vadd.f32 %v788, %v778
      %v790 = vadd.f32 %v789, %v779
      %v791 = vadd.f32 %v790, %v780
      %v792 = vsel %vm748, %v781, 0.0
      %v793 = vadd.f32 %v791, %v792
      %v794 = vrot.slane %v793, 4
      %v795 = vadd.f32 %v793, %v794
      %v796 = vrot.slane %v795, 2
      %v797 = vadd.f32 %v795, %v796
      %v798 = vrot.slane %v797, 1
      %v799 = vadd.f32 %v797, %v798
      %800 = vst [vmem:[%s241] sm:$0x1] %v799
      %p801 = scmp.lt.s32.totalorder %s17, 1
      %s802 = scalar_select %p801, %s17, 1
      %s803 = smul.addr %s802, 12
      %s804 = smul.addr %s803, 8
      %s805 = scalar_lea.vmem %s3, %s804
      %p806 = scmp.lt.s32.totalorder %s17, 1
      %s807 = scalar_select %p806, %s17, 1
      %s808 = scalar_lea.vmem %s4, %s807
      %p809 = scmp.lt.s32.totalorder %s17, 1
      %s810 = scalar_select %p809, %s17, 1
      %s811 = scalar_lea.vmem %s5, %s810
      // Predicated region
      $region33: #{_lambda_.13} parent=31 // pred_check
        %p812 = pneg %p103
      $region34: #{_lambda_.13} parent=31 // pred_check_branch
        %814 = sbr.rel (%p812) target = $region36
      $region35: #{_lambda_.13} parent=31 // pred_region
        _
      $region36: #{_lambda_.13} parent=31 // pred_fallthru
        _
      // Predicated region
      $region37: #{_lambda_.13} parent=31 // pred_check
        %p815 = pneg %p129
      $region38: #{_lambda_.13} parent=31 // pred_check_branch
        %817 = sbr.rel (%p815) target = $region40
      $region39: #{_lambda_.13} parent=31 // pred_region
        _
      $region40: #{_lambda_.13} parent=31 // pred_fallthru
        _
      // Predicated region
      $region41: #{_lambda_.13} parent=31 // pred_check
        %p818 = pneg %p155
      $region42: #{_lambda_.13} parent=31 // pred_check_branch
        %820 = sbr.rel (%p818) target = $region44
      $region43: #{_lambda_.13} parent=31 // pred_region
        _
      $region44: #{_lambda_.13} parent=31 // pred_fallthru
        _
    $region32: #{_lambda_.13} parent=5 // pred_fallthru
      _
    %p821 = scmp.le.s32.totalorder 2, %s12
    // Predicated region
    $region45: #{_lambda_.13} parent=5 // pred_check
      %p822 = pneg %p821
    $region46: #{_lambda_.13} parent=5 // pred_check_branch
      %824 = sbr.rel (%p822) target = $region48
    $region47: #{_lambda_.13} parent=5 // pred_region
      %s825 = ssub.s32 %s12, 2
      // Predicated region
      $region49: #{_lambda_.13} parent=47 // pred_check
        %p826 = pneg %p109
      $region50: #{_lambda_.13} parent=47 // pred_check_branch
        %828 = sbr.rel (%p826) target = $region52
      $region51: #{_lambda_.13} parent=47 // pred_region
        %p829 = scmp.lt.s32.totalorder %s18, 1
        %s830 = scalar_select %p829, %s18, 1
        %s831 = smul.addr %s830, 12
        %s832 = smul.addr %s831, 8
        %s833 = scalar_lea.vmem %s3, %s832
      $region52: #{_lambda_.13} parent=47 // pred_fallthru
        _
      // Predicated region
      $region53: #{_lambda_.13} parent=47 // pred_check
        %p834 = pneg %p135
      $region54: #{_lambda_.13} parent=47 // pred_check_branch
        %836 = sbr.rel (%p834) target = $region56
      $region55: #{_lambda_.13} parent=47 // pred_region
        %p837 = scmp.lt.s32.totalorder %s18, 1
        %s838 = scalar_select %p837, %s18, 1
        %s839 = scalar_lea.vmem %s4, %s838
      $region56: #{_lambda_.13} parent=47 // pred_fallthru
        _
      // Predicated region
      $region57: #{_lambda_.13} parent=47 // pred_check
        %p840 = pneg %p161
      $region58: #{_lambda_.13} parent=47 // pred_check_branch
        %842 = sbr.rel (%p840) target = $region60
      $region59: #{_lambda_.13} parent=47 // pred_region
        %p843 = scmp.lt.s32.totalorder %s18, 1
        %s844 = scalar_select %p843, %s18, 1
        %s845 = scalar_lea.vmem %s5, %s844
      $region60: #{_lambda_.13} parent=47 // pred_fallthru
        _
    $region48: #{_lambda_.13} parent=5 // pred_fallthru
      _
  $region6: #{_lambda_.13} parent=0 // loop_footer
    %s16 = sadd.s32 1, %s12
  $region7: #{_lambda_.13} parent=0 // loop_footer_branch
    %11 = sbr.rel target = $region3
  $region8: #{_lambda_.13} parent=0 // loop_exit
    _

// kernel: tile.79
$region0: #{tile.79}
  %s0 = inlined_call_operand.vmem [shape: f32[4,8], index: 0, kind: input, shape index: {}]
  %s1 = inlined_call_operand.vmem [shape: f32[32], index: 1, kind: output, shape index: {}]
  $region1: #{tile.79} parent=0
    #allocation0 [shape = 'u8[4096]{0}', space=vmem, size = 0x1000, scoped, tag = 'scoped mem for output reshape']
    #allocation1 [shape = 'u8[4096]{0}', space=vmem, size = 0x1000, scoped, tag = 'scoped mem for input reshape']
    %s3 = ssub.s32 16, 1
    %v4 = vld [vmem:[%s0] sm:%s3]
    %5 = vst [vmem:[#allocation1] sm:%s3] %v4
    %v6 = vld [vmem:[#allocation1] sm:$0x1]
    %vm7 = vcmask 64512
    %8 = vst.msk [vmem:[#allocation0] sm:$0x1] %vm7, %v6
    %s9 = scalar_lea.vmem [#allocation1], 3
    %v10 = vld [vmem:[%s9] sm:$0x1]
    %11 = vrot.lane.b32.xlu0 %v10, 24
    %v12 = vpop.permute.xlu0 %11
    %vm13 = vcmask 261312
    %14 = vst.msk [vmem:[#allocation0] sm:$0x1] %vm13, %v12
    %s15 = scalar_lea.vmem [#allocation1], 2
    %v16 = vld [vmem:[%s15] sm:$0x1]
    %17 = vrot.lane.b32.xlu0 %v16, 16
    %v18 = vpop.permute.xlu0 %17
    %vm19 = vcmask 195712
    %20 = vst.msk [vmem:[#allocation0] sm:$0x1] %vm19, %v18
    %s21 = scalar_lea.vmem [#allocation1], 1
    %v22 = vld [vmem:[%s21] sm:$0x1]
    %23 = vrot.lane.b32.xlu0 %v22, 8
    %v24 = vpop.permute.xlu0 %23
    %vm25 = vcmask 130112
    %26 = vst.msk [vmem:[#allocation0] sm:$0x1] %vm25, %v24
    %s28 = ssub.s32 2, 1
    %v29 = vld [vmem:[#allocation0] sm:%s28]
    %s31 = ssub.s32 2, 1
    %32 = vst [vmem:[%s1] sm:%s31] %v29

// kernel: tile.78
$region0: #{tile.78}
  #allocation0 [shape = 's32[1]{0}', space=sflag, size = 0x4, scoped, tag = 'scoped memory for tile.78']
  %s0 = inlined_call_operand.vmem [shape: f32[8], index: 0, kind: input, shape index: {}]
  %s1 = inlined_call_operand.vmem [shape: f32[4,8], index: 1, kind: output, shape index: {}]
  // Predicated region
  $region2: #{tile.78} parent=0 // pred_check
    _
  $region3: #{tile.78} parent=0 // pred_check_branch
    %3 = sbr.rel (0) target = $region5
  $region4: #{tile.78} parent=0 // pred_region
    _
  $region5: #{tile.78} parent=0 // pred_fallthru
    _
  %v4 = vld [vmem:[%s0] ss:$0 sm:$0xff]
  %5 = vst [vmem:[%s1] sm:$0xf] %v4

// kernel: _lambda_.16
$region0: #{_lambda_.16}
  #allocation0 [shape = 'u32[]', space=smem, size = 0x4, offset = 0x4, fixed_abs, tag = 'smem constant byte address 0x4 - core index']
  #allocation1 [shape = 'u32[72,128]{1,0:T(1,128)}', space=vmem, size = 0x9000, scoped, tag = 'internal scratch']
  %s0 = inlined_call_operand.vmem [shape: f32[2,306,128], index: 0, kind: input, shape index: {}]
  %s1 = inlined_call_operand.vmem [shape: f32[1,128], index: 1, kind: input, shape index: {}]
  %s2 = inlined_call_operand.vmem [shape: f32[1,128], index: 2, kind: input, shape index: {}]
  %s3 = inlined_call_operand.vmem [shape: f32[2,306,128], index: 3, kind: output, shape index: {}]
  %s4 = sld [smem:[#allocation0]]
  $region45: #{_lambda_.16} parent=0
    _
  %s6 = ssub.s32 1, %s4
  %s7 = scalar_select 0, %s6, %s4
  loop: start=0, step=1, limit=4
  $region2: #{_lambda_.16} parent=0 // loop_pre_header
    _
  $region3: #{_lambda_.16} parent=0 // loop_header
    %s9 = sphi 0, %s13
    %p10 = scmp.ge.s32.totalorder %s9, 4
    %s19 = sphi 0, %s21
    %s22 = sphi 0, %s19
    %s23 = sphi 0, %s22
    %s39 = sphi 0, %s23
    %s43 = sphi 0, %s43
    %s45 = sphi 0, %s43
    %s46 = sphi 0, %s45
    %s60 = sphi 0, %s46
    %s64 = sphi 0, %s64
    %s66 = sphi 0, %s64
    %s67 = sphi 0, %s66
    %s81 = sphi 0, %s67
    %s87 = sphi 0, %s89
    %s90 = sphi 0, %s87
    %s91 = sphi 0, %s90
    %s107 = sphi 0, %s91
  $region4: #{_lambda_.16} parent=0 // loop_header_branch
    %12 = sbr.rel (%p10) target = $region8
  $region5: #{_lambda_.16} parent=0 // loop_body
    %s14 = ssub.s32 %s9, 1
    %s15 = ssub.s32 %s9, 2
    %s16 = sadd.s32 %s9, 1
    %s17 = ssub.s32 %s9, %s16
    %p18 = scmp.eq.s32.totalorder %s17, 0
    %s20 = sadd.s32 %s19, 1
    %s21 = scalar_select %p18, %s19, %s20
    %p24 = pneg %p18
    %p25 = scmp.eq.s32.totalorder %s9, 1
    %p26 = por %p24, %p25
    %p27 = scmp.ne.s32.totalorder %s19, %s22
    %p28 = scmp.eq.s32.totalorder %s9, 0
    %p29 = por %p27, %p28
    %p30 = scmp.ne.s32.totalorder %s19, %s22
    %p31 = scmp.eq.s32.totalorder %s14, 1
    %p32 = por %p30, %p31
    %p33 = scmp.ne.s32.totalorder %s22, %s23
    %p34 = scmp.eq.s32.totalorder %s14, 0
    %p35 = por %p33, %p34
    %p36 = scmp.ne.s32.totalorder %s22, %s23
    %p37 = scmp.eq.s32.totalorder %s15, 1
    %p38 = por %p36, %p37
    %p40 = scmp.ne.s32.totalorder %s23, %s39
    %p41 = scmp.eq.s32.totalorder %s15, 0
    %p42 = por %p40, %p41
    %s44 = sadd.s32 %s43, 1
    %p47 = scmp.eq.s32.totalorder %s9, 1
    %p48 = scmp.ne.s32.totalorder %s43, %s45
    %p49 = scmp.eq.s32.totalorder %s9, 0
    %p50 = por %p48, %p49
    %p51 = scmp.ne.s32.totalorder %s43, %s45
    %p52 = scmp.eq.s32.totalorder %s14, 1
    %p53 = por %p51, %p52
    %p54 = scmp.ne.s32.totalorder %s45, %s46
    %p55 = scmp.eq.s32.totalorder %s14, 0
    %p56 = por %p54, %p55
    %p57 = scmp.ne.s32.totalorder %s45, %s46
    %p58 = scmp.eq.s32.totalorder %s15, 1
    %p59 = por %p57, %p58
    %p61 = scmp.ne.s32.totalorder %s46, %s60
    %p62 = scmp.eq.s32.totalorder %s15, 0
    %p63 = por %p61, %p62
    %s65 = sadd.s32 %s64, 1
    %p68 = scmp.eq.s32.totalorder %s9, 1
    %p69 = scmp.ne.s32.totalorder %s64, %s66
    %p70 = scmp.eq.s32.totalorder %s9, 0
    %p71 = por %p69, %p70
    %p72 = scmp.ne.s32.totalorder %s64, %s66
    %p73 = scmp.eq.s32.totalorder %s14, 1
    %p74 = por %p72, %p73
    %p75 = scmp.ne.s32.totalorder %s66, %s67
    %p76 = scmp.eq.s32.totalorder %s14, 0
    %p77 = por %p75, %p76
    %p78 = scmp.ne.s32.totalorder %s66, %s67
    %p79 = scmp.eq.s32.totalorder %s15, 1
    %p80 = por %p78, %p79
    %p82 = scmp.ne.s32.totalorder %s67, %s81
    %p83 = scmp.eq.s32.totalorder %s15, 0
    %p84 = por %p82, %p83
    %s85 = ssub.s32 %s9, %s16
    %p86 = scmp.eq.s32.totalorder %s85, 0
    %s88 = sadd.s32 %s87, 1
    %s89 = scalar_select %p86, %s87, %s88
    %p92 = pneg %p86
    %p93 = scmp.eq.s32.totalorder %s9, 1
    %p94 = por %p92, %p93
    %p95 = scmp.ne.s32.totalorder %s87, %s90
    %p96 = scmp.eq.s32.totalorder %s9, 0
    %p97 = por %p95, %p96
    %p98 = scmp.ne.s32.totalorder %s87, %s90
    %p99 = scmp.eq.s32.totalorder %s14, 1
    %p100 = por %p98, %p99
    %p101 = scmp.ne.s32.totalorder %s90, %s91
    %p102 = scmp.eq.s32.totalorder %s14, 0
    %p103 = por %p101, %p102
    %p104 = scmp.ne.s32.totalorder %s90, %s91
    %p105 = scmp.eq.s32.totalorder %s15, 1
    %p106 = por %p104, %p105
    %p108 = scmp.ne.s32.totalorder %s91, %s107
    %p109 = scmp.eq.s32.totalorder %s15, 0
    %p110 = por %p108, %p109
    %p111 = scmp.le.s32.totalorder 1, %s9
    %p112 = scmp.lt.s32.totalorder %s9, 3
    %p113 = pnand %p111, %p112
    %p114 = pneg %p113
    // Predicated region
    $region9: #{_lambda_.16} parent=5 // pred_check
      _
    $region10: #{_lambda_.16} parent=5 // pred_check_branch
      %116 = sbr.rel (%p113) target = $region12
    $region11: #{_lambda_.16} parent=5 // pred_region
      %s117 = ssub.s32 %s9, 1
      // Predicated region
      $region13: #{_lambda_.16} parent=11 // pred_check
        %p118 = pneg %p56
      $region14: #{_lambda_.16} parent=11 // pred_check_branch
        %120 = sbr.rel (%p118) target = $region16
      $region15: #{_lambda_.16} parent=11 // pred_region
        _
      $region16: #{_lambda_.16} parent=11 // pred_fallthru
        _
      // Predicated region
      $region17: #{_lambda_.16} parent=11 // pred_check
        %p121 = pneg %p77
      $region18: #{_lambda_.16} parent=11 // pred_check_branch
        %123 = sbr.rel (%p121) target = $region20
      $region19: #{_lambda_.16} parent=11 // pred_region
        _
      $region20: #{_lambda_.16} parent=11 // pred_fallthru
        _
    $region12: #{_lambda_.16} parent=5 // pred_fallthru
      _
    %p124 = scmp.lt.s32.totalorder %s9, 2
    // Predicated region
    $region21: #{_lambda_.16} parent=5 // pred_check
      %p125 = pneg %p124
    $region22: #{_lambda_.16} parent=5 // pred_check_branch
      %127 = sbr.rel (%p125) target = $region24
    $region23: #{_lambda_.16} parent=5 // pred_region
      // Predicated region
      $region25: #{_lambda_.16} parent=23 // pred_check
        %p128 = pneg %p29
      $region26: #{_lambda_.16} parent=23 // pred_check_branch
        %130 = sbr.rel (%p128) target = $region28
      $region27: #{_lambda_.16} parent=23 // pred_region
        %p131 = scmp.lt.s32.totalorder %s9, 1
        %s132 = scalar_select %p131, %s9, 1
        %s133 = smul.addr %s132, 39
        %s134 = smul.addr %s133, 8
        %s135 = scalar_lea.vmem %s0, %s134
      $region28: #{_lambda_.16} parent=23 // pred_fallthru
        _
    $region24: #{_lambda_.16} parent=5 // pred_fallthru
      _
    %p136 = scmp.le.s32.totalorder 1, %s9
    %p137 = scmp.lt.s32.totalorder %s9, 3
    %p138 = pnand %p136, %p137
    %p139 = pneg %p138
    // Predicated region
    $region29: #{_lambda_.16} parent=5 // pred_check
      _
    $region30: #{_lambda_.16} parent=5 // pred_check_branch
      %141 = sbr.rel (%p138) target = $region32
    $region31: #{_lambda_.16} parent=5 // pred_region
      %s142 = ssub.s32 %s9, 1
      %p143 = scmp.lt.s32.totalorder %s14, 1
      %s144 = scalar_select %p143, %s14, 1
      %s145 = smul.addr %s144, 39
      %s146 = smul.addr %s145, 8
      %s147 = scalar_lea.vmem %s0, %s146
      %p148 = pneg %p35
      %p149 = pneg %p32
      %p150 = pneg %p56
      %p151 = pneg %p53
      %p152 = pneg %p77
      %p153 = pneg %p74
      %p154 = pneg %p103
      %p155 = pneg %p100
      %p156 = scmp.lt.s32.totalorder %s14, 1
      %s157 = scalar_select %p156, %s14, 1
      %s158 = smul.addr %s157, 39
      %s159 = smul.addr %s158, 8
      %s160 = scalar_lea.vmem %s3, %s159
      %p161 = scmp.lt.s32.totalorder %s14, 1
      %s162 = scalar_select %p161, %s14, 1
      %s163 = smul.addr %s162, 39
      %s164 = smul.addr %s163, 8
      %s165 = scalar_lea.vmem %s0, %s164
      %p166 = scmp.lt.s32.totalorder %s14, 1
      %s167 = scalar_select %p166, %s14, 1
      %s168 = smul.addr %s167, 39
      %s169 = smul.addr %s168, 8
      %s170 = scalar_lea.vmem %s3, %s169
      %v171 = vld [vmem:[%s165] sm:$0xff]
      %v172 = vld [vmem:[%s165 + $0x8] sm:$0xff]
      %v173 = vld [vmem:[%s165 + $0x10] sm:$0xff]
      %v174 = vld [vmem:[%s165 + $0x18] sm:$0xff]
      %v175 = vld [vmem:[%s165 + $0x20] sm:$0xff]
      %v176 = vld [vmem:[%s165 + $0x28] sm:$0xff]
      %v177 = vld [vmem:[%s165 + $0x30] sm:$0xff]
      %v178 = vld [vmem:[%s165 + $0x38] sm:$0xff]
      %v179 = vld [vmem:[%s165 + $0x40] sm:$0xff]
      %v180 = vld [vmem:[%s165 + $0x48] sm:$0xff]
      %v181 = vld [vmem:[%s165 + $0x50] sm:$0xff]
      %v182 = vld [vmem:[%s165 + $0x58] sm:$0xff]
      %v183 = vld [vmem:[%s165 + $0x60] sm:$0xff]
      %v184 = vld [vmem:[%s165 + $0x68] sm:$0xff]
      %v185 = vld [vmem:[%s165 + $0x70] sm:$0xff]
      %v186 = vld [vmem:[%s165 + $0x78] sm:$0xff]
      %v187 = vld [vmem:[%s165 + $0x80] sm:$0xff]
      %v188 = vld [vmem:[%s165 + $0x88] sm:$0xff]
      %v189 = vld [vmem:[%s165 + $0x90] sm:$0xff]
      %v190 = vld [vmem:[%s165 + $0x98] sm:$0xff]
      %v191 = vld [vmem:[%s165 + $0xa0] sm:$0xff]
      %v192 = vld [vmem:[%s165 + $0xa8] sm:$0xff]
      %v193 = vld [vmem:[%s165 + $0xb0] sm:$0xff]
      %v194 = vld [vmem:[%s165 + $0xb8] sm:$0xff]
      %v195 = vld [vmem:[%s165 + $0xc0] sm:$0xff]
      %v196 = vld [vmem:[%s165 + $0xc8] sm:$0xff]
      %v197 = vld [vmem:[%s165 + $0xd0] sm:$0xff]
      %v198 = vld [vmem:[%s165 + $0xd8] sm:$0xff]
      %v199 = vld [vmem:[%s165 + $0xe0] sm:$0xff]
      %v200 = vld [vmem:[%s165 + $0xe8] sm:$0xff]
      %v201 = vld [vmem:[%s165 + $0xf0] sm:$0xff]
      %v202 = vld [vmem:[%s165 + $0xf8] sm:$0xff]
      %v203 = vld [vmem:[%s165 + $0x100] sm:$0xff]
      %v204 = vld [vmem:[%s165 + $0x108] sm:$0xff]
      %v205 = vld [vmem:[%s165 + $0x110] sm:$0xff]
      %v206 = vld [vmem:[%s165 + $0x118] sm:$0xff]
      %v207 = vld [vmem:[%s165 + $0x120] sm:$0xff]
      %v208 = vld [vmem:[%s165 + $0x128] sm:$0xff]
      %v209 = vld [vmem:[%s165 + $0x130] sm:$0x3]
      %v210 = vld [vmem:[%s1] sm:$0x1]
      %v212 = vperm.slane %v210, 0
      %v214 = vmul.f32 %v171, %v212
      %v215 = vmul.f32 %v172, %v212
      %v216 = vmul.f32 %v173, %v212
      %v217 = vmul.f32 %v174, %v212
      %v218 = vmul.f32 %v175, %v212
      %v219 = vmul.f32 %v176, %v212
      %v220 = vmul.f32 %v177, %v212
      %v221 = vmul.f32 %v178, %v212
      %v222 = vmul.f32 %v179, %v212
      %v223 = vmul.f32 %v180, %v212
      %v224 = vmul.f32 %v181, %v212
      %v225 = vmul.f32 %v182, %v212
      %v226 = vmul.f32 %v183, %v212
      %v227 = vmul.f32 %v184, %v212
      %v228 = vmul.f32 %v185, %v212
      %v229 = vmul.f32 %v186, %v212
      %v230 = vmul.f32 %v187, %v212
      %v231 = vmul.f32 %v188, %v212
      %v232 = vmul.f32 %v189, %v212
      %v233 = vmul.f32 %v190, %v212
      %v234 = vmul.f32 %v191, %v212
      %v235 = vmul.f32 %v192, %v212
      %v236 = vmul.f32 %v193, %v212
      %v237 = vmul.f32 %v194, %v212
      %v238 = vmul.f32 %v195, %v212
      %v239 = vmul.f32 %v196, %v212
      %v240 = vmul.f32 %v197, %v212
      %v241 = vmul.f32 %v198, %v212
      %v242 = vmul.f32 %v199, %v212
      %v243 = vmul.f32 %v200, %v212
      %v244 = vmul.f32 %v201, %v212
      %v245 = vmul.f32 %v202, %v212
      %v246 = vmul.f32 %v203, %v212
      %v247 = vmul.f32 %v204, %v212
      %v248 = vmul.f32 %v205, %v212
      %v249 = vmul.f32 %v206, %v212
      %v250 = vmul.f32 %v207, %v212
      %v251 = vmul.f32 %v208, %v212
      %v252 = vmul.f32 %v209, %v212
      %v253 = vld [vmem:[%s2] sm:$0x1]
      %v255 = vperm.slane %v253, 0
      %v257 = vadd.f32 %v214, %v255
      %v258 = vadd.f32 %v215, %v255
      %v259 = vadd.f32 %v216, %v255
      %v260 = vadd.f32 %v217, %v255
      %v261 = vadd.f32 %v218, %v255
      %v262 = vadd.f32 %v219, %v255
      %v263 = vadd.f32 %v220, %v255
      %v264 = vadd.f32 %v221, %v255
      %v265 = vadd.f32 %v222, %v255
      %v266 = vadd.f32 %v223, %v255
      %v267 = vadd.f32 %v224, %v255
      %v268 = vadd.f32 %v225, %v255
      %v269 = vadd.f32 %v226, %v255
      %v270 = vadd.f32 %v227, %v255
      %v271 = vadd.f32 %v228, %v255
      %v272 = vadd.f32 %v229, %v255
      %v273 = vadd.f32 %v230, %v255
      %v274 = vadd.f32 %v231, %v255
      %v275 = vadd.f32 %v232, %v255
      %v276 = vadd.f32 %v233, %v255
      %v277 = vadd.f32 %v234, %v255
      %v278 = vadd.f32 %v235, %v255
      %v279 = vadd.f32 %v236, %v255
      %v280 = vadd.f32 %v237, %v255
      %v281 = vadd.f32 %v238, %v255
      %v282 = vadd.f32 %v239, %v255
      %v283 = vadd.f32 %v240, %v255
      %v284 = vadd.f32 %v241, %v255
      %v285 = vadd.f32 %v242, %v255
      %v286 = vadd.f32 %v243, %v255
      %v287 = vadd.f32 %v244, %v255
      %v288 = vadd.f32 %v245, %v255
      %v289 = vadd.f32 %v246, %v255
      %v290 = vadd.f32 %v247, %v255
      %v291 = vadd.f32 %v248, %v255
      %v292 = vadd.f32 %v249, %v255
      %v293 = vadd.f32 %v250, %v255
      %v294 = vadd.f32 %v251, %v255
      %v295 = vadd.f32 %v252, %v255
      %v296 = vmax.f32 %v257, 0.0
      %v297 = vmax.f32 %v258, 0.0
      %v298 = vmax.f32 %v259, 0.0
      %v299 = vmax.f32 %v260, 0.0
      %v300 = vmax.f32 %v261, 0.0
      %v301 = vmax.f32 %v262, 0.0
      %v302 = vmax.f32 %v263, 0.0
      %v303 = vmax.f32 %v264, 0.0
      %v304 = vmax.f32 %v265, 0.0
      %v305 = vmax.f32 %v266, 0.0
      %v306 = vmax.f32 %v267, 0.0
      %v307 = vmax.f32 %v268, 0.0
      %v308 = vmax.f32 %v269, 0.0
      %v309 = vmax.f32 %v270, 0.0
      %v310 = vmax.f32 %v271, 0.0
      %v311 = vmax.f32 %v272, 0.0
      %v312 = vmax.f32 %v273, 0.0
      %v313 = vmax.f32 %v274, 0.0
      %v314 = vmax.f32 %v275, 0.0
      %v315 = vmax.f32 %v276, 0.0
      %v316 = vmax.f32 %v277, 0.0
      %v317 = vmax.f32 %v278, 0.0
      %v318 = vmax.f32 %v279, 0.0
      %v319 = vmax.f32 %v280, 0.0
      %v320 = vmax.f32 %v281, 0.0
      %v321 = vmax.f32 %v282, 0.0
      %v322 = vmax.f32 %v283, 0.0
      %v323 = vmax.f32 %v284, 0.0
      %v324 = vmax.f32 %v285, 0.0
      %v325 = vmax.f32 %v286, 0.0
      %v326 = vmax.f32 %v287, 0.0
      %v327 = vmax.f32 %v288, 0.0
      %v328 = vmax.f32 %v289, 0.0
      %v329 = vmax.f32 %v290, 0.0
      %v330 = vmax.f32 %v291, 0.0
      %v331 = vmax.f32 %v292, 0.0
      %v332 = vmax.f32 %v293, 0.0
      %v333 = vmax.f32 %v294, 0.0
      %v334 = vmax.f32 %v295, 0.0
      %335 = vst [vmem:[%s170] sm:$0xff] %v296
      %336 = vst [vmem:[%s170 + $0x8] sm:$0xff] %v297
      %337 = vst [vmem:[%s170 + $0x10] sm:$0xff] %v298
      %338 = vst [vmem:[%s170 + $0x18] sm:$0xff] %v299
      %339 = vst [vmem:[%s170 + $0x20] sm:$0xff] %v300
      %340 = vst [vmem:[%s170 + $0x28] sm:$0xff] %v301
      %341 = vst [vmem:[%s170 + $0x30] sm:$0xff] %v302
      %342 = vst [vmem:[%s170 + $0x38] sm:$0xff] %v303
      %343 = vst [vmem:[%s170 + $0x40] sm:$0xff] %v304
      %344 = vst [vmem:[%s170 + $0x48] sm:$0xff] %v305
      %345 = vst [vmem:[%s170 + $0x50] sm:$0xff] %v306
      %346 = vst [vmem:[%s170 + $0x58] sm:$0xff] %v307
      %347 = vst [vmem:[%s170 + $0x60] sm:$0xff] %v308
      %348 = vst [vmem:[%s170 + $0x68] sm:$0xff] %v309
      %349 = vst [vmem:[%s170 + $0x70] sm:$0xff] %v310
      %350 = vst [vmem:[%s170 + $0x78] sm:$0xff] %v311
      %351 = vst [vmem:[%s170 + $0x80] sm:$0xff] %v312
      %352 = vst [vmem:[%s170 + $0x88] sm:$0xff] %v313
      %353 = vst [vmem:[%s170 + $0x90] sm:$0xff] %v314
      %354 = vst [vmem:[%s170 + $0x98] sm:$0xff] %v315
      %355 = vst [vmem:[%s170 + $0xa0] sm:$0xff] %v316
      %356 = vst [vmem:[%s170 + $0xa8] sm:$0xff] %v317
      %357 = vst [vmem:[%s170 + $0xb0] sm:$0xff] %v318
      %358 = vst [vmem:[%s170 + $0xb8] sm:$0xff] %v319
      %359 = vst [vmem:[%s170 + $0xc0] sm:$0xff] %v320
      %360 = vst [vmem:[%s170 + $0xc8] sm:$0xff] %v321
      %361 = vst [vmem:[%s170 + $0xd0] sm:$0xff] %v322
      %362 = vst [vmem:[%s170 + $0xd8] sm:$0xff] %v323
      %363 = vst [vmem:[%s170 + $0xe0] sm:$0xff] %v324
      %364 = vst [vmem:[%s170 + $0xe8] sm:$0xff] %v325
      %365 = vst [vmem:[%s170 + $0xf0] sm:$0xff] %v326
      %366 = vst [vmem:[%s170 + $0xf8] sm:$0xff] %v327
      %367 = vst [vmem:[%s170 + $0x100] sm:$0xff] %v328
      %368 = vst [vmem:[%s170 + $0x108] sm:$0xff] %v329
      %369 = vst [vmem:[%s170 + $0x110] sm:$0xff] %v330
      %370 = vst [vmem:[%s170 + $0x118] sm:$0xff] %v331
      %371 = vst [vmem:[%s170 + $0x120] sm:$0xff] %v332
      %372 = vst [vmem:[%s170 + $0x128] sm:$0xff] %v333
      %373 = vst [vmem:[%s170 + $0x130] sm:$0x3] %v334
      %p374 = scmp.lt.s32.totalorder %s14, 1
      %s375 = scalar_select %p374, %s14, 1
      %s376 = smul.addr %s375, 39
      %s377 = smul.addr %s376, 8
      %s378 = scalar_lea.vmem %s3, %s377
      // Predicated region
      $region33: #{_lambda_.16} parent=31 // pred_check
        %p379 = pneg %p100
      $region34: #{_lambda_.16} parent=31 // pred_check_branch
        %381 = sbr.rel (%p379) target = $region36
      $region35: #{_lambda_.16} parent=31 // pred_region
        _
      $region36: #{_lambda_.16} parent=31 // pred_fallthru
        _
    $region32: #{_lambda_.16} parent=5 // pred_fallthru
      _
    %p382 = scmp.le.s32.totalorder 2, %s9
    // Predicated region
    $region37: #{_lambda_.16} parent=5 // pred_check
      %p383 = pneg %p382
    $region38: #{_lambda_.16} parent=5 // pred_check_branch
      %385 = sbr.rel (%p383) target = $region40
    $region39: #{_lambda_.16} parent=5 // pred_region
      %s386 = ssub.s32 %s9, 2
      // Predicated region
      $region41: #{_lambda_.16} parent=39 // pred_check
        %p387 = pneg %p106
      $region42: #{_lambda_.16} parent=39 // pred_check_branch
        %389 = sbr.rel (%p387) target = $region44
      $region43: #{_lambda_.16} parent=39 // pred_region
        %p390 = scmp.lt.s32.totalorder %s15, 1
        %s391 = scalar_select %p390, %s15, 1
        %s392 = smul.addr %s391, 39
        %s393 = smul.addr %s392, 8
        %s394 = scalar_lea.vmem %s3, %s393
      $region44: #{_lambda_.16} parent=39 // pred_fallthru
        _
    $region40: #{_lambda_.16} parent=5 // pred_fallthru
      _
  $region6: #{_lambda_.16} parent=0 // loop_footer
    %s13 = sadd.s32 1, %s9
  $region7: #{_lambda_.16} parent=0 // loop_footer_branch
    %8 = sbr.rel target = $region3
  $region8: #{_lambda_.16} parent=0 // loop_exit
    _

// kernel: _lambda_.15
$region0: #{_lambda_.15}
  #allocation0 [shape = 'u32[]', space=smem, size = 0x4, offset = 0x4, fixed_abs, tag = 'smem constant byte address 0x4 - core index']
  #allocation1 [shape = 'u32[72,128]{1,0:T(1,128)}', space=vmem, size = 0x9000, scoped, tag = 'internal scratch']
  %s0 = inlined_call_operand.vmem [shape: f32[2,342,16], index: 0, kind: input, shape index: {}]
  %s1 = inlined_call_operand.vmem [shape: bf16[4,16,128], index: 1, kind: input, shape index: {}]
  %s2 = inlined_call_operand.vmem [shape: f32[306,128], index: 2, kind: input, shape index: {}]
  %s3 = inlined_call_operand.vmem [shape: f32[2,306,128], index: 3, kind: output, shape index: {0}]
  %s4 = inlined_call_operand.vmem [shape: f32[2,1,128], index: 4, kind: output, shape index: {1}]
  %s5 = inlined_call_operand.vmem [shape: f32[2,1,128], index: 5, kind: output, shape index: {2}]
  %6 = xla_tuple %s3, %s4, %s5
  %s7 = sld [smem:[#allocation0]]
  $region61: #{_lambda_.15} parent=0
    _
  %s9 = ssub.s32 1, %s7
  %s10 = scalar_select 0, %s9, %s7
  loop: start=0, step=1, limit=4
  $region2: #{_lambda_.15} parent=0 // loop_pre_header
    _
  $region3: #{_lambda_.15} parent=0 // loop_header
    %s12 = sphi 0, %s16
    %p13 = scmp.ge.s32.totalorder %s12, 4
    %s22 = sphi 0, %s24
    %s25 = sphi 0, %s22
    %s26 = sphi 0, %s25
    %s42 = sphi 0, %s26
    %s46 = sphi 0, %s46
    %s48 = sphi 0, %s46
    %s49 = sphi 0, %s48
    %s63 = sphi 0, %s49
    %s67 = sphi 0, %s67
    %s69 = sphi 0, %s67
    %s70 = sphi 0, %s69
    %s84 = sphi 0, %s70
    %s90 = sphi 0, %s92
    %s93 = sphi 0, %s90
    %s94 = sphi 0, %s93
    %s110 = sphi 0, %s94
    %s116 = sphi 0, %s118
    %s119 = sphi 0, %s116
    %s120 = sphi 0, %s119
    %s136 = sphi 0, %s120
    %s142 = sphi 0, %s144
    %s145 = sphi 0, %s142
    %s146 = sphi 0, %s145
    %s162 = sphi 0, %s146
  $region4: #{_lambda_.15} parent=0 // loop_header_branch
    %15 = sbr.rel (%p13) target = $region8
  $region5: #{_lambda_.15} parent=0 // loop_body
    %s17 = ssub.s32 %s12, 1
    %s18 = ssub.s32 %s12, 2
    %s19 = sadd.s32 %s12, 1
    %s20 = ssub.s32 %s12, %s19
    %p21 = scmp.eq.s32.totalorder %s20, 0
    %s23 = sadd.s32 %s22, 1
    %s24 = scalar_select %p21, %s22, %s23
    %p27 = pneg %p21
    %p28 = scmp.eq.s32.totalorder %s12, 1
    %p29 = por %p27, %p28
    %p30 = scmp.ne.s32.totalorder %s22, %s25
    %p31 = scmp.eq.s32.totalorder %s12, 0
    %p32 = por %p30, %p31
    %p33 = scmp.ne.s32.totalorder %s22, %s25
    %p34 = scmp.eq.s32.totalorder %s17, 1
    %p35 = por %p33, %p34
    %p36 = scmp.ne.s32.totalorder %s25, %s26
    %p37 = scmp.eq.s32.totalorder %s17, 0
    %p38 = por %p36, %p37
    %p39 = scmp.ne.s32.totalorder %s25, %s26
    %p40 = scmp.eq.s32.totalorder %s18, 1
    %p41 = por %p39, %p40
    %p43 = scmp.ne.s32.totalorder %s26, %s42
    %p44 = scmp.eq.s32.totalorder %s18, 0
    %p45 = por %p43, %p44
    %s47 = sadd.s32 %s46, 1
    %p50 = scmp.eq.s32.totalorder %s12, 1
    %p51 = scmp.ne.s32.totalorder %s46, %s48
    %p52 = scmp.eq.s32.totalorder %s12, 0
    %p53 = por %p51, %p52
    %p54 = scmp.ne.s32.totalorder %s46, %s48
    %p55 = scmp.eq.s32.totalorder %s17, 1
    %p56 = por %p54, %p55
    %p57 = scmp.ne.s32.totalorder %s48, %s49
    %p58 = scmp.eq.s32.totalorder %s17, 0
    %p59 = por %p57, %p58
    %p60 = scmp.ne.s32.totalorder %s48, %s49
    %p61 = scmp.eq.s32.totalorder %s18, 1
    %p62 = por %p60, %p61
    %p64 = scmp.ne.s32.totalorder %s49, %s63
    %p65 = scmp.eq.s32.totalorder %s18, 0
    %p66 = por %p64, %p65
    %s68 = sadd.s32 %s67, 1
    %p71 = scmp.eq.s32.totalorder %s12, 1
    %p72 = scmp.ne.s32.totalorder %s67, %s69
    %p73 = scmp.eq.s32.totalorder %s12, 0
    %p74 = por %p72, %p73
    %p75 = scmp.ne.s32.totalorder %s67, %s69
    %p76 = scmp.eq.s32.totalorder %s17, 1
    %p77 = por %p75, %p76
    %p78 = scmp.ne.s32.totalorder %s69, %s70
    %p79 = scmp.eq.s32.totalorder %s17, 0
    %p80 = por %p78, %p79
    %p81 = scmp.ne.s32.totalorder %s69, %s70
    %p82 = scmp.eq.s32.totalorder %s18, 1
    %p83 = por %p81, %p82
    %p85 = scmp.ne.s32.totalorder %s70, %s84
    %p86 = scmp.eq.s32.totalorder %s18, 0
    %p87 = por %p85, %p86
    %s88 = ssub.s32 %s12, %s19
    %p89 = scmp.eq.s32.totalorder %s88, 0
    %s91 = sadd.s32 %s90, 1
    %s92 = scalar_select %p89, %s90, %s91
    %p95 = pneg %p89
    %p96 = scmp.eq.s32.totalorder %s12, 1
    %p97 = por %p95, %p96
    %p98 = scmp.ne.s32.totalorder %s90, %s93
    %p99 = scmp.eq.s32.totalorder %s12, 0
    %p100 = por %p98, %p99
    %p101 = scmp.ne.s32.totalorder %s90, %s93
    %p102 = scmp.eq.s32.totalorder %s17, 1
    %p103 = por %p101, %p102
    %p104 = scmp.ne.s32.totalorder %s93, %s94
    %p105 = scmp.eq.s32.totalorder %s17, 0
    %p106 = por %p104, %p105
    %p107 = scmp.ne.s32.totalorder %s93, %s94
    %p108 = scmp.eq.s32.totalorder %s18, 1
    %p109 = por %p107, %p108
    %p111 = scmp.ne.s32.totalorder %s94, %s110
    %p112 = scmp.eq.s32.totalorder %s18, 0
    %p113 = por %p111, %p112
    %s114 = ssub.s32 %s12, %s19
    %p115 = scmp.eq.s32.totalorder %s114, 0
    %s117 = sadd.s32 %s116, 1
    %s118 = scalar_select %p115, %s116, %s117
    %p121 = pneg %p115
    %p122 = scmp.eq.s32.totalorder %s12, 1
    %p123 = por %p121, %p122
    %p124 = scmp.ne.s32.totalorder %s116, %s119
    %p125 = scmp.eq.s32.totalorder %s12, 0
    %p126 = por %p124, %p125
    %p127 = scmp.ne.s32.totalorder %s116, %s119
    %p128 = scmp.eq.s32.totalorder %s17, 1
    %p129 = por %p127, %p128
    %p130 = scmp.ne.s32.totalorder %s119, %s120
    %p131 = scmp.eq.s32.totalorder %s17, 0
    %p132 = por %p130, %p131
    %p133 = scmp.ne.s32.totalorder %s119, %s120
    %p134 = scmp.eq.s32.totalorder %s18, 1
    %p135 = por %p133, %p134
    %p137 = scmp.ne.s32.totalorder %s120, %s136
    %p138 = scmp.eq.s32.totalorder %s18, 0
    %p139 = por %p137, %p138
    %s140 = ssub.s32 %s12, %s19
    %p141 = scmp.eq.s32.totalorder %s140, 0
    %s143 = sadd.s32 %s142, 1
    %s144 = scalar_select %p141, %s142, %s143
    %p147 = pneg %p141
    %p148 = scmp.eq.s32.totalorder %s12, 1
    %p149 = por %p147, %p148
    %p150 = scmp.ne.s32.totalorder %s142, %s145
    %p151 = scmp.eq.s32.totalorder %s12, 0
    %p152 = por %p150, %p151
    %p153 = scmp.ne.s32.totalorder %s142, %s145
    %p154 = scmp.eq.s32.totalorder %s17, 1
    %p155 = por %p153, %p154
    %p156 = scmp.ne.s32.totalorder %s145, %s146
    %p157 = scmp.eq.s32.totalorder %s17, 0
    %p158 = por %p156, %p157
    %p159 = scmp.ne.s32.totalorder %s145, %s146
    %p160 = scmp.eq.s32.totalorder %s18, 1
    %p161 = por %p159, %p160
    %p163 = scmp.ne.s32.totalorder %s146, %s162
    %p164 = scmp.eq.s32.totalorder %s18, 0
    %p165 = por %p163, %p164
    %p166 = scmp.le.s32.totalorder 1, %s12
    %p167 = scmp.lt.s32.totalorder %s12, 3
    %p168 = pnand %p166, %p167
    %p169 = pneg %p168
    // Predicated region
    $region9: #{_lambda_.15} parent=5 // pred_check
      _
    $region10: #{_lambda_.15} parent=5 // pred_check_branch
      %171 = sbr.rel (%p168) target = $region12
    $region11: #{_lambda_.15} parent=5 // pred_region
      %s172 = ssub.s32 %s12, 1
      // Predicated region
      $region13: #{_lambda_.15} parent=11 // pred_check
        %p173 = pneg %p59
      $region14: #{_lambda_.15} parent=11 // pred_check_branch
        %175 = sbr.rel (%p173) target = $region16
      $region15: #{_lambda_.15} parent=11 // pred_region
        _
      $region16: #{_lambda_.15} parent=11 // pred_fallthru
        _
      // Predicated region
      $region17: #{_lambda_.15} parent=11 // pred_check
        %p176 = pneg %p80
      $region18: #{_lambda_.15} parent=11 // pred_check_branch
        %178 = sbr.rel (%p176) target = $region20
      $region19: #{_lambda_.15} parent=11 // pred_region
        _
      $region20: #{_lambda_.15} parent=11 // pred_fallthru
        _
    $region12: #{_lambda_.15} parent=5 // pred_fallthru
      _
    %p179 = scmp.lt.s32.totalorder %s12, 2
    // Predicated region
    $region21: #{_lambda_.15} parent=5 // pred_check
      %p180 = pneg %p179
    $region22: #{_lambda_.15} parent=5 // pred_check_branch
      %182 = sbr.rel (%p180) target = $region24
    $region23: #{_lambda_.15} parent=5 // pred_region
      // Predicated region
      $region25: #{_lambda_.15} parent=23 // pred_check
        %p183 = pneg %p32
      $region26: #{_lambda_.15} parent=23 // pred_check_branch
        %185 = sbr.rel (%p183) target = $region28
      $region27: #{_lambda_.15} parent=23 // pred_region
        %p186 = scmp.lt.s32.totalorder %s12, 1
        %s187 = scalar_select %p186, %s12, 1
        %s188 = smul.addr %s187, 43
        %s189 = smul.addr %s188, 8
        %s190 = scalar_lea.vmem %s0, %s189
      $region28: #{_lambda_.15} parent=23 // pred_fallthru
        _
    $region24: #{_lambda_.15} parent=5 // pred_fallthru
      _
    %p191 = scmp.le.s32.totalorder 1, %s12
    %p192 = scmp.lt.s32.totalorder %s12, 3
    %p193 = pnand %p191, %p192
    %p194 = pneg %p193
    // Predicated region
    $region29: #{_lambda_.15} parent=5 // pred_check
      _
    $region30: #{_lambda_.15} parent=5 // pred_check_branch
      %196 = sbr.rel (%p193) target = $region32
    $region31: #{_lambda_.15} parent=5 // pred_region
      %s197 = ssub.s32 %s12, 1
      %p198 = scmp.lt.s32.totalorder %s17, 1
      %s199 = scalar_select %p198, %s17, 1
      %s200 = smul.addr %s199, 43
      %s201 = smul.addr %s200, 8
      %s202 = scalar_lea.vmem %s0, %s201
      %p203 = pneg %p38
      %p204 = pneg %p35
      %p205 = pneg %p59
      %p206 = pneg %p56
      %p207 = pneg %p80
      %p208 = pneg %p77
      %p209 = pneg %p106
      %p210 = pneg %p103
      %p211 = scmp.lt.s32.totalorder %s17, 1
      %s212 = scalar_select %p211, %s17, 1
      %s213 = smul.addr %s212, 39
      %s214 = smul.addr %s213, 8
      %s215 = scalar_lea.vmem %s3, %s214
      %p216 = pneg %p132
      %p217 = pneg %p129
      %p218 = scmp.lt.s32.totalorder %s17, 1
      %s219 = scalar_select %p218, %s17, 1
      %s220 = scalar_lea.vmem %s4, %s219
      %p221 = pneg %p158
      %p222 = pneg %p155
      %p223 = scmp.lt.s32.totalorder %s17, 1
      %s224 = scalar_select %p223, %s17, 1
      %s225 = scalar_lea.vmem %s5, %s224
      %p226 = scmp.lt.s32.totalorder %s17, 1
      %s227 = scalar_select %p226, %s17, 1
      %s228 = smul.addr %s227, 43
      %s229 = smul.addr %s228, 8
      %s230 = scalar_lea.vmem %s0, %s229
      %p231 = scmp.lt.s32.totalorder %s17, 1
      %s232 = scalar_select %p231, %s17, 1
      %s233 = smul.addr %s232, 39
      %s234 = smul.addr %s233, 8
      %s235 = scalar_lea.vmem %s3, %s234
      %p236 = scmp.lt.s32.totalorder %s17, 1
      %s237 = scalar_select %p236, %s17, 1
      %s238 = scalar_lea.vmem %s4, %s237
      %p239 = scmp.lt.s32.totalorder %s17, 1
      %s240 = scalar_select %p239, %s17, 1
      %s241 = scalar_lea.vmem %s5, %s240
      %v243 = vld [vmem:[%s230] sm:$0xff]
      %v244 = vld [vmem:[%s230 + $0x8] sm:$0xff]
      %v245 = vld [vmem:[%s230 + $0x10] sm:$0xff]
      %v246 = vld [vmem:[%s230 + $0x18] sm:$0xff]
      %v247 = vld [vmem:[%s230 + $0x20] sm:$0xff]
      %v248 = vld [vmem:[%s230 + $0x28] sm:$0xff]
      %v249 = vld [vmem:[%s230 + $0x30] sm:$0xff]
      %v250 = vld [vmem:[%s230 + $0x38] sm:$0xff]
      %v251 = vld [vmem:[%s230 + $0x40] sm:$0xff]
      %v252 = vld [vmem:[%s230 + $0x48] sm:$0xff]
      %v253 = vld [vmem:[%s230 + $0x50] sm:$0xff]
      %v254 = vld [vmem:[%s230 + $0x58] sm:$0xff]
      %v255 = vld [vmem:[%s230 + $0x60] sm:$0xff]
      %v256 = vld [vmem:[%s230 + $0x68] sm:$0xff]
      %v257 = vld [vmem:[%s230 + $0x70] sm:$0xff]
      %v258 = vld [vmem:[%s230 + $0x78] sm:$0xff]
      %v259 = vld [vmem:[%s230 + $0x80] sm:$0xff]
      %v260 = vld [vmem:[%s230 + $0x88] sm:$0xff]
      %v261 = vld [vmem:[%s230 + $0x90] sm:$0xff]
      %v262 = vld [vmem:[%s230 + $0x98] sm:$0xff]
      %v263 = vld [vmem:[%s230 + $0xa0] sm:$0xff]
      %v264 = vld [vmem:[%s230 + $0xa8] sm:$0xff]
      %v265 = vld [vmem:[%s230 + $0xb0] sm:$0xff]
      %v266 = vld [vmem:[%s230 + $0xb8] sm:$0xff]
      %v267 = vld [vmem:[%s230 + $0xc0] sm:$0xff]
      %v268 = vld [vmem:[%s230 + $0xc8] sm:$0xff]
      %v269 = vld [vmem:[%s230 + $0xd0] sm:$0xff]
      %v270 = vld [vmem:[%s230 + $0xd8] sm:$0xff]
      %v271 = vld [vmem:[%s230 + $0xe0] sm:$0xff]
      %v272 = vld [vmem:[%s230 + $0xe8] sm:$0xff]
      %v273 = vld [vmem:[%s230 + $0xf0] sm:$0xff]
      %v274 = vld [vmem:[%s230 + $0xf8] sm:$0xff]
      %v275 = vld [vmem:[%s230 + $0x100] sm:$0xff]
      %v276 = vld [vmem:[%s230 + $0x108] sm:$0xff]
      %v277 = vld [vmem:[%s230 + $0x110] sm:$0xff]
      %v278 = vld [vmem:[%s230 + $0x118] sm:$0xff]
      %v279 = vld [vmem:[%s230 + $0x120] sm:$0xff]
      %v280 = vld [vmem:[%s230 + $0x128] sm:$0xff]
      %v281 = vld [vmem:[%s230 + $0x130] sm:$0xff]
      %v282 = vld [vmem:[%s230 + $0x138] sm:$0xff]
      %v283 = vld [vmem:[%s230 + $0x140] sm:$0xff]
      %v284 = vpack.c.bf16 %v244, %v243
      %v285 = vpack.c.bf16 %v246, %v245
      %v286 = vpack.c.bf16 %v248, %v247
      %v287 = vpack.c.bf16 %v250, %v249
      %v288 = vpack.c.bf16 %v252, %v251
      %v289 = vpack.c.bf16 %v254, %v253
      %v290 = vpack.c.bf16 %v256, %v255
      %v291 = vpack.c.bf16 %v258, %v257
      %v292 = vpack.c.bf16 %v260, %v259
      %v293 = vpack.c.bf16 %v262, %v261
      %v294 = vpack.c.bf16 %v264, %v263
      %v295 = vpack.c.bf16 %v266, %v265
      %v296 = vpack.c.bf16 %v268, %v267
      %v297 = vpack.c.bf16 %v270, %v269
      %v298 = vpack.c.bf16 %v272, %v271
      %v299 = vpack.c.bf16 %v274, %v273
      %v300 = vpack.c.bf16 %v276, %v275
      %v301 = vpack.c.bf16 %v278, %v277
      %v302 = vpack.c.bf16 %v280, %v279
      %v303 = vpack.c.bf16 %v281, %v281
      %v304 = vld [vmem:[%s1] sm:$0xf]
      %v305 = vld [vmem:[%s1 + $0x4] sm:$0xf]
      %s306 = scalar_lea.vmem %s1, 8
      %v307 = vld [vmem:[%s306] sm:$0xf]
      %v308 = vld [vmem:[%s306 + $0x4] sm:$0xf]
      %vm309 = vsmask.f32 7424
      %v311 = vshrl.u32 %v284, 16
      %v313 = vshll.u32 %v284, 16
      %v315 = vrot.slane %v313, 1
      %v316 = vor.u32 %v311, %v315
      %v318 = vshll.u32 %v285, 16
      %v320 = vrot.slane %v318, 1
      %v321 = vsel %vm309, %v316, %v320
      %v322 = vshrl.u32 %v285, 16
      %v324 = vor.u32 %v322, %v320
      %v326 = vshll.u32 %v286, 16
      %v328 = vrot.slane %v326, 1
      %v329 = vsel %vm309, %v324, %v328
      %v330 = vshrl.u32 %v286, 16
      %v332 = vor.u32 %v330, %v328
      %v334 = vshll.u32 %v287, 16
      %v336 = vrot.slane %v334, 1
      %v337 = vsel %vm309, %v332, %v336
      %v338 = vshrl.u32 %v287, 16
      %v340 = vor.u32 %v338, %v336
      %v342 = vshll.u32 %v288, 16
      %v344 = vrot.slane %v342, 1
      %v345 = vsel %vm309, %v340, %v344
      %v346 = vshrl.u32 %v288, 16
      %v348 = vor.u32 %v346, %v344
      %v350 = vshll.u32 %v289, 16
      %v352 = vrot.slane %v350, 1
      %v353 = vsel %vm309, %v348, %v352
      %v354 = vshrl.u32 %v289, 16
      %v356 = vor.u32 %v354, %v352
      %v358 = vshll.u32 %v290, 16
      %v360 = vrot.slane %v358, 1
      %v361 = vsel %vm309, %v356, %v360
      %v362 = vshrl.u32 %v290, 16
      %v364 = vor.u32 %v362, %v360
      %v366 = vshll.u32 %v291, 16
      %v368 = vrot.slane %v366, 1
      %v369 = vsel %vm309, %v364, %v368
      %v370 = vshrl.u32 %v291, 16
      %v372 = vor.u32 %v370, %v368
      %v374 = vshll.u32 %v292, 16
      %v376 = vrot.slane %v374, 1
      %v377 = vsel %vm309, %v372, %v376
      %v378 = vshrl.u32 %v292, 16
      %v380 = vor.u32 %v378, %v376
      %v382 = vshll.u32 %v293, 16
      %v384 = vrot.slane %v382, 1
      %v385 = vsel %vm309, %v380, %v384
      %v386 = vshrl.u32 %v293, 16
      %v388 = vor.u32 %v386, %v384
      %v390 = vshll.u32 %v294, 16
      %v392 = vrot.slane %v390, 1
      %v393 = vsel %vm309, %v388, %v392
      %v394 = vshrl.u32 %v294, 16
      %v396 = vor.u32 %v394, %v392
      %v398 = vshll.u32 %v295, 16
      %v400 = vrot.slane %v398, 1
      %v401 = vsel %vm309, %v396, %v400
      %v402 = vshrl.u32 %v295, 16
      %v404 = vor.u32 %v402, %v400
      %v406 = vshll.u32 %v296, 16
      %v408 = vrot.slane %v406, 1
      %v409 = vsel %vm309, %v404, %v408
      %v410 = vshrl.u32 %v296, 16
      %v412 = vor.u32 %v410, %v408
      %v414 = vshll.u32 %v297, 16
      %v416 = vrot.slane %v414, 1
      %v417 = vsel %vm309, %v412, %v416
      %v418 = vshrl.u32 %v297, 16
      %v420 = vor.u32 %v418, %v416
      %v422 = vshll.u32 %v298, 16
      %v424 = vrot.slane %v422, 1
      %v425 = vsel %vm309, %v420, %v424
      %v426 = vshrl.u32 %v298, 16
      %v428 = vor.u32 %v426, %v424
      %v430 = vshll.u32 %v299, 16
      %v432 = vrot.slane %v430, 1
      %v433 = vsel %vm309, %v428, %v432
      %v434 = vshrl.u32 %v299, 16
      %v436 = vor.u32 %v434, %v432
      %v438 = vshll.u32 %v300, 16
      %v440 = vrot.slane %v438, 1
      %v441 = vsel %vm309, %v436, %v440
      %v442 = vshrl.u32 %v300, 16
      %v444 = vor.u32 %v442, %v440
      %v446 = vshll.u32 %v301, 16
      %v448 = vrot.slane %v446, 1
      %v449 = vsel %vm309, %v444, %v448
      %v450 = vshrl.u32 %v301, 16
      %v452 = vor.u32 %v450, %v448
      %v454 = vshll.u32 %v302, 16
      %v456 = vrot.slane %v454, 1
      %v457 = vsel %vm309, %v452, %v456
      %v458 = vshrl.u32 %v302, 16
      %v460 = vor.u32 %v458, %v456
      %v462 = vshll.u32 %v303, 16
      %v464 = vrot.slane %v462, 1
      %v465 = vsel %vm309, %v460, %v464
      %v466 = vshrl.u32 %v303, 16
      %v468 = vor.u32 %v466, %v464
      %v471 = vunpack.c.l.b16 %v307
      %v472 = vunpack.c.l.b16 %v308
      %v473 = vpack.c.b16 %v472, %v471
      %vm475 = vcmask 130048
      %v477 = vsel %vm475, %v321, 0
      %v480 = vsel %vm475, %v329, 0
      %v483 = vsel %vm475, %v337, 0
      %v486 = vsel %vm475, %v345, 0
      %v489 = vsel %vm475, %v353, 0
      %v492 = vsel %vm475, %v361, 0
      %v495 = vsel %vm475, %v369, 0
      %v498 = vsel %vm475, %v377, 0
      %v501 = vsel %vm475, %v385, 0
      %v504 = vsel %vm475, %v393, 0
      %v507 = vsel %vm475, %v401, 0
      %v510 = vsel %vm475, %v409, 0
      %v513 = vsel %vm475, %v417, 0
      %v516 = vsel %vm475, %v425, 0
      %v519 = vsel %vm475, %v433, 0
      %v522 = vsel %vm475, %v441, 0
      %v525 = vsel %vm475, %v449, 0
      %v528 = vsel %vm475, %v457, 0
      %v531 = vsel %vm475, %v465, 0
      %v534 = vsel %vm475, %v468, 0
      %536 = vmatpush.bf16.msra.mxu0 0
      %537 = vmatpush.bf16.msra.mxu0 0
      %538 = vmatpush.bf16.msra.mxu0 0
      %539 = vmatpush.bf16.msra.mxu0 0
      %540 = vmatpush.bf16.msra.mxu0 0
      %541 = vmatpush.bf16.msra.mxu0 0
      %542 = vmatpush.bf16.msra.mxu0 0
      %543 = vmatpush.bf16.msra.mxu0 %v473
      %544 = vmatmul.bf16.gmra.mxu0 %v477
      %v545 = vpop.f32.mrf.mxu0
      %v546 = vadd.f32 0.0, %v545
      %v547 = vpop.f32.mrf.mxu0
      %v548 = vadd.f32 0.0, %v547
      %549 = vmatmul.bf16.gmra.mxu0 %v480
      %v550 = vpop.f32.mrf.mxu0
      %v551 = vadd.f32 0.0, %v550
      %v552 = vpop.f32.mrf.mxu0
      %v553 = vadd.f32 0.0, %v552
      %554 = vmatmul.bf16.gmra.mxu0 %v483
      %v555 = vpop.f32.mrf.mxu0
      %v556 = vadd.f32 0.0, %v555
      %v557 = vpop.f32.mrf.mxu0
      %v558 = vadd.f32 0.0, %v557
      %559 = vmatmul.bf16.gmra.mxu0 %v486
      %v560 = vpop.f32.mrf.mxu0
      %v561 = vadd.f32 0.0, %v560
      %v562 = vpop.f32.mrf.mxu0
      %v563 = vadd.f32 0.0, %v562
      %564 = vmatmul.bf16.gmra.mxu0 %v489
      %v565 = vpop.f32.mrf.mxu0
      %v566 = vadd.f32 0.0, %v565
      %v567 = vpop.f32.mrf.mxu0
      %v568 = vadd.f32 0.0, %v567
      %569 = vmatmul.bf16.gmra.mxu0 %v492
      %v570 = vpop.f32.mrf.mxu0
      %v571 = vadd.f32 0.0, %v570
      %v572 = vpop.f32.mrf.mxu0
      %v573 = vadd.f32 0.0, %v572
      %574 = vmatmul.bf16.gmra.mxu0 %v495
      %v575 = vpop.f32.mrf.mxu0
      %v576 = vadd.f32 0.0, %v575
      %v577 = vpop.f32.mrf.mxu0
      %v578 = vadd.f32 0.0, %v577
      %579 = vmatmul.bf16.gmra.mxu0 %v498
      %v580 = vpop.f32.mrf.mxu0
      %v581 = vadd.f32 0.0, %v580
      %v582 = vpop.f32.mrf.mxu0
      %v583 = vadd.f32 0.0, %v582
      %584 = vmatmul.bf16.gmra.mxu0 %v501
      %v585 = vpop.f32.mrf.mxu0
      %v586 = vadd.f32 0.0, %v585
      %v587 = vpop.f32.mrf.mxu0
      %v588 = vadd.f32 0.0, %v587
      %589 = vmatmul.bf16.gmra.mxu0 %v504
      %v590 = vpop.f32.mrf.mxu0
      %v591 = vadd.f32 0.0, %v590
      %v592 = vpop.f32.mrf.mxu0
      %v593 = vadd.f32 0.0, %v592
      %594 = vmatmul.bf16.gmra.mxu0 %v507
      %v595 = vpop.f32.mrf.mxu0
      %v596 = vadd.f32 0.0, %v595
      %v597 = vpop.f32.mrf.mxu0
      %v598 = vadd.f32 0.0, %v597
      %599 = vmatmul.bf16.gmra.mxu0 %v510
      %v600 = vpop.f32.mrf.mxu0
      %v601 = vadd.f32 0.0, %v600
      %v602 = vpop.f32.mrf.mxu0
      %v603 = vadd.f32 0.0, %v602
      %604 = vmatmul.bf16.gmra.mxu0 %v513
      %v605 = vpop.f32.mrf.mxu0
      %v606 = vadd.f32 0.0, %v605
      %v607 = vpop.f32.mrf.mxu0
      %v608 = vadd.f32 0.0, %v607
      %609 = vmatmul.bf16.gmra.mxu0 %v516
      %v610 = vpop.f32.mrf.mxu0
      %v611 = vadd.f32 0.0, %v610
      %v612 = vpop.f32.mrf.mxu0
      %v613 = vadd.f32 0.0, %v612
      %614 = vmatmul.bf16.gmra.mxu0 %v519
      %v615 = vpop.f32.mrf.mxu0
      %v616 = vadd.f32 0.0, %v615
      %v617 = vpop.f32.mrf.mxu0
      %v618 = vadd.f32 0.0, %v617
      %619 = vmatmul.bf16.gmra.mxu0 %v522
      %v620 = vpop.f32.mrf.mxu0
      %v621 = vadd.f32 0.0, %v620
      %v622 = vpop.f32.mrf.mxu0
      %v623 = vadd.f32 0.0, %v622
      %624 = vmatmul.bf16.gmra.mxu0 %v525
      %v625 = vpop.f32.mrf.mxu0
      %v626 = vadd.f32 0.0, %v625
      %v627 = vpop.f32.mrf.mxu0
      %v628 = vadd.f32 0.0, %v627
      %629 = vmatmul.bf16.gmra.mxu0 %v528
      %v630 = vpop.f32.mrf.mxu0
      %v631 = vadd.f32 0.0, %v630
      %v632 = vpop.f32.mrf.mxu0
      %v633 = vadd.f32 0.0, %v632
      %634 = vmatmul.bf16.gmra.mxu0 %v531
      %v635 = vpop.f32.mrf.mxu0
      %v636 = vadd.f32 0.0, %v635
      %v637 = vpop.f32.mrf.mxu0
      %v638 = vadd.f32 0.0, %v637
      %639 = vmatmul.bf16.gmra.mxu0 %v534
      %v640 = vpop.f32.mrf.mxu0
      %v641 = vadd.f32 0.0, %v640
      %v642 = vpop.f32.mrf.mxu0
      %643 = vdwg.mxu0
      %v646 = vunpack.c.l.b16 %v304
      %v647 = vunpack.c.l.b16 %v305
      %v648 = vpack.c.b16 %v647, %v646
      %v650 = vsel %vm475, %v284, 0
      %v652 = vsel %vm475, %v285, 0
      %v654 = vsel %vm475, %v286, 0
      %v656 = vsel %vm475, %v287, 0
      %v658 = vsel %vm475, %v288, 0
      %v660 = vsel %vm475, %v289, 0
      %v662 = vsel %vm475, %v290, 0
      %v664 = vsel %vm475, %v291, 0
      %v666 = vsel %vm475, %v292, 0
      %v668 = vsel %vm475, %v293, 0
      %v670 = vsel %vm475, %v294, 0
      %v672 = vsel %vm475, %v295, 0
      %v674 = vsel %vm475, %v296, 0
      %v676 = vsel %vm475, %v297, 0
      %v678 = vsel %vm475, %v298, 0
      %v680 = vsel %vm475, %v299, 0
      %v682 = vsel %vm475, %v300, 0
      %v684 = vsel %vm475, %v301, 0
      %v686 = vsel %vm475, %v302, 0
      %v688 = vsel %vm475, %v303, 0
      %690 = vmatpush.bf16.msra.mxu0 0
      %691 = vmatpush.bf16.msra.mxu0 0
      %692 = vmatpush.bf16.msra.mxu0 0
      %693 = vmatpush.bf16.msra.mxu0 0
      %694 = vmatpush.bf16.msra.mxu0 0
      %695 = vmatpush.bf16.msra.mxu0 0
      %696 = vmatpush.bf16.msra.mxu0 0
      %697 = vmatpush.bf16.msra.mxu0 %v648
      %698 = vmatmul.bf16.gmra.mxu0 %v650
      %v699 = vpop.f32.mrf.mxu0
      %v700 = vadd.f32 %v546, %v699
      %v701 = vpop.f32.mrf.mxu0
      %v702 = vadd.f32 %v548, %v701
      %703 = vmatmul.bf16.gmra.mxu0 %v652
      %v704 = vpop.f32.mrf.mxu0
      %v705 = vadd.f32 %v551, %v704
      %v706 = vpop.f32.mrf.mxu0
      %v707 = vadd.f32 %v553, %v706
      %708 = vmatmul.bf16.gmra.mxu0 %v654
      %v709 = vpop.f32.mrf.mxu0
      %v710 = vadd.f32 %v556, %v709
      %v711 = vpop.f32.mrf.mxu0
      %v712 = vadd.f32 %v558, %v711
      %713 = vmatmul.bf16.gmra.mxu0 %v656
      %v714 = vpop.f32.mrf.mxu0
      %v715 = vadd.f32 %v561, %v714
      %v716 = vpop.f32.mrf.mxu0
      %v717 = vadd.f32 %v563, %v716
      %718 = vmatmul.bf16.gmra.mxu0 %v658
      %v719 = vpop.f32.mrf.mxu0
      %v720 = vadd.f32 %v566, %v719
      %v721 = vpop.f32.mrf.mxu0
      %v722 = vadd.f32 %v568, %v721
      %723 = vmatmul.bf16.gmra.mxu0 %v660
      %v724 = vpop.f32.mrf.mxu0
      %v725 = vadd.f32 %v571, %v724
      %v726 = vpop.f32.mrf.mxu0
      %v727 = vadd.f32 %v573, %v726
      %728 = vmatmul.bf16.gmra.mxu0 %v662
      %v729 = vpop.f32.mrf.mxu0
      %v730 = vadd.f32 %v576, %v729
      %v731 = vpop.f32.mrf.mxu0
      %v732 = vadd.f32 %v578, %v731
      %733 = vmatmul.bf16.gmra.mxu0 %v664
      %v734 = vpop.f32.mrf.mxu0
      %v735 = vadd.f32 %v581, %v734
      %v736 = vpop.f32.mrf.mxu0
      %v737 = vadd.f32 %v583, %v736
      %738 = vmatmul.bf16.gmra.mxu0 %v666
      %v739 = vpop.f32.mrf.mxu0
      %v740 = vadd.f32 %v586, %v739
      %v741 = vpop.f32.mrf.mxu0
      %v742 = vadd.f32 %v588, %v741
      %743 = vmatmul.bf16.gmra.mxu0 %v668
      %v744 = vpop.f32.mrf.mxu0
      %v745 = vadd.f32 %v591, %v744
      %v746 = vpop.f32.mrf.mxu0
      %v747 = vadd.f32 %v593, %v746
      %748 = vmatmul.bf16.gmra.mxu0 %v670
      %v749 = vpop.f32.mrf.mxu0
      %v750 = vadd.f32 %v596, %v749
      %v751 = vpop.f32.mrf.mxu0
      %v752 = vadd.f32 %v598, %v751
      %753 = vmatmul.bf16.gmra.mxu0 %v672
      %v754 = vpop.f32.mrf.mxu0
      %v755 = vadd.f32 %v601, %v754
      %v756 = vpop.f32.mrf.mxu0
      %v757 = vadd.f32 %v603, %v756
      %758 = vmatmul.bf16.gmra.mxu0 %v674
      %v759 = vpop.f32.mrf.mxu0
      %v760 = vadd.f32 %v606, %v759
      %v761 = vpop.f32.mrf.mxu0
      %v762 = vadd.f32 %v608, %v761
      %763 = vmatmul.bf16.gmra.mxu0 %v676
      %v764 = vpop.f32.mrf.mxu0
      %v765 = vadd.f32 %v611, %v764
      %v766 = vpop.f32.mrf.mxu0
      %v767 = vadd.f32 %v613, %v766
      %768 = vmatmul.bf16.gmra.mxu0 %v678
      %v769 = vpop.f32.mrf.mxu0
      %v770 = vadd.f32 %v616, %v769
      %v771 = vpop.f32.mrf.mxu0
      %v772 = vadd.f32 %v618, %v771
      %773 = vmatmul.bf16.gmra.mxu0 %v680
      %v774 = vpop.f32.mrf.mxu0
      %v775 = vadd.f32 %v621, %v774
      %v776 = vpop.f32.mrf.mxu0
      %v777 = vadd.f32 %v623, %v776
      %778 = vmatmul.bf16.gmra.mxu0 %v682
      %v779 = vpop.f32.mrf.mxu0
      %v780 = vadd.f32 %v626, %v779
      %v781 = vpop.f32.mrf.mxu0
      %v782 = vadd.f32 %v628, %v781
      %783 = vmatmul.bf16.gmra.mxu0 %v684
      %v784 = vpop.f32.mrf.mxu0
      %v785 = vadd.f32 %v631, %v784
      %v786 = vpop.f32.mrf.mxu0
      %v787 = vadd.f32 %v633, %v786
      %788 = vmatmul.bf16.gmra.mxu0 %v686
      %v789 = vpop.f32.mrf.mxu0
      %v790 = vadd.f32 %v636, %v789
      %v791 = vpop.f32.mrf.mxu0
      %v792 = vadd.f32 %v638, %v791
      %793 = vmatmul.bf16.gmra.mxu0 %v688
      %v794 = vpop.f32.mrf.mxu0
      %v795 = vadd.f32 %v641, %v794
      %v796 = vpop.f32.mrf.mxu0
      %797 = vdwg.mxu0
      %v798 = vpack.c.bf16 %v282, %v281
      %v799 = vpack.c.bf16 %v283, %v283
      %s800 = scalar_lea.vmem %s1, 16
      %v801 = vld [vmem:[%s800] sm:$0xf]
      %v802 = vld [vmem:[%s800 + $0x4] sm:$0xf]
      %vm823 = vcmask 1046528
      %v824 = vrot.slane %v285, 1
      %v825 = vrot.slane %v286, 1
      %v826 = vsel %vm823, %v824, %v825
      %v827 = vrot.slane %v287, 1
      %v828 = vsel %vm823, %v825, %v827
      %v829 = vrot.slane %v288, 1
      %v830 = vsel %vm823, %v827, %v829
      %v831 = vrot.slane %v289, 1
      %v832 = vsel %vm823, %v829, %v831
      %v833 = vrot.slane %v290, 1
      %v834 = vsel %vm823, %v831, %v833
      %v835 = vrot.slane %v291, 1
      %v836 = vsel %vm823, %v833, %v835
      %v837 = vrot.slane %v292, 1
      %v838 = vsel %vm823, %v835, %v837
      %v839 = vrot.slane %v293, 1
      %v840 = vsel %vm823, %v837, %v839
      %v841 = vrot.slane %v294, 1
      %v842 = vsel %vm823, %v839, %v841
      %v843 = vrot.slane %v295, 1
      %v844 = vsel %vm823, %v841, %v843
      %v845 = vrot.slane %v296, 1
      %v846 = vsel %vm823, %v843, %v845
      %v847 = vrot.slane %v297, 1
      %v848 = vsel %vm823, %v845, %v847
      %v849 = vrot.slane %v298, 1
      %v850 = vsel %vm823, %v847, %v849
      %v851 = vrot.slane %v299, 1
      %v852 = vsel %vm823, %v849, %v851
      %v853 = vrot.slane %v300, 1
      %v854 = vsel %vm823, %v851, %v853
      %v855 = vrot.slane %v301, 1
      %v856 = vsel %vm823, %v853, %v855
      %v857 = vrot.slane %v302, 1
      %v858 = vsel %vm823, %v855, %v857
      %v859 = vrot.slane %v798, 1
      %v860 = vsel %vm823, %v857, %v859
      %v861 = vrot.slane %v799, 1
      %v862 = vsel %vm823, %v859, %v861
      %v865 = vunpack.c.l.b16 %v801
      %v866 = vunpack.c.l.b16 %v802
      %v867 = vpack.c.b16 %v866, %v865
      %v870 = vsel %vm475, %v826, 0
      %v873 = vsel %vm475, %v828, 0
      %v876 = vsel %vm475, %v830, 0
      %v879 = vsel %vm475, %v832, 0
      %v882 = vsel %vm475, %v834, 0
      %v885 = vsel %vm475, %v836, 0
      %v888 = vsel %vm475, %v838, 0
      %v891 = vsel %vm475, %v840, 0
      %v894 = vsel %vm475, %v842, 0
      %v897 = vsel %vm475, %v844, 0
      %v900 = vsel %vm475, %v846, 0
      %v903 = vsel %vm475, %v848, 0
      %v906 = vsel %vm475, %v850, 0
      %v909 = vsel %vm475, %v852, 0
      %v912 = vsel %vm475, %v854, 0
      %v915 = vsel %vm475, %v856, 0
      %v918 = vsel %vm475, %v858, 0
      %v921 = vsel %vm475, %v860, 0
      %v924 = vsel %vm475, %v862, 0
      %v927 = vsel %vm475, %v861, 0
      %929 = vmatpush.bf16.msra.mxu0 0
      %930 = vmatpush.bf16.msra.mxu0 0
      %931 = vmatpush.bf16.msra.mxu0 0
      %932 = vmatpush.bf16.msra.mxu0 0
      %933 = vmatpush.bf16.msra.mxu0 0
      %934 = vmatpush.bf16.msra.mxu0 0
      %935 = vmatpush.bf16.msra.mxu0 0
      %936 = vmatpush.bf16.msra.mxu0 %v867
      %937 = vmatmul.bf16.gmra.mxu0 %v870
      %v938 = vpop.f32.mrf.mxu0
      %v939 = vadd.f32 0.0, %v938
      %v940 = vpop.f32.mrf.mxu0
      %v941 = vadd.f32 0.0, %v940
      %942 = vmatmul.bf16.gmra.mxu0 %v873
      %v943 = vpop.f32.mrf.mxu0
      %v944 = vadd.f32 0.0, %v943
      %v945 = vpop.f32.mrf.mxu0
      %v946 = vadd.f32 0.0, %v945
      %947 = vmatmul.bf16.gmra.mxu0 %v876
      %v948 = vpop.f32.mrf.mxu0
      %v949 = vadd.f32 0.0, %v948
      %v950 = vpop.f32.mrf.mxu0
      %v951 = vadd.f32 0.0, %v950
      %952 = vmatmul.bf16.gmra.mxu0 %v879
      %v953 = vpop.f32.mrf.mxu0
      %v954 = vadd.f32 0.0, %v953
      %v955 = vpop.f32.mrf.mxu0
      %v956 = vadd.f32 0.0, %v955
      %957 = vmatmul.bf16.gmra.mxu0 %v882
      %v958 = vpop.f32.mrf.mxu0
      %v959 = vadd.f32 0.0, %v958
      %v960 = vpop.f32.mrf.mxu0
      %v961 = vadd.f32 0.0, %v960
      %962 = vmatmul.bf16.gmra.mxu0 %v885
      %v963 = vpop.f32.mrf.mxu0
      %v964 = vadd.f32 0.0, %v963
      %v965 = vpop.f32.mrf.mxu0
      %v966 = vadd.f32 0.0, %v965
      %967 = vmatmul.bf16.gmra.mxu0 %v888
      %v968 = vpop.f32.mrf.mxu0
      %v969 = vadd.f32 0.0, %v968
      %v970 = vpop.f32.mrf.mxu0
      %v971 = vadd.f32 0.0, %v970
      %972 = vmatmul.bf16.gmra.mxu0 %v891
      %v973 = vpop.f32.mrf.mxu0
      %v974 = vadd.f32 0.0, %v973
      %v975 = vpop.f32.mrf.mxu0
      %v976 = vadd.f32 0.0, %v975
      %977 = vmatmul.bf16.gmra.mxu0 %v894
      %v978 = vpop.f32.mrf.mxu0
      %v979 = vadd.f32 0.0, %v978
      %v980 = vpop.f32.mrf.mxu0
      %v981 = vadd.f32 0.0, %v980
      %982 = vmatmul.bf16.gmra.mxu0 %v897
      %v983 = vpop.f32.mrf.mxu0
      %v984 = vadd.f32 0.0, %v983
      %v985 = vpop.f32.mrf.mxu0
      %v986 = vadd.f32 0.0, %v985
      %987 = vmatmul.bf16.gmra.mxu0 %v900
      %v988 = vpop.f32.mrf.mxu0
      %v989 = vadd.f32 0.0, %v988
      %v990 = vpop.f32.mrf.mxu0
      %v991 = vadd.f32 0.0, %v990
      %992 = vmatmul.bf16.gmra.mxu0 %v903
      %v993 = vpop.f32.mrf.mxu0
      %v994 = vadd.f32 0.0, %v993
      %v995 = vpop.f32.mrf.mxu0
      %v996 = vadd.f32 0.0, %v995
      %997 = vmatmul.bf16.gmra.mxu0 %v906
      %v998 = vpop.f32.mrf.mxu0
      %v999 = vadd.f32 0.0, %v998
      %v1000 = vpop.f32.mrf.mxu0
      %v1001 = vadd.f32 0.0, %v1000
      %1002 = vmatmul.bf16.gmra.mxu0 %v909
      %v1003 = vpop.f32.mrf.mxu0
      %v1004 = vadd.f32 0.0, %v1003
      %v1005 = vpop.f32.mrf.mxu0
      %v1006 = vadd.f32 0.0, %v1005
      %1007 = vmatmul.bf16.gmra.mxu0 %v912
      %v1008 = vpop.f32.mrf.mxu0
      %v1009 = vadd.f32 0.0, %v1008
      %v1010 = vpop.f32.mrf.mxu0
      %v1011 = vadd.f32 0.0, %v1010
      %1012 = vmatmul.bf16.gmra.mxu0 %v915
      %v1013 = vpop.f32.mrf.mxu0
      %v1014 = vadd.f32 0.0, %v1013
      %v1015 = vpop.f32.mrf.mxu0
      %v1016 = vadd.f32 0.0, %v1015
      %1017 = vmatmul.bf16.gmra.mxu0 %v918
      %v1018 = vpop.f32.mrf.mxu0
      %v1019 = vadd.f32 0.0, %v1018
      %v1020 = vpop.f32.mrf.mxu0
      %v1021 = vadd.f32 0.0, %v1020
      %1022 = vmatmul.bf16.gmra.mxu0 %v921
      %v1023 = vpop.f32.mrf.mxu0
      %v1024 = vadd.f32 0.0, %v1023
      %v1025 = vpop.f32.mrf.mxu0
      %v1026 = vadd.f32 0.0, %v1025
      %1027 = vmatmul.bf16.gmra.mxu0 %v924
      %v1028 = vpop.f32.mrf.mxu0
      %v1029 = vadd.f32 0.0, %v1028
      %v1030 = vpop.f32.mrf.mxu0
      %v1031 = vadd.f32 0.0, %v1030
      %1032 = vmatmul.bf16.gmra.mxu0 %v927
      %v1033 = vpop.f32.mrf.mxu0
      %v1034 = vadd.f32 0.0, %v1033
      %v1035 = vpop.f32.mrf.mxu0
      %1036 = vdwg.mxu0
      %v1037 = vadd.f32 %v700, %v939
      %v1038 = vadd.f32 %v702, %v941
      %v1039 = vadd.f32 %v705, %v944
      %v1040 = vadd.f32 %v707, %v946
      %v1041 = vadd.f32 %v710, %v949
      %v1042 = vadd.f32 %v712, %v951
      %v1043 = vadd.f32 %v715, %v954
      %v1044 = vadd.f32 %v717, %v956
      %v1045 = vadd.f32 %v720, %v959
      %v1046 = vadd.f32 %v722, %v961
      %v1047 = vadd.f32 %v725, %v964
      %v1048 = vadd.f32 %v727, %v966
      %v1049 = vadd.f32 %v730, %v969
      %v1050 = vadd.f32 %v732, %v971
      %v1051 = vadd.f32 %v735, %v974
      %v1052 = vadd.f32 %v737, %v976
      %v1053 = vadd.f32 %v740, %v979
      %v1054 = vadd.f32 %v742, %v981
      %v1055 = vadd.f32 %v745, %v984
      %v1056 = vadd.f32 %v747, %v986
      %v1057 = vadd.f32 %v750, %v989
      %v1058 = vadd.f32 %v752, %v991
      %v1059 = vadd.f32 %v755, %v994
      %v1060 = vadd.f32 %v757, %v996
      %v1061 = vadd.f32 %v760, %v999
      %v1062 = vadd.f32 %v762, %v1001
      %v1063 = vadd.f32 %v765, %v1004
      %v1064 = vadd.f32 %v767, %v1006
      %v1065 = vadd.f32 %v770, %v1009
      %v1066 = vadd.f32 %v772, %v1011
      %v1067 = vadd.f32 %v775, %v1014
      %v1068 = vadd.f32 %v777, %v1016
      %v1069 = vadd.f32 %v780, %v1019
      %v1070 = vadd.f32 %v782, %v1021
      %v1071 = vadd.f32 %v785, %v1024
      %v1072 = vadd.f32 %v787, %v1026
      %v1073 = vadd.f32 %v790, %v1029
      %v1074 = vadd.f32 %v792, %v1031
      %v1075 = vadd.f32 %v795, %v1034
      %s1076 = scalar_lea.vmem %s1, 24
      %v1077 = vld [vmem:[%s1076] sm:$0xf]
      %v1078 = vld [vmem:[%s1076 + $0x4] sm:$0xf]
      %vm1079 = vsmask.f32 6400
      %v1080 = vrot.slane %v322, 1
      %v1081 = vrot.slane %v318, 2
      %v1082 = vor.u32 %v1080, %v1081
      %v1083 = vrot.slane %v330, 1
      %v1084 = vrot.slane %v326, 2
      %v1085 = vor.u32 %v1083, %v1084
      %v1086 = vsel %vm1079, %v1082, %v1085
      %v1087 = vrot.slane %v338, 1
      %v1088 = vrot.slane %v334, 2
      %v1089 = vor.u32 %v1087, %v1088
      %v1090 = vsel %vm1079, %v1085, %v1089
      %v1091 = vrot.slane %v346, 1
      %v1092 = vrot.slane %v342, 2
      %v1093 = vor.u32 %v1091, %v1092
      %v1094 = vsel %vm1079, %v1089, %v1093
      %v1095 = vrot.slane %v354, 1
      %v1096 = vrot.slane %v350, 2
      %v1097 = vor.u32 %v1095, %v1096
      %v1098 = vsel %vm1079, %v1093, %v1097
      %v1099 = vrot.slane %v362, 1
      %v1100 = vrot.slane %v358, 2
      %v1101 = vor.u32 %v1099, %v1100
      %v1102 = vsel %vm1079, %v1097, %v1101
      %v1103 = vrot.slane %v370, 1
      %v1104 = vrot.slane %v366, 2
      %v1105 = vor.u32 %v1103, %v1104
      %v1106 = vsel %vm1079, %v1101, %v1105
      %v1107 = vrot.slane %v378, 1
      %v1108 = vrot.slane %v374, 2
      %v1109 = vor.u32 %v1107, %v1108
      %v1110 = vsel %vm1079, %v1105, %v1109
      %v1111 = vrot.slane %v386, 1
      %v1112 = vrot.slane %v382, 2
      %v1113 = vor.u32 %v1111, %v1112
      %v1114 = vsel %vm1079, %v1109, %v1113
      %v1115 = vrot.slane %v394, 1
      %v1116 = vrot.slane %v390, 2
      %v1117 = vor.u32 %v1115, %v1116
      %v1118 = vsel %vm1079, %v1113, %v1117
      %v1119 = vrot.slane %v402, 1
      %v1120 = vrot.slane %v398, 2
      %v1121 = vor.u32 %v1119, %v1120
      %v1122 = vsel %vm1079, %v1117, %v1121
      %v1123 = vrot.slane %v410, 1
      %v1124 = vrot.slane %v406, 2
      %v1125 = vor.u32 %v1123, %v1124
      %v1126 = vsel %vm1079, %v1121, %v1125
      %v1127 = vrot.slane %v418, 1
      %v1128 = vrot.slane %v414, 2
      %v1129 = vor.u32 %v1127, %v1128
      %v1130 = vsel %vm1079, %v1125, %v1129
      %v1131 = vrot.slane %v426, 1
      %v1132 = vrot.slane %v422, 2
      %v1133 = vor.u32 %v1131, %v1132
      %v1134 = vsel %vm1079, %v1129, %v1133
      %v1135 = vrot.slane %v434, 1
      %v1136 = vrot.slane %v430, 2
      %v1137 = vor.u32 %v1135, %v1136
      %v1138 = vsel %vm1079, %v1133, %v1137
      %v1139 = vrot.slane %v442, 1
      %v1140 = vrot.slane %v438, 2
      %v1141 = vor.u32 %v1139, %v1140
      %v1142 = vsel %vm1079, %v1137, %v1141
      %v1143 = vrot.slane %v450, 1
      %v1144 = vrot.slane %v446, 2
      %v1145 = vor.u32 %v1143, %v1144
      %v1146 = vsel %vm1079, %v1141, %v1145
      %v1147 = vrot.slane %v458, 1
      %v1148 = vrot.slane %v454, 2
      %v1149 = vor.u32 %v1147, %v1148
      %v1150 = vsel %vm1079, %v1145, %v1149
      %v1152 = vshrl.u32 %v798, 16
      %v1154 = vrot.slane %v1152, 1
      %v1155 = vshll.u32 %v798, 16
      %v1157 = vrot.slane %v1155, 2
      %v1158 = vor.u32 %v1154, %v1157
      %v1159 = vsel %vm1079, %v1149, %v1158
      %v1161 = vshrl.u32 %v799, 16
      %v1163 = vrot.slane %v1161, 1
      %v1164 = vshll.u32 %v799, 16
      %v1166 = vrot.slane %v1164, 2
      %v1167 = vor.u32 %v1163, %v1166
      %v1168 = vsel %vm1079, %v1158, %v1167
      %v1171 = vunpack.c.l.b16 %v1077
      %v1172 = vunpack.c.l.b16 %v1078
      %v1173 = vpack.c.b16 %v1172, %v1171
      %v1176 = vsel %vm475, %v1086, 0
      %v1179 = vsel %vm475, %v1090, 0
      %v1182 = vsel %vm475, %v1094, 0
      %v1185 = vsel %vm475, %v1098, 0
      %v1188 = vsel %vm475, %v1102, 0
      %v1191 = vsel %vm475, %v1106, 0
      %v1194 = vsel %vm475, %v1110, 0
      %v1197 = vsel %vm475, %v1114, 0
      %v1200 = vsel %vm475, %v1118, 0
      %v1203 = vsel %vm475, %v1122, 0
      %v1206 = vsel %vm475, %v1126, 0
      %v1209 = vsel %vm475, %v1130, 0
      %v1212 = vsel %vm475, %v1134, 0
      %v1215 = vsel %vm475, %v1138, 0
      %v1218 = vsel %vm475, %v1142, 0
      %v1221 = vsel %vm475, %v1146, 0
      %v1224 = vsel %vm475, %v1150, 0
      %v1227 = vsel %vm475, %v1159, 0
      %v1230 = vsel %vm475, %v1168, 0
      %v1233 = vsel %vm475, %v1167, 0
      %1235 = vmatpush.bf16.msra.mxu0 0
      %1236 = vmatpush.bf16.msra.mxu0 0
      %1237 = vmatpush.bf16.msra.mxu0 0
      %1238 = vmatpush.bf16.msra.mxu0 0
      %1239 = vmatpush.bf16.msra.mxu0 0
      %1240 = vmatpush.bf16.msra.mxu0 0
      %1241 = vmatpush.bf16.msra.mxu0 0
      %1242 = vmatpush.bf16.msra.mxu0 %v1173
      %1243 = vmatmul.bf16.gmra.mxu0 %v1176
      %v1244 = vpop.f32.mrf.mxu0
      %v1245 = vadd.f32 0.0, %v1244
      %v1246 = vpop.f32.mrf.mxu0
      %v1247 = vadd.f32 0.0, %v1246
      %1248 = vmatmul.bf16.gmra.mxu0 %v1179
      %v1249 = vpop.f32.mrf.mxu0
      %v1250 = vadd.f32 0.0, %v1249
      %v1251 = vpop.f32.mrf.mxu0
      %v1252 = vadd.f32 0.0, %v1251
      %1253 = vmatmul.bf16.gmra.mxu0 %v1182
      %v1254 = vpop.f32.mrf.mxu0
      %v1255 = vadd.f32 0.0, %v1254
      %v1256 = vpop.f32.mrf.mxu0
      %v1257 = vadd.f32 0.0, %v1256
      %1258 = vmatmul.bf16.gmra.mxu0 %v1185
      %v1259 = vpop.f32.mrf.mxu0
      %v1260 = vadd.f32 0.0, %v1259
      %v1261 = vpop.f32.mrf.mxu0
      %v1262 = vadd.f32 0.0, %v1261
      %1263 = vmatmul.bf16.gmra.mxu0 %v1188
      %v1264 = vpop.f32.mrf.mxu0
      %v1265 = vadd.f32 0.0, %v1264
      %v1266 = vpop.f32.mrf.mxu0
      %v1267 = vadd.f32 0.0, %v1266
      %1268 = vmatmul.bf16.gmra.mxu0 %v1191
      %v1269 = vpop.f32.mrf.mxu0
      %v1270 = vadd.f32 0.0, %v1269
      %v1271 = vpop.f32.mrf.mxu0
      %v1272 = vadd.f32 0.0, %v1271
      %1273 = vmatmul.bf16.gmra.mxu0 %v1194
      %v1274 = vpop.f32.mrf.mxu0
      %v1275 = vadd.f32 0.0, %v1274
      %v1276 = vpop.f32.mrf.mxu0
      %v1277 = vadd.f32 0.0, %v1276
      %1278 = vmatmul.bf16.gmra.mxu0 %v1197
      %v1279 = vpop.f32.mrf.mxu0
      %v1280 = vadd.f32 0.0, %v1279
      %v1281 = vpop.f32.mrf.mxu0
      %v1282 = vadd.f32 0.0, %v1281
      %1283 = vmatmul.bf16.gmra.mxu0 %v1200
      %v1284 = vpop.f32.mrf.mxu0
      %v1285 = vadd.f32 0.0, %v1284
      %v1286 = vpop.f32.mrf.mxu0
      %v1287 = vadd.f32 0.0, %v1286
      %1288 = vmatmul.bf16.gmra.mxu0 %v1203
      %v1289 = vpop.f32.mrf.mxu0
      %v1290 = vadd.f32 0.0, %v1289
      %v1291 = vpop.f32.mrf.mxu0
      %v1292 = vadd.f32 0.0, %v1291
      %1293 = vmatmul.bf16.gmra.mxu0 %v1206
      %v1294 = vpop.f32.mrf.mxu0
      %v1295 = vadd.f32 0.0, %v1294
      %v1296 = vpop.f32.mrf.mxu0
      %v1297 = vadd.f32 0.0, %v1296
      %1298 = vmatmul.bf16.gmra.mxu0 %v1209
      %v1299 = vpop.f32.mrf.mxu0
      %v1300 = vadd.f32 0.0, %v1299
      %v1301 = vpop.f32.mrf.mxu0
      %v1302 = vadd.f32 0.0, %v1301
      %1303 = vmatmul.bf16.gmra.mxu0 %v1212
      %v1304 = vpop.f32.mrf.mxu0
      %v1305 = vadd.f32 0.0, %v1304
      %v1306 = vpop.f32.mrf.mxu0
      %v1307 = vadd.f32 0.0, %v1306
      %1308 = vmatmul.bf16.gmra.mxu0 %v1215
      %v1309 = vpop.f32.mrf.mxu0
      %v1310 = vadd.f32 0.0, %v1309
      %v1311 = vpop.f32.mrf.mxu0
      %v1312 = vadd.f32 0.0, %v1311
      %1313 = vmatmul.bf16.gmra.mxu0 %v1218
      %v1314 = vpop.f32.mrf.mxu0
      %v1315 = vadd.f32 0.0, %v1314
      %v1316 = vpop.f32.mrf.mxu0
      %v1317 = vadd.f32 0.0, %v1316
      %1318 = vmatmul.bf16.gmra.mxu0 %v1221
      %v1319 = vpop.f32.mrf.mxu0
      %v1320 = vadd.f32 0.0, %v1319
      %v1321 = vpop.f32.mrf.mxu0
      %v1322 = vadd.f32 0.0, %v1321
      %1323 = vmatmul.bf16.gmra.mxu0 %v1224
      %v1324 = vpop.f32.mrf.mxu0
      %v1325 = vadd.f32 0.0, %v1324
      %v1326 = vpop.f32.mrf.mxu0
      %v1327 = vadd.f32 0.0, %v1326
      %1328 = vmatmul.bf16.gmra.mxu0 %v1227
      %v1329 = vpop.f32.mrf.mxu0
      %v1330 = vadd.f32 0.0, %v1329
      %v1331 = vpop.f32.mrf.mxu0
      %v1332 = vadd.f32 0.0, %v1331
      %1333 = vmatmul.bf16.gmra.mxu0 %v1230
      %v1334 = vpop.f32.mrf.mxu0
      %v1335 = vadd.f32 0.0, %v1334
      %v1336 = vpop.f32.mrf.mxu0
      %v1337 = vadd.f32 0.0, %v1336
      %1338 = vmatmul.bf16.gmra.mxu0 %v1233
      %v1339 = vpop.f32.mrf.mxu0
      %v1340 = vadd.f32 0.0, %v1339
      %v1341 = vpop.f32.mrf.mxu0
      %1342 = vdwg.mxu0
      %v1343 = vadd.f32 %v1037, %v1245
      %v1344 = vadd.f32 %v1038, %v1247
      %v1345 = vadd.f32 %v1039, %v1250
      %v1346 = vadd.f32 %v1040, %v1252
      %v1347 = vadd.f32 %v1041, %v1255
      %v1348 = vadd.f32 %v1042, %v1257
      %v1349 = vadd.f32 %v1043, %v1260
      %v1350 = vadd.f32 %v1044, %v1262
      %v1351 = vadd.f32 %v1045, %v1265
      %v1352 = vadd.f32 %v1046, %v1267
      %v1353 = vadd.f32 %v1047, %v1270
      %v1354 = vadd.f32 %v1048, %v1272
      %v1355 = vadd.f32 %v1049, %v1275
      %v1356 = vadd.f32 %v1050, %v1277
      %v1357 = vadd.f32 %v1051, %v1280
      %v1358 = vadd.f32 %v1052, %v1282
      %v1359 = vadd.f32 %v1053, %v1285
      %v1360 = vadd.f32 %v1054, %v1287
      %v1361 = vadd.f32 %v1055, %v1290
      %v1362 = vadd.f32 %v1056, %v1292
      %v1363 = vadd.f32 %v1057, %v1295
      %v1364 = vadd.f32 %v1058, %v1297
      %v1365 = vadd.f32 %v1059, %v1300
      %v1366 = vadd.f32 %v1060, %v1302
      %v1367 = vadd.f32 %v1061, %v1305
      %v1368 = vadd.f32 %v1062, %v1307
      %v1369 = vadd.f32 %v1063, %v1310
      %v1370 = vadd.f32 %v1064, %v1312
      %v1371 = vadd.f32 %v1065, %v1315
      %v1372 = vadd.f32 %v1066, %v1317
      %v1373 = vadd.f32 %v1067, %v1320
      %v1374 = vadd.f32 %v1068, %v1322
      %v1375 = vadd.f32 %v1069, %v1325
      %v1376 = vadd.f32 %v1070, %v1327
      %v1377 = vadd.f32 %v1071, %v1330
      %v1378 = vadd.f32 %v1072, %v1332
      %v1379 = vadd.f32 %v1073, %v1335
      %v1380 = vadd.f32 %v1074, %v1337
      %v1381 = vadd.f32 %v1075, %v1340
      %1382 = vst [vmem:[%s235] sm:$0xff] %v1343
      %1383 = vst [vmem:[%s235 + $0x8] sm:$0xff] %v1344
      %1384 = vst [vmem:[%s235 + $0x10] sm:$0xff] %v1345
      %1385 = vst [vmem:[%s235 + $0x18] sm:$0xff] %v1346
      %1386 = vst [vmem:[%s235 + $0x20] sm:$0xff] %v1347
      %1387 = vst [vmem:[%s235 + $0x28] sm:$0xff] %v1348
      %1388 = vst [vmem:[%s235 + $0x30] sm:$0xff] %v1349
      %1389 = vst [vmem:[%s235 + $0x38] sm:$0xff] %v1350
      %1390 = vst [vmem:[%s235 + $0x40] sm:$0xff] %v1351
      %1391 = vst [vmem:[%s235 + $0x48] sm:$0xff] %v1352
      %1392 = vst [vmem:[%s235 + $0x50] sm:$0xff] %v1353
      %1393 = vst [vmem:[%s235 + $0x58] sm:$0xff] %v1354
      %1394 = vst [vmem:[%s235 + $0x60] sm:$0xff] %v1355
      %1395 = vst [vmem:[%s235 + $0x68] sm:$0xff] %v1356
      %1396 = vst [vmem:[%s235 + $0x70] sm:$0xff] %v1357
      %1397 = vst [vmem:[%s235 + $0x78] sm:$0xff] %v1358
      %1398 = vst [vmem:[%s235 + $0x80] sm:$0xff] %v1359
      %1399 = vst [vmem:[%s235 + $0x88] sm:$0xff] %v1360
      %1400 = vst [vmem:[%s235 + $0x90] sm:$0xff] %v1361
      %1401 = vst [vmem:[%s235 + $0x98] sm:$0xff] %v1362
      %1402 = vst [vmem:[%s235 + $0xa0] sm:$0xff] %v1363
      %1403 = vst [vmem:[%s235 + $0xa8] sm:$0xff] %v1364
      %1404 = vst [vmem:[%s235 + $0xb0] sm:$0xff] %v1365
      %1405 = vst [vmem:[%s235 + $0xb8] sm:$0xff] %v1366
      %1406 = vst [vmem:[%s235 + $0xc0] sm:$0xff] %v1367
      %1407 = vst [vmem:[%s235 + $0xc8] sm:$0xff] %v1368
      %1408 = vst [vmem:[%s235 + $0xd0] sm:$0xff] %v1369
      %1409 = vst [vmem:[%s235 + $0xd8] sm:$0xff] %v1370
      %1410 = vst [vmem:[%s235 + $0xe0] sm:$0xff] %v1371
      %1411 = vst [vmem:[%s235 + $0xe8] sm:$0xff] %v1372
      %1412 = vst [vmem:[%s235 + $0xf0] sm:$0xff] %v1373
      %1413 = vst [vmem:[%s235 + $0xf8] sm:$0xff] %v1374
      %1414 = vst [vmem:[%s235 + $0x100] sm:$0xff] %v1375
      %1415 = vst [vmem:[%s235 + $0x108] sm:$0xff] %v1376
      %1416 = vst [vmem:[%s235 + $0x110] sm:$0xff] %v1377
      %1417 = vst [vmem:[%s235 + $0x118] sm:$0xff] %v1378
      %1418 = vst [vmem:[%s235 + $0x120] sm:$0xff] %v1379
      %1419 = vst [vmem:[%s235 + $0x128] sm:$0xff] %v1380
      %1420 = vst [vmem:[%s235 + $0x130] sm:$0x3] %v1381
      %v1421 = vld [vmem:[%s2] sm:$0xff]
      %v1422 = vld [vmem:[%s2 + $0x8] sm:$0xff]
      %v1423 = vld [vmem:[%s2 + $0x10] sm:$0xff]
      %v1424 = vld [vmem:[%s2 + $0x18] sm:$0xff]
      %v1425 = vld [vmem:[%s2 + $0x20] sm:$0xff]
      %v1426 = vld [vmem:[%s2 + $0x28] sm:$0xff]
      %v1427 = vld [vmem:[%s2 + $0x30] sm:$0xff]
      %v1428 = vld [vmem:[%s2 + $0x38] sm:$0xff]
      %v1429 = vld [vmem:[%s2 + $0x40] sm:$0xff]
      %v1430 = vld [vmem:[%s2 + $0x48] sm:$0xff]
      %v1431 = vld [vmem:[%s2 + $0x50] sm:$0xff]
      %v1432 = vld [vmem:[%s2 + $0x58] sm:$0xff]
      %v1433 = vld [vmem:[%s2 + $0x60] sm:$0xff]
      %v1434 = vld [vmem:[%s2 + $0x68] sm:$0xff]
      %v1435 = vld [vmem:[%s2 + $0x70] sm:$0xff]
      %v1436 = vld [vmem:[%s2 + $0x78] sm:$0xff]
      %v1437 = vld [vmem:[%s2 + $0x80] sm:$0xff]
      %v1438 = vld [vmem:[%s2 + $0x88] sm:$0xff]
      %v1439 = vld [vmem:[%s2 + $0x90] sm:$0xff]
      %v1440 = vld [vmem:[%s2 + $0x98] sm:$0xff]
      %v1441 = vld [vmem:[%s2 + $0xa0] sm:$0xff]
      %v1442 = vld [vmem:[%s2 + $0xa8] sm:$0xff]
      %v1443 = vld [vmem:[%s2 + $0xb0] sm:$0xff]
      %v1444 = vld [vmem:[%s2 + $0xb8] sm:$0xff]
      %v1445 = vld [vmem:[%s2 + $0xc0] sm:$0xff]
      %v1446 = vld [vmem:[%s2 + $0xc8] sm:$0xff]
      %v1447 = vld [vmem:[%s2 + $0xd0] sm:$0xff]
      %v1448 = vld [vmem:[%s2 + $0xd8] sm:$0xff]
      %v1449 = vld [vmem:[%s2 + $0xe0] sm:$0xff]
      %v1450 = vld [vmem:[%s2 + $0xe8] sm:$0xff]
      %v1451 = vld [vmem:[%s2 + $0xf0] sm:$0xff]
      %v1452 = vld [vmem:[%s2 + $0xf8] sm:$0xff]
      %v1453 = vld [vmem:[%s2 + $0x100] sm:$0xff]
      %v1454 = vld [vmem:[%s2 + $0x108] sm:$0xff]
      %v1455 = vld [vmem:[%s2 + $0x110] sm:$0xff]
      %v1456 = vld [vmem:[%s2 + $0x118] sm:$0xff]
      %v1457 = vld [vmem:[%s2 + $0x120] sm:$0xff]
      %v1458 = vld [vmem:[%s2 + $0x128] sm:$0xff]
      %v1459 = vld [vmem:[%s2 + $0x130] sm:$0x3]
      %v1460 = vmul.f32 %v1343, %v1421
      %v1461 = vmul.f32 %v1344, %v1422
      %v1462 = vmul.f32 %v1345, %v1423
      %v1463 = vmul.f32 %v1346, %v1424
      %v1464 = vmul.f32 %v1347, %v1425
      %v1465 = vmul.f32 %v1348, %v1426
      %v1466 = vmul.f32 %v1349, %v1427
      %v1467 = vmul.f32 %v1350, %v1428
      %v1468 = vmul.f32 %v1351, %v1429
      %v1469 = vmul.f32 %v1352, %v1430
      %v1470 = vmul.f32 %v1353, %v1431
      %v1471 = vmul.f32 %v1354, %v1432
      %v1472 = vmul.f32 %v1355, %v1433
      %v1473 = vmul.f32 %v1356, %v1434
      %v1474 = vmul.f32 %v1357, %v1435
      %v1475 = vmul.f32 %v1358, %v1436
      %v1476 = vmul.f32 %v1359, %v1437
      %v1477 = vmul.f32 %v1360, %v1438
      %v1478 = vmul.f32 %v1361, %v1439
      %v1479 = vmul.f32 %v1362, %v1440
      %v1480 = vmul.f32 %v1363, %v1441
      %v1481 = vmul.f32 %v1364, %v1442
      %v1482 = vmul.f32 %v1365, %v1443
      %v1483 = vmul.f32 %v1366, %v1444
      %v1484 = vmul.f32 %v1367, %v1445
      %v1485 = vmul.f32 %v1368, %v1446
      %v1486 = vmul.f32 %v1369, %v1447
      %v1487 = vmul.f32 %v1370, %v1448
      %v1488 = vmul.f32 %v1371, %v1449
      %v1489 = vmul.f32 %v1372, %v1450
      %v1490 = vmul.f32 %v1373, %v1451
      %v1491 = vmul.f32 %v1374, %v1452
      %v1492 = vmul.f32 %v1375, %v1453
      %v1493 = vmul.f32 %v1376, %v1454
      %v1494 = vmul.f32 %v1377, %v1455
      %v1495 = vmul.f32 %v1378, %v1456
      %v1496 = vmul.f32 %v1379, %v1457
      %v1497 = vmul.f32 %v1380, %v1458
      %v1498 = vmul.f32 %v1381, %v1459
      %v1499 = vadd.f32 %v1460, %v1461
      %v1500 = vadd.f32 %v1499, %v1462
      %v1501 = vadd.f32 %v1500, %v1463
      %v1502 = vadd.f32 %v1501, %v1464
      %v1503 = vadd.f32 %v1502, %v1465
      %v1504 = vadd.f32 %v1503, %v1466
      %v1505 = vadd.f32 %v1504, %v1467
      %v1506 = vadd.f32 %v1505, %v1468
      %v1507 = vadd.f32 %v1506, %v1469
      %v1508 = vadd.f32 %v1507, %v1470
      %v1509 = vadd.f32 %v1508, %v1471
      %v1510 = vadd.f32 %v1509, %v1472
      %v1511 = vadd.f32 %v1510, %v1473
      %v1512 = vadd.f32 %v1511, %v1474
      %v1513 = vadd.f32 %v1512, %v1475
      %v1514 = vadd.f32 %v1513, %v1476
      %v1515 = vadd.f32 %v1514, %v1477
      %v1516 = vadd.f32 %v1515, %v1478
      %v1517 = vadd.f32 %v1516, %v1479
      %v1518 = vadd.f32 %v1517, %v1480
      %v1519 = vadd.f32 %v1518, %v1481
      %v1520 = vadd.f32 %v1519, %v1482
      %v1521 = vadd.f32 %v1520, %v1483
      %v1522 = vadd.f32 %v1521, %v1484
      %v1523 = vadd.f32 %v1522, %v1485
      %v1524 = vadd.f32 %v1523, %v1486
      %v1525 = vadd.f32 %v1524, %v1487
      %v1526 = vadd.f32 %v1525, %v1488
      %v1527 = vadd.f32 %v1526, %v1489
      %v1528 = vadd.f32 %v1527, %v1490
      %v1529 = vadd.f32 %v1528, %v1491
      %v1530 = vadd.f32 %v1529, %v1492
      %v1531 = vadd.f32 %v1530, %v1493
      %v1532 = vadd.f32 %v1531, %v1494
      %v1533 = vadd.f32 %v1532, %v1495
      %v1534 = vadd.f32 %v1533, %v1496
      %v1535 = vadd.f32 %v1534, %v1497
      %vm1536 = vcmask 1041408
      %v1537 = vsel %vm1536, %v1498, 0.0
      %v1538 = vadd.f32 %v1535, %v1537
      %v1539 = vrot.slane %v1538, 4
      %v1540 = vadd.f32 %v1538, %v1539
      %v1541 = vrot.slane %v1540, 2
      %v1542 = vadd.f32 %v1540, %v1541
      %v1543 = vrot.slane %v1542, 1
      %v1544 = vadd.f32 %v1542, %v1543
      %1545 = vst [vmem:[%s238] sm:$0x1] %v1544
      %v1546 = vmul.f32 %v1343, %v1343
      %v1547 = vmul.f32 %v1344, %v1344
      %v1548 = vmul.f32 %v1345, %v1345
      %v1549 = vmul.f32 %v1346, %v1346
      %v1550 = vmul.f32 %v1347, %v1347
      %v1551 = vmul.f32 %v1348, %v1348
      %v1552 = vmul.f32 %v1349, %v1349
      %v1553 = vmul.f32 %v1350, %v1350
      %v1554 = vmul.f32 %v1351, %v1351
      %v1555 = vmul.f32 %v1352, %v1352
      %v1556 = vmul.f32 %v1353, %v1353
      %v1557 = vmul.f32 %v1354, %v1354
      %v1558 = vmul.f32 %v1355, %v1355
      %v1559 = vmul.f32 %v1356, %v1356
      %v1560 = vmul.f32 %v1357, %v1357
      %v1561 = vmul.f32 %v1358, %v1358
      %v1562 = vmul.f32 %v1359, %v1359
      %v1563 = vmul.f32 %v1360, %v1360
      %v1564 = vmul.f32 %v1361, %v1361
      %v1565 = vmul.f32 %v1362, %v1362
      %v1566 = vmul.f32 %v1363, %v1363
      %v1567 = vmul.f32 %v1364, %v1364
      %v1568 = vmul.f32 %v1365, %v1365
      %v1569 = vmul.f32 %v1366, %v1366
      %v1570 = vmul.f32 %v1367, %v1367
      %v1571 = vmul.f32 %v1368, %v1368
      %v1572 = vmul.f32 %v1369, %v1369
      %v1573 = vmul.f32 %v1370, %v1370
      %v1574 = vmul.f32 %v1371, %v1371
      %v1575 = vmul.f32 %v1372, %v1372
      %v1576 = vmul.f32 %v1373, %v1373
      %v1577 = vmul.f32 %v1374, %v1374
      %v1578 = vmul.f32 %v1375, %v1375
      %v1579 = vmul.f32 %v1376, %v1376
      %v1580 = vmul.f32 %v1377, %v1377
      %v1581 = vmul.f32 %v1378, %v1378
      %v1582 = vmul.f32 %v1379, %v1379
      %v1583 = vmul.f32 %v1380, %v1380
      %v1584 = vmul.f32 %v1381, %v1381
      %v1585 = vmul.f32 %v1546, %v1421
      %v1586 = vmul.f32 %v1547, %v1422
      %v1587 = vmul.f32 %v1548, %v1423
      %v1588 = vmul.f32 %v1549, %v1424
      %v1589 = vmul.f32 %v1550, %v1425
      %v1590 = vmul.f32 %v1551, %v1426
      %v1591 = vmul.f32 %v1552, %v1427
      %v1592 = vmul.f32 %v1553, %v1428
      %v1593 = vmul.f32 %v1554, %v1429
      %v1594 = vmul.f32 %v1555, %v1430
      %v1595 = vmul.f32 %v1556, %v1431
      %v1596 = vmul.f32 %v1557, %v1432
      %v1597 = vmul.f32 %v1558, %v1433
      %v1598 = vmul.f32 %v1559, %v1434
      %v1599 = vmul.f32 %v1560, %v1435
      %v1600 = vmul.f32 %v1561, %v1436
      %v1601 = vmul.f32 %v1562, %v1437
      %v1602 = vmul.f32 %v1563, %v1438
      %v1603 = vmul.f32 %v1564, %v1439
      %v1604 = vmul.f32 %v1565, %v1440
      %v1605 = vmul.f32 %v1566, %v1441
      %v1606 = vmul.f32 %v1567, %v1442
      %v1607 = vmul.f32 %v1568, %v1443
      %v1608 = vmul.f32 %v1569, %v1444
      %v1609 = vmul.f32 %v1570, %v1445
      %v1610 = vmul.f32 %v1571, %v1446
      %v1611 = vmul.f32 %v1572, %v1447
      %v1612 = vmul.f32 %v1573, %v1448
      %v1613 = vmul.f32 %v1574, %v1449
      %v1614 = vmul.f32 %v1575, %v1450
      %v1615 = vmul.f32 %v1576, %v1451
      %v1616 = vmul.f32 %v1577, %v1452
      %v1617 = vmul.f32 %v1578, %v1453
      %v1618 = vmul.f32 %v1579, %v1454
      %v1619 = vmul.f32 %v1580, %v1455
      %v1620 = vmul.f32 %v1581, %v1456
      %v1621 = vmul.f32 %v1582, %v1457
      %v1622 = vmul.f32 %v1583, %v1458
      %v1623 = vmul.f32 %v1584, %v1459
      %v1624 = vadd.f32 %v1585, %v1586
      %v1625 = vadd.f32 %v1624, %v1587
      %v1626 = vadd.f32 %v1625, %v1588
      %v1627 = vadd.f32 %v1626, %v1589
      %v1628 = vadd.f32 %v1627, %v1590
      %v1629 = vadd.f32 %v1628, %v1591
      %v1630 = vadd.f32 %v1629, %v1592
      %v1631 = vadd.f32 %v1630, %v1593
      %v1632 = vadd.f32 %v1631, %v1594
      %v1633 = vadd.f32 %v1632, %v1595
      %v1634 = vadd.f32 %v1633, %v1596
      %v1635 = vadd.f32 %v1634, %v1597
      %v1636 = vadd.f32 %v1635, %v1598
      %v1637 = vadd.f32 %v1636, %v1599
      %v1638 = vadd.f32 %v1637, %v1600
      %v1639 = vadd.f32 %v1638, %v1601
      %v1640 = vadd.f32 %v1639, %v1602
      %v1641 = vadd.f32 %v1640, %v1603
      %v1642 = vadd.f32 %v1641, %v1604
      %v1643 = vadd.f32 %v1642, %v1605
      %v1644 = vadd.f32 %v1643, %v1606
      %v1645 = vadd.f32 %v1644, %v1607
      %v1646 = vadd.f32 %v1645, %v1608
      %v1647 = vadd.f32 %v1646, %v1609
      %v1648 = vadd.f32 %v1647, %v1610
      %v1649 = vadd.f32 %v1648, %v1611
      %v1650 = vadd.f32 %v1649, %v1612
      %v1651 = vadd.f32 %v1650, %v1613
      %v1652 = vadd.f32 %v1651, %v1614
      %v1653 = vadd.f32 %v1652, %v1615
      %v1654 = vadd.f32 %v1653, %v1616
      %v1655 = vadd.f32 %v1654, %v1617
      %v1656 = vadd.f32 %v1655, %v1618
      %v1657 = vadd.f32 %v1656, %v1619
      %v1658 = vadd.f32 %v1657, %v1620
      %v1659 = vadd.f32 %v1658, %v1621
      %v1660 = vadd.f32 %v1659, %v1622
      %v1661 = vsel %vm1536, %v1623, 0.0
      %v1662 = vadd.f32 %v1660, %v1661
      %v1663 = vrot.slane %v1662, 4
      %v1664 = vadd.f32 %v1662, %v1663
      %v1665 = vrot.slane %v1664, 2
      %v1666 = vadd.f32 %v1664, %v1665
      %v1667 = vrot.slane %v1666, 1
      %v1668 = vadd.f32 %v1666, %v1667
      %1669 = vst [vmem:[%s241] sm:$0x1] %v1668
      %p1670 = scmp.lt.s32.totalorder %s17, 1
      %s1671 = scalar_select %p1670, %s17, 1
      %s1672 = smul.addr %s1671, 39
      %s1673 = smul.addr %s1672, 8
      %s1674 = scalar_lea.vmem %s3, %s1673
      %p1675 = scmp.lt.s32.totalorder %s17, 1
      %s1676 = scalar_select %p1675, %s17, 1
      %s1677 = scalar_lea.vmem %s4, %s1676
      %p1678 = scmp.lt.s32.totalorder %s17, 1
      %s1679 = scalar_select %p1678, %s17, 1
      %s1680 = scalar_lea.vmem %s5, %s1679
      // Predicated region
      $region33: #{_lambda_.15} parent=31 // pred_check
        %p1681 = pneg %p103
      $region34: #{_lambda_.15} parent=31 // pred_check_branch
        %1683 = sbr.rel (%p1681) target = $region36
      $region35: #{_lambda_.15} parent=31 // pred_region
        _
      $region36: #{_lambda_.15} parent=31 // pred_fallthru
        _
      // Predicated region
      $region37: #{_lambda_.15} parent=31 // pred_check
        %p1684 = pneg %p129
      $region38: #{_lambda_.15} parent=31 // pred_check_branch
        %1686 = sbr.rel (%p1684) target = $region40
      $region39: #{_lambda_.15} parent=31 // pred_region
        _
      $region40: #{_lambda_.15} parent=31 // pred_fallthru
        _
      // Predicated region
      $region41: #{_lambda_.15} parent=31 // pred_check
        %p1687 = pneg %p155
      $region42: #{_lambda_.15} parent=31 // pred_check_branch
        %1689 = sbr.rel (%p1687) target = $region44
      $region43: #{_lambda_.15} parent=31 // pred_region
        _
      $region44: #{_lambda_.15} parent=31 // pred_fallthru
        _
    $region32: #{_lambda_.15} parent=5 // pred_fallthru
      _
    %p1690 = scmp.le.s32.totalorder 2, %s12
    // Predicated region
    $region45: #{_lambda_.15} parent=5 // pred_check
      %p1691 = pneg %p1690
    $region46: #{_lambda_.15} parent=5 // pred_check_branch
      %1693 = sbr.rel (%p1691) target = $region48
    $region47: #{_lambda_.15} parent=5 // pred_region
      %s1694 = ssub.s32 %s12, 2
      // Predicated region
      $region49: #{_lambda_.15} parent=47 // pred_check
        %p1695 = pneg %p109
      $region50: #{_lambda_.15} parent=47 // pred_check_branch
        %1697 = sbr.rel (%p1695) target = $region52
      $region51: #{_lambda_.15} parent=47 // pred_region
        %p1698 = scmp.lt.s32.totalorder %s18, 1
        %s1699 = scalar_select %p1698, %s18, 1
        %s1700 = smul.addr %s1699, 39
        %s1701 = smul.addr %s1700, 8
        %s1702 = scalar_lea.vmem %s3, %s1701
      $region52: #{_lambda_.15} parent=47 // pred_fallthru
        _
      // Predicated region
      $region53: #{_lambda_.15} parent=47 // pred_check
        %p1703 = pneg %p135
      $region54: #{_lambda_.15} parent=47 // pred_check_branch
        %1705 = sbr.rel (%p1703) target = $region56
      $region55: #{_lambda_.15} parent=47 // pred_region
        %p1706 = scmp.lt.s32.totalorder %s18, 1
        %s1707 = scalar_select %p1706, %s18, 1
        %s1708 = scalar_lea.vmem %s4, %s1707
      $region56: #{_lambda_.15} parent=47 // pred_fallthru
        _
      // Predicated region
      $region57: #{_lambda_.15} parent=47 // pred_check
        %p1709 = pneg %p161
      $region58: #{_lambda_.15} parent=47 // pred_check_branch
        %1711 = sbr.rel (%p1709) target = $region60
      $region59: #{_lambda_.15} parent=47 // pred_region
        %p1712 = scmp.lt.s32.totalorder %s18, 1
        %s1713 = scalar_select %p1712, %s18, 1
        %s1714 = scalar_lea.vmem %s5, %s1713
      $region60: #{_lambda_.15} parent=47 // pred_fallthru
        _
    $region48: #{_lambda_.15} parent=5 // pred_fallthru
      _
  $region6: #{_lambda_.15} parent=0 // loop_footer
    %s16 = sadd.s32 1, %s12
  $region7: #{_lambda_.15} parent=0 // loop_footer_branch
    %11 = sbr.rel target = $region3
  $region8: #{_lambda_.15} parent=0 // loop_exit
    _

// kernel: _lambda_.17
$region0: #{_lambda_.17}
  #allocation0 [shape = 'u32[]', space=smem, size = 0x4, offset = 0x4, fixed_abs, tag = 'smem constant byte address 0x4 - core index']
  #allocation1 [shape = 'u32[72,128]{1,0:T(1,128)}', space=vmem, size = 0x9000, scoped, tag = 'internal scratch']
  %s0 = inlined_call_operand.vmem [shape: f32[2,1190,8], index: 0, kind: input, shape index: {}]
  %s1 = inlined_call_operand.vmem [shape: bf16[4,8,128], index: 1, kind: input, shape index: {}]
  %s2 = inlined_call_operand.vmem [shape: f32[2,1122,128], index: 2, kind: output, shape index: {}]
  %s3 = sld [smem:[#allocation0]]
  $region41: #{_lambda_.17} parent=0
    _
  %s5 = ssub.s32 1, %s3
  %s6 = scalar_select 0, %s5, %s3
  loop: start=0, step=1, limit=4
  $region2: #{_lambda_.17} parent=0 // loop_pre_header
    _
  $region3: #{_lambda_.17} parent=0 // loop_header
    %s8 = sphi 0, %s12
    %p9 = scmp.ge.s32.totalorder %s8, 4
    %s18 = sphi 0, %s20
    %s21 = sphi 0, %s18
    %s22 = sphi 0, %s21
    %s38 = sphi 0, %s22
    %s42 = sphi 0, %s42
    %s44 = sphi 0, %s42
    %s45 = sphi 0, %s44
    %s59 = sphi 0, %s45
    %s65 = sphi 0, %s67
    %s68 = sphi 0, %s65
    %s69 = sphi 0, %s68
    %s85 = sphi 0, %s69
  $region4: #{_lambda_.17} parent=0 // loop_header_branch
    %11 = sbr.rel (%p9) target = $region8
  $region5: #{_lambda_.17} parent=0 // loop_body
    %s13 = ssub.s32 %s8, 1
    %s14 = ssub.s32 %s8, 2
    %s15 = sadd.s32 %s8, 1
    %s16 = ssub.s32 %s8, %s15
    %p17 = scmp.eq.s32.totalorder %s16, 0
    %s19 = sadd.s32 %s18, 1
    %s20 = scalar_select %p17, %s18, %s19
    %p23 = pneg %p17
    %p24 = scmp.eq.s32.totalorder %s8, 1
    %p25 = por %p23, %p24
    %p26 = scmp.ne.s32.totalorder %s18, %s21
    %p27 = scmp.eq.s32.totalorder %s8, 0
    %p28 = por %p26, %p27
    %p29 = scmp.ne.s32.totalorder %s18, %s21
    %p30 = scmp.eq.s32.totalorder %s13, 1
    %p31 = por %p29, %p30
    %p32 = scmp.ne.s32.totalorder %s21, %s22
    %p33 = scmp.eq.s32.totalorder %s13, 0
    %p34 = por %p32, %p33
    %p35 = scmp.ne.s32.totalorder %s21, %s22
    %p36 = scmp.eq.s32.totalorder %s14, 1
    %p37 = por %p35, %p36
    %p39 = scmp.ne.s32.totalorder %s22, %s38
    %p40 = scmp.eq.s32.totalorder %s14, 0
    %p41 = por %p39, %p40
    %s43 = sadd.s32 %s42, 1
    %p46 = scmp.eq.s32.totalorder %s8, 1
    %p47 = scmp.ne.s32.totalorder %s42, %s44
    %p48 = scmp.eq.s32.totalorder %s8, 0
    %p49 = por %p47, %p48
    %p50 = scmp.ne.s32.totalorder %s42, %s44
    %p51 = scmp.eq.s32.totalorder %s13, 1
    %p52 = por %p50, %p51
    %p53 = scmp.ne.s32.totalorder %s44, %s45
    %p54 = scmp.eq.s32.totalorder %s13, 0
    %p55 = por %p53, %p54
    %p56 = scmp.ne.s32.totalorder %s44, %s45
    %p57 = scmp.eq.s32.totalorder %s14, 1
    %p58 = por %p56, %p57
    %p60 = scmp.ne.s32.totalorder %s45, %s59
    %p61 = scmp.eq.s32.totalorder %s14, 0
    %p62 = por %p60, %p61
    %s63 = ssub.s32 %s8, %s15
    %p64 = scmp.eq.s32.totalorder %s63, 0
    %s66 = sadd.s32 %s65, 1
    %s67 = scalar_select %p64, %s65, %s66
    %p70 = pneg %p64
    %p71 = scmp.eq.s32.totalorder %s8, 1
    %p72 = por %p70, %p71
    %p73 = scmp.ne.s32.totalorder %s65, %s68
    %p74 = scmp.eq.s32.totalorder %s8, 0
    %p75 = por %p73, %p74
    %p76 = scmp.ne.s32.totalorder %s65, %s68
    %p77 = scmp.eq.s32.totalorder %s13, 1
    %p78 = por %p76, %p77
    %p79 = scmp.ne.s32.totalorder %s68, %s69
    %p80 = scmp.eq.s32.totalorder %s13, 0
    %p81 = por %p79, %p80
    %p82 = scmp.ne.s32.totalorder %s68, %s69
    %p83 = scmp.eq.s32.totalorder %s14, 1
    %p84 = por %p82, %p83
    %p86 = scmp.ne.s32.totalorder %s69, %s85
    %p87 = scmp.eq.s32.totalorder %s14, 0
    %p88 = por %p86, %p87
    %p89 = scmp.le.s32.totalorder 1, %s8
    %p90 = scmp.lt.s32.totalorder %s8, 3
    %p91 = pnand %p89, %p90
    %p92 = pneg %p91
    // Predicated region
    $region9: #{_lambda_.17} parent=5 // pred_check
      _
    $region10: #{_lambda_.17} parent=5 // pred_check_branch
      %94 = sbr.rel (%p91) target = $region12
    $region11: #{_lambda_.17} parent=5 // pred_region
      %s95 = ssub.s32 %s8, 1
      // Predicated region
      $region13: #{_lambda_.17} parent=11 // pred_check
        %p96 = pneg %p55
      $region14: #{_lambda_.17} parent=11 // pred_check_branch
        %98 = sbr.rel (%p96) target = $region16
      $region15: #{_lambda_.17} parent=11 // pred_region
        _
      $region16: #{_lambda_.17} parent=11 // pred_fallthru
        _
    $region12: #{_lambda_.17} parent=5 // pred_fallthru
      _
    %p99 = scmp.lt.s32.totalorder %s8, 2
    // Predicated region
    $region17: #{_lambda_.17} parent=5 // pred_check
      %p100 = pneg %p99
    $region18: #{_lambda_.17} parent=5 // pred_check_branch
      %102 = sbr.rel (%p100) target = $region20
    $region19: #{_lambda_.17} parent=5 // pred_region
      // Predicated region
      $region21: #{_lambda_.17} parent=19 // pred_check
        %p103 = pneg %p28
      $region22: #{_lambda_.17} parent=19 // pred_check_branch
        %105 = sbr.rel (%p103) target = $region24
      $region23: #{_lambda_.17} parent=19 // pred_region
        %p106 = scmp.lt.s32.totalorder %s8, 1
        %s107 = scalar_select %p106, %s8, 1
        %s108 = smul.addr %s107, 149
        %s109 = smul.addr %s108, 8
        %s110 = scalar_lea.vmem %s0, %s109
      $region24: #{_lambda_.17} parent=19 // pred_fallthru
        _
    $region20: #{_lambda_.17} parent=5 // pred_fallthru
      _
    %p111 = scmp.le.s32.totalorder 1, %s8
    %p112 = scmp.lt.s32.totalorder %s8, 3
    %p113 = pnand %p111, %p112
    %p114 = pneg %p113
    // Predicated region
    $region25: #{_lambda_.17} parent=5 // pred_check
      _
    $region26: #{_lambda_.17} parent=5 // pred_check_branch
      %116 = sbr.rel (%p113) target = $region28
    $region27: #{_lambda_.17} parent=5 // pred_region
      %s117 = ssub.s32 %s8, 1
      %p118 = scmp.lt.s32.totalorder %s13, 1
      %s119 = scalar_select %p118, %s13, 1
      %s120 = smul.addr %s119, 149
      %s121 = smul.addr %s120, 8
      %s122 = scalar_lea.vmem %s0, %s121
      %p123 = pneg %p34
      %p124 = pneg %p31
      %p125 = pneg %p55
      %p126 = pneg %p52
      %p127 = pneg %p81
      %p128 = pneg %p78
      %p129 = scmp.lt.s32.totalorder %s13, 1
      %s130 = scalar_select %p129, %s13, 1
      %s131 = smul.addr %s130, 141
      %s132 = smul.addr %s131, 8
      %s133 = scalar_lea.vmem %s2, %s132
      %p134 = scmp.lt.s32.totalorder %s13, 1
      %s135 = scalar_select %p134, %s13, 1
      %s136 = smul.addr %s135, 149
      %s137 = smul.addr %s136, 8
      %s138 = scalar_lea.vmem %s0, %s137
      %p139 = scmp.lt.s32.totalorder %s13, 1
      %s140 = scalar_select %p139, %s13, 1
      %s141 = smul.addr %s140, 141
      %s142 = smul.addr %s141, 8
      %s143 = scalar_lea.vmem %s2, %s142
      %v145 = vld [vmem:[%s138] sm:$0xff]
      %v146 = vld [vmem:[%s138 + $0x8] sm:$0xff]
      %v147 = vld [vmem:[%s138 + $0x10] sm:$0xff]
      %v148 = vld [vmem:[%s138 + $0x18] sm:$0xff]
      %v149 = vld [vmem:[%s138 + $0x20] sm:$0xff]
      %v150 = vld [vmem:[%s138 + $0x28] sm:$0xff]
      %v151 = vld [vmem:[%s138 + $0x30] sm:$0xff]
      %v152 = vld [vmem:[%s138 + $0x38] sm:$0xff]
      %v153 = vld [vmem:[%s138 + $0x40] sm:$0xff]
      %v154 = vld [vmem:[%s138 + $0x48] sm:$0xff]
      %v155 = vld [vmem:[%s138 + $0x50] sm:$0xff]
      %v156 = vld [vmem:[%s138 + $0x58] sm:$0xff]
      %v157 = vld [vmem:[%s138 + $0x60] sm:$0xff]
      %v158 = vld [vmem:[%s138 + $0x68] sm:$0xff]
      %v159 = vld [vmem:[%s138 + $0x70] sm:$0xff]
      %v160 = vld [vmem:[%s138 + $0x78] sm:$0xff]
      %v161 = vld [vmem:[%s138 + $0x80] sm:$0xff]
      %v162 = vld [vmem:[%s138 + $0x88] sm:$0xff]
      %v163 = vld [vmem:[%s138 + $0x90] sm:$0xff]
      %v164 = vld [vmem:[%s138 + $0x98] sm:$0xff]
      %v165 = vld [vmem:[%s138 + $0xa0] sm:$0xff]
      %v166 = vld [vmem:[%s138 + $0xa8] sm:$0xff]
      %v167 = vld [vmem:[%s138 + $0xb0] sm:$0xff]
      %v168 = vld [vmem:[%s138 + $0xb8] sm:$0xff]
      %v169 = vld [vmem:[%s138 + $0xc0] sm:$0xff]
      %v170 = vld [vmem:[%s138 + $0xc8] sm:$0xff]
      %v171 = vld [vmem:[%s138 + $0xd0] sm:$0xff]
      %v172 = vld [vmem:[%s138 + $0xd8] sm:$0xff]
      %v173 = vld [vmem:[%s138 + $0xe0] sm:$0xff]
      %v174 = vld [vmem:[%s138 + $0xe8] sm:$0xff]
      %v175 = vld [vmem:[%s138 + $0xf0] sm:$0xff]
      %v176 = vld [vmem:[%s138 + $0xf8] sm:$0xff]
      %v177 = vld [vmem:[%s138 + $0x100] sm:$0xff]
      %v178 = vld [vmem:[%s138 + $0x108] sm:$0xff]
      %v179 = vld [vmem:[%s138 + $0x110] sm:$0xff]
      %v180 = vld [vmem:[%s138 + $0x118] sm:$0xff]
      %v181 = vld [vmem:[%s138 + $0x120] sm:$0xff]
      %v182 = vld [vmem:[%s138 + $0x128] sm:$0xff]
      %v183 = vld [vmem:[%s138 + $0x130] sm:$0xff]
      %v184 = vld [vmem:[%s138 + $0x138] sm:$0xff]
      %v185 = vld [vmem:[%s138 + $0x140] sm:$0xff]
      %v186 = vld [vmem:[%s138 + $0x148] sm:$0xff]
      %v187 = vld [vmem:[%s138 + $0x150] sm:$0xff]
      %v188 = vld [vmem:[%s138 + $0x158] sm:$0xff]
      %v189 = vld [vmem:[%s138 + $0x160] sm:$0xff]
      %v190 = vld [vmem:[%s138 + $0x168] sm:$0xff]
      %v191 = vld [vmem:[%s138 + $0x170] sm:$0xff]
      %v192 = vld [vmem:[%s138 + $0x178] sm:$0xff]
      %v193 = vld [vmem:[%s138 + $0x180] sm:$0xff]
      %v194 = vld [vmem:[%s138 + $0x188] sm:$0xff]
      %v195 = vld [vmem:[%s138 + $0x190] sm:$0xff]
      %v196 = vld [vmem:[%s138 + $0x198] sm:$0xff]
      %v197 = vld [vmem:[%s138 + $0x1a0] sm:$0xff]
      %v198 = vld [vmem:[%s138 + $0x1a8] sm:$0xff]
      %v199 = vld [vmem:[%s138 + $0x1b0] sm:$0xff]
      %v200 = vld [vmem:[%s138 + $0x1b8] sm:$0xff]
      %v201 = vld [vmem:[%s138 + $0x1c0] sm:$0xff]
      %v202 = vld [vmem:[%s138 + $0x1c8] sm:$0xff]
      %v203 = vld [vmem:[%s138 + $0x1d0] sm:$0xff]
      %v204 = vld [vmem:[%s138 + $0x1d8] sm:$0xff]
      %v205 = vld [vmem:[%s138 + $0x1e0] sm:$0xff]
      %v206 = vld [vmem:[%s138 + $0x1e8] sm:$0xff]
      %v207 = vld [vmem:[%s138 + $0x1f0] sm:$0xff]
      %v208 = vld [vmem:[%s138 + $0x1f8] sm:$0xff]
      %v209 = vld [vmem:[%s138 + $0x200] sm:$0xff]
      %v210 = vld [vmem:[%s138 + $0x208] sm:$0xff]
      %v211 = vld [vmem:[%s138 + $0x210] sm:$0xff]
      %v212 = vld [vmem:[%s138 + $0x218] sm:$0xff]
      %v213 = vld [vmem:[%s138 + $0x220] sm:$0xff]
      %v214 = vld [vmem:[%s138 + $0x228] sm:$0xff]
      %v215 = vld [vmem:[%s138 + $0x230] sm:$0xff]
      %v216 = vld [vmem:[%s138 + $0x238] sm:$0xff]
      %v217 = vld [vmem:[%s138 + $0x240] sm:$0xff]
      %v218 = vld [vmem:[%s138 + $0x248] sm:$0xff]
      %v219 = vld [vmem:[%s138 + $0x250] sm:$0xff]
      %v220 = vld [vmem:[%s138 + $0x258] sm:$0xff]
      %v221 = vld [vmem:[%s138 + $0x260] sm:$0xff]
      %v222 = vld [vmem:[%s138 + $0x268] sm:$0xff]
      %v223 = vld [vmem:[%s138 + $0x270] sm:$0xff]
      %v224 = vld [vmem:[%s138 + $0x278] sm:$0xff]
      %v225 = vld [vmem:[%s138 + $0x280] sm:$0xff]
      %v226 = vld [vmem:[%s138 + $0x288] sm:$0xff]
      %v227 = vld [vmem:[%s138 + $0x290] sm:$0xff]
      %v228 = vld [vmem:[%s138 + $0x298] sm:$0xff]
      %v229 = vld [vmem:[%s138 + $0x2a0] sm:$0xff]
      %v230 = vld [vmem:[%s138 + $0x2a8] sm:$0xff]
      %v231 = vld [vmem:[%s138 + $0x2b0] sm:$0xff]
      %v232 = vld [vmem:[%s138 + $0x2b8] sm:$0xff]
      %v233 = vld [vmem:[%s138 + $0x2c0] sm:$0xff]
      %v234 = vld [vmem:[%s138 + $0x2c8] sm:$0xff]
      %v235 = vld [vmem:[%s138 + $0x2d0] sm:$0xff]
      %v236 = vld [vmem:[%s138 + $0x2d8] sm:$0xff]
      %v237 = vld [vmem:[%s138 + $0x2e0] sm:$0xff]
      %v238 = vld [vmem:[%s138 + $0x2e8] sm:$0xff]
      %v239 = vld [vmem:[%s138 + $0x2f0] sm:$0xff]
      %v240 = vld [vmem:[%s138 + $0x2f8] sm:$0xff]
      %v241 = vld [vmem:[%s138 + $0x300] sm:$0xff]
      %v242 = vld [vmem:[%s138 + $0x308] sm:$0xff]
      %v243 = vld [vmem:[%s138 + $0x310] sm:$0xff]
      %v244 = vld [vmem:[%s138 + $0x318] sm:$0xff]
      %v245 = vld [vmem:[%s138 + $0x320] sm:$0xff]
      %v246 = vld [vmem:[%s138 + $0x328] sm:$0xff]
      %v247 = vld [vmem:[%s138 + $0x330] sm:$0xff]
      %v248 = vld [vmem:[%s138 + $0x338] sm:$0xff]
      %v249 = vld [vmem:[%s138 + $0x340] sm:$0xff]
      %v250 = vld [vmem:[%s138 + $0x348] sm:$0xff]
      %v251 = vld [vmem:[%s138 + $0x350] sm:$0xff]
      %v252 = vld [vmem:[%s138 + $0x358] sm:$0xff]
      %v253 = vld [vmem:[%s138 + $0x360] sm:$0xff]
      %v254 = vld [vmem:[%s138 + $0x368] sm:$0xff]
      %v255 = vld [vmem:[%s138 + $0x370] sm:$0xff]
      %v256 = vld [vmem:[%s138 + $0x378] sm:$0xff]
      %v257 = vld [vmem:[%s138 + $0x380] sm:$0xff]
      %v258 = vld [vmem:[%s138 + $0x388] sm:$0xff]
      %v259 = vld [vmem:[%s138 + $0x390] sm:$0xff]
      %v260 = vld [vmem:[%s138 + $0x398] sm:$0xff]
      %v261 = vld [vmem:[%s138 + $0x3a0] sm:$0xff]
      %v262 = vld [vmem:[%s138 + $0x3a8] sm:$0xff]
      %v263 = vld [vmem:[%s138 + $0x3b0] sm:$0xff]
      %v264 = vld [vmem:[%s138 + $0x3b8] sm:$0xff]
      %v265 = vld [vmem:[%s138 + $0x3c0] sm:$0xff]
      %v266 = vld [vmem:[%s138 + $0x3c8] sm:$0xff]
      %v267 = vld [vmem:[%s138 + $0x3d0] sm:$0xff]
      %v268 = vld [vmem:[%s138 + $0x3d8] sm:$0xff]
      %v269 = vld [vmem:[%s138 + $0x3e0] sm:$0xff]
      %v270 = vld [vmem:[%s138 + $0x3e8] sm:$0xff]
      %v271 = vld [vmem:[%s138 + $0x3f0] sm:$0xff]
      %v272 = vld [vmem:[%s138 + $0x3f8] sm:$0xff]
      %v273 = vld [vmem:[%s138 + $0x400] sm:$0xff]
      %v274 = vld [vmem:[%s138 + $0x408] sm:$0xff]
      %v275 = vld [vmem:[%s138 + $0x410] sm:$0xff]
      %v276 = vld [vmem:[%s138 + $0x418] sm:$0xff]
      %v277 = vld [vmem:[%s138 + $0x420] sm:$0xff]
      %v278 = vld [vmem:[%s138 + $0x428] sm:$0xff]
      %v279 = vld [vmem:[%s138 + $0x430] sm:$0xff]
      %v280 = vld [vmem:[%s138 + $0x438] sm:$0xff]
      %v281 = vld [vmem:[%s138 + $0x440] sm:$0xff]
      %v282 = vld [vmem:[%s138 + $0x448] sm:$0xff]
      %v283 = vld [vmem:[%s138 + $0x450] sm:$0xff]
      %v284 = vld [vmem:[%s138 + $0x458] sm:$0xff]
      %v285 = vld [vmem:[%s138 + $0x460] sm:$0xff]
      %v286 = vld [vmem:[%s138 + $0x468] sm:$0xff]
      %v287 = vld [vmem:[%s138 + $0x470] sm:$0xff]
      %v288 = vld [vmem:[%s138 + $0x478] sm:$0xff]
      %v289 = vld [vmem:[%s138 + $0x480] sm:$0xff]
      %v290 = vpack.c.bf16 %v146, %v145
      %v291 = vpack.c.bf16 %v148, %v147
      %v292 = vpack.c.bf16 %v150, %v149
      %v293 = vpack.c.bf16 %v152, %v151
      %v294 = vpack.c.bf16 %v154, %v153
      %v295 = vpack.c.bf16 %v156, %v155
      %v296 = vpack.c.bf16 %v158, %v157
      %v297 = vpack.c.bf16 %v160, %v159
      %v298 = vpack.c.bf16 %v162, %v161
      %v299 = vpack.c.bf16 %v164, %v163
      %v300 = vpack.c.bf16 %v166, %v165
      %v301 = vpack.c.bf16 %v168, %v167
      %v302 = vpack.c.bf16 %v170, %v169
      %v303 = vpack.c.bf16 %v172, %v171
      %v304 = vpack.c.bf16 %v174, %v173
      %v305 = vpack.c.bf16 %v176, %v175
      %v306 = vpack.c.bf16 %v178, %v177
      %v307 = vpack.c.bf16 %v180, %v179
      %v308 = vpack.c.bf16 %v182, %v181
      %v309 = vpack.c.bf16 %v184, %v183
      %v310 = vpack.c.bf16 %v186, %v185
      %v311 = vpack.c.bf16 %v188, %v187
      %v312 = vpack.c.bf16 %v190, %v189
      %v313 = vpack.c.bf16 %v192, %v191
      %v314 = vpack.c.bf16 %v194, %v193
      %v315 = vpack.c.bf16 %v196, %v195
      %v316 = vpack.c.bf16 %v198, %v197
      %v317 = vpack.c.bf16 %v200, %v199
      %v318 = vpack.c.bf16 %v202, %v201
      %v319 = vpack.c.bf16 %v204, %v203
      %v320 = vpack.c.bf16 %v206, %v205
      %v321 = vpack.c.bf16 %v208, %v207
      %v322 = vpack.c.bf16 %v210, %v209
      %v323 = vpack.c.bf16 %v212, %v211
      %v324 = vpack.c.bf16 %v214, %v213
      %v325 = vpack.c.bf16 %v216, %v215
      %v326 = vpack.c.bf16 %v218, %v217
      %v327 = vpack.c.bf16 %v220, %v219
      %v328 = vpack.c.bf16 %v222, %v221
      %v329 = vpack.c.bf16 %v224, %v223
      %v330 = vpack.c.bf16 %v226, %v225
      %v331 = vpack.c.bf16 %v228, %v227
      %v332 = vpack.c.bf16 %v230, %v229
      %v333 = vpack.c.bf16 %v232, %v231
      %v334 = vpack.c.bf16 %v234, %v233
      %v335 = vpack.c.bf16 %v236, %v235
      %v336 = vpack.c.bf16 %v238, %v237
      %v337 = vpack.c.bf16 %v240, %v239
      %v338 = vpack.c.bf16 %v242, %v241
      %v339 = vpack.c.bf16 %v244, %v243
      %v340 = vpack.c.bf16 %v246, %v245
      %v341 = vpack.c.bf16 %v248, %v247
      %v342 = vpack.c.bf16 %v250, %v249
      %v343 = vpack.c.bf16 %v252, %v251
      %v344 = vpack.c.bf16 %v254, %v253
      %v345 = vpack.c.bf16 %v256, %v255
      %v346 = vpack.c.bf16 %v258, %v257
      %v347 = vpack.c.bf16 %v260, %v259
      %v348 = vpack.c.bf16 %v262, %v261
      %v349 = vpack.c.bf16 %v264, %v263
      %v350 = vpack.c.bf16 %v266, %v265
      %v351 = vpack.c.bf16 %v268, %v267
      %v352 = vpack.c.bf16 %v270, %v269
      %v353 = vpack.c.bf16 %v272, %v271
      %v354 = vpack.c.bf16 %v274, %v273
      %v355 = vpack.c.bf16 %v276, %v275
      %v356 = vpack.c.bf16 %v278, %v277
      %v357 = vpack.c.bf16 %v280, %v279
      %v358 = vpack.c.bf16 %v282, %v281
      %v359 = vpack.c.bf16 %v284, %v283
      %v360 = vpack.c.bf16 %v285, %v285
      %v361 = vld [vmem:[%s1] sm:$0xf]
      %s362 = scalar_lea.vmem %s1, 4
      %v363 = vld [vmem:[%s362] sm:$0xf]
      %vm364 = vsmask.f32 7424
      %v366 = vshrl.u32 %v290, 16
      %v368 = vshll.u32 %v290, 16
      %v370 = vrot.slane %v368, 1
      %v371 = vor.u32 %v366, %v370
      %v373 = vshll.u32 %v291, 16
      %v375 = vrot.slane %v373, 1
      %v376 = vsel %vm364, %v371, %v375
      %v377 = vshrl.u32 %v291, 16
      %v379 = vor.u32 %v377, %v375
      %v381 = vshll.u32 %v292, 16
      %v383 = vrot.slane %v381, 1
      %v384 = vsel %vm364, %v379, %v383
      %v385 = vshrl.u32 %v292, 16
      %v387 = vor.u32 %v385, %v383
      %v389 = vshll.u32 %v293, 16
      %v391 = vrot.slane %v389, 1
      %v392 = vsel %vm364, %v387, %v391
      %v393 = vshrl.u32 %v293, 16
      %v395 = vor.u32 %v393, %v391
      %v397 = vshll.u32 %v294, 16
      %v399 = vrot.slane %v397, 1
      %v400 = vsel %vm364, %v395, %v399
      %v401 = vshrl.u32 %v294, 16
      %v403 = vor.u32 %v401, %v399
      %v405 = vshll.u32 %v295, 16
      %v407 = vrot.slane %v405, 1
      %v408 = vsel %vm364, %v403, %v407
      %v409 = vshrl.u32 %v295, 16
      %v411 = vor.u32 %v409, %v407
      %v413 = vshll.u32 %v296, 16
      %v415 = vrot.slane %v413, 1
      %v416 = vsel %vm364, %v411, %v415
      %v417 = vshrl.u32 %v296, 16
      %v419 = vor.u32 %v417, %v415
      %v421 = vshll.u32 %v297, 16
      %v423 = vrot.slane %v421, 1
      %v424 = vsel %vm364, %v419, %v423
      %v425 = vshrl.u32 %v297, 16
      %v427 = vor.u32 %v425, %v423
      %v429 = vshll.u32 %v298, 16
      %v431 = vrot.slane %v429, 1
      %v432 = vsel %vm364, %v427, %v431
      %v433 = vshrl.u32 %v298, 16
      %v435 = vor.u32 %v433, %v431
      %v437 = vshll.u32 %v299, 16
      %v439 = vrot.slane %v437, 1
      %v440 = vsel %vm364, %v435, %v439
      %v441 = vshrl.u32 %v299, 16
      %v443 = vor.u32 %v441, %v439
      %v445 = vshll.u32 %v300, 16
      %v447 = vrot.slane %v445, 1
      %v448 = vsel %vm364, %v443, %v447
      %v449 = vshrl.u32 %v300, 16
      %v451 = vor.u32 %v449, %v447
      %v453 = vshll.u32 %v301, 16
      %v455 = vrot.slane %v453, 1
      %v456 = vsel %vm364, %v451, %v455
      %v457 = vshrl.u32 %v301, 16
      %v459 = vor.u32 %v457, %v455
      %v461 = vshll.u32 %v302, 16
      %v463 = vrot.slane %v461, 1
      %v464 = vsel %vm364, %v459, %v463
      %v465 = vshrl.u32 %v302, 16
      %v467 = vor.u32 %v465, %v463
      %v469 = vshll.u32 %v303, 16
      %v471 = vrot.slane %v469, 1
      %v472 = vsel %vm364, %v467, %v471
      %v473 = vshrl.u32 %v303, 16
      %v475 = vor.u32 %v473, %v471
      %v477 = vshll.u32 %v304, 16
      %v479 = vrot.slane %v477, 1
      %v480 = vsel %vm364, %v475, %v479
      %v481 = vshrl.u32 %v304, 16
      %v483 = vor.u32 %v481, %v479
      %v485 = vshll.u32 %v305, 16
      %v487 = vrot.slane %v485, 1
      %v488 = vsel %vm364, %v483, %v487
      %v489 = vshrl.u32 %v305, 16
      %v491 = vor.u32 %v489, %v487
      %v493 = vshll.u32 %v306, 16
      %v495 = vrot.slane %v493, 1
      %v496 = vsel %vm364, %v491, %v495
      %v497 = vshrl.u32 %v306, 16
      %v499 = vor.u32 %v497, %v495
      %v501 = vshll.u32 %v307, 16
      %v503 = vrot.slane %v501, 1
      %v504 = vsel %vm364, %v499, %v503
      %v505 = vshrl.u32 %v307, 16
      %v507 = vor.u32 %v505, %v503
      %v509 = vshll.u32 %v308, 16
      %v511 = vrot.slane %v509, 1
      %v512 = vsel %vm364, %v507, %v511
      %v513 = vshrl.u32 %v308, 16
      %v515 = vor.u32 %v513, %v511
      %v517 = vshll.u32 %v309, 16
      %v519 = vrot.slane %v517, 1
      %v520 = vsel %vm364, %v515, %v519
      %v521 = vshrl.u32 %v309, 16
      %v523 = vor.u32 %v521, %v519
      %v525 = vshll.u32 %v310, 16
      %v527 = vrot.slane %v525, 1
      %v528 = vsel %vm364, %v523, %v527
      %v529 = vshrl.u32 %v310, 16
      %v531 = vor.u32 %v529, %v527
      %v533 = vshll.u32 %v311, 16
      %v535 = vrot.slane %v533, 1
      %v536 = vsel %vm364, %v531, %v535
      %v537 = vshrl.u32 %v311, 16
      %v539 = vor.u32 %v537, %v535
      %v541 = vshll.u32 %v312, 16
      %v543 = vrot.slane %v541, 1
      %v544 = vsel %vm364, %v539, %v543
      %v545 = vshrl.u32 %v312, 16
      %v547 = vor.u32 %v545, %v543
      %v549 = vshll.u32 %v313, 16
      %v551 = vrot.slane %v549, 1
      %v552 = vsel %vm364, %v547, %v551
      %v553 = vshrl.u32 %v313, 16
      %v555 = vor.u32 %v553, %v551
      %v557 = vshll.u32 %v314, 16
      %v559 = vrot.slane %v557, 1
      %v560 = vsel %vm364, %v555, %v559
      %v561 = vshrl.u32 %v314, 16
      %v563 = vor.u32 %v561, %v559
      %v565 = vshll.u32 %v315, 16
      %v567 = vrot.slane %v565, 1
      %v568 = vsel %vm364, %v563, %v567
      %v569 = vshrl.u32 %v315, 16
      %v571 = vor.u32 %v569, %v567
      %v573 = vshll.u32 %v316, 16
      %v575 = vrot.slane %v573, 1
      %v576 = vsel %vm364, %v571, %v575
      %v577 = vshrl.u32 %v316, 16
      %v579 = vor.u32 %v577, %v575
      %v581 = vshll.u32 %v317, 16
      %v583 = vrot.slane %v581, 1
      %v584 = vsel %vm364, %v579, %v583
      %v585 = vshrl.u32 %v317, 16
      %v587 = vor.u32 %v585, %v583
      %v589 = vshll.u32 %v318, 16
      %v591 = vrot.slane %v589, 1
      %v592 = vsel %vm364, %v587, %v591
      %v593 = vshrl.u32 %v318, 16
      %v595 = vor.u32 %v593, %v591
      %v597 = vshll.u32 %v319, 16
      %v599 = vrot.slane %v597, 1
      %v600 = vsel %vm364, %v595, %v599
      %v601 = vshrl.u32 %v319, 16
      %v603 = vor.u32 %v601, %v599
      %v605 = vshll.u32 %v320, 16
      %v607 = vrot.slane %v605, 1
      %v608 = vsel %vm364, %v603, %v607
      %v609 = vshrl.u32 %v320, 16
      %v611 = vor.u32 %v609, %v607
      %v613 = vshll.u32 %v321, 16
      %v615 = vrot.slane %v613, 1
      %v616 = vsel %vm364, %v611, %v615
      %v617 = vshrl.u32 %v321, 16
      %v619 = vor.u32 %v617, %v615
      %v621 = vshll.u32 %v322, 16
      %v623 = vrot.slane %v621, 1
      %v624 = vsel %vm364, %v619, %v623
      %v625 = vshrl.u32 %v322, 16
      %v627 = vor.u32 %v625, %v623
      %v629 = vshll.u32 %v323, 16
      %v631 = vrot.slane %v629, 1
      %v632 = vsel %vm364, %v627, %v631
      %v633 = vshrl.u32 %v323, 16
      %v635 = vor.u32 %v633, %v631
      %v637 = vshll.u32 %v324, 16
      %v639 = vrot.slane %v637, 1
      %v640 = vsel %vm364, %v635, %v639
      %v641 = vshrl.u32 %v324, 16
      %v643 = vor.u32 %v641, %v639
      %v645 = vshll.u32 %v325, 16
      %v647 = vrot.slane %v645, 1
      %v648 = vsel %vm364, %v643, %v647
      %v649 = vshrl.u32 %v325, 16
      %v651 = vor.u32 %v649, %v647
      %v653 = vshll.u32 %v326, 16
      %v655 = vrot.slane %v653, 1
      %v656 = vsel %vm364, %v651, %v655
      %v657 = vshrl.u32 %v326, 16
      %v659 = vor.u32 %v657, %v655
      %v661 = vshll.u32 %v327, 16
      %v663 = vrot.slane %v661, 1
      %v664 = vsel %vm364, %v659, %v663
      %v665 = vshrl.u32 %v327, 16
      %v667 = vor.u32 %v665, %v663
      %v669 = vshll.u32 %v328, 16
      %v671 = vrot.slane %v669, 1
      %v672 = vsel %vm364, %v667, %v671
      %v673 = vshrl.u32 %v328, 16
      %v675 = vor.u32 %v673, %v671
      %v677 = vshll.u32 %v329, 16
      %v679 = vrot.slane %v677, 1
      %v680 = vsel %vm364, %v675, %v679
      %v681 = vshrl.u32 %v329, 16
      %v683 = vor.u32 %v681, %v679
      %v685 = vshll.u32 %v330, 16
      %v687 = vrot.slane %v685, 1
      %v688 = vsel %vm364, %v683, %v687
      %v689 = vshrl.u32 %v330, 16
      %v691 = vor.u32 %v689, %v687
      %v693 = vshll.u32 %v331, 16
      %v695 = vrot.slane %v693, 1
      %v696 = vsel %vm364, %v691, %v695
      %v697 = vshrl.u32 %v331, 16
      %v699 = vor.u32 %v697, %v695
      %v701 = vshll.u32 %v332, 16
      %v703 = vrot.slane %v701, 1
      %v704 = vsel %vm364, %v699, %v703
      %v705 = vshrl.u32 %v332, 16
      %v707 = vor.u32 %v705, %v703
      %v709 = vshll.u32 %v333, 16
      %v711 = vrot.slane %v709, 1
      %v712 = vsel %vm364, %v707, %v711
      %v713 = vshrl.u32 %v333, 16
      %v715 = vor.u32 %v713, %v711
      %v717 = vshll.u32 %v334, 16
      %v719 = vrot.slane %v717, 1
      %v720 = vsel %vm364, %v715, %v719
      %v721 = vshrl.u32 %v334, 16
      %v723 = vor.u32 %v721, %v719
      %v725 = vshll.u32 %v335, 16
      %v727 = vrot.slane %v725, 1
      %v728 = vsel %vm364, %v723, %v727
      %v729 = vshrl.u32 %v335, 16
      %v731 = vor.u32 %v729, %v727
      %v733 = vshll.u32 %v336, 16
      %v735 = vrot.slane %v733, 1
      %v736 = vsel %vm364, %v731, %v735
      %v737 = vshrl.u32 %v336, 16
      %v739 = vor.u32 %v737, %v735
      %v741 = vshll.u32 %v337, 16
      %v743 = vrot.slane %v741, 1
      %v744 = vsel %vm364, %v739, %v743
      %v745 = vshrl.u32 %v337, 16
      %v747 = vor.u32 %v745, %v743
      %v749 = vshll.u32 %v338, 16
      %v751 = vrot.slane %v749, 1
      %v752 = vsel %vm364, %v747, %v751
      %v753 = vshrl.u32 %v338, 16
      %v755 = vor.u32 %v753, %v751
      %v757 = vshll.u32 %v339, 16
      %v759 = vrot.slane %v757, 1
      %v760 = vsel %vm364, %v755, %v759
      %v761 = vshrl.u32 %v339, 16
      %v763 = vor.u32 %v761, %v759
      %v765 = vshll.u32 %v340, 16
      %v767 = vrot.slane %v765, 1
      %v768 = vsel %vm364, %v763, %v767
      %v769 = vshrl.u32 %v340, 16
      %v771 = vor.u32 %v769, %v767
      %v773 = vshll.u32 %v341, 16
      %v775 = vrot.slane %v773, 1
      %v776 = vsel %vm364, %v771, %v775
      %v777 = vshrl.u32 %v341, 16
      %v779 = vor.u32 %v777, %v775
      %v781 = vshll.u32 %v342, 16
      %v783 = vrot.slane %v781, 1
      %v784 = vsel %vm364, %v779, %v783
      %v785 = vshrl.u32 %v342, 16
      %v787 = vor.u32 %v785, %v783
      %v789 = vshll.u32 %v343, 16
      %v791 = vrot.slane %v789, 1
      %v792 = vsel %vm364, %v787, %v791
      %v793 = vshrl.u32 %v343, 16
      %v795 = vor.u32 %v793, %v791
      %v797 = vshll.u32 %v344, 16
      %v799 = vrot.slane %v797, 1
      %v800 = vsel %vm364, %v795, %v799
      %v801 = vshrl.u32 %v344, 16
      %v803 = vor.u32 %v801, %v799
      %v805 = vshll.u32 %v345, 16
      %v807 = vrot.slane %v805, 1
      %v808 = vsel %vm364, %v803, %v807
      %v809 = vshrl.u32 %v345, 16
      %v811 = vor.u32 %v809, %v807
      %v813 = vshll.u32 %v346, 16
      %v815 = vrot.slane %v813, 1
      %v816 = vsel %vm364, %v811, %v815
      %v817 = vshrl.u32 %v346, 16
      %v819 = vor.u32 %v817, %v815
      %v821 = vshll.u32 %v347, 16
      %v823 = vrot.slane %v821, 1
      %v824 = vsel %vm364, %v819, %v823
      %v825 = vshrl.u32 %v347, 16
      %v827 = vor.u32 %v825, %v823
      %v829 = vshll.u32 %v348, 16
      %v831 = vrot.slane %v829, 1
      %v832 = vsel %vm364, %v827, %v831
      %v833 = vshrl.u32 %v348, 16
      %v835 = vor.u32 %v833, %v831
      %v837 = vshll.u32 %v349, 16
      %v839 = vrot.slane %v837, 1
      %v840 = vsel %vm364, %v835, %v839
      %v841 = vshrl.u32 %v349, 16
      %v843 = vor.u32 %v841, %v839
      %v845 = vshll.u32 %v350, 16
      %v847 = vrot.slane %v845, 1
      %v848 = vsel %vm364, %v843, %v847
      %v849 = vshrl.u32 %v350, 16
      %v851 = vor.u32 %v849, %v847
      %v853 = vshll.u32 %v351, 16
      %v855 = vrot.slane %v853, 1
      %v856 = vsel %vm364, %v851, %v855
      %v857 = vshrl.u32 %v351, 16
      %v859 = vor.u32 %v857, %v855
      %v861 = vshll.u32 %v352, 16
      %v863 = vrot.slane %v861, 1
      %v864 = vsel %vm364, %v859, %v863
      %v865 = vshrl.u32 %v352, 16
      %v867 = vor.u32 %v865, %v863
      %v869 = vshll.u32 %v353, 16
      %v871 = vrot.slane %v869, 1
      %v872 = vsel %vm364, %v867, %v871
      %v873 = vshrl.u32 %v353, 16
      %v875 = vor.u32 %v873, %v871
      %v877 = vshll.u32 %v354, 16
      %v879 = vrot.slane %v877, 1
      %v880 = vsel %vm364, %v875, %v879
      %v881 = vshrl.u32 %v354, 16
      %v883 = vor.u32 %v881, %v879
      %v885 = vshll.u32 %v355, 16
      %v887 = vrot.slane %v885, 1
      %v888 = vsel %vm364, %v883, %v887
      %v889 = vshrl.u32 %v355, 16
      %v891 = vor.u32 %v889, %v887
      %v893 = vshll.u32 %v356, 16
      %v895 = vrot.slane %v893, 1
      %v896 = vsel %vm364, %v891, %v895
      %v897 = vshrl.u32 %v356, 16
      %v899 = vor.u32 %v897, %v895
      %v901 = vshll.u32 %v357, 16
      %v903 = vrot.slane %v901, 1
      %v904 = vsel %vm364, %v899, %v903
      %v905 = vshrl.u32 %v357, 16
      %v907 = vor.u32 %v905, %v903
      %v909 = vshll.u32 %v358, 16
      %v911 = vrot.slane %v909, 1
      %v912 = vsel %vm364, %v907, %v911
      %v913 = vshrl.u32 %v358, 16
      %v915 = vor.u32 %v913, %v911
      %v917 = vshll.u32 %v359, 16
      %v919 = vrot.slane %v917, 1
      %v920 = vsel %vm364, %v915, %v919
      %v921 = vshrl.u32 %v359, 16
      %v923 = vor.u32 %v921, %v919
      %v925 = vshll.u32 %v360, 16
      %v927 = vrot.slane %v925, 1
      %v928 = vsel %vm364, %v923, %v927
      %v929 = vshrl.u32 %v360, 16
      %v931 = vor.u32 %v929, %v927
      %vm932 = vcmask 64512
      %v934 = vsel %vm932, %v376, 0
      %v937 = vsel %vm932, %v384, 0
      %v940 = vsel %vm932, %v392, 0
      %v943 = vsel %vm932, %v400, 0
      %v946 = vsel %vm932, %v408, 0
      %v949 = vsel %vm932, %v416, 0
      %v952 = vsel %vm932, %v424, 0
      %v955 = vsel %vm932, %v432, 0
      %v958 = vsel %vm932, %v440, 0
      %v961 = vsel %vm932, %v448, 0
      %v964 = vsel %vm932, %v456, 0
      %v967 = vsel %vm932, %v464, 0
      %v970 = vsel %vm932, %v472, 0
      %v973 = vsel %vm932, %v480, 0
      %v976 = vsel %vm932, %v488, 0
      %v979 = vsel %vm932, %v496, 0
      %v982 = vsel %vm932, %v504, 0
      %v985 = vsel %vm932, %v512, 0
      %v988 = vsel %vm932, %v520, 0
      %v991 = vsel %vm932, %v528, 0
      %v994 = vsel %vm932, %v536, 0
      %v997 = vsel %vm932, %v544, 0
      %v1000 = vsel %vm932, %v552, 0
      %v1003 = vsel %vm932, %v560, 0
      %v1006 = vsel %vm932, %v568, 0
      %v1009 = vsel %vm932, %v576, 0
      %v1012 = vsel %vm932, %v584, 0
      %v1015 = vsel %vm932, %v592, 0
      %v1018 = vsel %vm932, %v600, 0
      %v1021 = vsel %vm932, %v608, 0
      %v1024 = vsel %vm932, %v616, 0
      %v1027 = vsel %vm932, %v624, 0
      %v1030 = vsel %vm932, %v632, 0
      %v1033 = vsel %vm932, %v640, 0
      %v1036 = vsel %vm932, %v648, 0
      %v1039 = vsel %vm932, %v656, 0
      %v1042 = vsel %vm932, %v664, 0
      %v1045 = vsel %vm932, %v672, 0
      %v1048 = vsel %vm932, %v680, 0
      %v1051 = vsel %vm932, %v688, 0
      %v1054 = vsel %vm932, %v696, 0
      %v1057 = vsel %vm932, %v704, 0
      %v1060 = vsel %vm932, %v712, 0
      %v1063 = vsel %vm932, %v720, 0
      %v1066 = vsel %vm932, %v728, 0
      %v1069 = vsel %vm932, %v736, 0
      %v1072 = vsel %vm932, %v744, 0
      %v1075 = vsel %vm932, %v752, 0
      %v1078 = vsel %vm932, %v760, 0
      %v1081 = vsel %vm932, %v768, 0
      %v1084 = vsel %vm932, %v776, 0
      %v1087 = vsel %vm932, %v784, 0
      %v1090 = vsel %vm932, %v792, 0
      %v1093 = vsel %vm932, %v800, 0
      %v1096 = vsel %vm932, %v808, 0
      %v1099 = vsel %vm932, %v816, 0
      %v1102 = vsel %vm932, %v824, 0
      %v1105 = vsel %vm932, %v832, 0
      %v1108 = vsel %vm932, %v840, 0
      %v1111 = vsel %vm932, %v848, 0
      %v1114 = vsel %vm932, %v856, 0
      %v1117 = vsel %vm932, %v864, 0
      %v1120 = vsel %vm932, %v872, 0
      %v1123 = vsel %vm932, %v880, 0
      %v1126 = vsel %vm932, %v888, 0
      %v1129 = vsel %vm932, %v896, 0
      %v1132 = vsel %vm932, %v904, 0
      %v1135 = vsel %vm932, %v912, 0
      %v1138 = vsel %vm932, %v920, 0
      %v1141 = vsel %vm932, %v928, 0
      %v1144 = vsel %vm932, %v931, 0
      %vm1146 = vcmask 1043456
      %v1148 = vsel %vm1146, %v363, 0
      %1150 = vmatpush.bf16.msra.mxu0 0
      %1151 = vmatpush.bf16.msra.mxu0 0
      %1152 = vmatpush.bf16.msra.mxu0 0
      %1153 = vmatpush.bf16.msra.mxu0 0
      %1154 = vmatpush.bf16.msra.mxu0 0
      %1155 = vmatpush.bf16.msra.mxu0 0
      %1156 = vmatpush.bf16.msra.mxu0 0
      %1157 = vmatpush.bf16.msra.mxu0 %v1148
      %1158 = vmatmul.bf16.gmra.mxu0 %v934
      %v1159 = vpop.f32.mrf.mxu0
      %v1160 = vadd.f32 0.0, %v1159
      %v1161 = vpop.f32.mrf.mxu0
      %v1162 = vadd.f32 0.0, %v1161
      %1163 = vmatmul.bf16.gmra.mxu0 %v937
      %v1164 = vpop.f32.mrf.mxu0
      %v1165 = vadd.f32 0.0, %v1164
      %v1166 = vpop.f32.mrf.mxu0
      %v1167 = vadd.f32 0.0, %v1166
      %1168 = vmatmul.bf16.gmra.mxu0 %v940
      %v1169 = vpop.f32.mrf.mxu0
      %v1170 = vadd.f32 0.0, %v1169
      %v1171 = vpop.f32.mrf.mxu0
      %v1172 = vadd.f32 0.0, %v1171
      %1173 = vmatmul.bf16.gmra.mxu0 %v943
      %v1174 = vpop.f32.mrf.mxu0
      %v1175 = vadd.f32 0.0, %v1174
      %v1176 = vpop.f32.mrf.mxu0
      %v1177 = vadd.f32 0.0, %v1176
      %1178 = vmatmul.bf16.gmra.mxu0 %v946
      %v1179 = vpop.f32.mrf.mxu0
      %v1180 = vadd.f32 0.0, %v1179
      %v1181 = vpop.f32.mrf.mxu0
      %v1182 = vadd.f32 0.0, %v1181
      %1183 = vmatmul.bf16.gmra.mxu0 %v949
      %v1184 = vpop.f32.mrf.mxu0
      %v1185 = vadd.f32 0.0, %v1184
      %v1186 = vpop.f32.mrf.mxu0
      %v1187 = vadd.f32 0.0, %v1186
      %1188 = vmatmul.bf16.gmra.mxu0 %v952
      %v1189 = vpop.f32.mrf.mxu0
      %v1190 = vadd.f32 0.0, %v1189
      %v1191 = vpop.f32.mrf.mxu0
      %v1192 = vadd.f32 0.0, %v1191
      %1193 = vmatmul.bf16.gmra.mxu0 %v955
      %v1194 = vpop.f32.mrf.mxu0
      %v1195 = vadd.f32 0.0, %v1194
      %v1196 = vpop.f32.mrf.mxu0
      %v1197 = vadd.f32 0.0, %v1196
      %1198 = vmatmul.bf16.gmra.mxu0 %v958
      %v1199 = vpop.f32.mrf.mxu0
      %v1200 = vadd.f32 0.0, %v1199
      %v1201 = vpop.f32.mrf.mxu0
      %v1202 = vadd.f32 0.0, %v1201
      %1203 = vmatmul.bf16.gmra.mxu0 %v961
      %v1204 = vpop.f32.mrf.mxu0
      %v1205 = vadd.f32 0.0, %v1204
      %v1206 = vpop.f32.mrf.mxu0
      %v1207 = vadd.f32 0.0, %v1206
      %1208 = vmatmul.bf16.gmra.mxu0 %v964
      %v1209 = vpop.f32.mrf.mxu0
      %v1210 = vadd.f32 0.0, %v1209
      %v1211 = vpop.f32.mrf.mxu0
      %v1212 = vadd.f32 0.0, %v1211
      %1213 = vmatmul.bf16.gmra.mxu0 %v967
      %v1214 = vpop.f32.mrf.mxu0
      %v1215 = vadd.f32 0.0, %v1214
      %v1216 = vpop.f32.mrf.mxu0
      %v1217 = vadd.f32 0.0, %v1216
      %1218 = vmatmul.bf16.gmra.mxu0 %v970
      %v1219 = vpop.f32.mrf.mxu0
      %v1220 = vadd.f32 0.0, %v1219
      %v1221 = vpop.f32.mrf.mxu0
      %v1222 = vadd.f32 0.0, %v1221
      %1223 = vmatmul.bf16.gmra.mxu0 %v973
      %v1224 = vpop.f32.mrf.mxu0
      %v1225 = vadd.f32 0.0, %v1224
      %v1226 = vpop.f32.mrf.mxu0
      %v1227 = vadd.f32 0.0, %v1226
      %1228 = vmatmul.bf16.gmra.mxu0 %v976
      %v1229 = vpop.f32.mrf.mxu0
      %v1230 = vadd.f32 0.0, %v1229
      %v1231 = vpop.f32.mrf.mxu0
      %v1232 = vadd.f32 0.0, %v1231
      %1233 = vmatmul.bf16.gmra.mxu0 %v979
      %v1234 = vpop.f32.mrf.mxu0
      %v1235 = vadd.f32 0.0, %v1234
      %v1236 = vpop.f32.mrf.mxu0
      %v1237 = vadd.f32 0.0, %v1236
      %1238 = vmatmul.bf16.gmra.mxu0 %v982
      %v1239 = vpop.f32.mrf.mxu0
      %v1240 = vadd.f32 0.0, %v1239
      %v1241 = vpop.f32.mrf.mxu0
      %v1242 = vadd.f32 0.0, %v1241
      %1243 = vmatmul.bf16.gmra.mxu0 %v985
      %v1244 = vpop.f32.mrf.mxu0
      %v1245 = vadd.f32 0.0, %v1244
      %v1246 = vpop.f32.mrf.mxu0
      %v1247 = vadd.f32 0.0, %v1246
      %1248 = vmatmul.bf16.gmra.mxu0 %v988
      %v1249 = vpop.f32.mrf.mxu0
      %v1250 = vadd.f32 0.0, %v1249
      %v1251 = vpop.f32.mrf.mxu0
      %v1252 = vadd.f32 0.0, %v1251
      %1253 = vmatmul.bf16.gmra.mxu0 %v991
      %v1254 = vpop.f32.mrf.mxu0
      %v1255 = vadd.f32 0.0, %v1254
      %v1256 = vpop.f32.mrf.mxu0
      %v1257 = vadd.f32 0.0, %v1256
      %1258 = vmatmul.bf16.gmra.mxu0 %v994
      %v1259 = vpop.f32.mrf.mxu0
      %v1260 = vadd.f32 0.0, %v1259
      %v1261 = vpop.f32.mrf.mxu0
      %v1262 = vadd.f32 0.0, %v1261
      %1263 = vmatmul.bf16.gmra.mxu0 %v997
      %v1264 = vpop.f32.mrf.mxu0
      %v1265 = vadd.f32 0.0, %v1264
      %v1266 = vpop.f32.mrf.mxu0
      %v1267 = vadd.f32 0.0, %v1266
      %1268 = vmatmul.bf16.gmra.mxu0 %v1000
      %v1269 = vpop.f32.mrf.mxu0
      %v1270 = vadd.f32 0.0, %v1269
      %v1271 = vpop.f32.mrf.mxu0
      %v1272 = vadd.f32 0.0, %v1271
      %1273 = vmatmul.bf16.gmra.mxu0 %v1003
      %v1274 = vpop.f32.mrf.mxu0
      %v1275 = vadd.f32 0.0, %v1274
      %v1276 = vpop.f32.mrf.mxu0
      %v1277 = vadd.f32 0.0, %v1276
      %1278 = vmatmul.bf16.gmra.mxu0 %v1006
      %v1279 = vpop.f32.mrf.mxu0
      %v1280 = vadd.f32 0.0, %v1279
      %v1281 = vpop.f32.mrf.mxu0
      %v1282 = vadd.f32 0.0, %v1281
      %1283 = vmatmul.bf16.gmra.mxu0 %v1009
      %v1284 = vpop.f32.mrf.mxu0
      %v1285 = vadd.f32 0.0, %v1284
      %v1286 = vpop.f32.mrf.mxu0
      %v1287 = vadd.f32 0.0, %v1286
      %1288 = vmatmul.bf16.gmra.mxu0 %v1012
      %v1289 = vpop.f32.mrf.mxu0
      %v1290 = vadd.f32 0.0, %v1289
      %v1291 = vpop.f32.mrf.mxu0
      %v1292 = vadd.f32 0.0, %v1291
      %1293 = vmatmul.bf16.gmra.mxu0 %v1015
      %v1294 = vpop.f32.mrf.mxu0
      %v1295 = vadd.f32 0.0, %v1294
      %v1296 = vpop.f32.mrf.mxu0
      %v1297 = vadd.f32 0.0, %v1296
      %1298 = vmatmul.bf16.gmra.mxu0 %v1018
      %v1299 = vpop.f32.mrf.mxu0
      %v1300 = vadd.f32 0.0, %v1299
      %v1301 = vpop.f32.mrf.mxu0
      %v1302 = vadd.f32 0.0, %v1301
      %1303 = vmatmul.bf16.gmra.mxu0 %v1021
      %v1304 = vpop.f32.mrf.mxu0
      %v1305 = vadd.f32 0.0, %v1304
      %v1306 = vpop.f32.mrf.mxu0
      %v1307 = vadd.f32 0.0, %v1306
      %1308 = vmatmul.bf16.gmra.mxu0 %v1024
      %v1309 = vpop.f32.mrf.mxu0
      %v1310 = vadd.f32 0.0, %v1309
      %v1311 = vpop.f32.mrf.mxu0
      %v1312 = vadd.f32 0.0, %v1311
      %1313 = vmatmul.bf16.gmra.mxu0 %v1027
      %v1314 = vpop.f32.mrf.mxu0
      %v1315 = vadd.f32 0.0, %v1314
      %v1316 = vpop.f32.mrf.mxu0
      %v1317 = vadd.f32 0.0, %v1316
      %1318 = vmatmul.bf16.gmra.mxu0 %v1030
      %v1319 = vpop.f32.mrf.mxu0
      %v1320 = vadd.f32 0.0, %v1319
      %v1321 = vpop.f32.mrf.mxu0
      %v1322 = vadd.f32 0.0, %v1321
      %1323 = vmatmul.bf16.gmra.mxu0 %v1033
      %v1324 = vpop.f32.mrf.mxu0
      %v1325 = vadd.f32 0.0, %v1324
      %v1326 = vpop.f32.mrf.mxu0
      %v1327 = vadd.f32 0.0, %v1326
      %1328 = vmatmul.bf16.gmra.mxu0 %v1036
      %v1329 = vpop.f32.mrf.mxu0
      %v1330 = vadd.f32 0.0, %v1329
      %v1331 = vpop.f32.mrf.mxu0
      %v1332 = vadd.f32 0.0, %v1331
      %1333 = vmatmul.bf16.gmra.mxu0 %v1039
      %v1334 = vpop.f32.mrf.mxu0
      %v1335 = vadd.f32 0.0, %v1334
      %v1336 = vpop.f32.mrf.mxu0
      %v1337 = vadd.f32 0.0, %v1336
      %1338 = vmatmul.bf16.gmra.mxu0 %v1042
      %v1339 = vpop.f32.mrf.mxu0
      %v1340 = vadd.f32 0.0, %v1339
      %v1341 = vpop.f32.mrf.mxu0
      %v1342 = vadd.f32 0.0, %v1341
      %1343 = vmatmul.bf16.gmra.mxu0 %v1045
      %v1344 = vpop.f32.mrf.mxu0
      %v1345 = vadd.f32 0.0, %v1344
      %v1346 = vpop.f32.mrf.mxu0
      %v1347 = vadd.f32 0.0, %v1346
      %1348 = vmatmul.bf16.gmra.mxu0 %v1048
      %v1349 = vpop.f32.mrf.mxu0
      %v1350 = vadd.f32 0.0, %v1349
      %v1351 = vpop.f32.mrf.mxu0
      %v1352 = vadd.f32 0.0, %v1351
      %1353 = vmatmul.bf16.gmra.mxu0 %v1051
      %v1354 = vpop.f32.mrf.mxu0
      %v1355 = vadd.f32 0.0, %v1354
      %v1356 = vpop.f32.mrf.mxu0
      %v1357 = vadd.f32 0.0, %v1356
      %1358 = vmatmul.bf16.gmra.mxu0 %v1054
      %v1359 = vpop.f32.mrf.mxu0
      %v1360 = vadd.f32 0.0, %v1359
      %v1361 = vpop.f32.mrf.mxu0
      %v1362 = vadd.f32 0.0, %v1361
      %1363 = vmatmul.bf16.gmra.mxu0 %v1057
      %v1364 = vpop.f32.mrf.mxu0
      %v1365 = vadd.f32 0.0, %v1364
      %v1366 = vpop.f32.mrf.mxu0
      %v1367 = vadd.f32 0.0, %v1366
      %1368 = vmatmul.bf16.gmra.mxu0 %v1060
      %v1369 = vpop.f32.mrf.mxu0
      %v1370 = vadd.f32 0.0, %v1369
      %v1371 = vpop.f32.mrf.mxu0
      %v1372 = vadd.f32 0.0, %v1371
      %1373 = vmatmul.bf16.gmra.mxu0 %v1063
      %v1374 = vpop.f32.mrf.mxu0
      %v1375 = vadd.f32 0.0, %v1374
      %v1376 = vpop.f32.mrf.mxu0
      %v1377 = vadd.f32 0.0, %v1376
      %1378 = vmatmul.bf16.gmra.mxu0 %v1066
      %v1379 = vpop.f32.mrf.mxu0
      %v1380 = vadd.f32 0.0, %v1379
      %v1381 = vpop.f32.mrf.mxu0
      %v1382 = vadd.f32 0.0, %v1381
      %1383 = vmatmul.bf16.gmra.mxu0 %v1069
      %v1384 = vpop.f32.mrf.mxu0
      %v1385 = vadd.f32 0.0, %v1384
      %v1386 = vpop.f32.mrf.mxu0
      %v1387 = vadd.f32 0.0, %v1386
      %1388 = vmatmul.bf16.gmra.mxu0 %v1072
      %v1389 = vpop.f32.mrf.mxu0
      %v1390 = vadd.f32 0.0, %v1389
      %v1391 = vpop.f32.mrf.mxu0
      %v1392 = vadd.f32 0.0, %v1391
      %1393 = vmatmul.bf16.gmra.mxu0 %v1075
      %v1394 = vpop.f32.mrf.mxu0
      %v1395 = vadd.f32 0.0, %v1394
      %v1396 = vpop.f32.mrf.mxu0
      %v1397 = vadd.f32 0.0, %v1396
      %1398 = vmatmul.bf16.gmra.mxu0 %v1078
      %v1399 = vpop.f32.mrf.mxu0
      %v1400 = vadd.f32 0.0, %v1399
      %v1401 = vpop.f32.mrf.mxu0
      %v1402 = vadd.f32 0.0, %v1401
      %1403 = vmatmul.bf16.gmra.mxu0 %v1081
      %v1404 = vpop.f32.mrf.mxu0
      %v1405 = vadd.f32 0.0, %v1404
      %v1406 = vpop.f32.mrf.mxu0
      %v1407 = vadd.f32 0.0, %v1406
      %1408 = vmatmul.bf16.gmra.mxu0 %v1084
      %v1409 = vpop.f32.mrf.mxu0
      %v1410 = vadd.f32 0.0, %v1409
      %v1411 = vpop.f32.mrf.mxu0
      %v1412 = vadd.f32 0.0, %v1411
      %1413 = vmatmul.bf16.gmra.mxu0 %v1087
      %v1414 = vpop.f32.mrf.mxu0
      %v1415 = vadd.f32 0.0, %v1414
      %v1416 = vpop.f32.mrf.mxu0
      %v1417 = vadd.f32 0.0, %v1416
      %1418 = vmatmul.bf16.gmra.mxu0 %v1090
      %v1419 = vpop.f32.mrf.mxu0
      %v1420 = vadd.f32 0.0, %v1419
      %v1421 = vpop.f32.mrf.mxu0
      %v1422 = vadd.f32 0.0, %v1421
      %1423 = vmatmul.bf16.gmra.mxu0 %v1093
      %v1424 = vpop.f32.mrf.mxu0
      %v1425 = vadd.f32 0.0, %v1424
      %v1426 = vpop.f32.mrf.mxu0
      %v1427 = vadd.f32 0.0, %v1426
      %1428 = vmatmul.bf16.gmra.mxu0 %v1096
      %v1429 = vpop.f32.mrf.mxu0
      %v1430 = vadd.f32 0.0, %v1429
      %v1431 = vpop.f32.mrf.mxu0
      %v1432 = vadd.f32 0.0, %v1431
      %1433 = vmatmul.bf16.gmra.mxu0 %v1099
      %v1434 = vpop.f32.mrf.mxu0
      %v1435 = vadd.f32 0.0, %v1434
      %v1436 = vpop.f32.mrf.mxu0
      %v1437 = vadd.f32 0.0, %v1436
      %1438 = vmatmul.bf16.gmra.mxu0 %v1102
      %v1439 = vpop.f32.mrf.mxu0
      %v1440 = vadd.f32 0.0, %v1439
      %v1441 = vpop.f32.mrf.mxu0
      %v1442 = vadd.f32 0.0, %v1441
      %1443 = vmatmul.bf16.gmra.mxu0 %v1105
      %v1444 = vpop.f32.mrf.mxu0
      %v1445 = vadd.f32 0.0, %v1444
      %v1446 = vpop.f32.mrf.mxu0
      %v1447 = vadd.f32 0.0, %v1446
      %1448 = vmatmul.bf16.gmra.mxu0 %v1108
      %v1449 = vpop.f32.mrf.mxu0
      %v1450 = vadd.f32 0.0, %v1449
      %v1451 = vpop.f32.mrf.mxu0
      %v1452 = vadd.f32 0.0, %v1451
      %1453 = vmatmul.bf16.gmra.mxu0 %v1111
      %v1454 = vpop.f32.mrf.mxu0
      %v1455 = vadd.f32 0.0, %v1454
      %v1456 = vpop.f32.mrf.mxu0
      %v1457 = vadd.f32 0.0, %v1456
      %1458 = vmatmul.bf16.gmra.mxu0 %v1114
      %v1459 = vpop.f32.mrf.mxu0
      %v1460 = vadd.f32 0.0, %v1459
      %v1461 = vpop.f32.mrf.mxu0
      %v1462 = vadd.f32 0.0, %v1461
      %1463 = vmatmul.bf16.gmra.mxu0 %v1117
      %v1464 = vpop.f32.mrf.mxu0
      %v1465 = vadd.f32 0.0, %v1464
      %v1466 = vpop.f32.mrf.mxu0
      %v1467 = vadd.f32 0.0, %v1466
      %1468 = vmatmul.bf16.gmra.mxu0 %v1120
      %v1469 = vpop.f32.mrf.mxu0
      %v1470 = vadd.f32 0.0, %v1469
      %v1471 = vpop.f32.mrf.mxu0
      %v1472 = vadd.f32 0.0, %v1471
      %1473 = vmatmul.bf16.gmra.mxu0 %v1123
      %v1474 = vpop.f32.mrf.mxu0
      %v1475 = vadd.f32 0.0, %v1474
      %v1476 = vpop.f32.mrf.mxu0
      %v1477 = vadd.f32 0.0, %v1476
      %1478 = vmatmul.bf16.gmra.mxu0 %v1126
      %v1479 = vpop.f32.mrf.mxu0
      %v1480 = vadd.f32 0.0, %v1479
      %v1481 = vpop.f32.mrf.mxu0
      %v1482 = vadd.f32 0.0, %v1481
      %1483 = vmatmul.bf16.gmra.mxu0 %v1129
      %v1484 = vpop.f32.mrf.mxu0
      %v1485 = vadd.f32 0.0, %v1484
      %v1486 = vpop.f32.mrf.mxu0
      %v1487 = vadd.f32 0.0, %v1486
      %1488 = vmatmul.bf16.gmra.mxu0 %v1132
      %v1489 = vpop.f32.mrf.mxu0
      %v1490 = vadd.f32 0.0, %v1489
      %v1491 = vpop.f32.mrf.mxu0
      %v1492 = vadd.f32 0.0, %v1491
      %1493 = vmatmul.bf16.gmra.mxu0 %v1135
      %v1494 = vpop.f32.mrf.mxu0
      %v1495 = vadd.f32 0.0, %v1494
      %v1496 = vpop.f32.mrf.mxu0
      %v1497 = vadd.f32 0.0, %v1496
      %1498 = vmatmul.bf16.gmra.mxu0 %v1138
      %v1499 = vpop.f32.mrf.mxu0
      %v1500 = vadd.f32 0.0, %v1499
      %v1501 = vpop.f32.mrf.mxu0
      %v1502 = vadd.f32 0.0, %v1501
      %1503 = vmatmul.bf16.gmra.mxu0 %v1141
      %v1504 = vpop.f32.mrf.mxu0
      %v1505 = vadd.f32 0.0, %v1504
      %v1506 = vpop.f32.mrf.mxu0
      %v1507 = vadd.f32 0.0, %v1506
      %1508 = vmatmul.bf16.gmra.mxu0 %v1144
      %v1509 = vpop.f32.mrf.mxu0
      %v1510 = vadd.f32 0.0, %v1509
      %v1511 = vpop.f32.mrf.mxu0
      %1512 = vdwg.mxu0
      %v1513 = vsel %vm932, %v290, 0
      %v1515 = vsel %vm932, %v291, 0
      %v1517 = vsel %vm932, %v292, 0
      %v1519 = vsel %vm932, %v293, 0
      %v1521 = vsel %vm932, %v294, 0
      %v1523 = vsel %vm932, %v295, 0
      %v1525 = vsel %vm932, %v296, 0
      %v1527 = vsel %vm932, %v297, 0
      %v1529 = vsel %vm932, %v298, 0
      %v1531 = vsel %vm932, %v299, 0
      %v1533 = vsel %vm932, %v300, 0
      %v1535 = vsel %vm932, %v301, 0
      %v1537 = vsel %vm932, %v302, 0
      %v1539 = vsel %vm932, %v303, 0
      %v1541 = vsel %vm932, %v304, 0
      %v1543 = vsel %vm932, %v305, 0
      %v1545 = vsel %vm932, %v306, 0
      %v1547 = vsel %vm932, %v307, 0
      %v1549 = vsel %vm932, %v308, 0
      %v1551 = vsel %vm932, %v309, 0
      %v1553 = vsel %vm932, %v310, 0
      %v1555 = vsel %vm932, %v311, 0
      %v1557 = vsel %vm932, %v312, 0
      %v1559 = vsel %vm932, %v313, 0
      %v1561 = vsel %vm932, %v314, 0
      %v1563 = vsel %vm932, %v315, 0
      %v1565 = vsel %vm932, %v316, 0
      %v1567 = vsel %vm932, %v317, 0
      %v1569 = vsel %vm932, %v318, 0
      %v1571 = vsel %vm932, %v319, 0
      %v1573 = vsel %vm932, %v320, 0
      %v1575 = vsel %vm932, %v321, 0
      %v1577 = vsel %vm932, %v322, 0
      %v1579 = vsel %vm932, %v323, 0
      %v1581 = vsel %vm932, %v324, 0
      %v1583 = vsel %vm932, %v325, 0
      %v1585 = vsel %vm932, %v326, 0
      %v1587 = vsel %vm932, %v327, 0
      %v1589 = vsel %vm932, %v328, 0
      %v1591 = vsel %vm932, %v329, 0
      %v1593 = vsel %vm932, %v330, 0
      %v1595 = vsel %vm932, %v331, 0
      %v1597 = vsel %vm932, %v332, 0
      %v1599 = vsel %vm932, %v333, 0
      %v1601 = vsel %vm932, %v334, 0
      %v1603 = vsel %vm932, %v335, 0
      %v1605 = vsel %vm932, %v336, 0
      %v1607 = vsel %vm932, %v337, 0
      %v1609 = vsel %vm932, %v338, 0
      %v1611 = vsel %vm932, %v339, 0
      %v1613 = vsel %vm932, %v340, 0
      %v1615 = vsel %vm932, %v341, 0
      %v1617 = vsel %vm932, %v342, 0
      %v1619 = vsel %vm932, %v343, 0
      %v1621 = vsel %vm932, %v344, 0
      %v1623 = vsel %vm932, %v345, 0
      %v1625 = vsel %vm932, %v346, 0
      %v1627 = vsel %vm932, %v347, 0
      %v1629 = vsel %vm932, %v348, 0
      %v1631 = vsel %vm932, %v349, 0
      %v1633 = vsel %vm932, %v350, 0
      %v1635 = vsel %vm932, %v351, 0
      %v1637 = vsel %vm932, %v352, 0
      %v1639 = vsel %vm932, %v353, 0
      %v1641 = vsel %vm932, %v354, 0
      %v1643 = vsel %vm932, %v355, 0
      %v1645 = vsel %vm932, %v356, 0
      %v1647 = vsel %vm932, %v357, 0
      %v1649 = vsel %vm932, %v358, 0
      %v1651 = vsel %vm932, %v359, 0
      %v1653 = vsel %vm932, %v360, 0
      %v1656 = vsel %vm1146, %v361, 0
      %1658 = vmatpush.bf16.msra.mxu0 0
      %1659 = vmatpush.bf16.msra.mxu0 0
      %1660 = vmatpush.bf16.msra.mxu0 0
      %1661 = vmatpush.bf16.msra.mxu0 0
      %1662 = vmatpush.bf16.msra.mxu0 0
      %1663 = vmatpush.bf16.msra.mxu0 0
      %1664 = vmatpush.bf16.msra.mxu0 0
      %1665 = vmatpush.bf16.msra.mxu0 %v1656
      %1666 = vmatmul.bf16.gmra.mxu0 %v1513
      %v1667 = vpop.f32.mrf.mxu0
      %v1668 = vadd.f32 %v1160, %v1667
      %v1669 = vpop.f32.mrf.mxu0
      %v1670 = vadd.f32 %v1162, %v1669
      %1671 = vmatmul.bf16.gmra.mxu0 %v1515
      %v1672 = vpop.f32.mrf.mxu0
      %v1673 = vadd.f32 %v1165, %v1672
      %v1674 = vpop.f32.mrf.mxu0
      %v1675 = vadd.f32 %v1167, %v1674
      %1676 = vmatmul.bf16.gmra.mxu0 %v1517
      %v1677 = vpop.f32.mrf.mxu0
      %v1678 = vadd.f32 %v1170, %v1677
      %v1679 = vpop.f32.mrf.mxu0
      %v1680 = vadd.f32 %v1172, %v1679
      %1681 = vmatmul.bf16.gmra.mxu0 %v1519
      %v1682 = vpop.f32.mrf.mxu0
      %v1683 = vadd.f32 %v1175, %v1682
      %v1684 = vpop.f32.mrf.mxu0
      %v1685 = vadd.f32 %v1177, %v1684
      %1686 = vmatmul.bf16.gmra.mxu0 %v1521
      %v1687 = vpop.f32.mrf.mxu0
      %v1688 = vadd.f32 %v1180, %v1687
      %v1689 = vpop.f32.mrf.mxu0
      %v1690 = vadd.f32 %v1182, %v1689
      %1691 = vmatmul.bf16.gmra.mxu0 %v1523
      %v1692 = vpop.f32.mrf.mxu0
      %v1693 = vadd.f32 %v1185, %v1692
      %v1694 = vpop.f32.mrf.mxu0
      %v1695 = vadd.f32 %v1187, %v1694
      %1696 = vmatmul.bf16.gmra.mxu0 %v1525
      %v1697 = vpop.f32.mrf.mxu0
      %v1698 = vadd.f32 %v1190, %v1697
      %v1699 = vpop.f32.mrf.mxu0
      %v1700 = vadd.f32 %v1192, %v1699
      %1701 = vmatmul.bf16.gmra.mxu0 %v1527
      %v1702 = vpop.f32.mrf.mxu0
      %v1703 = vadd.f32 %v1195, %v1702
      %v1704 = vpop.f32.mrf.mxu0
      %v1705 = vadd.f32 %v1197, %v1704
      %1706 = vmatmul.bf16.gmra.mxu0 %v1529
      %v1707 = vpop.f32.mrf.mxu0
      %v1708 = vadd.f32 %v1200, %v1707
      %v1709 = vpop.f32.mrf.mxu0
      %v1710 = vadd.f32 %v1202, %v1709
      %1711 = vmatmul.bf16.gmra.mxu0 %v1531
      %v1712 = vpop.f32.mrf.mxu0
      %v1713 = vadd.f32 %v1205, %v1712
      %v1714 = vpop.f32.mrf.mxu0
      %v1715 = vadd.f32 %v1207, %v1714
      %1716 = vmatmul.bf16.gmra.mxu0 %v1533
      %v1717 = vpop.f32.mrf.mxu0
      %v1718 = vadd.f32 %v1210, %v1717
      %v1719 = vpop.f32.mrf.mxu0
      %v1720 = vadd.f32 %v1212, %v1719
      %1721 = vmatmul.bf16.gmra.mxu0 %v1535
      %v1722 = vpop.f32.mrf.mxu0
      %v1723 = vadd.f32 %v1215, %v1722
      %v1724 = vpop.f32.mrf.mxu0
      %v1725 = vadd.f32 %v1217, %v1724
      %1726 = vmatmul.bf16.gmra.mxu0 %v1537
      %v1727 = vpop.f32.mrf.mxu0
      %v1728 = vadd.f32 %v1220, %v1727
      %v1729 = vpop.f32.mrf.mxu0
      %v1730 = vadd.f32 %v1222, %v1729
      %1731 = vmatmul.bf16.gmra.mxu0 %v1539
      %v1732 = vpop.f32.mrf.mxu0
      %v1733 = vadd.f32 %v1225, %v1732
      %v1734 = vpop.f32.mrf.mxu0
      %v1735 = vadd.f32 %v1227, %v1734
      %1736 = vmatmul.bf16.gmra.mxu0 %v1541
      %v1737 = vpop.f32.mrf.mxu0
      %v1738 = vadd.f32 %v1230, %v1737
      %v1739 = vpop.f32.mrf.mxu0
      %v1740 = vadd.f32 %v1232, %v1739
      %1741 = vmatmul.bf16.gmra.mxu0 %v1543
      %v1742 = vpop.f32.mrf.mxu0
      %v1743 = vadd.f32 %v1235, %v1742
      %v1744 = vpop.f32.mrf.mxu0
      %v1745 = vadd.f32 %v1237, %v1744
      %1746 = vmatmul.bf16.gmra.mxu0 %v1545
      %v1747 = vpop.f32.mrf.mxu0
      %v1748 = vadd.f32 %v1240, %v1747
      %v1749 = vpop.f32.mrf.mxu0
      %v1750 = vadd.f32 %v1242, %v1749
      %1751 = vmatmul.bf16.gmra.mxu0 %v1547
      %v1752 = vpop.f32.mrf.mxu0
      %v1753 = vadd.f32 %v1245, %v1752
      %v1754 = vpop.f32.mrf.mxu0
      %v1755 = vadd.f32 %v1247, %v1754
      %1756 = vmatmul.bf16.gmra.mxu0 %v1549
      %v1757 = vpop.f32.mrf.mxu0
      %v1758 = vadd.f32 %v1250, %v1757
      %v1759 = vpop.f32.mrf.mxu0
      %v1760 = vadd.f32 %v1252, %v1759
      %1761 = vmatmul.bf16.gmra.mxu0 %v1551
      %v1762 = vpop.f32.mrf.mxu0
      %v1763 = vadd.f32 %v1255, %v1762
      %v1764 = vpop.f32.mrf.mxu0
      %v1765 = vadd.f32 %v1257, %v1764
      %1766 = vmatmul.bf16.gmra.mxu0 %v1553
      %v1767 = vpop.f32.mrf.mxu0
      %v1768 = vadd.f32 %v1260, %v1767
      %v1769 = vpop.f32.mrf.mxu0
      %v1770 = vadd.f32 %v1262, %v1769
      %1771 = vmatmul.bf16.gmra.mxu0 %v1555
      %v1772 = vpop.f32.mrf.mxu0
      %v1773 = vadd.f32 %v1265, %v1772
      %v1774 = vpop.f32.mrf.mxu0
      %v1775 = vadd.f32 %v1267, %v1774
      %1776 = vmatmul.bf16.gmra.mxu0 %v1557
      %v1777 = vpop.f32.mrf.mxu0
      %v1778 = vadd.f32 %v1270, %v1777
      %v1779 = vpop.f32.mrf.mxu0
      %v1780 = vadd.f32 %v1272, %v1779
      %1781 = vmatmul.bf16.gmra.mxu0 %v1559
      %v1782 = vpop.f32.mrf.mxu0
      %v1783 = vadd.f32 %v1275, %v1782
      %v1784 = vpop.f32.mrf.mxu0
      %v1785 = vadd.f32 %v1277, %v1784
      %1786 = vmatmul.bf16.gmra.mxu0 %v1561
      %v1787 = vpop.f32.mrf.mxu0
      %v1788 = vadd.f32 %v1280, %v1787
      %v1789 = vpop.f32.mrf.mxu0
      %v1790 = vadd.f32 %v1282, %v1789
      %1791 = vmatmul.bf16.gmra.mxu0 %v1563
      %v1792 = vpop.f32.mrf.mxu0
      %v1793 = vadd.f32 %v1285, %v1792
      %v1794 = vpop.f32.mrf.mxu0
      %v1795 = vadd.f32 %v1287, %v1794
      %1796 = vmatmul.bf16.gmra.mxu0 %v1565
      %v1797 = vpop.f32.mrf.mxu0
      %v1798 = vadd.f32 %v1290, %v1797
      %v1799 = vpop.f32.mrf.mxu0
      %v1800 = vadd.f32 %v1292, %v1799
      %1801 = vmatmul.bf16.gmra.mxu0 %v1567
      %v1802 = vpop.f32.mrf.mxu0
      %v1803 = vadd.f32 %v1295, %v1802
      %v1804 = vpop.f32.mrf.mxu0
      %v1805 = vadd.f32 %v1297, %v1804
      %1806 = vmatmul.bf16.gmra.mxu0 %v1569
      %v1807 = vpop.f32.mrf.mxu0
      %v1808 = vadd.f32 %v1300, %v1807
      %v1809 = vpop.f32.mrf.mxu0
      %v1810 = vadd.f32 %v1302, %v1809
      %1811 = vmatmul.bf16.gmra.mxu0 %v1571
      %v1812 = vpop.f32.mrf.mxu0
      %v1813 = vadd.f32 %v1305, %v1812
      %v1814 = vpop.f32.mrf.mxu0
      %v1815 = vadd.f32 %v1307, %v1814
      %1816 = vmatmul.bf16.gmra.mxu0 %v1573
      %v1817 = vpop.f32.mrf.mxu0
      %v1818 = vadd.f32 %v1310, %v1817
      %v1819 = vpop.f32.mrf.mxu0
      %v1820 = vadd.f32 %v1312, %v1819
      %1821 = vmatmul.bf16.gmra.mxu0 %v1575
      %v1822 = vpop.f32.mrf.mxu0
      %v1823 = vadd.f32 %v1315, %v1822
      %v1824 = vpop.f32.mrf.mxu0
      %v1825 = vadd.f32 %v1317, %v1824
      %1826 = vmatmul.bf16.gmra.mxu0 %v1577
      %v1827 = vpop.f32.mrf.mxu0
      %v1828 = vadd.f32 %v1320, %v1827
      %v1829 = vpop.f32.mrf.mxu0
      %v1830 = vadd.f32 %v1322, %v1829
      %1831 = vmatmul.bf16.gmra.mxu0 %v1579
      %v1832 = vpop.f32.mrf.mxu0
      %v1833 = vadd.f32 %v1325, %v1832
      %v1834 = vpop.f32.mrf.mxu0
      %v1835 = vadd.f32 %v1327, %v1834
      %1836 = vmatmul.bf16.gmra.mxu0 %v1581
      %v1837 = vpop.f32.mrf.mxu0
      %v1838 = vadd.f32 %v1330, %v1837
      %v1839 = vpop.f32.mrf.mxu0
      %v1840 = vadd.f32 %v1332, %v1839
      %1841 = vmatmul.bf16.gmra.mxu0 %v1583
      %v1842 = vpop.f32.mrf.mxu0
      %v1843 = vadd.f32 %v1335, %v1842
      %v1844 = vpop.f32.mrf.mxu0
      %v1845 = vadd.f32 %v1337, %v1844
      %1846 = vmatmul.bf16.gmra.mxu0 %v1585
      %v1847 = vpop.f32.mrf.mxu0
      %v1848 = vadd.f32 %v1340, %v1847
      %v1849 = vpop.f32.mrf.mxu0
      %v1850 = vadd.f32 %v1342, %v1849
      %1851 = vmatmul.bf16.gmra.mxu0 %v1587
      %v1852 = vpop.f32.mrf.mxu0
      %v1853 = vadd.f32 %v1345, %v1852
      %v1854 = vpop.f32.mrf.mxu0
      %v1855 = vadd.f32 %v1347, %v1854
      %1856 = vmatmul.bf16.gmra.mxu0 %v1589
      %v1857 = vpop.f32.mrf.mxu0
      %v1858 = vadd.f32 %v1350, %v1857
      %v1859 = vpop.f32.mrf.mxu0
      %v1860 = vadd.f32 %v1352, %v1859
      %1861 = vmatmul.bf16.gmra.mxu0 %v1591
      %v1862 = vpop.f32.mrf.mxu0
      %v1863 = vadd.f32 %v1355, %v1862
      %v1864 = vpop.f32.mrf.mxu0
      %v1865 = vadd.f32 %v1357, %v1864
      %1866 = vmatmul.bf16.gmra.mxu0 %v1593
      %v1867 = vpop.f32.mrf.mxu0
      %v1868 = vadd.f32 %v1360, %v1867
      %v1869 = vpop.f32.mrf.mxu0
      %v1870 = vadd.f32 %v1362, %v1869
      %1871 = vmatmul.bf16.gmra.mxu0 %v1595
      %v1872 = vpop.f32.mrf.mxu0
      %v1873 = vadd.f32 %v1365, %v1872
      %v1874 = vpop.f32.mrf.mxu0
      %v1875 = vadd.f32 %v1367, %v1874
      %1876 = vmatmul.bf16.gmra.mxu0 %v1597
      %v1877 = vpop.f32.mrf.mxu0
      %v1878 = vadd.f32 %v1370, %v1877
      %v1879 = vpop.f32.mrf.mxu0
      %v1880 = vadd.f32 %v1372, %v1879
      %1881 = vmatmul.bf16.gmra.mxu0 %v1599
      %v1882 = vpop.f32.mrf.mxu0
      %v1883 = vadd.f32 %v1375, %v1882
      %v1884 = vpop.f32.mrf.mxu0
      %v1885 = vadd.f32 %v1377, %v1884
      %1886 = vmatmul.bf16.gmra.mxu0 %v1601
      %v1887 = vpop.f32.mrf.mxu0
      %v1888 = vadd.f32 %v1380, %v1887
      %v1889 = vpop.f32.mrf.mxu0
      %v1890 = vadd.f32 %v1382, %v1889
      %1891 = vmatmul.bf16.gmra.mxu0 %v1603
      %v1892 = vpop.f32.mrf.mxu0
      %v1893 = vadd.f32 %v1385, %v1892
      %v1894 = vpop.f32.mrf.mxu0
      %v1895 = vadd.f32 %v1387, %v1894
      %1896 = vmatmul.bf16.gmra.mxu0 %v1605
      %v1897 = vpop.f32.mrf.mxu0
      %v1898 = vadd.f32 %v1390, %v1897
      %v1899 = vpop.f32.mrf.mxu0
      %v1900 = vadd.f32 %v1392, %v1899
      %1901 = vmatmul.bf16.gmra.mxu0 %v1607
      %v1902 = vpop.f32.mrf.mxu0
      %v1903 = vadd.f32 %v1395, %v1902
      %v1904 = vpop.f32.mrf.mxu0
      %v1905 = vadd.f32 %v1397, %v1904
      %1906 = vmatmul.bf16.gmra.mxu0 %v1609
      %v1907 = vpop.f32.mrf.mxu0
      %v1908 = vadd.f32 %v1400, %v1907
      %v1909 = vpop.f32.mrf.mxu0
      %v1910 = vadd.f32 %v1402, %v1909
      %1911 = vmatmul.bf16.gmra.mxu0 %v1611
      %v1912 = vpop.f32.mrf.mxu0
      %v1913 = vadd.f32 %v1405, %v1912
      %v1914 = vpop.f32.mrf.mxu0
      %v1915 = vadd.f32 %v1407, %v1914
      %1916 = vmatmul.bf16.gmra.mxu0 %v1613
      %v1917 = vpop.f32.mrf.mxu0
      %v1918 = vadd.f32 %v1410, %v1917
      %v1919 = vpop.f32.mrf.mxu0
      %v1920 = vadd.f32 %v1412, %v1919
      %1921 = vmatmul.bf16.gmra.mxu0 %v1615
      %v1922 = vpop.f32.mrf.mxu0
      %v1923 = vadd.f32 %v1415, %v1922
      %v1924 = vpop.f32.mrf.mxu0
      %v1925 = vadd.f32 %v1417, %v1924
      %1926 = vmatmul.bf16.gmra.mxu0 %v1617
      %v1927 = vpop.f32.mrf.mxu0
      %v1928 = vadd.f32 %v1420, %v1927
      %v1929 = vpop.f32.mrf.mxu0
      %v1930 = vadd.f32 %v1422, %v1929
      %1931 = vmatmul.bf16.gmra.mxu0 %v1619
      %v1932 = vpop.f32.mrf.mxu0
      %v1933 = vadd.f32 %v1425, %v1932
      %v1934 = vpop.f32.mrf.mxu0
      %v1935 = vadd.f32 %v1427, %v1934
      %1936 = vmatmul.bf16.gmra.mxu0 %v1621
      %v1937 = vpop.f32.mrf.mxu0
      %v1938 = vadd.f32 %v1430, %v1937
      %v1939 = vpop.f32.mrf.mxu0
      %v1940 = vadd.f32 %v1432, %v1939
      %1941 = vmatmul.bf16.gmra.mxu0 %v1623
      %v1942 = vpop.f32.mrf.mxu0
      %v1943 = vadd.f32 %v1435, %v1942
      %v1944 = vpop.f32.mrf.mxu0
      %v1945 = vadd.f32 %v1437, %v1944
      %1946 = vmatmul.bf16.gmra.mxu0 %v1625
      %v1947 = vpop.f32.mrf.mxu0
      %v1948 = vadd.f32 %v1440, %v1947
      %v1949 = vpop.f32.mrf.mxu0
      %v1950 = vadd.f32 %v1442, %v1949
      %1951 = vmatmul.bf16.gmra.mxu0 %v1627
      %v1952 = vpop.f32.mrf.mxu0
      %v1953 = vadd.f32 %v1445, %v1952
      %v1954 = vpop.f32.mrf.mxu0
      %v1955 = vadd.f32 %v1447, %v1954
      %1956 = vmatmul.bf16.gmra.mxu0 %v1629
      %v1957 = vpop.f32.mrf.mxu0
      %v1958 = vadd.f32 %v1450, %v1957
      %v1959 = vpop.f32.mrf.mxu0
      %v1960 = vadd.f32 %v1452, %v1959
      %1961 = vmatmul.bf16.gmra.mxu0 %v1631
      %v1962 = vpop.f32.mrf.mxu0
      %v1963 = vadd.f32 %v1455, %v1962
      %v1964 = vpop.f32.mrf.mxu0
      %v1965 = vadd.f32 %v1457, %v1964
      %1966 = vmatmul.bf16.gmra.mxu0 %v1633
      %v1967 = vpop.f32.mrf.mxu0
      %v1968 = vadd.f32 %v1460, %v1967
      %v1969 = vpop.f32.mrf.mxu0
      %v1970 = vadd.f32 %v1462, %v1969
      %1971 = vmatmul.bf16.gmra.mxu0 %v1635
      %v1972 = vpop.f32.mrf.mxu0
      %v1973 = vadd.f32 %v1465, %v1972
      %v1974 = vpop.f32.mrf.mxu0
      %v1975 = vadd.f32 %v1467, %v1974
      %1976 = vmatmul.bf16.gmra.mxu0 %v1637
      %v1977 = vpop.f32.mrf.mxu0
      %v1978 = vadd.f32 %v1470, %v1977
      %v1979 = vpop.f32.mrf.mxu0
      %v1980 = vadd.f32 %v1472, %v1979
      %1981 = vmatmul.bf16.gmra.mxu0 %v1639
      %v1982 = vpop.f32.mrf.mxu0
      %v1983 = vadd.f32 %v1475, %v1982
      %v1984 = vpop.f32.mrf.mxu0
      %v1985 = vadd.f32 %v1477, %v1984
      %1986 = vmatmul.bf16.gmra.mxu0 %v1641
      %v1987 = vpop.f32.mrf.mxu0
      %v1988 = vadd.f32 %v1480, %v1987
      %v1989 = vpop.f32.mrf.mxu0
      %v1990 = vadd.f32 %v1482, %v1989
      %1991 = vmatmul.bf16.gmra.mxu0 %v1643
      %v1992 = vpop.f32.mrf.mxu0
      %v1993 = vadd.f32 %v1485, %v1992
      %v1994 = vpop.f32.mrf.mxu0
      %v1995 = vadd.f32 %v1487, %v1994
      %1996 = vmatmul.bf16.gmra.mxu0 %v1645
      %v1997 = vpop.f32.mrf.mxu0
      %v1998 = vadd.f32 %v1490, %v1997
      %v1999 = vpop.f32.mrf.mxu0
      %v2000 = vadd.f32 %v1492, %v1999
      %2001 = vmatmul.bf16.gmra.mxu0 %v1647
      %v2002 = vpop.f32.mrf.mxu0
      %v2003 = vadd.f32 %v1495, %v2002
      %v2004 = vpop.f32.mrf.mxu0
      %v2005 = vadd.f32 %v1497, %v2004
      %2006 = vmatmul.bf16.gmra.mxu0 %v1649
      %v2007 = vpop.f32.mrf.mxu0
      %v2008 = vadd.f32 %v1500, %v2007
      %v2009 = vpop.f32.mrf.mxu0
      %v2010 = vadd.f32 %v1502, %v2009
      %2011 = vmatmul.bf16.gmra.mxu0 %v1651
      %v2012 = vpop.f32.mrf.mxu0
      %v2013 = vadd.f32 %v1505, %v2012
      %v2014 = vpop.f32.mrf.mxu0
      %v2015 = vadd.f32 %v1507, %v2014
      %2016 = vmatmul.bf16.gmra.mxu0 %v1653
      %v2017 = vpop.f32.mrf.mxu0
      %v2018 = vadd.f32 %v1510, %v2017
      %v2019 = vpop.f32.mrf.mxu0
      %2020 = vdwg.mxu0
      %v2021 = vpack.c.bf16 %v286, %v285
      %v2022 = vpack.c.bf16 %v288, %v287
      %v2023 = vpack.c.bf16 %v289, %v289
      %s2024 = scalar_lea.vmem %s1, 8
      %v2025 = vld [vmem:[%s2024] sm:$0xf]
      %vm2097 = vcmask 1046528
      %v2098 = vrot.slane %v292, 1
      %v2099 = vrot.slane %v293, 1
      %v2100 = vsel %vm2097, %v2098, %v2099
      %v2101 = vrot.slane %v294, 1
      %v2102 = vsel %vm2097, %v2099, %v2101
      %v2103 = vrot.slane %v295, 1
      %v2104 = vsel %vm2097, %v2101, %v2103
      %v2105 = vrot.slane %v296, 1
      %v2106 = vsel %vm2097, %v2103, %v2105
      %v2107 = vrot.slane %v297, 1
      %v2108 = vsel %vm2097, %v2105, %v2107
      %v2109 = vrot.slane %v298, 1
      %v2110 = vsel %vm2097, %v2107, %v2109
      %v2111 = vrot.slane %v299, 1
      %v2112 = vsel %vm2097, %v2109, %v2111
      %v2113 = vrot.slane %v300, 1
      %v2114 = vsel %vm2097, %v2111, %v2113
      %v2115 = vrot.slane %v301, 1
      %v2116 = vsel %vm2097, %v2113, %v2115
      %v2117 = vrot.slane %v302, 1
      %v2118 = vsel %vm2097, %v2115, %v2117
      %v2119 = vrot.slane %v303, 1
      %v2120 = vsel %vm2097, %v2117, %v2119
      %v2121 = vrot.slane %v304, 1
      %v2122 = vsel %vm2097, %v2119, %v2121
      %v2123 = vrot.slane %v305, 1
      %v2124 = vsel %vm2097, %v2121, %v2123
      %v2125 = vrot.slane %v306, 1
      %v2126 = vsel %vm2097, %v2123, %v2125
      %v2127 = vrot.slane %v307, 1
      %v2128 = vsel %vm2097, %v2125, %v2127
      %v2129 = vrot.slane %v308, 1
      %v2130 = vsel %vm2097, %v2127, %v2129
      %v2131 = vrot.slane %v309, 1
      %v2132 = vsel %vm2097, %v2129, %v2131
      %v2133 = vrot.slane %v310, 1
      %v2134 = vsel %vm2097, %v2131, %v2133
      %v2135 = vrot.slane %v311, 1
      %v2136 = vsel %vm2097, %v2133, %v2135
      %v2137 = vrot.slane %v312, 1
      %v2138 = vsel %vm2097, %v2135, %v2137
      %v2139 = vrot.slane %v313, 1
      %v2140 = vsel %vm2097, %v2137, %v2139
      %v2141 = vrot.slane %v314, 1
      %v2142 = vsel %vm2097, %v2139, %v2141
      %v2143 = vrot.slane %v315, 1
      %v2144 = vsel %vm2097, %v2141, %v2143
      %v2145 = vrot.slane %v316, 1
      %v2146 = vsel %vm2097, %v2143, %v2145
      %v2147 = vrot.slane %v317, 1
      %v2148 = vsel %vm2097, %v2145, %v2147
      %v2149 = vrot.slane %v318, 1
      %v2150 = vsel %vm2097, %v2147, %v2149
      %v2151 = vrot.slane %v319, 1
      %v2152 = vsel %vm2097, %v2149, %v2151
      %v2153 = vrot.slane %v320, 1
      %v2154 = vsel %vm2097, %v2151, %v2153
      %v2155 = vrot.slane %v321, 1
      %v2156 = vsel %vm2097, %v2153, %v2155
      %v2157 = vrot.slane %v322, 1
      %v2158 = vsel %vm2097, %v2155, %v2157
      %v2159 = vrot.slane %v323, 1
      %v2160 = vsel %vm2097, %v2157, %v2159
      %v2161 = vrot.slane %v324, 1
      %v2162 = vsel %vm2097, %v2159, %v2161
      %v2163 = vrot.slane %v325, 1
      %v2164 = vsel %vm2097, %v2161, %v2163
      %v2165 = vrot.slane %v326, 1
      %v2166 = vsel %vm2097, %v2163, %v2165
      %v2167 = vrot.slane %v327, 1
      %v2168 = vsel %vm2097, %v2165, %v2167
      %v2169 = vrot.slane %v328, 1
      %v2170 = vsel %vm2097, %v2167, %v2169
      %v2171 = vrot.slane %v329, 1
      %v2172 = vsel %vm2097, %v2169, %v2171
      %v2173 = vrot.slane %v330, 1
      %v2174 = vsel %vm2097, %v2171, %v2173
      %v2175 = vrot.slane %v331, 1
      %v2176 = vsel %vm2097, %v2173, %v2175
      %v2177 = vrot.slane %v332, 1
      %v2178 = vsel %vm2097, %v2175, %v2177
      %v2179 = vrot.slane %v333, 1
      %v2180 = vsel %vm2097, %v2177, %v2179
      %v2181 = vrot.slane %v334, 1
      %v2182 = vsel %vm2097, %v2179, %v2181
      %v2183 = vrot.slane %v335, 1
      %v2184 = vsel %vm2097, %v2181, %v2183
      %v2185 = vrot.slane %v336, 1
      %v2186 = vsel %vm2097, %v2183, %v2185
      %v2187 = vrot.slane %v337, 1
      %v2188 = vsel %vm2097, %v2185, %v2187
      %v2189 = vrot.slane %v338, 1
      %v2190 = vsel %vm2097, %v2187, %v2189
      %v2191 = vrot.slane %v339, 1
      %v2192 = vsel %vm2097, %v2189, %v2191
      %v2193 = vrot.slane %v340, 1
      %v2194 = vsel %vm2097, %v2191, %v2193
      %v2195 = vrot.slane %v341, 1
      %v2196 = vsel %vm2097, %v2193, %v2195
      %v2197 = vrot.slane %v342, 1
      %v2198 = vsel %vm2097, %v2195, %v2197
      %v2199 = vrot.slane %v343, 1
      %v2200 = vsel %vm2097, %v2197, %v2199
      %v2201 = vrot.slane %v344, 1
      %v2202 = vsel %vm2097, %v2199, %v2201
      %v2203 = vrot.slane %v345, 1
      %v2204 = vsel %vm2097, %v2201, %v2203
      %v2205 = vrot.slane %v346, 1
      %v2206 = vsel %vm2097, %v2203, %v2205
      %v2207 = vrot.slane %v347, 1
      %v2208 = vsel %vm2097, %v2205, %v2207
      %v2209 = vrot.slane %v348, 1
      %v2210 = vsel %vm2097, %v2207, %v2209
      %v2211 = vrot.slane %v349, 1
      %v2212 = vsel %vm2097, %v2209, %v2211
      %v2213 = vrot.slane %v350, 1
      %v2214 = vsel %vm2097, %v2211, %v2213
      %v2215 = vrot.slane %v351, 1
      %v2216 = vsel %vm2097, %v2213, %v2215
      %v2217 = vrot.slane %v352, 1
      %v2218 = vsel %vm2097, %v2215, %v2217
      %v2219 = vrot.slane %v353, 1
      %v2220 = vsel %vm2097, %v2217, %v2219
      %v2221 = vrot.slane %v354, 1
      %v2222 = vsel %vm2097, %v2219, %v2221
      %v2223 = vrot.slane %v355, 1
      %v2224 = vsel %vm2097, %v2221, %v2223
      %v2225 = vrot.slane %v356, 1
      %v2226 = vsel %vm2097, %v2223, %v2225
      %v2227 = vrot.slane %v357, 1
      %v2228 = vsel %vm2097, %v2225, %v2227
      %v2229 = vrot.slane %v358, 1
      %v2230 = vsel %vm2097, %v2227, %v2229
      %v2231 = vrot.slane %v359, 1
      %v2232 = vsel %vm2097, %v2229, %v2231
      %v2233 = vrot.slane %v2021, 1
      %v2234 = vsel %vm2097, %v2231, %v2233
      %v2235 = vrot.slane %v2022, 1
      %v2236 = vsel %vm2097, %v2233, %v2235
      %v2237 = vrot.slane %v2023, 1
      %v2238 = vsel %vm2097, %v2235, %v2237
      %v2240 = vsel %vm932, %v2100, 0
      %v2243 = vsel %vm932, %v2102, 0
      %v2246 = vsel %vm932, %v2104, 0
      %v2249 = vsel %vm932, %v2106, 0
      %v2252 = vsel %vm932, %v2108, 0
      %v2255 = vsel %vm932, %v2110, 0
      %v2258 = vsel %vm932, %v2112, 0
      %v2261 = vsel %vm932, %v2114, 0
      %v2264 = vsel %vm932, %v2116, 0
      %v2267 = vsel %vm932, %v2118, 0
      %v2270 = vsel %vm932, %v2120, 0
      %v2273 = vsel %vm932, %v2122, 0
      %v2276 = vsel %vm932, %v2124, 0
      %v2279 = vsel %vm932, %v2126, 0
      %v2282 = vsel %vm932, %v2128, 0
      %v2285 = vsel %vm932, %v2130, 0
      %v2288 = vsel %vm932, %v2132, 0
      %v2291 = vsel %vm932, %v2134, 0
      %v2294 = vsel %vm932, %v2136, 0
      %v2297 = vsel %vm932, %v2138, 0
      %v2300 = vsel %vm932, %v2140, 0
      %v2303 = vsel %vm932, %v2142, 0
      %v2306 = vsel %vm932, %v2144, 0
      %v2309 = vsel %vm932, %v2146, 0
      %v2312 = vsel %vm932, %v2148, 0
      %v2315 = vsel %vm932, %v2150, 0
      %v2318 = vsel %vm932, %v2152, 0
      %v2321 = vsel %vm932, %v2154, 0
      %v2324 = vsel %vm932, %v2156, 0
      %v2327 = vsel %vm932, %v2158, 0
      %v2330 = vsel %vm932, %v2160, 0
      %v2333 = vsel %vm932, %v2162, 0
      %v2336 = vsel %vm932, %v2164, 0
      %v2339 = vsel %vm932, %v2166, 0
      %v2342 = vsel %vm932, %v2168, 0
      %v2345 = vsel %vm932, %v2170, 0
      %v2348 = vsel %vm932, %v2172, 0
      %v2351 = vsel %vm932, %v2174, 0
      %v2354 = vsel %vm932, %v2176, 0
      %v2357 = vsel %vm932, %v2178, 0
      %v2360 = vsel %vm932, %v2180, 0
      %v2363 = vsel %vm932, %v2182, 0
      %v2366 = vsel %vm932, %v2184, 0
      %v2369 = vsel %vm932, %v2186, 0
      %v2372 = vsel %vm932, %v2188, 0
      %v2375 = vsel %vm932, %v2190, 0
      %v2378 = vsel %vm932, %v2192, 0
      %v2381 = vsel %vm932, %v2194, 0
      %v2384 = vsel %vm932, %v2196, 0
      %v2387 = vsel %vm932, %v2198, 0
      %v2390 = vsel %vm932, %v2200, 0
      %v2393 = vsel %vm932, %v2202, 0
      %v2396 = vsel %vm932, %v2204, 0
      %v2399 = vsel %vm932, %v2206, 0
      %v2402 = vsel %vm932, %v2208, 0
      %v2405 = vsel %vm932, %v2210, 0
      %v2408 = vsel %vm932, %v2212, 0
      %v2411 = vsel %vm932, %v2214, 0
      %v2414 = vsel %vm932, %v2216, 0
      %v2417 = vsel %vm932, %v2218, 0
      %v2420 = vsel %vm932, %v2220, 0
      %v2423 = vsel %vm932, %v2222, 0
      %v2426 = vsel %vm932, %v2224, 0
      %v2429 = vsel %vm932, %v2226, 0
      %v2432 = vsel %vm932, %v2228, 0
      %v2435 = vsel %vm932, %v2230, 0
      %v2438 = vsel %vm932, %v2232, 0
      %v2441 = vsel %vm932, %v2234, 0
      %v2444 = vsel %vm932, %v2236, 0
      %v2447 = vsel %vm932, %v2238, 0
      %v2450 = vsel %vm932, %v2237, 0
      %v2453 = vsel %vm1146, %v2025, 0
      %2455 = vmatpush.bf16.msra.mxu0 0
      %2456 = vmatpush.bf16.msra.mxu0 0
      %2457 = vmatpush.bf16.msra.mxu0 0
      %2458 = vmatpush.bf16.msra.mxu0 0
      %2459 = vmatpush.bf16.msra.mxu0 0
      %2460 = vmatpush.bf16.msra.mxu0 0
      %2461 = vmatpush.bf16.msra.mxu0 0
      %2462 = vmatpush.bf16.msra.mxu0 %v2453
      %2463 = vmatmul.bf16.gmra.mxu0 %v2240
      %v2464 = vpop.f32.mrf.mxu0
      %v2465 = vadd.f32 0.0, %v2464
      %v2466 = vpop.f32.mrf.mxu0
      %v2467 = vadd.f32 0.0, %v2466
      %2468 = vmatmul.bf16.gmra.mxu0 %v2243
      %v2469 = vpop.f32.mrf.mxu0
      %v2470 = vadd.f32 0.0, %v2469
      %v2471 = vpop.f32.mrf.mxu0
      %v2472 = vadd.f32 0.0, %v2471
      %2473 = vmatmul.bf16.gmra.mxu0 %v2246
      %v2474 = vpop.f32.mrf.mxu0
      %v2475 = vadd.f32 0.0, %v2474
      %v2476 = vpop.f32.mrf.mxu0
      %v2477 = vadd.f32 0.0, %v2476
      %2478 = vmatmul.bf16.gmra.mxu0 %v2249
      %v2479 = vpop.f32.mrf.mxu0
      %v2480 = vadd.f32 0.0, %v2479
      %v2481 = vpop.f32.mrf.mxu0
      %v2482 = vadd.f32 0.0, %v2481
      %2483 = vmatmul.bf16.gmra.mxu0 %v2252
      %v2484 = vpop.f32.mrf.mxu0
      %v2485 = vadd.f32 0.0, %v2484
      %v2486 = vpop.f32.mrf.mxu0
      %v2487 = vadd.f32 0.0, %v2486
      %2488 = vmatmul.bf16.gmra.mxu0 %v2255
      %v2489 = vpop.f32.mrf.mxu0
      %v2490 = vadd.f32 0.0, %v2489
      %v2491 = vpop.f32.mrf.mxu0
      %v2492 = vadd.f32 0.0, %v2491
      %2493 = vmatmul.bf16.gmra.mxu0 %v2258
      %v2494 = vpop.f32.mrf.mxu0
      %v2495 = vadd.f32 0.0, %v2494
      %v2496 = vpop.f32.mrf.mxu0
      %v2497 = vadd.f32 0.0, %v2496
      %2498 = vmatmul.bf16.gmra.mxu0 %v2261
      %v2499 = vpop.f32.mrf.mxu0
      %v2500 = vadd.f32 0.0, %v2499
      %v2501 = vpop.f32.mrf.mxu0
      %v2502 = vadd.f32 0.0, %v2501
      %2503 = vmatmul.bf16.gmra.mxu0 %v2264
      %v2504 = vpop.f32.mrf.mxu0
      %v2505 = vadd.f32 0.0, %v2504
      %v2506 = vpop.f32.mrf.mxu0
      %v2507 = vadd.f32 0.0, %v2506
      %2508 = vmatmul.bf16.gmra.mxu0 %v2267
      %v2509 = vpop.f32.mrf.mxu0
      %v2510 = vadd.f32 0.0, %v2509
      %v2511 = vpop.f32.mrf.mxu0
      %v2512 = vadd.f32 0.0, %v2511
      %2513 = vmatmul.bf16.gmra.mxu0 %v2270
      %v2514 = vpop.f32.mrf.mxu0
      %v2515 = vadd.f32 0.0, %v2514
      %v2516 = vpop.f32.mrf.mxu0
      %v2517 = vadd.f32 0.0, %v2516
      %2518 = vmatmul.bf16.gmra.mxu0 %v2273
      %v2519 = vpop.f32.mrf.mxu0
      %v2520 = vadd.f32 0.0, %v2519
      %v2521 = vpop.f32.mrf.mxu0
      %v2522 = vadd.f32 0.0, %v2521
      %2523 = vmatmul.bf16.gmra.mxu0 %v2276
      %v2524 = vpop.f32.mrf.mxu0
      %v2525 = vadd.f32 0.0, %v2524
      %v2526 = vpop.f32.mrf.mxu0
      %v2527 = vadd.f32 0.0, %v2526
      %2528 = vmatmul.bf16.gmra.mxu0 %v2279
      %v2529 = vpop.f32.mrf.mxu0
      %v2530 = vadd.f32 0.0, %v2529
      %v2531 = vpop.f32.mrf.mxu0
      %v2532 = vadd.f32 0.0, %v2531
      %2533 = vmatmul.bf16.gmra.mxu0 %v2282
      %v2534 = vpop.f32.mrf.mxu0
      %v2535 = vadd.f32 0.0, %v2534
      %v2536 = vpop.f32.mrf.mxu0
      %v2537 = vadd.f32 0.0, %v2536
      %2538 = vmatmul.bf16.gmra.mxu0 %v2285
      %v2539 = vpop.f32.mrf.mxu0
      %v2540 = vadd.f32 0.0, %v2539
      %v2541 = vpop.f32.mrf.mxu0
      %v2542 = vadd.f32 0.0, %v2541
      %2543 = vmatmul.bf16.gmra.mxu0 %v2288
      %v2544 = vpop.f32.mrf.mxu0
      %v2545 = vadd.f32 0.0, %v2544
      %v2546 = vpop.f32.mrf.mxu0
      %v2547 = vadd.f32 0.0, %v2546
      %2548 = vmatmul.bf16.gmra.mxu0 %v2291
      %v2549 = vpop.f32.mrf.mxu0
      %v2550 = vadd.f32 0.0, %v2549
      %v2551 = vpop.f32.mrf.mxu0
      %v2552 = vadd.f32 0.0, %v2551
      %2553 = vmatmul.bf16.gmra.mxu0 %v2294
      %v2554 = vpop.f32.mrf.mxu0
      %v2555 = vadd.f32 0.0, %v2554
      %v2556 = vpop.f32.mrf.mxu0
      %v2557 = vadd.f32 0.0, %v2556
      %2558 = vmatmul.bf16.gmra.mxu0 %v2297
      %v2559 = vpop.f32.mrf.mxu0
      %v2560 = vadd.f32 0.0, %v2559
      %v2561 = vpop.f32.mrf.mxu0
      %v2562 = vadd.f32 0.0, %v2561
      %2563 = vmatmul.bf16.gmra.mxu0 %v2300
      %v2564 = vpop.f32.mrf.mxu0
      %v2565 = vadd.f32 0.0, %v2564
      %v2566 = vpop.f32.mrf.mxu0
      %v2567 = vadd.f32 0.0, %v2566
      %2568 = vmatmul.bf16.gmra.mxu0 %v2303
      %v2569 = vpop.f32.mrf.mxu0
      %v2570 = vadd.f32 0.0, %v2569
      %v2571 = vpop.f32.mrf.mxu0
      %v2572 = vadd.f32 0.0, %v2571
      %2573 = vmatmul.bf16.gmra.mxu0 %v2306
      %v2574 = vpop.f32.mrf.mxu0
      %v2575 = vadd.f32 0.0, %v2574
      %v2576 = vpop.f32.mrf.mxu0
      %v2577 = vadd.f32 0.0, %v2576
      %2578 = vmatmul.bf16.gmra.mxu0 %v2309
      %v2579 = vpop.f32.mrf.mxu0
      %v2580 = vadd.f32 0.0, %v2579
      %v2581 = vpop.f32.mrf.mxu0
      %v2582 = vadd.f32 0.0, %v2581
      %2583 = vmatmul.bf16.gmra.mxu0 %v2312
      %v2584 = vpop.f32.mrf.mxu0
      %v2585 = vadd.f32 0.0, %v2584
      %v2586 = vpop.f32.mrf.mxu0
      %v2587 = vadd.f32 0.0, %v2586
      %2588 = vmatmul.bf16.gmra.mxu0 %v2315
      %v2589 = vpop.f32.mrf.mxu0
      %v2590 = vadd.f32 0.0, %v2589
      %v2591 = vpop.f32.mrf.mxu0
      %v2592 = vadd.f32 0.0, %v2591
      %2593 = vmatmul.bf16.gmra.mxu0 %v2318
      %v2594 = vpop.f32.mrf.mxu0
      %v2595 = vadd.f32 0.0, %v2594
      %v2596 = vpop.f32.mrf.mxu0
      %v2597 = vadd.f32 0.0, %v2596
      %2598 = vmatmul.bf16.gmra.mxu0 %v2321
      %v2599 = vpop.f32.mrf.mxu0
      %v2600 = vadd.f32 0.0, %v2599
      %v2601 = vpop.f32.mrf.mxu0
      %v2602 = vadd.f32 0.0, %v2601
      %2603 = vmatmul.bf16.gmra.mxu0 %v2324
      %v2604 = vpop.f32.mrf.mxu0
      %v2605 = vadd.f32 0.0, %v2604
      %v2606 = vpop.f32.mrf.mxu0
      %v2607 = vadd.f32 0.0, %v2606
      %2608 = vmatmul.bf16.gmra.mxu0 %v2327
      %v2609 = vpop.f32.mrf.mxu0
      %v2610 = vadd.f32 0.0, %v2609
      %v2611 = vpop.f32.mrf.mxu0
      %v2612 = vadd.f32 0.0, %v2611
      %2613 = vmatmul.bf16.gmra.mxu0 %v2330
      %v2614 = vpop.f32.mrf.mxu0
      %v2615 = vadd.f32 0.0, %v2614
      %v2616 = vpop.f32.mrf.mxu0
      %v2617 = vadd.f32 0.0, %v2616
      %2618 = vmatmul.bf16.gmra.mxu0 %v2333
      %v2619 = vpop.f32.mrf.mxu0
      %v2620 = vadd.f32 0.0, %v2619
      %v2621 = vpop.f32.mrf.mxu0
      %v2622 = vadd.f32 0.0, %v2621
      %2623 = vmatmul.bf16.gmra.mxu0 %v2336
      %v2624 = vpop.f32.mrf.mxu0
      %v2625 = vadd.f32 0.0, %v2624
      %v2626 = vpop.f32.mrf.mxu0
      %v2627 = vadd.f32 0.0, %v2626
      %2628 = vmatmul.bf16.gmra.mxu0 %v2339
      %v2629 = vpop.f32.mrf.mxu0
      %v2630 = vadd.f32 0.0, %v2629
      %v2631 = vpop.f32.mrf.mxu0
      %v2632 = vadd.f32 0.0, %v2631
      %2633 = vmatmul.bf16.gmra.mxu0 %v2342
      %v2634 = vpop.f32.mrf.mxu0
      %v2635 = vadd.f32 0.0, %v2634
      %v2636 = vpop.f32.mrf.mxu0
      %v2637 = vadd.f32 0.0, %v2636
      %2638 = vmatmul.bf16.gmra.mxu0 %v2345
      %v2639 = vpop.f32.mrf.mxu0
      %v2640 = vadd.f32 0.0, %v2639
      %v2641 = vpop.f32.mrf.mxu0
      %v2642 = vadd.f32 0.0, %v2641
      %2643 = vmatmul.bf16.gmra.mxu0 %v2348
      %v2644 = vpop.f32.mrf.mxu0
      %v2645 = vadd.f32 0.0, %v2644
      %v2646 = vpop.f32.mrf.mxu0
      %v2647 = vadd.f32 0.0, %v2646
      %2648 = vmatmul.bf16.gmra.mxu0 %v2351
      %v2649 = vpop.f32.mrf.mxu0
      %v2650 = vadd.f32 0.0, %v2649
      %v2651 = vpop.f32.mrf.mxu0
      %v2652 = vadd.f32 0.0, %v2651
      %2653 = vmatmul.bf16.gmra.mxu0 %v2354
      %v2654 = vpop.f32.mrf.mxu0
      %v2655 = vadd.f32 0.0, %v2654
      %v2656 = vpop.f32.mrf.mxu0
      %v2657 = vadd.f32 0.0, %v2656
      %2658 = vmatmul.bf16.gmra.mxu0 %v2357
      %v2659 = vpop.f32.mrf.mxu0
      %v2660 = vadd.f32 0.0, %v2659
      %v2661 = vpop.f32.mrf.mxu0
      %v2662 = vadd.f32 0.0, %v2661
      %2663 = vmatmul.bf16.gmra.mxu0 %v2360
      %v2664 = vpop.f32.mrf.mxu0
      %v2665 = vadd.f32 0.0, %v2664
      %v2666 = vpop.f32.mrf.mxu0
      %v2667 = vadd.f32 0.0, %v2666
      %2668 = vmatmul.bf16.gmra.mxu0 %v2363
      %v2669 = vpop.f32.mrf.mxu0
      %v2670 = vadd.f32 0.0, %v2669
      %v2671 = vpop.f32.mrf.mxu0
      %v2672 = vadd.f32 0.0, %v2671
      %2673 = vmatmul.bf16.gmra.mxu0 %v2366
      %v2674 = vpop.f32.mrf.mxu0
      %v2675 = vadd.f32 0.0, %v2674
      %v2676 = vpop.f32.mrf.mxu0
      %v2677 = vadd.f32 0.0, %v2676
      %2678 = vmatmul.bf16.gmra.mxu0 %v2369
      %v2679 = vpop.f32.mrf.mxu0
      %v2680 = vadd.f32 0.0, %v2679
      %v2681 = vpop.f32.mrf.mxu0
      %v2682 = vadd.f32 0.0, %v2681
      %2683 = vmatmul.bf16.gmra.mxu0 %v2372
      %v2684 = vpop.f32.mrf.mxu0
      %v2685 = vadd.f32 0.0, %v2684
      %v2686 = vpop.f32.mrf.mxu0
      %v2687 = vadd.f32 0.0, %v2686
      %2688 = vmatmul.bf16.gmra.mxu0 %v2375
      %v2689 = vpop.f32.mrf.mxu0
      %v2690 = vadd.f32 0.0, %v2689
      %v2691 = vpop.f32.mrf.mxu0
      %v2692 = vadd.f32 0.0, %v2691
      %2693 = vmatmul.bf16.gmra.mxu0 %v2378
      %v2694 = vpop.f32.mrf.mxu0
      %v2695 = vadd.f32 0.0, %v2694
      %v2696 = vpop.f32.mrf.mxu0
      %v2697 = vadd.f32 0.0, %v2696
      %2698 = vmatmul.bf16.gmra.mxu0 %v2381
      %v2699 = vpop.f32.mrf.mxu0
      %v2700 = vadd.f32 0.0, %v2699
      %v2701 = vpop.f32.mrf.mxu0
      %v2702 = vadd.f32 0.0, %v2701
      %2703 = vmatmul.bf16.gmra.mxu0 %v2384
      %v2704 = vpop.f32.mrf.mxu0
      %v2705 = vadd.f32 0.0, %v2704
      %v2706 = vpop.f32.mrf.mxu0
      %v2707 = vadd.f32 0.0, %v2706
      %2708 = vmatmul.bf16.gmra.mxu0 %v2387
      %v2709 = vpop.f32.mrf.mxu0
      %v2710 = vadd.f32 0.0, %v2709
      %v2711 = vpop.f32.mrf.mxu0
      %v2712 = vadd.f32 0.0, %v2711
      %2713 = vmatmul.bf16.gmra.mxu0 %v2390
      %v2714 = vpop.f32.mrf.mxu0
      %v2715 = vadd.f32 0.0, %v2714
      %v2716 = vpop.f32.mrf.mxu0
      %v2717 = vadd.f32 0.0, %v2716
      %2718 = vmatmul.bf16.gmra.mxu0 %v2393
      %v2719 = vpop.f32.mrf.mxu0
      %v2720 = vadd.f32 0.0, %v2719
      %v2721 = vpop.f32.mrf.mxu0
      %v2722 = vadd.f32 0.0, %v2721
      %2723 = vmatmul.bf16.gmra.mxu0 %v2396
      %v2724 = vpop.f32.mrf.mxu0
      %v2725 = vadd.f32 0.0, %v2724
      %v2726 = vpop.f32.mrf.mxu0
      %v2727 = vadd.f32 0.0, %v2726
      %2728 = vmatmul.bf16.gmra.mxu0 %v2399
      %v2729 = vpop.f32.mrf.mxu0
      %v2730 = vadd.f32 0.0, %v2729
      %v2731 = vpop.f32.mrf.mxu0
      %v2732 = vadd.f32 0.0, %v2731
      %2733 = vmatmul.bf16.gmra.mxu0 %v2402
      %v2734 = vpop.f32.mrf.mxu0
      %v2735 = vadd.f32 0.0, %v2734
      %v2736 = vpop.f32.mrf.mxu0
      %v2737 = vadd.f32 0.0, %v2736
      %2738 = vmatmul.bf16.gmra.mxu0 %v2405
      %v2739 = vpop.f32.mrf.mxu0
      %v2740 = vadd.f32 0.0, %v2739
      %v2741 = vpop.f32.mrf.mxu0
      %v2742 = vadd.f32 0.0, %v2741
      %2743 = vmatmul.bf16.gmra.mxu0 %v2408
      %v2744 = vpop.f32.mrf.mxu0
      %v2745 = vadd.f32 0.0, %v2744
      %v2746 = vpop.f32.mrf.mxu0
      %v2747 = vadd.f32 0.0, %v2746
      %2748 = vmatmul.bf16.gmra.mxu0 %v2411
      %v2749 = vpop.f32.mrf.mxu0
      %v2750 = vadd.f32 0.0, %v2749
      %v2751 = vpop.f32.mrf.mxu0
      %v2752 = vadd.f32 0.0, %v2751
      %2753 = vmatmul.bf16.gmra.mxu0 %v2414
      %v2754 = vpop.f32.mrf.mxu0
      %v2755 = vadd.f32 0.0, %v2754
      %v2756 = vpop.f32.mrf.mxu0
      %v2757 = vadd.f32 0.0, %v2756
      %2758 = vmatmul.bf16.gmra.mxu0 %v2417
      %v2759 = vpop.f32.mrf.mxu0
      %v2760 = vadd.f32 0.0, %v2759
      %v2761 = vpop.f32.mrf.mxu0
      %v2762 = vadd.f32 0.0, %v2761
      %2763 = vmatmul.bf16.gmra.mxu0 %v2420
      %v2764 = vpop.f32.mrf.mxu0
      %v2765 = vadd.f32 0.0, %v2764
      %v2766 = vpop.f32.mrf.mxu0
      %v2767 = vadd.f32 0.0, %v2766
      %2768 = vmatmul.bf16.gmra.mxu0 %v2423
      %v2769 = vpop.f32.mrf.mxu0
      %v2770 = vadd.f32 0.0, %v2769
      %v2771 = vpop.f32.mrf.mxu0
      %v2772 = vadd.f32 0.0, %v2771
      %2773 = vmatmul.bf16.gmra.mxu0 %v2426
      %v2774 = vpop.f32.mrf.mxu0
      %v2775 = vadd.f32 0.0, %v2774
      %v2776 = vpop.f32.mrf.mxu0
      %v2777 = vadd.f32 0.0, %v2776
      %2778 = vmatmul.bf16.gmra.mxu0 %v2429
      %v2779 = vpop.f32.mrf.mxu0
      %v2780 = vadd.f32 0.0, %v2779
      %v2781 = vpop.f32.mrf.mxu0
      %v2782 = vadd.f32 0.0, %v2781
      %2783 = vmatmul.bf16.gmra.mxu0 %v2432
      %v2784 = vpop.f32.mrf.mxu0
      %v2785 = vadd.f32 0.0, %v2784
      %v2786 = vpop.f32.mrf.mxu0
      %v2787 = vadd.f32 0.0, %v2786
      %2788 = vmatmul.bf16.gmra.mxu0 %v2435
      %v2789 = vpop.f32.mrf.mxu0
      %v2790 = vadd.f32 0.0, %v2789
      %v2791 = vpop.f32.mrf.mxu0
      %v2792 = vadd.f32 0.0, %v2791
      %2793 = vmatmul.bf16.gmra.mxu0 %v2438
      %v2794 = vpop.f32.mrf.mxu0
      %v2795 = vadd.f32 0.0, %v2794
      %v2796 = vpop.f32.mrf.mxu0
      %v2797 = vadd.f32 0.0, %v2796
      %2798 = vmatmul.bf16.gmra.mxu0 %v2441
      %v2799 = vpop.f32.mrf.mxu0
      %v2800 = vadd.f32 0.0, %v2799
      %v2801 = vpop.f32.mrf.mxu0
      %v2802 = vadd.f32 0.0, %v2801
      %2803 = vmatmul.bf16.gmra.mxu0 %v2444
      %v2804 = vpop.f32.mrf.mxu0
      %v2805 = vadd.f32 0.0, %v2804
      %v2806 = vpop.f32.mrf.mxu0
      %v2807 = vadd.f32 0.0, %v2806
      %2808 = vmatmul.bf16.gmra.mxu0 %v2447
      %v2809 = vpop.f32.mrf.mxu0
      %v2810 = vadd.f32 0.0, %v2809
      %v2811 = vpop.f32.mrf.mxu0
      %v2812 = vadd.f32 0.0, %v2811
      %2813 = vmatmul.bf16.gmra.mxu0 %v2450
      %v2814 = vpop.f32.mrf.mxu0
      %v2815 = vadd.f32 0.0, %v2814
      %v2816 = vpop.f32.mrf.mxu0
      %2817 = vdwg.mxu0
      %v2818 = vadd.f32 %v1668, %v2465
      %v2819 = vadd.f32 %v1670, %v2467
      %v2820 = vadd.f32 %v1673, %v2470
      %v2821 = vadd.f32 %v1675, %v2472
      %v2822 = vadd.f32 %v1678, %v2475
      %v2823 = vadd.f32 %v1680, %v2477
      %v2824 = vadd.f32 %v1683, %v2480
      %v2825 = vadd.f32 %v1685, %v2482
      %v2826 = vadd.f32 %v1688, %v2485
      %v2827 = vadd.f32 %v1690, %v2487
      %v2828 = vadd.f32 %v1693, %v2490
      %v2829 = vadd.f32 %v1695, %v2492
      %v2830 = vadd.f32 %v1698, %v2495
      %v2831 = vadd.f32 %v1700, %v2497
      %v2832 = vadd.f32 %v1703, %v2500
      %v2833 = vadd.f32 %v1705, %v2502
      %v2834 = vadd.f32 %v1708, %v2505
      %v2835 = vadd.f32 %v1710, %v2507
      %v2836 = vadd.f32 %v1713, %v2510
      %v2837 = vadd.f32 %v1715, %v2512
      %v2838 = vadd.f32 %v1718, %v2515
      %v2839 = vadd.f32 %v1720, %v2517
      %v2840 = vadd.f32 %v1723, %v2520
      %v2841 = vadd.f32 %v1725, %v2522
      %v2842 = vadd.f32 %v1728, %v2525
      %v2843 = vadd.f32 %v1730, %v2527
      %v2844 = vadd.f32 %v1733, %v2530
      %v2845 = vadd.f32 %v1735, %v2532
      %v2846 = vadd.f32 %v1738, %v2535
      %v2847 = vadd.f32 %v1740, %v2537
      %v2848 = vadd.f32 %v1743, %v2540
      %v2849 = vadd.f32 %v1745, %v2542
      %v2850 = vadd.f32 %v1748, %v2545
      %v2851 = vadd.f32 %v1750, %v2547
      %v2852 = vadd.f32 %v1753, %v2550
      %v2853 = vadd.f32 %v1755, %v2552
      %v2854 = vadd.f32 %v1758, %v2555
      %v2855 = vadd.f32 %v1760, %v2557
      %v2856 = vadd.f32 %v1763, %v2560
      %v2857 = vadd.f32 %v1765, %v2562
      %v2858 = vadd.f32 %v1768, %v2565
      %v2859 = vadd.f32 %v1770, %v2567
      %v2860 = vadd.f32 %v1773, %v2570
      %v2861 = vadd.f32 %v1775, %v2572
      %v2862 = vadd.f32 %v1778, %v2575
      %v2863 = vadd.f32 %v1780, %v2577
      %v2864 = vadd.f32 %v1783, %v2580
      %v2865 = vadd.f32 %v1785, %v2582
      %v2866 = vadd.f32 %v1788, %v2585
      %v2867 = vadd.f32 %v1790, %v2587
      %v2868 = vadd.f32 %v1793, %v2590
      %v2869 = vadd.f32 %v1795, %v2592
      %v2870 = vadd.f32 %v1798, %v2595
      %v2871 = vadd.f32 %v1800, %v2597
      %v2872 = vadd.f32 %v1803, %v2600
      %v2873 = vadd.f32 %v1805, %v2602
      %v2874 = vadd.f32 %v1808, %v2605
      %v2875 = vadd.f32 %v1810, %v2607
      %v2876 = vadd.f32 %v1813, %v2610
      %v2877 = vadd.f32 %v1815, %v2612
      %v2878 = vadd.f32 %v1818, %v2615
      %v2879 = vadd.f32 %v1820, %v2617
      %v2880 = vadd.f32 %v1823, %v2620
      %v2881 = vadd.f32 %v1825, %v2622
      %v2882 = vadd.f32 %v1828, %v2625
      %v2883 = vadd.f32 %v1830, %v2627
      %v2884 = vadd.f32 %v1833, %v2630
      %v2885 = vadd.f32 %v1835, %v2632
      %v2886 = vadd.f32 %v1838, %v2635
      %v2887 = vadd.f32 %v1840, %v2637
      %v2888 = vadd.f32 %v1843, %v2640
      %v2889 = vadd.f32 %v1845, %v2642
      %v2890 = vadd.f32 %v1848, %v2645
      %v2891 = vadd.f32 %v1850, %v2647
      %v2892 = vadd.f32 %v1853, %v2650
      %v2893 = vadd.f32 %v1855, %v2652
      %v2894 = vadd.f32 %v1858, %v2655
      %v2895 = vadd.f32 %v1860, %v2657
      %v2896 = vadd.f32 %v1863, %v2660
      %v2897 = vadd.f32 %v1865, %v2662
      %v2898 = vadd.f32 %v1868, %v2665
      %v2899 = vadd.f32 %v1870, %v2667
      %v2900 = vadd.f32 %v1873, %v2670
      %v2901 = vadd.f32 %v1875, %v2672
      %v2902 = vadd.f32 %v1878, %v2675
      %v2903 = vadd.f32 %v1880, %v2677
      %v2904 = vadd.f32 %v1883, %v2680
      %v2905 = vadd.f32 %v1885, %v2682
      %v2906 = vadd.f32 %v1888, %v2685
      %v2907 = vadd.f32 %v1890, %v2687
      %v2908 = vadd.f32 %v1893, %v2690
      %v2909 = vadd.f32 %v1895, %v2692
      %v2910 = vadd.f32 %v1898, %v2695
      %v2911 = vadd.f32 %v1900, %v2697
      %v2912 = vadd.f32 %v1903, %v2700
      %v2913 = vadd.f32 %v1905, %v2702
      %v2914 = vadd.f32 %v1908, %v2705
      %v2915 = vadd.f32 %v1910, %v2707
      %v2916 = vadd.f32 %v1913, %v2710
      %v2917 = vadd.f32 %v1915, %v2712
      %v2918 = vadd.f32 %v1918, %v2715
      %v2919 = vadd.f32 %v1920, %v2717
      %v2920 = vadd.f32 %v1923, %v2720
      %v2921 = vadd.f32 %v1925, %v2722
      %v2922 = vadd.f32 %v1928, %v2725
      %v2923 = vadd.f32 %v1930, %v2727
      %v2924 = vadd.f32 %v1933, %v2730
      %v2925 = vadd.f32 %v1935, %v2732
      %v2926 = vadd.f32 %v1938, %v2735
      %v2927 = vadd.f32 %v1940, %v2737
      %v2928 = vadd.f32 %v1943, %v2740
      %v2929 = vadd.f32 %v1945, %v2742
      %v2930 = vadd.f32 %v1948, %v2745
      %v2931 = vadd.f32 %v1950, %v2747
      %v2932 = vadd.f32 %v1953, %v2750
      %v2933 = vadd.f32 %v1955, %v2752
      %v2934 = vadd.f32 %v1958, %v2755
      %v2935 = vadd.f32 %v1960, %v2757
      %v2936 = vadd.f32 %v1963, %v2760
      %v2937 = vadd.f32 %v1965, %v2762
      %v2938 = vadd.f32 %v1968, %v2765
      %v2939 = vadd.f32 %v1970, %v2767
      %v2940 = vadd.f32 %v1973, %v2770
      %v2941 = vadd.f32 %v1975, %v2772
      %v2942 = vadd.f32 %v1978, %v2775
      %v2943 = vadd.f32 %v1980, %v2777
      %v2944 = vadd.f32 %v1983, %v2780
      %v2945 = vadd.f32 %v1985, %v2782
      %v2946 = vadd.f32 %v1988, %v2785
      %v2947 = vadd.f32 %v1990, %v2787
      %v2948 = vadd.f32 %v1993, %v2790
      %v2949 = vadd.f32 %v1995, %v2792
      %v2950 = vadd.f32 %v1998, %v2795
      %v2951 = vadd.f32 %v2000, %v2797
      %v2952 = vadd.f32 %v2003, %v2800
      %v2953 = vadd.f32 %v2005, %v2802
      %v2954 = vadd.f32 %v2008, %v2805
      %v2955 = vadd.f32 %v2010, %v2807
      %v2956 = vadd.f32 %v2013, %v2810
      %v2957 = vadd.f32 %v2015, %v2812
      %v2958 = vadd.f32 %v2018, %v2815
      %s2959 = scalar_lea.vmem %s1, 12
      %v2960 = vld [vmem:[%s2959] sm:$0xf]
      %vm2961 = vsmask.f32 6400
      %v2962 = vrot.slane %v385, 1
      %v2963 = vrot.slane %v381, 2
      %v2964 = vor.u32 %v2962, %v2963
      %v2965 = vrot.slane %v393, 1
      %v2966 = vrot.slane %v389, 2
      %v2967 = vor.u32 %v2965, %v2966
      %v2968 = vsel %vm2961, %v2964, %v2967
      %v2969 = vrot.slane %v401, 1
      %v2970 = vrot.slane %v397, 2
      %v2971 = vor.u32 %v2969, %v2970
      %v2972 = vsel %vm2961, %v2967, %v2971
      %v2973 = vrot.slane %v409, 1
      %v2974 = vrot.slane %v405, 2
      %v2975 = vor.u32 %v2973, %v2974
      %v2976 = vsel %vm2961, %v2971, %v2975
      %v2977 = vrot.slane %v417, 1
      %v2978 = vrot.slane %v413, 2
      %v2979 = vor.u32 %v2977, %v2978
      %v2980 = vsel %vm2961, %v2975, %v2979
      %v2981 = vrot.slane %v425, 1
      %v2982 = vrot.slane %v421, 2
      %v2983 = vor.u32 %v2981, %v2982
      %v2984 = vsel %vm2961, %v2979, %v2983
      %v2985 = vrot.slane %v433, 1
      %v2986 = vrot.slane %v429, 2
      %v2987 = vor.u32 %v2985, %v2986
      %v2988 = vsel %vm2961, %v2983, %v2987
      %v2989 = vrot.slane %v441, 1
      %v2990 = vrot.slane %v437, 2
      %v2991 = vor.u32 %v2989, %v2990
      %v2992 = vsel %vm2961, %v2987, %v2991
      %v2993 = vrot.slane %v449, 1
      %v2994 = vrot.slane %v445, 2
      %v2995 = vor.u32 %v2993, %v2994
      %v2996 = vsel %vm2961, %v2991, %v2995
      %v2997 = vrot.slane %v457, 1
      %v2998 = vrot.slane %v453, 2
      %v2999 = vor.u32 %v2997, %v2998
      %v3000 = vsel %vm2961, %v2995, %v2999
      %v3001 = vrot.slane %v465, 1
      %v3002 = vrot.slane %v461, 2
      %v3003 = vor.u32 %v3001, %v3002
      %v3004 = vsel %vm2961, %v2999, %v3003
      %v3005 = vrot.slane %v473, 1
      %v3006 = vrot.slane %v469, 2
      %v3007 = vor.u32 %v3005, %v3006
      %v3008 = vsel %vm2961, %v3003, %v3007
      %v3009 = vrot.slane %v481, 1
      %v3010 = vrot.slane %v477, 2
      %v3011 = vor.u32 %v3009, %v3010
      %v3012 = vsel %vm2961, %v3007, %v3011
      %v3013 = vrot.slane %v489, 1
      %v3014 = vrot.slane %v485, 2
      %v3015 = vor.u32 %v3013, %v3014
      %v3016 = vsel %vm2961, %v3011, %v3015
      %v3017 = vrot.slane %v497, 1
      %v3018 = vrot.slane %v493, 2
      %v3019 = vor.u32 %v3017, %v3018
      %v3020 = vsel %vm2961, %v3015, %v3019
      %v3021 = vrot.slane %v505, 1
      %v3022 = vrot.slane %v501, 2
      %v3023 = vor.u32 %v3021, %v3022
      %v3024 = vsel %vm2961, %v3019, %v3023
      %v3025 = vrot.slane %v513, 1
      %v3026 = vrot.slane %v509, 2
      %v3027 = vor.u32 %v3025, %v3026
      %v3028 = vsel %vm2961, %v3023, %v3027
      %v3029 = vrot.slane %v521, 1
      %v3030 = vrot.slane %v517, 2
      %v3031 = vor.u32 %v3029, %v3030
      %v3032 = vsel %vm2961, %v3027, %v3031
      %v3033 = vrot.slane %v529, 1
      %v3034 = vrot.slane %v525, 2
      %v3035 = vor.u32 %v3033, %v3034
      %v3036 = vsel %vm2961, %v3031, %v3035
      %v3037 = vrot.slane %v537, 1
      %v3038 = vrot.slane %v533, 2
      %v3039 = vor.u32 %v3037, %v3038
      %v3040 = vsel %vm2961, %v3035, %v3039
      %v3041 = vrot.slane %v545, 1
      %v3042 = vrot.slane %v541, 2
      %v3043 = vor.u32 %v3041, %v3042
      %v3044 = vsel %vm2961, %v3039, %v3043
      %v3045 = vrot.slane %v553, 1
      %v3046 = vrot.slane %v549, 2
      %v3047 = vor.u32 %v3045, %v3046
      %v3048 = vsel %vm2961, %v3043, %v3047
      %v3049 = vrot.slane %v561, 1
      %v3050 = vrot.slane %v557, 2
      %v3051 = vor.u32 %v3049, %v3050
      %v3052 = vsel %vm2961, %v3047, %v3051
      %v3053 = vrot.slane %v569, 1
      %v3054 = vrot.slane %v565, 2
      %v3055 = vor.u32 %v3053, %v3054
      %v3056 = vsel %vm2961, %v3051, %v3055
      %v3057 = vrot.slane %v577, 1
      %v3058 = vrot.slane %v573, 2
      %v3059 = vor.u32 %v3057, %v3058
      %v3060 = vsel %vm2961, %v3055, %v3059
      %v3061 = vrot.slane %v585, 1
      %v3062 = vrot.slane %v581, 2
      %v3063 = vor.u32 %v3061, %v3062
      %v3064 = vsel %vm2961, %v3059, %v3063
      %v3065 = vrot.slane %v593, 1
      %v3066 = vrot.slane %v589, 2
      %v3067 = vor.u32 %v3065, %v3066
      %v3068 = vsel %vm2961, %v3063, %v3067
      %v3069 = vrot.slane %v601, 1
      %v3070 = vrot.slane %v597, 2
      %v3071 = vor.u32 %v3069, %v3070
      %v3072 = vsel %vm2961, %v3067, %v3071
      %v3073 = vrot.slane %v609, 1
      %v3074 = vrot.slane %v605, 2
      %v3075 = vor.u32 %v3073, %v3074
      %v3076 = vsel %vm2961, %v3071, %v3075
      %v3077 = vrot.slane %v617, 1
      %v3078 = vrot.slane %v613, 2
      %v3079 = vor.u32 %v3077, %v3078
      %v3080 = vsel %vm2961, %v3075, %v3079
      %v3081 = vrot.slane %v625, 1
      %v3082 = vrot.slane %v621, 2
      %v3083 = vor.u32 %v3081, %v3082
      %v3084 = vsel %vm2961, %v3079, %v3083
      %v3085 = vrot.slane %v633, 1
      %v3086 = vrot.slane %v629, 2
      %v3087 = vor.u32 %v3085, %v3086
      %v3088 = vsel %vm2961, %v3083, %v3087
      %v3089 = vrot.slane %v641, 1
      %v3090 = vrot.slane %v637, 2
      %v3091 = vor.u32 %v3089, %v3090
      %v3092 = vsel %vm2961, %v3087, %v3091
      %v3093 = vrot.slane %v649, 1
      %v3094 = vrot.slane %v645, 2
      %v3095 = vor.u32 %v3093, %v3094
      %v3096 = vsel %vm2961, %v3091, %v3095
      %v3097 = vrot.slane %v657, 1
      %v3098 = vrot.slane %v653, 2
      %v3099 = vor.u32 %v3097, %v3098
      %v3100 = vsel %vm2961, %v3095, %v3099
      %v3101 = vrot.slane %v665, 1
      %v3102 = vrot.slane %v661, 2
      %v3103 = vor.u32 %v3101, %v3102
      %v3104 = vsel %vm2961, %v3099, %v3103
      %v3105 = vrot.slane %v673, 1
      %v3106 = vrot.slane %v669, 2
      %v3107 = vor.u32 %v3105, %v3106
      %v3108 = vsel %vm2961, %v3103, %v3107
      %v3109 = vrot.slane %v681, 1
      %v3110 = vrot.slane %v677, 2
      %v3111 = vor.u32 %v3109, %v3110
      %v3112 = vsel %vm2961, %v3107, %v3111
      %v3113 = vrot.slane %v689, 1
      %v3114 = vrot.slane %v685, 2
      %v3115 = vor.u32 %v3113, %v3114
      %v3116 = vsel %vm2961, %v3111, %v3115
      %v3117 = vrot.slane %v697, 1
      %v3118 = vrot.slane %v693, 2
      %v3119 = vor.u32 %v3117, %v3118
      %v3120 = vsel %vm2961, %v3115, %v3119
      %v3121 = vrot.slane %v705, 1
      %v3122 = vrot.slane %v701, 2
      %v3123 = vor.u32 %v3121, %v3122
      %v3124 = vsel %vm2961, %v3119, %v3123
      %v3125 = vrot.slane %v713, 1
      %v3126 = vrot.slane %v709, 2
      %v3127 = vor.u32 %v3125, %v3126
      %v3128 = vsel %vm2961, %v3123, %v3127
      %v3129 = vrot.slane %v721, 1
      %v3130 = vrot.slane %v717, 2
      %v3131 = vor.u32 %v3129, %v3130
      %v3132 = vsel %vm2961, %v3127, %v3131
      %v3133 = vrot.slane %v729, 1
      %v3134 = vrot.slane %v725, 2
      %v3135 = vor.u32 %v3133, %v3134
      %v3136 = vsel %vm2961, %v3131, %v3135
      %v3137 = vrot.slane %v737, 1
      %v3138 = vrot.slane %v733, 2
      %v3139 = vor.u32 %v3137, %v3138
      %v3140 = vsel %vm2961, %v3135, %v3139
      %v3141 = vrot.slane %v745, 1
      %v3142 = vrot.slane %v741, 2
      %v3143 = vor.u32 %v3141, %v3142
      %v3144 = vsel %vm2961, %v3139, %v3143
      %v3145 = vrot.slane %v753, 1
      %v3146 = vrot.slane %v749, 2
      %v3147 = vor.u32 %v3145, %v3146
      %v3148 = vsel %vm2961, %v3143, %v3147
      %v3149 = vrot.slane %v761, 1
      %v3150 = vrot.slane %v757, 2
      %v3151 = vor.u32 %v3149, %v3150
      %v3152 = vsel %vm2961, %v3147, %v3151
      %v3153 = vrot.slane %v769, 1
      %v3154 = vrot.slane %v765, 2
      %v3155 = vor.u32 %v3153, %v3154
      %v3156 = vsel %vm2961, %v3151, %v3155
      %v3157 = vrot.slane %v777, 1
      %v3158 = vrot.slane %v773, 2
      %v3159 = vor.u32 %v3157, %v3158
      %v3160 = vsel %vm2961, %v3155, %v3159
      %v3161 = vrot.slane %v785, 1
      %v3162 = vrot.slane %v781, 2
      %v3163 = vor.u32 %v3161, %v3162
      %v3164 = vsel %vm2961, %v3159, %v3163
      %v3165 = vrot.slane %v793, 1
      %v3166 = vrot.slane %v789, 2
      %v3167 = vor.u32 %v3165, %v3166
      %v3168 = vsel %vm2961, %v3163, %v3167
      %v3169 = vrot.slane %v801, 1
      %v3170 = vrot.slane %v797, 2
      %v3171 = vor.u32 %v3169, %v3170
      %v3172 = vsel %vm2961, %v3167, %v3171
      %v3173 = vrot.slane %v809, 1
      %v3174 = vrot.slane %v805, 2
      %v3175 = vor.u32 %v3173, %v3174
      %v3176 = vsel %vm2961, %v3171, %v3175
      %v3177 = vrot.slane %v817, 1
      %v3178 = vrot.slane %v813, 2
      %v3179 = vor.u32 %v3177, %v3178
      %v3180 = vsel %vm2961, %v3175, %v3179
      %v3181 = vrot.slane %v825, 1
      %v3182 = vrot.slane %v821, 2
      %v3183 = vor.u32 %v3181, %v3182
      %v3184 = vsel %vm2961, %v3179, %v3183
      %v3185 = vrot.slane %v833, 1
      %v3186 = vrot.slane %v829, 2
      %v3187 = vor.u32 %v3185, %v3186
      %v3188 = vsel %vm2961, %v3183, %v3187
      %v3189 = vrot.slane %v841, 1
      %v3190 = vrot.slane %v837, 2
      %v3191 = vor.u32 %v3189, %v3190
      %v3192 = vsel %vm2961, %v3187, %v3191
      %v3193 = vrot.slane %v849, 1
      %v3194 = vrot.slane %v845, 2
      %v3195 = vor.u32 %v3193, %v3194
      %v3196 = vsel %vm2961, %v3191, %v3195
      %v3197 = vrot.slane %v857, 1
      %v3198 = vrot.slane %v853, 2
      %v3199 = vor.u32 %v3197, %v3198
      %v3200 = vsel %vm2961, %v3195, %v3199
      %v3201 = vrot.slane %v865, 1
      %v3202 = vrot.slane %v861, 2
      %v3203 = vor.u32 %v3201, %v3202
      %v3204 = vsel %vm2961, %v3199, %v3203
      %v3205 = vrot.slane %v873, 1
      %v3206 = vrot.slane %v869, 2
      %v3207 = vor.u32 %v3205, %v3206
      %v3208 = vsel %vm2961, %v3203, %v3207
      %v3209 = vrot.slane %v881, 1
      %v3210 = vrot.slane %v877, 2
      %v3211 = vor.u32 %v3209, %v3210
      %v3212 = vsel %vm2961, %v3207, %v3211
      %v3213 = vrot.slane %v889, 1
      %v3214 = vrot.slane %v885, 2
      %v3215 = vor.u32 %v3213, %v3214
      %v3216 = vsel %vm2961, %v3211, %v3215
      %v3217 = vrot.slane %v897, 1
      %v3218 = vrot.slane %v893, 2
      %v3219 = vor.u32 %v3217, %v3218
      %v3220 = vsel %vm2961, %v3215, %v3219
      %v3221 = vrot.slane %v905, 1
      %v3222 = vrot.slane %v901, 2
      %v3223 = vor.u32 %v3221, %v3222
      %v3224 = vsel %vm2961, %v3219, %v3223
      %v3225 = vrot.slane %v913, 1
      %v3226 = vrot.slane %v909, 2
      %v3227 = vor.u32 %v3225, %v3226
      %v3228 = vsel %vm2961, %v3223, %v3227
      %v3229 = vrot.slane %v921, 1
      %v3230 = vrot.slane %v917, 2
      %v3231 = vor.u32 %v3229, %v3230
      %v3232 = vsel %vm2961, %v3227, %v3231
      %v3234 = vshrl.u32 %v2021, 16
      %v3236 = vrot.slane %v3234, 1
      %v3237 = vshll.u32 %v2021, 16
      %v3239 = vrot.slane %v3237, 2
      %v3240 = vor.u32 %v3236, %v3239
      %v3241 = vsel %vm2961, %v3231, %v3240
      %v3243 = vshrl.u32 %v2022, 16
      %v3245 = vrot.slane %v3243, 1
      %v3246 = vshll.u32 %v2022, 16
      %v3248 = vrot.slane %v3246, 2
      %v3249 = vor.u32 %v3245, %v3248
      %v3250 = vsel %vm2961, %v3240, %v3249
      %v3252 = vshrl.u32 %v2023, 16
      %v3254 = vrot.slane %v3252, 1
      %v3255 = vshll.u32 %v2023, 16
      %v3257 = vrot.slane %v3255, 2
      %v3258 = vor.u32 %v3254, %v3257
      %v3259 = vsel %vm2961, %v3249, %v3258
      %v3261 = vsel %vm932, %v2968, 0
      %v3264 = vsel %vm932, %v2972, 0
      %v3267 = vsel %vm932, %v2976, 0
      %v3270 = vsel %vm932, %v2980, 0
      %v3273 = vsel %vm932, %v2984, 0
      %v3276 = vsel %vm932, %v2988, 0
      %v3279 = vsel %vm932, %v2992, 0
      %v3282 = vsel %vm932, %v2996, 0
      %v3285 = vsel %vm932, %v3000, 0
      %v3288 = vsel %vm932, %v3004, 0
      %v3291 = vsel %vm932, %v3008, 0
      %v3294 = vsel %vm932, %v3012, 0
      %v3297 = vsel %vm932, %v3016, 0
      %v3300 = vsel %vm932, %v3020, 0
      %v3303 = vsel %vm932, %v3024, 0
      %v3306 = vsel %vm932, %v3028, 0
      %v3309 = vsel %vm932, %v3032, 0
      %v3312 = vsel %vm932, %v3036, 0
      %v3315 = vsel %vm932, %v3040, 0
      %v3318 = vsel %vm932, %v3044, 0
      %v3321 = vsel %vm932, %v3048, 0
      %v3324 = vsel %vm932, %v3052, 0
      %v3327 = vsel %vm932, %v3056, 0
      %v3330 = vsel %vm932, %v3060, 0
      %v3333 = vsel %vm932, %v3064, 0
      %v3336 = vsel %vm932, %v3068, 0
      %v3339 = vsel %vm932, %v3072, 0
      %v3342 = vsel %vm932, %v3076, 0
      %v3345 = vsel %vm932, %v3080, 0
      %v3348 = vsel %vm932, %v3084, 0
      %v3351 = vsel %vm932, %v3088, 0
      %v3354 = vsel %vm932, %v3092, 0
      %v3357 = vsel %vm932, %v3096, 0
      %v3360 = vsel %vm932, %v3100, 0
      %v3363 = vsel %vm932, %v3104, 0
      %v3366 = vsel %vm932, %v3108, 0
      %v3369 = vsel %vm932, %v3112, 0
      %v3372 = vsel %vm932, %v3116, 0
      %v3375 = vsel %vm932, %v3120, 0
      %v3378 = vsel %vm932, %v3124, 0
      %v3381 = vsel %vm932, %v3128, 0
      %v3384 = vsel %vm932, %v3132, 0
      %v3387 = vsel %vm932, %v3136, 0
      %v3390 = vsel %vm932, %v3140, 0
      %v3393 = vsel %vm932, %v3144, 0
      %v3396 = vsel %vm932, %v3148, 0
      %v3399 = vsel %vm932, %v3152, 0
      %v3402 = vsel %vm932, %v3156, 0
      %v3405 = vsel %vm932, %v3160, 0
      %v3408 = vsel %vm932, %v3164, 0
      %v3411 = vsel %vm932, %v3168, 0
      %v3414 = vsel %vm932, %v3172, 0
      %v3417 = vsel %vm932, %v3176, 0
      %v3420 = vsel %vm932, %v3180, 0
      %v3423 = vsel %vm932, %v3184, 0
      %v3426 = vsel %vm932, %v3188, 0
      %v3429 = vsel %vm932, %v3192, 0
      %v3432 = vsel %vm932, %v3196, 0
      %v3435 = vsel %vm932, %v3200, 0
      %v3438 = vsel %vm932, %v3204, 0
      %v3441 = vsel %vm932, %v3208, 0
      %v3444 = vsel %vm932, %v3212, 0
      %v3447 = vsel %vm932, %v3216, 0
      %v3450 = vsel %vm932, %v3220, 0
      %v3453 = vsel %vm932, %v3224, 0
      %v3456 = vsel %vm932, %v3228, 0
      %v3459 = vsel %vm932, %v3232, 0
      %v3462 = vsel %vm932, %v3241, 0
      %v3465 = vsel %vm932, %v3250, 0
      %v3468 = vsel %vm932, %v3259, 0
      %v3471 = vsel %vm932, %v3258, 0
      %v3474 = vsel %vm1146, %v2960, 0
      %3476 = vmatpush.bf16.msra.mxu0 0
      %3477 = vmatpush.bf16.msra.mxu0 0
      %3478 = vmatpush.bf16.msra.mxu0 0
      %3479 = vmatpush.bf16.msra.mxu0 0
      %3480 = vmatpush.bf16.msra.mxu0 0
      %3481 = vmatpush.bf16.msra.mxu0 0
      %3482 = vmatpush.bf16.msra.mxu0 0
      %3483 = vmatpush.bf16.msra.mxu0 %v3474
      %3484 = vmatmul.bf16.gmra.mxu0 %v3261
      %v3485 = vpop.f32.mrf.mxu0
      %v3486 = vadd.f32 0.0, %v3485
      %v3487 = vpop.f32.mrf.mxu0
      %v3488 = vadd.f32 0.0, %v3487
      %3489 = vmatmul.bf16.gmra.mxu0 %v3264
      %v3490 = vpop.f32.mrf.mxu0
      %v3491 = vadd.f32 0.0, %v3490
      %v3492 = vpop.f32.mrf.mxu0
      %v3493 = vadd.f32 0.0, %v3492
      %3494 = vmatmul.bf16.gmra.mxu0 %v3267
      %v3495 = vpop.f32.mrf.mxu0
      %v3496 = vadd.f32 0.0, %v3495
      %v3497 = vpop.f32.mrf.mxu0
      %v3498 = vadd.f32 0.0, %v3497
      %3499 = vmatmul.bf16.gmra.mxu0 %v3270
      %v3500 = vpop.f32.mrf.mxu0
      %v3501 = vadd.f32 0.0, %v3500
      %v3502 = vpop.f32.mrf.mxu0
      %v3503 = vadd.f32 0.0, %v3502
      %3504 = vmatmul.bf16.gmra.mxu0 %v3273
      %v3505 = vpop.f32.mrf.mxu0
      %v3506 = vadd.f32 0.0, %v3505
      %v3507 = vpop.f32.mrf.mxu0
      %v3508 = vadd.f32 0.0, %v3507
      %3509 = vmatmul.bf16.gmra.mxu0 %v3276
      %v3510 = vpop.f32.mrf.mxu0
      %v3511 = vadd.f32 0.0, %v3510
      %v3512 = vpop.f32.mrf.mxu0
      %v3513 = vadd.f32 0.0, %v3512
      %3514 = vmatmul.bf16.gmra.mxu0 %v3279
      %v3515 = vpop.f32.mrf.mxu0
      %v3516 = vadd.f32 0.0, %v3515
      %v3517 = vpop.f32.mrf.mxu0
      %v3518 = vadd.f32 0.0, %v3517
      %3519 = vmatmul.bf16.gmra.mxu0 %v3282
      %v3520 = vpop.f32.mrf.mxu0
      %v3521 = vadd.f32 0.0, %v3520
      %v3522 = vpop.f32.mrf.mxu0
      %v3523 = vadd.f32 0.0, %v3522
      %3524 = vmatmul.bf16.gmra.mxu0 %v3285
      %v3525 = vpop.f32.mrf.mxu0
      %v3526 = vadd.f32 0.0, %v3525
      %v3527 = vpop.f32.mrf.mxu0
      %v3528 = vadd.f32 0.0, %v3527
      %3529 = vmatmul.bf16.gmra.mxu0 %v3288
      %v3530 = vpop.f32.mrf.mxu0
      %v3531 = vadd.f32 0.0, %v3530
      %v3532 = vpop.f32.mrf.mxu0
      %v3533 = vadd.f32 0.0, %v3532
      %3534 = vmatmul.bf16.gmra.mxu0 %v3291
      %v3535 = vpop.f32.mrf.mxu0
      %v3536 = vadd.f32 0.0, %v3535
      %v3537 = vpop.f32.mrf.mxu0
      %v3538 = vadd.f32 0.0, %v3537
      %3539 = vmatmul.bf16.gmra.mxu0 %v3294
      %v3540 = vpop.f32.mrf.mxu0
      %v3541 = vadd.f32 0.0, %v3540
      %v3542 = vpop.f32.mrf.mxu0
      %v3543 = vadd.f32 0.0, %v3542
      %3544 = vmatmul.bf16.gmra.mxu0 %v3297
      %v3545 = vpop.f32.mrf.mxu0
      %v3546 = vadd.f32 0.0, %v3545
      %v3547 = vpop.f32.mrf.mxu0
      %v3548 = vadd.f32 0.0, %v3547
      %3549 = vmatmul.bf16.gmra.mxu0 %v3300
      %v3550 = vpop.f32.mrf.mxu0
      %v3551 = vadd.f32 0.0, %v3550
      %v3552 = vpop.f32.mrf.mxu0
      %v3553 = vadd.f32 0.0, %v3552
      %3554 = vmatmul.bf16.gmra.mxu0 %v3303
      %v3555 = vpop.f32.mrf.mxu0
      %v3556 = vadd.f32 0.0, %v3555
      %v3557 = vpop.f32.mrf.mxu0
      %v3558 = vadd.f32 0.0, %v3557
      %3559 = vmatmul.bf16.gmra.mxu0 %v3306
      %v3560 = vpop.f32.mrf.mxu0
      %v3561 = vadd.f32 0.0, %v3560
      %v3562 = vpop.f32.mrf.mxu0
      %v3563 = vadd.f32 0.0, %v3562
      %3564 = vmatmul.bf16.gmra.mxu0 %v3309
      %v3565 = vpop.f32.mrf.mxu0
      %v3566 = vadd.f32 0.0, %v3565
      %v3567 = vpop.f32.mrf.mxu0
      %v3568 = vadd.f32 0.0, %v3567
      %3569 = vmatmul.bf16.gmra.mxu0 %v3312
      %v3570 = vpop.f32.mrf.mxu0
      %v3571 = vadd.f32 0.0, %v3570
      %v3572 = vpop.f32.mrf.mxu0
      %v3573 = vadd.f32 0.0, %v3572
      %3574 = vmatmul.bf16.gmra.mxu0 %v3315
      %v3575 = vpop.f32.mrf.mxu0
      %v3576 = vadd.f32 0.0, %v3575
      %v3577 = vpop.f32.mrf.mxu0
      %v3578 = vadd.f32 0.0, %v3577
      %3579 = vmatmul.bf16.gmra.mxu0 %v3318
      %v3580 = vpop.f32.mrf.mxu0
      %v3581 = vadd.f32 0.0, %v3580
      %v3582 = vpop.f32.mrf.mxu0
      %v3583 = vadd.f32 0.0, %v3582
      %3584 = vmatmul.bf16.gmra.mxu0 %v3321
      %v3585 = vpop.f32.mrf.mxu0
      %v3586 = vadd.f32 0.0, %v3585
      %v3587 = vpop.f32.mrf.mxu0
      %v3588 = vadd.f32 0.0, %v3587
      %3589 = vmatmul.bf16.gmra.mxu0 %v3324
      %v3590 = vpop.f32.mrf.mxu0
      %v3591 = vadd.f32 0.0, %v3590
      %v3592 = vpop.f32.mrf.mxu0
      %v3593 = vadd.f32 0.0, %v3592
      %3594 = vmatmul.bf16.gmra.mxu0 %v3327
      %v3595 = vpop.f32.mrf.mxu0
      %v3596 = vadd.f32 0.0, %v3595
      %v3597 = vpop.f32.mrf.mxu0
      %v3598 = vadd.f32 0.0, %v3597
      %3599 = vmatmul.bf16.gmra.mxu0 %v3330
      %v3600 = vpop.f32.mrf.mxu0
      %v3601 = vadd.f32 0.0, %v3600
      %v3602 = vpop.f32.mrf.mxu0
      %v3603 = vadd.f32 0.0, %v3602
      %3604 = vmatmul.bf16.gmra.mxu0 %v3333
      %v3605 = vpop.f32.mrf.mxu0
      %v3606 = vadd.f32 0.0, %v3605
      %v3607 = vpop.f32.mrf.mxu0
      %v3608 = vadd.f32 0.0, %v3607
      %3609 = vmatmul.bf16.gmra.mxu0 %v3336
      %v3610 = vpop.f32.mrf.mxu0
      %v3611 = vadd.f32 0.0, %v3610
      %v3612 = vpop.f32.mrf.mxu0
      %v3613 = vadd.f32 0.0, %v3612
      %3614 = vmatmul.bf16.gmra.mxu0 %v3339
      %v3615 = vpop.f32.mrf.mxu0
      %v3616 = vadd.f32 0.0, %v3615
      %v3617 = vpop.f32.mrf.mxu0
      %v3618 = vadd.f32 0.0, %v3617
      %3619 = vmatmul.bf16.gmra.mxu0 %v3342
      %v3620 = vpop.f32.mrf.mxu0
      %v3621 = vadd.f32 0.0, %v3620
      %v3622 = vpop.f32.mrf.mxu0
      %v3623 = vadd.f32 0.0, %v3622
      %3624 = vmatmul.bf16.gmra.mxu0 %v3345
      %v3625 = vpop.f32.mrf.mxu0
      %v3626 = vadd.f32 0.0, %v3625
      %v3627 = vpop.f32.mrf.mxu0
      %v3628 = vadd.f32 0.0, %v3627
      %3629 = vmatmul.bf16.gmra.mxu0 %v3348
      %v3630 = vpop.f32.mrf.mxu0
      %v3631 = vadd.f32 0.0, %v3630
      %v3632 = vpop.f32.mrf.mxu0
      %v3633 = vadd.f32 0.0, %v3632
      %3634 = vmatmul.bf16.gmra.mxu0 %v3351
      %v3635 = vpop.f32.mrf.mxu0
      %v3636 = vadd.f32 0.0, %v3635
      %v3637 = vpop.f32.mrf.mxu0
      %v3638 = vadd.f32 0.0, %v3637
      %3639 = vmatmul.bf16.gmra.mxu0 %v3354
      %v3640 = vpop.f32.mrf.mxu0
      %v3641 = vadd.f32 0.0, %v3640
      %v3642 = vpop.f32.mrf.mxu0
      %v3643 = vadd.f32 0.0, %v3642
      %3644 = vmatmul.bf16.gmra.mxu0 %v3357
      %v3645 = vpop.f32.mrf.mxu0
      %v3646 = vadd.f32 0.0, %v3645
      %v3647 = vpop.f32.mrf.mxu0
      %v3648 = vadd.f32 0.0, %v3647
      %3649 = vmatmul.bf16.gmra.mxu0 %v3360
      %v3650 = vpop.f32.mrf.mxu0
      %v3651 = vadd.f32 0.0, %v3650
      %v3652 = vpop.f32.mrf.mxu0
      %v3653 = vadd.f32 0.0, %v3652
      %3654 = vmatmul.bf16.gmra.mxu0 %v3363
      %v3655 = vpop.f32.mrf.mxu0
      %v3656 = vadd.f32 0.0, %v3655
      %v3657 = vpop.f32.mrf.mxu0
      %v3658 = vadd.f32 0.0, %v3657
      %3659 = vmatmul.bf16.gmra.mxu0 %v3366
      %v3660 = vpop.f32.mrf.mxu0
      %v3661 = vadd.f32 0.0, %v3660
      %v3662 = vpop.f32.mrf.mxu0
      %v3663 = vadd.f32 0.0, %v3662
      %3664 = vmatmul.bf16.gmra.mxu0 %v3369
      %v3665 = vpop.f32.mrf.mxu0
      %v3666 = vadd.f32 0.0, %v3665
      %v3667 = vpop.f32.mrf.mxu0
      %v3668 = vadd.f32 0.0, %v3667
      %3669 = vmatmul.bf16.gmra.mxu0 %v3372
      %v3670 = vpop.f32.mrf.mxu0
      %v3671 = vadd.f32 0.0, %v3670
      %v3672 = vpop.f32.mrf.mxu0
      %v3673 = vadd.f32 0.0, %v3672
      %3674 = vmatmul.bf16.gmra.mxu0 %v3375
      %v3675 = vpop.f32.mrf.mxu0
      %v3676 = vadd.f32 0.0, %v3675
      %v3677 = vpop.f32.mrf.mxu0
      %v3678 = vadd.f32 0.0, %v3677
      %3679 = vmatmul.bf16.gmra.mxu0 %v3378
      %v3680 = vpop.f32.mrf.mxu0
      %v3681 = vadd.f32 0.0, %v3680
      %v3682 = vpop.f32.mrf.mxu0
      %v3683 = vadd.f32 0.0, %v3682
      %3684 = vmatmul.bf16.gmra.mxu0 %v3381
      %v3685 = vpop.f32.mrf.mxu0
      %v3686 = vadd.f32 0.0, %v3685
      %v3687 = vpop.f32.mrf.mxu0
      %v3688 = vadd.f32 0.0, %v3687
      %3689 = vmatmul.bf16.gmra.mxu0 %v3384
      %v3690 = vpop.f32.mrf.mxu0
      %v3691 = vadd.f32 0.0, %v3690
      %v3692 = vpop.f32.mrf.mxu0
      %v3693 = vadd.f32 0.0, %v3692
      %3694 = vmatmul.bf16.gmra.mxu0 %v3387
      %v3695 = vpop.f32.mrf.mxu0
      %v3696 = vadd.f32 0.0, %v3695
      %v3697 = vpop.f32.mrf.mxu0
      %v3698 = vadd.f32 0.0, %v3697
      %3699 = vmatmul.bf16.gmra.mxu0 %v3390
      %v3700 = vpop.f32.mrf.mxu0
      %v3701 = vadd.f32 0.0, %v3700
      %v3702 = vpop.f32.mrf.mxu0
      %v3703 = vadd.f32 0.0, %v3702
      %3704 = vmatmul.bf16.gmra.mxu0 %v3393
      %v3705 = vpop.f32.mrf.mxu0
      %v3706 = vadd.f32 0.0, %v3705
      %v3707 = vpop.f32.mrf.mxu0
      %v3708 = vadd.f32 0.0, %v3707
      %3709 = vmatmul.bf16.gmra.mxu0 %v3396
      %v3710 = vpop.f32.mrf.mxu0
      %v3711 = vadd.f32 0.0, %v3710
      %v3712 = vpop.f32.mrf.mxu0
      %v3713 = vadd.f32 0.0, %v3712
      %3714 = vmatmul.bf16.gmra.mxu0 %v3399
      %v3715 = vpop.f32.mrf.mxu0
      %v3716 = vadd.f32 0.0, %v3715
      %v3717 = vpop.f32.mrf.mxu0
      %v3718 = vadd.f32 0.0, %v3717
      %3719 = vmatmul.bf16.gmra.mxu0 %v3402
      %v3720 = vpop.f32.mrf.mxu0
      %v3721 = vadd.f32 0.0, %v3720
      %v3722 = vpop.f32.mrf.mxu0
      %v3723 = vadd.f32 0.0, %v3722
      %3724 = vmatmul.bf16.gmra.mxu0 %v3405
      %v3725 = vpop.f32.mrf.mxu0
      %v3726 = vadd.f32 0.0, %v3725
      %v3727 = vpop.f32.mrf.mxu0
      %v3728 = vadd.f32 0.0, %v3727
      %3729 = vmatmul.bf16.gmra.mxu0 %v3408
      %v3730 = vpop.f32.mrf.mxu0
      %v3731 = vadd.f32 0.0, %v3730
      %v3732 = vpop.f32.mrf.mxu0
      %v3733 = vadd.f32 0.0, %v3732
      %3734 = vmatmul.bf16.gmra.mxu0 %v3411
      %v3735 = vpop.f32.mrf.mxu0
      %v3736 = vadd.f32 0.0, %v3735
      %v3737 = vpop.f32.mrf.mxu0
      %v3738 = vadd.f32 0.0, %v3737
      %3739 = vmatmul.bf16.gmra.mxu0 %v3414
      %v3740 = vpop.f32.mrf.mxu0
      %v3741 = vadd.f32 0.0, %v3740
      %v3742 = vpop.f32.mrf.mxu0
      %v3743 = vadd.f32 0.0, %v3742
      %3744 = vmatmul.bf16.gmra.mxu0 %v3417
      %v3745 = vpop.f32.mrf.mxu0
      %v3746 = vadd.f32 0.0, %v3745
      %v3747 = vpop.f32.mrf.mxu0
      %v3748 = vadd.f32 0.0, %v3747
      %3749 = vmatmul.bf16.gmra.mxu0 %v3420
      %v3750 = vpop.f32.mrf.mxu0
      %v3751 = vadd.f32 0.0, %v3750
      %v3752 = vpop.f32.mrf.mxu0
      %v3753 = vadd.f32 0.0, %v3752
      %3754 = vmatmul.bf16.gmra.mxu0 %v3423
      %v3755 = vpop.f32.mrf.mxu0
      %v3756 = vadd.f32 0.0, %v3755
      %v3757 = vpop.f32.mrf.mxu0
      %v3758 = vadd.f32 0.0, %v3757
      %3759 = vmatmul.bf16.gmra.mxu0 %v3426
      %v3760 = vpop.f32.mrf.mxu0
      %v3761 = vadd.f32 0.0, %v3760
      %v3762 = vpop.f32.mrf.mxu0
      %v3763 = vadd.f32 0.0, %v3762
      %3764 = vmatmul.bf16.gmra.mxu0 %v3429
      %v3765 = vpop.f32.mrf.mxu0
      %v3766 = vadd.f32 0.0, %v3765
      %v3767 = vpop.f32.mrf.mxu0
      %v3768 = vadd.f32 0.0, %v3767
      %3769 = vmatmul.bf16.gmra.mxu0 %v3432
      %v3770 = vpop.f32.mrf.mxu0
      %v3771 = vadd.f32 0.0, %v3770
      %v3772 = vpop.f32.mrf.mxu0
      %v3773 = vadd.f32 0.0, %v3772
      %3774 = vmatmul.bf16.gmra.mxu0 %v3435
      %v3775 = vpop.f32.mrf.mxu0
      %v3776 = vadd.f32 0.0, %v3775
      %v3777 = vpop.f32.mrf.mxu0
      %v3778 = vadd.f32 0.0, %v3777
      %3779 = vmatmul.bf16.gmra.mxu0 %v3438
      %v3780 = vpop.f32.mrf.mxu0
      %v3781 = vadd.f32 0.0, %v3780
      %v3782 = vpop.f32.mrf.mxu0
      %v3783 = vadd.f32 0.0, %v3782
      %3784 = vmatmul.bf16.gmra.mxu0 %v3441
      %v3785 = vpop.f32.mrf.mxu0
      %v3786 = vadd.f32 0.0, %v3785
      %v3787 = vpop.f32.mrf.mxu0
      %v3788 = vadd.f32 0.0, %v3787
      %3789 = vmatmul.bf16.gmra.mxu0 %v3444
      %v3790 = vpop.f32.mrf.mxu0
      %v3791 = vadd.f32 0.0, %v3790
      %v3792 = vpop.f32.mrf.mxu0
      %v3793 = vadd.f32 0.0, %v3792
      %3794 = vmatmul.bf16.gmra.mxu0 %v3447
      %v3795 = vpop.f32.mrf.mxu0
      %v3796 = vadd.f32 0.0, %v3795
      %v3797 = vpop.f32.mrf.mxu0
      %v3798 = vadd.f32 0.0, %v3797
      %3799 = vmatmul.bf16.gmra.mxu0 %v3450
      %v3800 = vpop.f32.mrf.mxu0
      %v3801 = vadd.f32 0.0, %v3800
      %v3802 = vpop.f32.mrf.mxu0
      %v3803 = vadd.f32 0.0, %v3802
      %3804 = vmatmul.bf16.gmra.mxu0 %v3453
      %v3805 = vpop.f32.mrf.mxu0
      %v3806 = vadd.f32 0.0, %v3805
      %v3807 = vpop.f32.mrf.mxu0
      %v3808 = vadd.f32 0.0, %v3807
      %3809 = vmatmul.bf16.gmra.mxu0 %v3456
      %v3810 = vpop.f32.mrf.mxu0
      %v3811 = vadd.f32 0.0, %v3810
      %v3812 = vpop.f32.mrf.mxu0
      %v3813 = vadd.f32 0.0, %v3812
      %3814 = vmatmul.bf16.gmra.mxu0 %v3459
      %v3815 = vpop.f32.mrf.mxu0
      %v3816 = vadd.f32 0.0, %v3815
      %v3817 = vpop.f32.mrf.mxu0
      %v3818 = vadd.f32 0.0, %v3817
      %3819 = vmatmul.bf16.gmra.mxu0 %v3462
      %v3820 = vpop.f32.mrf.mxu0
      %v3821 = vadd.f32 0.0, %v3820
      %v3822 = vpop.f32.mrf.mxu0
      %v3823 = vadd.f32 0.0, %v3822
      %3824 = vmatmul.bf16.gmra.mxu0 %v3465
      %v3825 = vpop.f32.mrf.mxu0
      %v3826 = vadd.f32 0.0, %v3825
      %v3827 = vpop.f32.mrf.mxu0
      %v3828 = vadd.f32 0.0, %v3827
      %3829 = vmatmul.bf16.gmra.mxu0 %v3468
      %v3830 = vpop.f32.mrf.mxu0
      %v3831 = vadd.f32 0.0, %v3830
      %v3832 = vpop.f32.mrf.mxu0
      %v3833 = vadd.f32 0.0, %v3832
      %3834 = vmatmul.bf16.gmra.mxu0 %v3471
      %v3835 = vpop.f32.mrf.mxu0
      %v3836 = vadd.f32 0.0, %v3835
      %v3837 = vpop.f32.mrf.mxu0
      %3838 = vdwg.mxu0
      %v3839 = vadd.f32 %v2818, %v3486
      %v3840 = vadd.f32 %v2819, %v3488
      %v3841 = vadd.f32 %v2820, %v3491
      %v3842 = vadd.f32 %v2821, %v3493
      %v3843 = vadd.f32 %v2822, %v3496
      %v3844 = vadd.f32 %v2823, %v3498
      %v3845 = vadd.f32 %v2824, %v3501
      %v3846 = vadd.f32 %v2825, %v3503
      %v3847 = vadd.f32 %v2826, %v3506
      %v3848 = vadd.f32 %v2827, %v3508
      %v3849 = vadd.f32 %v2828, %v3511
      %v3850 = vadd.f32 %v2829, %v3513
      %v3851 = vadd.f32 %v2830, %v3516
      %v3852 = vadd.f32 %v2831, %v3518
      %v3853 = vadd.f32 %v2832, %v3521
      %v3854 = vadd.f32 %v2833, %v3523
      %v3855 = vadd.f32 %v2834, %v3526
      %v3856 = vadd.f32 %v2835, %v3528
      %v3857 = vadd.f32 %v2836, %v3531
      %v3858 = vadd.f32 %v2837, %v3533
      %v3859 = vadd.f32 %v2838, %v3536
      %v3860 = vadd.f32 %v2839, %v3538
      %v3861 = vadd.f32 %v2840, %v3541
      %v3862 = vadd.f32 %v2841, %v3543
      %v3863 = vadd.f32 %v2842, %v3546
      %v3864 = vadd.f32 %v2843, %v3548
      %v3865 = vadd.f32 %v2844, %v3551
      %v3866 = vadd.f32 %v2845, %v3553
      %v3867 = vadd.f32 %v2846, %v3556
      %v3868 = vadd.f32 %v2847, %v3558
      %v3869 = vadd.f32 %v2848, %v3561
      %v3870 = vadd.f32 %v2849, %v3563
      %v3871 = vadd.f32 %v2850, %v3566
      %v3872 = vadd.f32 %v2851, %v3568
      %v3873 = vadd.f32 %v2852, %v3571
      %v3874 = vadd.f32 %v2853, %v3573
      %v3875 = vadd.f32 %v2854, %v3576
      %v3876 = vadd.f32 %v2855, %v3578
      %v3877 = vadd.f32 %v2856, %v3581
      %v3878 = vadd.f32 %v2857, %v3583
      %v3879 = vadd.f32 %v2858, %v3586
      %v3880 = vadd.f32 %v2859, %v3588
      %v3881 = vadd.f32 %v2860, %v3591
      %v3882 = vadd.f32 %v2861, %v3593
      %v3883 = vadd.f32 %v2862, %v3596
      %v3884 = vadd.f32 %v2863, %v3598
      %v3885 = vadd.f32 %v2864, %v3601
      %v3886 = vadd.f32 %v2865, %v3603
      %v3887 = vadd.f32 %v2866, %v3606
      %v3888 = vadd.f32 %v2867, %v3608
      %v3889 = vadd.f32 %v2868, %v3611
      %v3890 = vadd.f32 %v2869, %v3613
      %v3891 = vadd.f32 %v2870, %v3616
      %v3892 = vadd.f32 %v2871, %v3618
      %v3893 = vadd.f32 %v2872, %v3621
      %v3894 = vadd.f32 %v2873, %v3623
      %v3895 = vadd.f32 %v2874, %v3626
      %v3896 = vadd.f32 %v2875, %v3628
      %v3897 = vadd.f32 %v2876, %v3631
      %v3898 = vadd.f32 %v2877, %v3633
      %v3899 = vadd.f32 %v2878, %v3636
      %v3900 = vadd.f32 %v2879, %v3638
      %v3901 = vadd.f32 %v2880, %v3641
      %v3902 = vadd.f32 %v2881, %v3643
      %v3903 = vadd.f32 %v2882, %v3646
      %v3904 = vadd.f32 %v2883, %v3648
      %v3905 = vadd.f32 %v2884, %v3651
      %v3906 = vadd.f32 %v2885, %v3653
      %v3907 = vadd.f32 %v2886, %v3656
      %v3908 = vadd.f32 %v2887, %v3658
      %v3909 = vadd.f32 %v2888, %v3661
      %v3910 = vadd.f32 %v2889, %v3663
      %v3911 = vadd.f32 %v2890, %v3666
      %v3912 = vadd.f32 %v2891, %v3668
      %v3913 = vadd.f32 %v2892, %v3671
      %v3914 = vadd.f32 %v2893, %v3673
      %v3915 = vadd.f32 %v2894, %v3676
      %v3916 = vadd.f32 %v2895, %v3678
      %v3917 = vadd.f32 %v2896, %v3681
      %v3918 = vadd.f32 %v2897, %v3683
      %v3919 = vadd.f32 %v2898, %v3686
      %v3920 = vadd.f32 %v2899, %v3688
      %v3921 = vadd.f32 %v2900, %v3691
      %v3922 = vadd.f32 %v2901, %v3693
      %v3923 = vadd.f32 %v2902, %v3696
      %v3924 = vadd.f32 %v2903, %v3698
      %v3925 = vadd.f32 %v2904, %v3701
      %v3926 = vadd.f32 %v2905, %v3703
      %v3927 = vadd.f32 %v2906, %v3706
      %v3928 = vadd.f32 %v2907, %v3708
      %v3929 = vadd.f32 %v2908, %v3711
      %v3930 = vadd.f32 %v2909, %v3713
      %v3931 = vadd.f32 %v2910, %v3716
      %v3932 = vadd.f32 %v2911, %v3718
      %v3933 = vadd.f32 %v2912, %v3721
      %v3934 = vadd.f32 %v2913, %v3723
      %v3935 = vadd.f32 %v2914, %v3726
      %v3936 = vadd.f32 %v2915, %v3728
      %v3937 = vadd.f32 %v2916, %v3731
      %v3938 = vadd.f32 %v2917, %v3733
      %v3939 = vadd.f32 %v2918, %v3736
      %v3940 = vadd.f32 %v2919, %v3738
      %v3941 = vadd.f32 %v2920, %v3741
      %v3942 = vadd.f32 %v2921, %v3743
      %v3943 = vadd.f32 %v2922, %v3746
      %v3944 = vadd.f32 %v2923, %v3748
      %v3945 = vadd.f32 %v2924, %v3751
      %v3946 = vadd.f32 %v2925, %v3753
      %v3947 = vadd.f32 %v2926, %v3756
      %v3948 = vadd.f32 %v2927, %v3758
      %v3949 = vadd.f32 %v2928, %v3761
      %v3950 = vadd.f32 %v2929, %v3763
      %v3951 = vadd.f32 %v2930, %v3766
      %v3952 = vadd.f32 %v2931, %v3768
      %v3953 = vadd.f32 %v2932, %v3771
      %v3954 = vadd.f32 %v2933, %v3773
      %v3955 = vadd.f32 %v2934, %v3776
      %v3956 = vadd.f32 %v2935, %v3778
      %v3957 = vadd.f32 %v2936, %v3781
      %v3958 = vadd.f32 %v2937, %v3783
      %v3959 = vadd.f32 %v2938, %v3786
      %v3960 = vadd.f32 %v2939, %v3788
      %v3961 = vadd.f32 %v2940, %v3791
      %v3962 = vadd.f32 %v2941, %v3793
      %v3963 = vadd.f32 %v2942, %v3796
      %v3964 = vadd.f32 %v2943, %v3798
      %v3965 = vadd.f32 %v2944, %v3801
      %v3966 = vadd.f32 %v2945, %v3803
      %v3967 = vadd.f32 %v2946, %v3806
      %v3968 = vadd.f32 %v2947, %v3808
      %v3969 = vadd.f32 %v2948, %v3811
      %v3970 = vadd.f32 %v2949, %v3813
      %v3971 = vadd.f32 %v2950, %v3816
      %v3972 = vadd.f32 %v2951, %v3818
      %v3973 = vadd.f32 %v2952, %v3821
      %v3974 = vadd.f32 %v2953, %v3823
      %v3975 = vadd.f32 %v2954, %v3826
      %v3976 = vadd.f32 %v2955, %v3828
      %v3977 = vadd.f32 %v2956, %v3831
      %v3978 = vadd.f32 %v2957, %v3833
      %v3979 = vadd.f32 %v2958, %v3836
      %v3980 = vtanh.pop %v3839
      %v3981 = vtanh.pop %v3840
      %v3982 = vtanh.pop %v3841
      %v3983 = vtanh.pop %v3842
      %v3984 = vtanh.pop %v3843
      %v3985 = vtanh.pop %v3844
      %v3986 = vtanh.pop %v3845
      %v3987 = vtanh.pop %v3846
      %v3988 = vtanh.pop %v3847
      %v3989 = vtanh.pop %v3848
      %v3990 = vtanh.pop %v3849
      %v3991 = vtanh.pop %v3850
      %v3992 = vtanh.pop %v3851
      %v3993 = vtanh.pop %v3852
      %v3994 = vtanh.pop %v3853
      %v3995 = vtanh.pop %v3854
      %v3996 = vtanh.pop %v3855
      %v3997 = vtanh.pop %v3856
      %v3998 = vtanh.pop %v3857
      %v3999 = vtanh.pop %v3858
      %v4000 = vtanh.pop %v3859
      %v4001 = vtanh.pop %v3860
      %v4002 = vtanh.pop %v3861
      %v4003 = vtanh.pop %v3862
      %v4004 = vtanh.pop %v3863
      %v4005 = vtanh.pop %v3864
      %v4006 = vtanh.pop %v3865
      %v4007 = vtanh.pop %v3866
      %v4008 = vtanh.pop %v3867
      %v4009 = vtanh.pop %v3868
      %v4010 = vtanh.pop %v3869
      %v4011 = vtanh.pop %v3870
      %v4012 = vtanh.pop %v3871
      %v4013 = vtanh.pop %v3872
      %v4014 = vtanh.pop %v3873
      %v4015 = vtanh.pop %v3874
      %v4016 = vtanh.pop %v3875
      %v4017 = vtanh.pop %v3876
      %v4018 = vtanh.pop %v3877
      %v4019 = vtanh.pop %v3878
      %v4020 = vtanh.pop %v3879
      %v4021 = vtanh.pop %v3880
      %v4022 = vtanh.pop %v3881
      %v4023 = vtanh.pop %v3882
      %v4024 = vtanh.pop %v3883
      %v4025 = vtanh.pop %v3884
      %v4026 = vtanh.pop %v3885
      %v4027 = vtanh.pop %v3886
      %v4028 = vtanh.pop %v3887
      %v4029 = vtanh.pop %v3888
      %v4030 = vtanh.pop %v3889
      %v4031 = vtanh.pop %v3890
      %v4032 = vtanh.pop %v3891
      %v4033 = vtanh.pop %v3892
      %v4034 = vtanh.pop %v3893
      %v4035 = vtanh.pop %v3894
      %v4036 = vtanh.pop %v3895
      %v4037 = vtanh.pop %v3896
      %v4038 = vtanh.pop %v3897
      %v4039 = vtanh.pop %v3898
      %v4040 = vtanh.pop %v3899
      %v4041 = vtanh.pop %v3900
      %v4042 = vtanh.pop %v3901
      %v4043 = vtanh.pop %v3902
      %v4044 = vtanh.pop %v3903
      %v4045 = vtanh.pop %v3904
      %v4046 = vtanh.pop %v3905
      %v4047 = vtanh.pop %v3906
      %v4048 = vtanh.pop %v3907
      %v4049 = vtanh.pop %v3908
      %v4050 = vtanh.pop %v3909
      %v4051 = vtanh.pop %v3910
      %v4052 = vtanh.pop %v3911
      %v4053 = vtanh.pop %v3912
      %v4054 = vtanh.pop %v3913
      %v4055 = vtanh.pop %v3914
      %v4056 = vtanh.pop %v3915
      %v4057 = vtanh.pop %v3916
      %v4058 = vtanh.pop %v3917
      %v4059 = vtanh.pop %v3918
      %v4060 = vtanh.pop %v3919
      %v4061 = vtanh.pop %v3920
      %v4062 = vtanh.pop %v3921
      %v4063 = vtanh.pop %v3922
      %v4064 = vtanh.pop %v3923
      %v4065 = vtanh.pop %v3924
      %v4066 = vtanh.pop %v3925
      %v4067 = vtanh.pop %v3926
      %v4068 = vtanh.pop %v3927
      %v4069 = vtanh.pop %v3928
      %v4070 = vtanh.pop %v3929
      %v4071 = vtanh.pop %v3930
      %v4072 = vtanh.pop %v3931
      %v4073 = vtanh.pop %v3932
      %v4074 = vtanh.pop %v3933
      %v4075 = vtanh.pop %v3934
      %v4076 = vtanh.pop %v3935
      %v4077 = vtanh.pop %v3936
      %v4078 = vtanh.pop %v3937
      %v4079 = vtanh.pop %v3938
      %v4080 = vtanh.pop %v3939
      %v4081 = vtanh.pop %v3940
      %v4082 = vtanh.pop %v3941
      %v4083 = vtanh.pop %v3942
      %v4084 = vtanh.pop %v3943
      %v4085 = vtanh.pop %v3944
      %v4086 = vtanh.pop %v3945
      %v4087 = vtanh.pop %v3946
      %v4088 = vtanh.pop %v3947
      %v4089 = vtanh.pop %v3948
      %v4090 = vtanh.pop %v3949
      %v4091 = vtanh.pop %v3950
      %v4092 = vtanh.pop %v3951
      %v4093 = vtanh.pop %v3952
      %v4094 = vtanh.pop %v3953
      %v4095 = vtanh.pop %v3954
      %v4096 = vtanh.pop %v3955
      %v4097 = vtanh.pop %v3956
      %v4098 = vtanh.pop %v3957
      %v4099 = vtanh.pop %v3958
      %v4100 = vtanh.pop %v3959
      %v4101 = vtanh.pop %v3960
      %v4102 = vtanh.pop %v3961
      %v4103 = vtanh.pop %v3962
      %v4104 = vtanh.pop %v3963
      %v4105 = vtanh.pop %v3964
      %v4106 = vtanh.pop %v3965
      %v4107 = vtanh.pop %v3966
      %v4108 = vtanh.pop %v3967
      %v4109 = vtanh.pop %v3968
      %v4110 = vtanh.pop %v3969
      %v4111 = vtanh.pop %v3970
      %v4112 = vtanh.pop %v3971
      %v4113 = vtanh.pop %v3972
      %v4114 = vtanh.pop %v3973
      %v4115 = vtanh.pop %v3974
      %v4116 = vtanh.pop %v3975
      %v4117 = vtanh.pop %v3976
      %v4118 = vtanh.pop %v3977
      %v4119 = vtanh.pop %v3978
      %v4120 = vtanh.pop %v3979
      %4121 = vst [vmem:[%s143] sm:$0xff] %v3980
      %4122 = vst [vmem:[%s143 + $0x8] sm:$0xff] %v3981
      %4123 = vst [vmem:[%s143 + $0x10] sm:$0xff] %v3982
      %4124 = vst [vmem:[%s143 + $0x18] sm:$0xff] %v3983
      %4125 = vst [vmem:[%s143 + $0x20] sm:$0xff] %v3984
      %4126 = vst [vmem:[%s143 + $0x28] sm:$0xff] %v3985
      %4127 = vst [vmem:[%s143 + $0x30] sm:$0xff] %v3986
      %4128 = vst [vmem:[%s143 + $0x38] sm:$0xff] %v3987
      %4129 = vst [vmem:[%s143 + $0x40] sm:$0xff] %v3988
      %4130 = vst [vmem:[%s143 + $0x48] sm:$0xff] %v3989
      %4131 = vst [vmem:[%s143 + $0x50] sm:$0xff] %v3990
      %4132 = vst [vmem:[%s143 + $0x58] sm:$0xff] %v3991
      %4133 = vst [vmem:[%s143 + $0x60] sm:$0xff] %v3992
      %4134 = vst [vmem:[%s143 + $0x68] sm:$0xff] %v3993
      %4135 = vst [vmem:[%s143 + $0x70] sm:$0xff] %v3994
      %4136 = vst [vmem:[%s143 + $0x78] sm:$0xff] %v3995
      %4137 = vst [vmem:[%s143 + $0x80] sm:$0xff] %v3996
      %4138 = vst [vmem:[%s143 + $0x88] sm:$0xff] %v3997
      %4139 = vst [vmem:[%s143 + $0x90] sm:$0xff] %v3998
      %4140 = vst [vmem:[%s143 + $0x98] sm:$0xff] %v3999
      %4141 = vst [vmem:[%s143 + $0xa0] sm:$0xff] %v4000
      %4142 = vst [vmem:[%s143 + $0xa8] sm:$0xff] %v4001
      %4143 = vst [vmem:[%s143 + $0xb0] sm:$0xff] %v4002
      %4144 = vst [vmem:[%s143 + $0xb8] sm:$0xff] %v4003
      %4145 = vst [vmem:[%s143 + $0xc0] sm:$0xff] %v4004
      %4146 = vst [vmem:[%s143 + $0xc8] sm:$0xff] %v4005
      %4147 = vst [vmem:[%s143 + $0xd0] sm:$0xff] %v4006
      %4148 = vst [vmem:[%s143 + $0xd8] sm:$0xff] %v4007
      %4149 = vst [vmem:[%s143 + $0xe0] sm:$0xff] %v4008
      %4150 = vst [vmem:[%s143 + $0xe8] sm:$0xff] %v4009
      %4151 = vst [vmem:[%s143 + $0xf0] sm:$0xff] %v4010
      %4152 = vst [vmem:[%s143 + $0xf8] sm:$0xff] %v4011
      %4153 = vst [vmem:[%s143 + $0x100] sm:$0xff] %v4012
      %4154 = vst [vmem:[%s143 + $0x108] sm:$0xff] %v4013
      %4155 = vst [vmem:[%s143 + $0x110] sm:$0xff] %v4014
      %4156 = vst [vmem:[%s143 + $0x118] sm:$0xff] %v4015
      %4157 = vst [vmem:[%s143 + $0x120] sm:$0xff] %v4016
      %4158 = vst [vmem:[%s143 + $0x128] sm:$0xff] %v4017
      %4159 = vst [vmem:[%s143 + $0x130] sm:$0xff] %v4018
      %4160 = vst [vmem:[%s143 + $0x138] sm:$0xff] %v4019
      %4161 = vst [vmem:[%s143 + $0x140] sm:$0xff] %v4020
      %4162 = vst [vmem:[%s143 + $0x148] sm:$0xff] %v4021
      %4163 = vst [vmem:[%s143 + $0x150] sm:$0xff] %v4022
      %4164 = vst [vmem:[%s143 + $0x158] sm:$0xff] %v4023
      %4165 = vst [vmem:[%s143 + $0x160] sm:$0xff] %v4024
      %4166 = vst [vmem:[%s143 + $0x168] sm:$0xff] %v4025
      %4167 = vst [vmem:[%s143 + $0x170] sm:$0xff] %v4026
      %4168 = vst [vmem:[%s143 + $0x178] sm:$0xff] %v4027
      %4169 = vst [vmem:[%s143 + $0x180] sm:$0xff] %v4028
      %4170 = vst [vmem:[%s143 + $0x188] sm:$0xff] %v4029
      %4171 = vst [vmem:[%s143 + $0x190] sm:$0xff] %v4030
      %4172 = vst [vmem:[%s143 + $0x198] sm:$0xff] %v4031
      %4173 = vst [vmem:[%s143 + $0x1a0] sm:$0xff] %v4032
      %4174 = vst [vmem:[%s143 + $0x1a8] sm:$0xff] %v4033
      %4175 = vst [vmem:[%s143 + $0x1b0] sm:$0xff] %v4034
      %4176 = vst [vmem:[%s143 + $0x1b8] sm:$0xff] %v4035
      %4177 = vst [vmem:[%s143 + $0x1c0] sm:$0xff] %v4036
      %4178 = vst [vmem:[%s143 + $0x1c8] sm:$0xff] %v4037
      %4179 = vst [vmem:[%s143 + $0x1d0] sm:$0xff] %v4038
      %4180 = vst [vmem:[%s143 + $0x1d8] sm:$0xff] %v4039
      %4181 = vst [vmem:[%s143 + $0x1e0] sm:$0xff] %v4040
      %4182 = vst [vmem:[%s143 + $0x1e8] sm:$0xff] %v4041
      %4183 = vst [vmem:[%s143 + $0x1f0] sm:$0xff] %v4042
      %4184 = vst [vmem:[%s143 + $0x1f8] sm:$0xff] %v4043
      %4185 = vst [vmem:[%s143 + $0x200] sm:$0xff] %v4044
      %4186 = vst [vmem:[%s143 + $0x208] sm:$0xff] %v4045
      %4187 = vst [vmem:[%s143 + $0x210] sm:$0xff] %v4046
      %4188 = vst [vmem:[%s143 + $0x218] sm:$0xff] %v4047
      %4189 = vst [vmem:[%s143 + $0x220] sm:$0xff] %v4048
      %4190 = vst [vmem:[%s143 + $0x228] sm:$0xff] %v4049
      %4191 = vst [vmem:[%s143 + $0x230] sm:$0xff] %v4050
      %4192 = vst [vmem:[%s143 + $0x238] sm:$0xff] %v4051
      %4193 = vst [vmem:[%s143 + $0x240] sm:$0xff] %v4052
      %4194 = vst [vmem:[%s143 + $0x248] sm:$0xff] %v4053
      %4195 = vst [vmem:[%s143 + $0x250] sm:$0xff] %v4054
      %4196 = vst [vmem:[%s143 + $0x258] sm:$0xff] %v4055
      %4197 = vst [vmem:[%s143 + $0x260] sm:$0xff] %v4056
      %4198 = vst [vmem:[%s143 + $0x268] sm:$0xff] %v4057
      %4199 = vst [vmem:[%s143 + $0x270] sm:$0xff] %v4058
      %4200 = vst [vmem:[%s143 + $0x278] sm:$0xff] %v4059
      %4201 = vst [vmem:[%s143 + $0x280] sm:$0xff] %v4060
      %4202 = vst [vmem:[%s143 + $0x288] sm:$0xff] %v4061
      %4203 = vst [vmem:[%s143 + $0x290] sm:$0xff] %v4062
      %4204 = vst [vmem:[%s143 + $0x298] sm:$0xff] %v4063
      %4205 = vst [vmem:[%s143 + $0x2a0] sm:$0xff] %v4064
      %4206 = vst [vmem:[%s143 + $0x2a8] sm:$0xff] %v4065
      %4207 = vst [vmem:[%s143 + $0x2b0] sm:$0xff] %v4066
      %4208 = vst [vmem:[%s143 + $0x2b8] sm:$0xff] %v4067
      %4209 = vst [vmem:[%s143 + $0x2c0] sm:$0xff] %v4068
      %4210 = vst [vmem:[%s143 + $0x2c8] sm:$0xff] %v4069
      %4211 = vst [vmem:[%s143 + $0x2d0] sm:$0xff] %v4070
      %4212 = vst [vmem:[%s143 + $0x2d8] sm:$0xff] %v4071
      %4213 = vst [vmem:[%s143 + $0x2e0] sm:$0xff] %v4072
      %4214 = vst [vmem:[%s143 + $0x2e8] sm:$0xff] %v4073
      %4215 = vst [vmem:[%s143 + $0x2f0] sm:$0xff] %v4074
      %4216 = vst [vmem:[%s143 + $0x2f8] sm:$0xff] %v4075
      %4217 = vst [vmem:[%s143 + $0x300] sm:$0xff] %v4076
      %4218 = vst [vmem:[%s143 + $0x308] sm:$0xff] %v4077
      %4219 = vst [vmem:[%s143 + $0x310] sm:$0xff] %v4078
      %4220 = vst [vmem:[%s143 + $0x318] sm:$0xff] %v4079
      %4221 = vst [vmem:[%s143 + $0x320] sm:$0xff] %v4080
      %4222 = vst [vmem:[%s143 + $0x328] sm:$0xff] %v4081
      %4223 = vst [vmem:[%s143 + $0x330] sm:$0xff] %v4082
      %4224 = vst [vmem:[%s143 + $0x338] sm:$0xff] %v4083
      %4225 = vst [vmem:[%s143 + $0x340] sm:$0xff] %v4084
      %4226 = vst [vmem:[%s143 + $0x348] sm:$0xff] %v4085
      %4227 = vst [vmem:[%s143 + $0x350] sm:$0xff] %v4086
      %4228 = vst [vmem:[%s143 + $0x358] sm:$0xff] %v4087
      %4229 = vst [vmem:[%s143 + $0x360] sm:$0xff] %v4088
      %4230 = vst [vmem:[%s143 + $0x368] sm:$0xff] %v4089
      %4231 = vst [vmem:[%s143 + $0x370] sm:$0xff] %v4090
      %4232 = vst [vmem:[%s143 + $0x378] sm:$0xff] %v4091
      %4233 = vst [vmem:[%s143 + $0x380] sm:$0xff] %v4092
      %4234 = vst [vmem:[%s143 + $0x388] sm:$0xff] %v4093
      %4235 = vst [vmem:[%s143 + $0x390] sm:$0xff] %v4094
      %4236 = vst [vmem:[%s143 + $0x398] sm:$0xff] %v4095
      %4237 = vst [vmem:[%s143 + $0x3a0] sm:$0xff] %v4096
      %4238 = vst [vmem:[%s143 + $0x3a8] sm:$0xff] %v4097
      %4239 = vst [vmem:[%s143 + $0x3b0] sm:$0xff] %v4098
      %4240 = vst [vmem:[%s143 + $0x3b8] sm:$0xff] %v4099
      %4241 = vst [vmem:[%s143 + $0x3c0] sm:$0xff] %v4100
      %4242 = vst [vmem:[%s143 + $0x3c8] sm:$0xff] %v4101
      %4243 = vst [vmem:[%s143 + $0x3d0] sm:$0xff] %v4102
      %4244 = vst [vmem:[%s143 + $0x3d8] sm:$0xff] %v4103
      %4245 = vst [vmem:[%s143 + $0x3e0] sm:$0xff] %v4104
      %4246 = vst [vmem:[%s143 + $0x3e8] sm:$0xff] %v4105
      %4247 = vst [vmem:[%s143 + $0x3f0] sm:$0xff] %v4106
      %4248 = vst [vmem:[%s143 + $0x3f8] sm:$0xff] %v4107
      %4249 = vst [vmem:[%s143 + $0x400] sm:$0xff] %v4108
      %4250 = vst [vmem:[%s143 + $0x408] sm:$0xff] %v4109
      %4251 = vst [vmem:[%s143 + $0x410] sm:$0xff] %v4110
      %4252 = vst [vmem:[%s143 + $0x418] sm:$0xff] %v4111
      %4253 = vst [vmem:[%s143 + $0x420] sm:$0xff] %v4112
      %4254 = vst [vmem:[%s143 + $0x428] sm:$0xff] %v4113
      %4255 = vst [vmem:[%s143 + $0x430] sm:$0xff] %v4114
      %4256 = vst [vmem:[%s143 + $0x438] sm:$0xff] %v4115
      %4257 = vst [vmem:[%s143 + $0x440] sm:$0xff] %v4116
      %4258 = vst [vmem:[%s143 + $0x448] sm:$0xff] %v4117
      %4259 = vst [vmem:[%s143 + $0x450] sm:$0xff] %v4118
      %4260 = vst [vmem:[%s143 + $0x458] sm:$0xff] %v4119
      %4261 = vst [vmem:[%s143 + $0x460] sm:$0x3] %v4120
      %p4262 = scmp.lt.s32.totalorder %s13, 1
      %s4263 = scalar_select %p4262, %s13, 1
      %s4264 = smul.addr %s4263, 141
      %s4265 = smul.addr %s4264, 8
      %s4266 = scalar_lea.vmem %s2, %s4265
      // Predicated region
      $region29: #{_lambda_.17} parent=27 // pred_check
        %p4267 = pneg %p78
      $region30: #{_lambda_.17} parent=27 // pred_check_branch
        %4269 = sbr.rel (%p4267) target = $region32
      $region31: #{_lambda_.17} parent=27 // pred_region
        _
      $region32: #{_lambda_.17} parent=27 // pred_fallthru
        _
    $region28: #{_lambda_.17} parent=5 // pred_fallthru
      _
    %p4270 = scmp.le.s32.totalorder 2, %s8
    // Predicated region
    $region33: #{_lambda_.17} parent=5 // pred_check
      %p4271 = pneg %p4270
    $region34: #{_lambda_.17} parent=5 // pred_check_branch
      %4273 = sbr.rel (%p4271) target = $region36
    $region35: #{_lambda_.17} parent=5 // pred_region
      %s4274 = ssub.s32 %s8, 2
      // Predicated region
      $region37: #{_lambda_.17} parent=35 // pred_check
        %p4275 = pneg %p84
      $region38: #{_lambda_.17} parent=35 // pred_check_branch
        %4277 = sbr.rel (%p4275) target = $region40
      $region39: #{_lambda_.17} parent=35 // pred_region
        %p4278 = scmp.lt.s32.totalorder %s14, 1
        %s4279 = scalar_select %p4278, %s14, 1
        %s4280 = smul.addr %s4279, 141
        %s4281 = smul.addr %s4280, 8
        %s4282 = scalar_lea.vmem %s2, %s4281
      $region40: #{_lambda_.17} parent=35 // pred_fallthru
        _
    $region36: #{_lambda_.17} parent=5 // pred_fallthru
      _
  $region6: #{_lambda_.17} parent=0 // loop_footer
    %s12 = sadd.s32 1, %s8
  $region7: #{_lambda_.17} parent=0 // loop_footer_branch
    %7 = sbr.rel target = $region3
  $region8: #{_lambda_.17} parent=0 // loop_exit
    _

</llo_original>
